<compile_context>
chip_gen: v7x
topology: tpu7x:2x2x1
jax: 0.10.0
libtpu: 0.0.40
codegen_flags: <defaults>
</compile_context>

<pallas_src>
import math

import jax
import jax.numpy as jnp
from jax.experimental import pallas as pl
from jax.experimental.pallas import tpu as pltpu


# ----------------------------------------------------------------------------
# In-kernel helpers
# ----------------------------------------------------------------------------
def _erf(z):
    # Abramowitz & Stegun 7.1.26, max abs error ~1.5e-7 (matches exact-GELU semantics).
    a = jnp.abs(z)
    t = 1.0 / (1.0 + 0.3275911 * a)
    poly = t * (0.254829592 + t * (-0.284496736 + t * (1.421413741
               + t * (-1.453152027 + t * 1.061405429))))
    e = 1.0 - poly * jnp.exp(-a * a)
    return jnp.where(z < 0, -e, e)


def _gelu_exact(x):
    return 0.5 * x * (1.0 + _erf(x * 0.7071067811865476))


# ----------------------------------------------------------------------------
# Kernel 1: fused QKV projection + RoPE + attention.  grid = (B, num_q_tiles).
# ----------------------------------------------------------------------------
def _attn_kernel(plm_ref, s_ref, wq_ref, bq_ref, wkv_ref, bkv_ref,
                 cos_ref, sin_ref, ctx_ref, attn_ref, k_scr, v_scr):
    qi = pl.program_id(1)
    H, S, D = k_scr.shape
    TQ = ctx_ref.shape[1]
    E = H * D

    # ---- K/V projection + RoPE, once per batch, cached in VMEM scratch (bf16) ----
    @pl.when(qi == 0)
    def _():
        kv = jnp.dot(s_ref[0].astype(jnp.bfloat16), wkv_ref[...],
                     preferred_element_type=jnp.float32) + bkv_ref[...]      # (S, 2E) f32
        k = jnp.transpose(kv[:, :E].reshape(S, H, D), (1, 0, 2))             # (H, S, D)
        v = jnp.transpose(kv[:, E:].reshape(S, H, D), (1, 0, 2))             # (H, S, D)
        cos = cos_ref[...]                                                   # (S, D)
        sin = sin_ref[...]                                                   # sign-folded
        # rotate_half(k) * sin == roll(k, D/2) * sin_signed  (exact; XLU, not MXU)
        kr = k * cos + pltpu.roll(k, shift=D // 2, axis=2) * sin
        k_scr[...] = kr.astype(k_scr.dtype)
        v_scr[...] = v.astype(v_scr.dtype)

    # ---- Q projection (this q-tile), scale folded in, RoPE ----
    q = jnp.dot(plm_ref[0].astype(jnp.bfloat16), wq_ref[...],
                preferred_element_type=jnp.float32) + bq_ref[...]            # (TQ, E) f32
    q = q * (1.0 / math.sqrt(D))                  # fold 1/sqrt(Dh) before QK^T (H*S*D ops)
    q = jnp.transpose(q.reshape(TQ, H, D), (1, 0, 2))                        # (H, TQ, D)

    q0 = pl.multiple_of(qi * TQ, TQ)
    cos_q = cos_ref[pl.ds(q0, TQ), :]
    sin_q = sin_ref[pl.ds(q0, TQ), :]
    qr = q * cos_q + pltpu.roll(q, shift=D // 2, axis=2) * sin_q

    # ---- scores / softmax / values ----
    s = jnp.einsum("hqd,hkd->hqk", qr.astype(jnp.bfloat16), k_scr[...],
                   preferred_element_type=jnp.float32)                       # (H, TQ, S)
    m = jnp.max(s, axis=-1, keepdims=True)
    e = jnp.exp(s - m)
    denom = jnp.sum(e, axis=-1, keepdims=True)
    attn = e * pl.reciprocal(denom, approx=True)
    attn_ref[0] = attn.astype(attn_ref.dtype)

    vals = jnp.einsum("hqk,hkd->hqd", attn.astype(jnp.bfloat16), v_scr[...],
                      preferred_element_type=jnp.float32)                    # (H, TQ, D)
    # merge heads lane-dense: (H, TQ, D) -> (TQ, H*D); single transpose, no per-head concat
    ctx_ref[0] = jnp.transpose(vals, (1, 0, 2)).reshape(TQ, E).astype(ctx_ref.dtype)


# ----------------------------------------------------------------------------
# Kernel 2: o_proj + residual + LayerNorm + FFN (down, GELU, up) + residual.
# ----------------------------------------------------------------------------
def _out_ffn_kernel(ctx_ref, plm_ref, wo_ref, bo_ref, g_ref, be_ref,
                    wd_ref, bd_ref, wu_ref, bu_ref, out_ref):
    o = jnp.dot(ctx_ref[...], wo_ref[...],
                preferred_element_type=jnp.float32) + bo_ref[...]
    x = o + plm_ref[...]

    mu = jnp.mean(x, axis=-1, keepdims=True)
    xc = x - mu
    var = jnp.mean(xc * xc, axis=-1, keepdims=True)
    y = xc * jax.lax.rsqrt(var + 1e-5) * g_ref[...] + be_ref[...]

    h = jnp.dot(y.astype(jnp.bfloat16), wd_ref[...],
                preferred_element_type=jnp.float32) + bd_ref[...]
    h = _gelu_exact(h)
    out = jnp.dot(h.astype(jnp.bfloat16), wu_ref[...],
                  preferred_element_type=jnp.float32) + bu_ref[...] + y
    out_ref[...] = out.astype(out_ref.dtype)


# ----------------------------------------------------------------------------
# Host-side tables / params
# ----------------------------------------------------------------------------
def rotary_tables(S, d):
    inv_freq = 1.0 / (10000.0 ** (jnp.arange(0, d, 2, dtype=jnp.float32) / d))
    t = jnp.arange(S, dtype=jnp.float32)
    freqs = jnp.einsum("i,j->ij", t, inv_freq)          # (S, d/2)
    emb = jnp.concatenate([freqs, freqs], axis=-1)      # (S, d)
    return jnp.cos(emb), jnp.sin(emb)


def init_params(key, embed_dim=768):
    def xavier(k, out_d, in_d):
        bound = math.sqrt(6.0 / (in_d + out_d))
        return jax.random.uniform(k, (out_d, in_d), jnp.float32, -bound, bound)

    ks = jax.random.split(key, 12)
    # NOTE: the PyTorch module zero-fills biases; small random values are used here so the
    # bias-add plumbing is actually exercised by the self-test (forward semantics identical).
    small = lambda k, n: 0.02 * jax.random.normal(k, (n,), jnp.float32)
    return dict(
        w_q=xavier(ks[0], embed_dim, 1280), b_q=small(ks[1], embed_dim),
        w_k=xavier(ks[2], embed_dim, 128),  b_k=small(ks[3], embed_dim),
        w_v=xavier(ks[4], embed_dim, 128),  b_v=small(ks[5], embed_dim),
        w_o=xavier(ks[6], 1280, embed_dim), b_o=small(ks[7], 1280),
        ln_g=jnp.ones((1280,), jnp.float32), ln_b=jnp.zeros((1280,), jnp.float32),
        w_down=xavier(ks[8], 640, 1280), b_down=small(ks[9], 640),
        w_up=xavier(ks[10], 1280, 640),  b_up=small(ks[11], 1280),
    )


def _pick_tile(n, cap):
    """Largest multiple of 8 <= cap that divides n; n itself if n <= cap or nothing divides."""
    if n <= cap:
        return n
    t = (cap // 8) * 8
    while t >= 8:
        if n % t == 0:
            return t
        t -= 8
    return n


# ----------------------------------------------------------------------------
# Forward pass (Pallas)
# ----------------------------------------------------------------------------
def structure_adapter_forward(params, s_repre, plm_repre, num_heads=12):
    B, S, in_dim = s_repre.shape
    plm_dim = plm_repre.shape[-1]
    E = params["w_q"].shape[0]
    H = num_heads
    D = E // H
    N = B * S
    dtype = plm_repre.dtype
    VMEM_LIMIT = 32 * 1024 * 1024   # explicit on every call (v5e default is only 16 MiB)

    # ---- host-side weight prep (transpose + bf16 cast, done once) ----
    wq_t = params["w_q"].T.astype(jnp.bfloat16)                                   # (1280, E)
    wkv_t = jnp.concatenate([params["w_k"].T, params["w_v"].T], axis=1).astype(jnp.bfloat16)
    bq = params["b_q"].reshape(1, E).astype(jnp.float32)
    bkv = jnp.concatenate([params["b_k"], params["b_v"]]).reshape(1, 2 * E).astype(jnp.float32)

    cos, sin = rotary_tables(S, D)
    # fold the rotate_half sign into the sin table: rotate_half(x)*sin == roll(x,D/2)*sin_signed
    sin_signed = jnp.concatenate([-sin[:, :D // 2], sin[:, D // 2:]], axis=-1)

    TQ = _pick_tile(S, 256)
    nq = S // TQ

    # ---- fused QKV + RoPE + attention ----
    ctx, attn = pl.pallas_call(
        _attn_kernel,
        out_shape=(jax.ShapeDtypeStruct((B, S, E), jnp.bfloat16),
                   jax.ShapeDtypeStruct((B, H, S, S), jnp.float32)),
        grid=(B, nq),
        in_specs=[
            pl.BlockSpec((1, TQ, plm_dim), lambda b, qi: (b, qi, 0)),
            pl.BlockSpec((1, S, in_dim), lambda b, qi: (b, 0, 0)),
            pl.BlockSpec((plm_dim, E), lambda b, qi: (0, 0)),
            pl.BlockSpec((1, E), lambda b, qi: (0, 0)),
            pl.BlockSpec((in_dim, 2 * E), lambda b, qi: (0, 0)),
            pl.BlockSpec((1, 2 * E), lambda b, qi: (0, 0)),
            pl.BlockSpec((S, D), lambda b, qi: (0, 0)),
            pl.BlockSpec((S, D), lambda b, qi: (0, 0)),
        ],
        out_specs=(pl.BlockSpec((1, TQ, E), lambda b, qi: (b, qi, 0)),
                   pl.BlockSpec((1, H, TQ, S), lambda b, qi: (b, 0, qi, 0))),
        scratch_shapes=[pltpu.VMEM((H, S, D), jnp.bfloat16),   # rotary-embedded K cache
                        pltpu.VMEM((H, S, D), jnp.bfloat16)],  # V cache
        compiler_params=pltpu.CompilerParams(
            dimension_semantics=("parallel", "arbitrary"),
            vmem_limit_bytes=VMEM_LIMIT),
    )(plm_repre, s_repre, wq_t, bq, wkv_t, bkv, cos, sin_signed)

    # ---- o_proj + residual + LayerNorm + FFN + residual (fully fused, row-tiled) ----
    ctx2 = ctx.reshape(N, E)                       # contiguous view, no transpose needed
    plm2 = plm_repre.reshape(N, plm_dim)
    wo_t = params["w_o"].T.astype(jnp.bfloat16)    # (E, 1280)
    wd_t = params["w_down"].T.astype(jnp.bfloat16) # (1280, 640)
    wu_t = params["w_up"].T.astype(jnp.bfloat16)   # (640, 1280)
    F_ffn = wd_t.shape[1]
    bo = params["b_o"].reshape(1, plm_dim)
    bd = params["b_down"].reshape(1, F_ffn)
    bu = params["b_up"].reshape(1, plm_dim)
    gamma = params["ln_g"].reshape(1, plm_dim)
    beta = params["ln_b"].reshape(1, plm_dim)

    TM = _pick_tile(N, 256)
    out = pl.pallas_call(
        _out_ffn_kernel,
        out_shape=jax.ShapeDtypeStruct((N, plm_dim), dtype),
        grid=(N // TM,),
        in_specs=[
            pl.BlockSpec((TM, E), lambda i: (i, 0)),
            pl.BlockSpec((TM, plm_dim), lambda i: (i, 0)),
            pl.BlockSpec((E, plm_dim), lambda i: (0, 0)),
            pl.BlockSpec((1, plm_dim), lambda i: (0, 0)),
            pl.BlockSpec((1, plm_dim), lambda i: (0, 0)),
            pl.BlockSpec((1, plm_dim), lambda i: (0, 0)),
            pl.BlockSpec((plm_dim, F_ffn), lambda i: (0, 0)),
            pl.BlockSpec((1, F_ffn), lambda i: (0, 0)),
            pl.BlockSpec((F_ffn, plm_dim), lambda i: (0, 0)),
            pl.BlockSpec((1, plm_dim), lambda i: (0, 0)),
        ],
        out_specs=pl.BlockSpec((TM, plm_dim), lambda i: (i, 0)),
        compiler_params=pltpu.CompilerParams(
            dimension_semantics=("parallel",), vmem_limit_bytes=VMEM_LIMIT),
    )(ctx2, plm2, wo_t, bo, gamma, beta, wd_t, bd, wu_t, bu)

    return out.reshape(B, S, plm_dim), attn


# ----------------------------------------------------------------------------
# Pure-JAX reference (same math and same bf16/f32 matmul precision choices).
# ----------------------------------------------------------------------------
def structure_adapter_reference(params, s_repre, plm_repre, num_heads=12):
    B, S, _ = s_repre.shape
    E = params["w_q"].shape[0]
    D = E // num_heads
    bf = jnp.bfloat16

    def lin(x, w, b):
        return jnp.dot(x.astype(bf), w.T.astype(bf),
                       preferred_element_type=jnp.float32) + b

    q = lin(plm_repre, params["w_q"], params["b_q"])
    k = lin(s_repre, params["w_k"], params["b_k"])
    v = lin(s_repre, params["w_v"], params["b_v"])

    def heads(x):
        return x.reshape(B, S, num_heads, D).transpose(0, 2, 1, 3)

    q, k, v = heads(q), heads(k), heads(v)
    cos, sin = rotary_tables(S, D)

    def rot_half(x):
        x1, x2 = x[..., :D // 2], x[..., D // 2:]
        return jnp.concatenate([-x2, x1], axis=-1)

    q = q * cos + rot_half(q) * sin
    k = k * cos + rot_half(k) * sin
    scores = jnp.einsum("bhqd,bhkd->bhqk", q.astype(bf), k.astype(bf),
                        preferred_element_type=jnp.float32) / math.sqrt(D)
    attn = jax.nn.softmax(scores, axis=-1)
    vals = jnp.einsum("bhqk,bhkd->bhqd", attn.astype(bf), v.astype(bf),
                      preferred_element_type=jnp.float32)
    vals = vals.transpose(0, 2, 1, 3).reshape(B, S, E)

    o = lin(vals, params["w_o"], params["b_o"])
    x = o + plm_repre
    mu = jnp.mean(x, axis=-1, keepdims=True)
    var = jnp.mean((x - mu) ** 2, axis=-1, keepdims=True)
    y = (x - mu) / jnp.sqrt(var + 1e-5) * params["ln_g"] + params["ln_b"]
    h = lin(y, params["w_down"], params["b_down"])
    h = jax.nn.gelu(h, approximate=False)
    out = lin(h, params["w_up"], params["b_up"]) + y
    return out, attn


if __name__ == "__main__":
    B, S = 2, 8
    embed_dim, num_heads, hidden_dim = 768, 12, 128

    key = jax.random.PRNGKey(0)
    kp, ks, kq = jax.random.split(key, 3)
    params = init_params(kp, embed_dim)
    s_repre = jax.random.normal(ks, (B, S, hidden_dim), jnp.float32)
    plm_repre = jax.random.normal(kq, (B, S, 1280), jnp.float32)

    out, attn = structure_adapter_forward(params, s_repre, plm_repre, num_heads)
    out = jax.block_until_ready(out)
    attn = jax.block_until_ready(attn)

    out_ref, attn_ref = structure_adapter_reference(params, s_repre, plm_repre, num_heads)

    assert out.shape == (B, S, 1280)
    assert attn.shape == (B, num_heads, S, S)
    assert float(jnp.max(jnp.abs(attn.sum(-1) - 1.0))) < 5e-3
    assert float(jnp.max(jnp.abs(attn - attn_ref))) < 2e-2
    assert float(jnp.max(jnp.abs(out - out_ref))) < 5e-2

    print("KERNEL_OK")
</pallas_src>

<mosaic_0001>
module attributes {stable_mosaic.version = 11 : i64} {
  func.func @_attn_kernel(%arg0: i32, %arg1: i32, %arg2: memref<1x8x1280xf32, #tpu.memory_space<vmem>>, %arg3: memref<1x8x128xf32, #tpu.memory_space<vmem>>, %arg4: memref<1280x768xbf16, #tpu.memory_space<vmem>>, %arg5: memref<1x768xf32, #tpu.memory_space<vmem>>, %arg6: memref<128x1536xbf16, #tpu.memory_space<vmem>>, %arg7: memref<1x1536xf32, #tpu.memory_space<vmem>>, %arg8: memref<8x64xf32, #tpu.memory_space<vmem>>, %arg9: memref<8x64xf32, #tpu.memory_space<vmem>>, %arg10: memref<1x8x768xbf16, #tpu.memory_space<vmem>>, %arg11: memref<1x12x8x8xf32, #tpu.memory_space<vmem>>, %arg12: memref<12x8x64xbf16, #tpu.memory_space<vmem>>, %arg13: memref<12x8x64xbf16, #tpu.memory_space<vmem>>) attributes {dimension_semantics = [#tpu.dimension_semantics<parallel>, #tpu.dimension_semantics<arbitrary>], iteration_bounds = array<i64: 2, 1>, scalar_prefetch = 0 : i64, scratch_operands = 2 : i64, tpu.core_type = #tpu.core_type<tc>, window_params = [{transform_indices = @transform_0, window_bounds = array<i64: 1, 8, 1280>}, {transform_indices = @transform_1, window_bounds = array<i64: 1, 8, 128>}, {pipeline_mode = #tpu.pipeline_mode<synchronous>, transform_indices = @transform_2, window_bounds = array<i64: 1280, 768>}, {pipeline_mode = #tpu.pipeline_mode<synchronous>, transform_indices = @transform_3, window_bounds = array<i64: 1, 768>}, {pipeline_mode = #tpu.pipeline_mode<synchronous>, transform_indices = @transform_4, window_bounds = array<i64: 128, 1536>}, {pipeline_mode = #tpu.pipeline_mode<synchronous>, transform_indices = @transform_5, window_bounds = array<i64: 1, 1536>}, {pipeline_mode = #tpu.pipeline_mode<synchronous>, transform_indices = @transform_6, window_bounds = array<i64: 8, 64>}, {pipeline_mode = #tpu.pipeline_mode<synchronous>, transform_indices = @transform_7, window_bounds = array<i64: 8, 64>}, {transform_indices = @transform_8, window_bounds = array<i64: 1, 8, 768>}, {transform_indices = @transform_9, window_bounds = array<i64: 1, 12, 8, 8>}]} {
    %c0_i32 = arith.constant 0 : i32
    %0 = arith.cmpi eq, %arg1, %c0_i32 : i32
    %1 = arith.extui %0 : i1 to i32
    %c0_i32_0 = arith.constant 0 : i32
    %2 = arith.cmpi ne, %1, %c0_i32_0 : i32
    scf.if %2 {
      %c0_27 = arith.constant 0 : index
      %c0_28 = arith.constant 0 : index
      %c0_29 = arith.constant 0 : index
      %54 = vector.load %arg3[%c0_27, %c0_28, %c0_29] : memref<1x8x128xf32, #tpu.memory_space<vmem>>, vector<1x8x128xf32>
      %55 = vector.shape_cast %54 : vector<1x8x128xf32> to vector<8x128xf32>
      %56 = arith.truncf %55 : vector<8x128xf32> to vector<8x128xbf16>
      %c0_30 = arith.constant 0 : index
      %c0_31 = arith.constant 0 : index
      %57 = vector.load %arg6[%c0_30, %c0_31] : memref<128x1536xbf16, #tpu.memory_space<vmem>>, vector<128x1536xbf16>
      %cst_32 = arith.constant dense<0.000000e+00> : vector<8x1536xf32>
      %58 = tpu.matmul %56, %57, %cst_32 {dimension_numbers = #tpu.dot_dimension_numbers<[1], [0], [0], [1], [0, 0, 1, 1], [], []>} : vector<8x128xbf16>, vector<128x1536xbf16>, vector<8x1536xf32> -> vector<8x1536xf32>
      %c0_33 = arith.constant 0 : index
      %c0_34 = arith.constant 0 : index
      %59 = vector.load %arg7[%c0_33, %c0_34] : memref<1x1536xf32, #tpu.memory_space<vmem>>, vector<1x1536xf32>
      %60 = vector.broadcast %59 : vector<1x1536xf32> to vector<8x1536xf32>
      %61 = arith.addf %58, %60 : vector<8x1536xf32>
      %62 = vector.extract_strided_slice %61 {offsets = [0, 0], sizes = [8, 768], strides = [1, 1]} : vector<8x1536xf32> to vector<8x768xf32>
      %63 = vector.shape_cast %62 : vector<8x768xf32> to vector<8x12x64xf32>
      %64 = tpu.transpose %63, [1, 0, 2] : vector<8x12x64xf32> -> vector<12x8x64xf32>
      %65 = vector.extract_strided_slice %61 {offsets = [0, 768], sizes = [8, 768], strides = [1, 1]} : vector<8x1536xf32> to vector<8x768xf32>
      %66 = vector.shape_cast %65 : vector<8x768xf32> to vector<8x12x64xf32>
      %67 = tpu.transpose %66, [1, 0, 2] : vector<8x12x64xf32> -> vector<12x8x64xf32>
      %c0_35 = arith.constant 0 : index
      %c0_36 = arith.constant 0 : index
      %68 = vector.load %arg8[%c0_35, %c0_36] : memref<8x64xf32, #tpu.memory_space<vmem>>, vector<8x64xf32>
      %c0_37 = arith.constant 0 : index
      %c0_38 = arith.constant 0 : index
      %69 = vector.load %arg9[%c0_37, %c0_38] : memref<8x64xf32, #tpu.memory_space<vmem>>, vector<8x64xf32>
      %70 = vector.shape_cast %68 : vector<8x64xf32> to vector<1x8x64xf32>
      %71 = vector.broadcast %70 : vector<1x8x64xf32> to vector<12x8x64xf32>
      %72 = arith.mulf %64, %71 : vector<12x8x64xf32>
      %c32_i32_39 = arith.constant 32 : i32
      %73 = tpu.dynamic_rotate %64 by %c32_i32_39 dim 2 : vector<12x8x64xf32>, i32 -> vector<12x8x64xf32>
      %74 = vector.shape_cast %69 : vector<8x64xf32> to vector<1x8x64xf32>
      %75 = vector.broadcast %74 : vector<1x8x64xf32> to vector<12x8x64xf32>
      %76 = arith.mulf %73, %75 : vector<12x8x64xf32>
      %77 = arith.addf %72, %76 : vector<12x8x64xf32>
      %78 = arith.truncf %77 : vector<12x8x64xf32> to vector<12x8x64xbf16>
      %c0_40 = arith.constant 0 : index
      %c0_41 = arith.constant 0 : index
      %c0_42 = arith.constant 0 : index
      %79 = vector.load %arg12[%c0_40, %c0_41, %c0_42] : memref<12x8x64xbf16, #tpu.memory_space<vmem>>, vector<12x8x64xbf16>
      tpu.vector_store %arg12[%c0_40, %c0_41, %c0_42], %78 {strides = array<i32>} : memref<12x8x64xbf16, #tpu.memory_space<vmem>>, vector<12x8x64xbf16>,
      %80 = arith.truncf %67 : vector<12x8x64xf32> to vector<12x8x64xbf16>
      %c0_43 = arith.constant 0 : index
      %c0_44 = arith.constant 0 : index
      %c0_45 = arith.constant 0 : index
      %81 = vector.load %arg13[%c0_43, %c0_44, %c0_45] : memref<12x8x64xbf16, #tpu.memory_space<vmem>>, vector<12x8x64xbf16>
      tpu.vector_store %arg13[%c0_43, %c0_44, %c0_45], %80 {strides = array<i32>} : memref<12x8x64xbf16, #tpu.memory_space<vmem>>, vector<12x8x64xbf16>,
    } else {
    }
    %c0 = arith.constant 0 : index
    %c0_1 = arith.constant 0 : index
    %c0_2 = arith.constant 0 : index
    %3 = vector.load %arg2[%c0, %c0_1, %c0_2] : memref<1x8x1280xf32, #tpu.memory_space<vmem>>, vector<1x8x1280xf32>
    %4 = vector.shape_cast %3 : vector<1x8x1280xf32> to vector<8x1280xf32>
    %5 = arith.truncf %4 : vector<8x1280xf32> to vector<8x1280xbf16>
    %c0_3 = arith.constant 0 : index
    %c0_4 = arith.constant 0 : index
    %6 = vector.load %arg4[%c0_3, %c0_4] : memref<1280x768xbf16, #tpu.memory_space<vmem>>, vector<1280x768xbf16>
    %cst = arith.constant dense<0.000000e+00> : vector<8x768xf32>
    %7 = tpu.matmul %5, %6, %cst {dimension_numbers = #tpu.dot_dimension_numbers<[1], [0], [0], [1], [0, 0, 1, 1], [], []>} : vector<8x1280xbf16>, vector<1280x768xbf16>, vector<8x768xf32> -> vector<8x768xf32>
    %c0_5 = arith.constant 0 : index
    %c0_6 = arith.constant 0 : index
    %8 = vector.load %arg5[%c0_5, %c0_6] : memref<1x768xf32, #tpu.memory_space<vmem>>, vector<1x768xf32>
    %9 = vector.broadcast %8 : vector<1x768xf32> to vector<8x768xf32>
    %10 = arith.addf %7, %9 : vector<8x768xf32>
    %cst_7 = arith.constant 1.250000e-01 : f32
    %11 = vector.broadcast %cst_7 : f32 to vector<8x768xf32>
    %12 = arith.mulf %10, %11 : vector<8x768xf32>
    %13 = vector.shape_cast %12 : vector<8x768xf32> to vector<8x12x64xf32>
    %14 = tpu.transpose %13, [1, 0, 2] : vector<8x12x64xf32> -> vector<12x8x64xf32>
    %c8_i32 = arith.constant 8 : i32
    %15 = arith.muli %arg1, %c8_i32 : i32
    %16 = tpu.assume_multiple %15, 8 : i32
    %17 = arith.index_cast %16 : i32 to index
    %c0_8 = arith.constant 0 : index
    %18 = vector.load %arg8[%17, %c0_8] : memref<8x64xf32, #tpu.memory_space<vmem>>, vector<8x64xf32>
    %19 = arith.index_cast %16 : i32 to index
    %c0_9 = arith.constant 0 : index
    %20 = vector.load %arg9[%19, %c0_9] : memref<8x64xf32, #tpu.memory_space<vmem>>, vector<8x64xf32>
    %21 = vector.shape_cast %18 : vector<8x64xf32> to vector<1x8x64xf32>
    %22 = vector.broadcast %21 : vector<1x8x64xf32> to vector<12x8x64xf32>
    %23 = arith.mulf %14, %22 : vector<12x8x64xf32>
    %c32_i32 = arith.constant 32 : i32
    %24 = tpu.dynamic_rotate %14 by %c32_i32 dim 2 : vector<12x8x64xf32>, i32 -> vector<12x8x64xf32>
    %25 = vector.shape_cast %20 : vector<8x64xf32> to vector<1x8x64xf32>
    %26 = vector.broadcast %25 : vector<1x8x64xf32> to vector<12x8x64xf32>
    %27 = arith.mulf %24, %26 : vector<12x8x64xf32>
    %28 = arith.addf %23, %27 : vector<12x8x64xf32>
    %29 = arith.truncf %28 : vector<12x8x64xf32> to vector<12x8x64xbf16>
    %c0_10 = arith.constant 0 : index
    %c0_11 = arith.constant 0 : index
    %c0_12 = arith.constant 0 : index
    %30 = vector.load %arg12[%c0_10, %c0_11, %c0_12] : memref<12x8x64xbf16, #tpu.memory_space<vmem>>, vector<12x8x64xbf16>
    "tpu.trace_start"() <{level = 10 : i32, message = "hqd,hkd->hqk"}> : () -> ()
    %cst_13 = arith.constant dense<0.000000e+00> : vector<12x8x8xf32>
    %31 = tpu.matmul %29, %30, %cst_13 {dimension_numbers = #tpu.dot_dimension_numbers<[2], [2], [1], [1], [0, 0, 0, 1, 1, 1], [0], [0]>} : vector<12x8x64xbf16>, vector<12x8x64xbf16>, vector<12x8x8xf32> -> vector<12x8x8xf32>
    "tpu.trace_stop"() : () -> ()
    %cst_14 = arith.constant dense<0xFF800000> : vector<12x8xf32>
    %32 = vector.multi_reduction <maximumf>, %31, %cst_14 [2] : vector<12x8x8xf32> to vector<12x8xf32>
    %33 = vector.shape_cast %32 : vector<12x8xf32> to vector<12x8x1xf32>
    %34 = vector.broadcast %33 : vector<12x8x1xf32> to vector<12x8x8xf32>
    %35 = arith.subf %31, %34 : vector<12x8x8xf32>
    %36 = math.exp %35 : vector<12x8x8xf32>
    %cst_15 = arith.constant dense<0.000000e+00> : vector<12x8xf32>
    %37 = vector.multi_reduction <add>, %36, %cst_15 [2] : vector<12x8x8xf32> to vector<12x8xf32>
    %38 = vector.shape_cast %37 : vector<12x8xf32> to vector<12x8x1xf32>
    %39 = tpu.reciprocal %38 {approx = true} : vector<12x8x1xf32> -> vector<12x8x1xf32>
    %40 = vector.broadcast %39 : vector<12x8x1xf32> to vector<12x8x8xf32>
    %41 = arith.mulf %36, %40 : vector<12x8x8xf32>
    %c0_16 = arith.constant 0 : index
    %c0_17 = arith.constant 0 : index
    %c0_18 = arith.constant 0 : index
    %c0_19 = arith.constant 0 : index
    %42 = vector.load %arg11[%c0_16, %c0_17, %c0_18, %c0_19] : memref<1x12x8x8xf32, #tpu.memory_space<vmem>>, vector<1x12x8x8xf32>
    %43 = vector.shape_cast %42 : vector<1x12x8x8xf32> to vector<12x8x8xf32>
    %44 = vector.shape_cast %41 : vector<12x8x8xf32> to vector<1x12x8x8xf32>
    tpu.vector_store %arg11[%c0_16, %c0_17, %c0_18, %c0_19], %44 {strides = array<i32>} : memref<1x12x8x8xf32, #tpu.memory_space<vmem>>, vector<1x12x8x8xf32>,
    %45 = arith.truncf %41 : vector<12x8x8xf32> to vector<12x8x8xbf16>
    %c0_20 = arith.constant 0 : index
    %c0_21 = arith.constant 0 : index
    %c0_22 = arith.constant 0 : index
    %46 = vector.load %arg13[%c0_20, %c0_21, %c0_22] : memref<12x8x64xbf16, #tpu.memory_space<vmem>>, vector<12x8x64xbf16>
    "tpu.trace_start"() <{level = 10 : i32, message = "hqk,hkd->hqd"}> : () -> ()
    %cst_23 = arith.constant dense<0.000000e+00> : vector<12x8x64xf32>
    %47 = tpu.matmul %45, %46, %cst_23 {dimension_numbers = #tpu.dot_dimension_numbers<[2], [1], [1], [2], [0, 0, 0, 1, 1, 2], [0], [0]>} : vector<12x8x8xbf16>, vector<12x8x64xbf16>, vector<12x8x64xf32> -> vector<12x8x64xf32>
    "tpu.trace_stop"() : () -> ()
    %48 = tpu.transpose %47, [1, 0, 2] : vector<12x8x64xf32> -> vector<8x12x64xf32>
    %49 = vector.shape_cast %48 : vector<8x12x64xf32> to vector<8x768xf32>
    %50 = arith.truncf %49 : vector<8x768xf32> to vector<8x768xbf16>
    %c0_24 = arith.constant 0 : index
    %c0_25 = arith.constant 0 : index
    %c0_26 = arith.constant 0 : index
    %51 = vector.load %arg10[%c0_24, %c0_25, %c0_26] : memref<1x8x768xbf16, #tpu.memory_space<vmem>>, vector<1x8x768xbf16>
    %52 = vector.shape_cast %51 : vector<1x8x768xbf16> to vector<8x768xbf16>
    %53 = vector.shape_cast %50 : vector<8x768xbf16> to vector<1x8x768xbf16>
    tpu.vector_store %arg10[%c0_24, %c0_25, %c0_26], %53 {strides = array<i32>} : memref<1x8x768xbf16, #tpu.memory_space<vmem>>, vector<1x8x768xbf16>,
    return
  }
  func.func @transform_0(%arg0: i32, %arg1: i32) -> (i32, i32, i32) {
    %c0_i32 = arith.constant 0 : i32
    %c0_i32_0 = arith.constant 0 : i32
    return %arg0, %arg1, %c0_i32 : i32, i32, i32
  }
  func.func @transform_1(%arg0: i32, %arg1: i32) -> (i32, i32, i32) {
    %c0_i32 = arith.constant 0 : i32
    %c0_i32_0 = arith.constant 0 : i32
    %c0_i32_1 = arith.constant 0 : i32
    return %arg0, %c0_i32, %c0_i32_0 : i32, i32, i32
  }
  func.func @transform_2(%arg0: i32, %arg1: i32) -> (i32, i32) {
    %c0_i32 = arith.constant 0 : i32
    %c0_i32_0 = arith.constant 0 : i32
    %c0_i32_1 = arith.constant 0 : i32
    return %c0_i32, %c0_i32_0 : i32, i32
  }
  func.func @transform_3(%arg0: i32, %arg1: i32) -> (i32, i32) {
    %c0_i32 = arith.constant 0 : i32
    %c0_i32_0 = arith.constant 0 : i32
    %c0_i32_1 = arith.constant 0 : i32
    return %c0_i32, %c0_i32_0 : i32, i32
  }
  func.func @transform_4(%arg0: i32, %arg1: i32) -> (i32, i32) {
    %c0_i32 = arith.constant 0 : i32
    %c0_i32_0 = arith.constant 0 : i32
    %c0_i32_1 = arith.constant 0 : i32
    return %c0_i32, %c0_i32_0 : i32, i32
  }
  func.func @transform_5(%arg0: i32, %arg1: i32) -> (i32, i32) {
    %c0_i32 = arith.constant 0 : i32
    %c0_i32_0 = arith.constant 0 : i32
    %c0_i32_1 = arith.constant 0 : i32
    return %c0_i32, %c0_i32_0 : i32, i32
  }
  func.func @transform_6(%arg0: i32, %arg1: i32) -> (i32, i32) {
    %c0_i32 = arith.constant 0 : i32
    %c0_i32_0 = arith.constant 0 : i32
    %c0_i32_1 = arith.constant 0 : i32
    return %c0_i32, %c0_i32_0 : i32, i32
  }
  func.func @transform_7(%arg0: i32, %arg1: i32) -> (i32, i32) {
    %c0_i32 = arith.constant 0 : i32
    %c0_i32_0 = arith.constant 0 : i32
    %c0_i32_1 = arith.constant 0 : i32
    return %c0_i32, %c0_i32_0 : i32, i32
  }
  func.func @transform_8(%arg0: i32, %arg1: i32) -> (i32, i32, i32) {
    %c0_i32 = arith.constant 0 : i32
    %c0_i32_0 = arith.constant 0 : i32
    return %arg0, %arg1, %c0_i32 : i32, i32, i32
  }
  func.func @transform_9(%arg0: i32, %arg1: i32) -> (i32, i32, i32, i32) {
    %c0_i32 = arith.constant 0 : i32
    %c0_i32_0 = arith.constant 0 : i32
    %c0_i32_1 = arith.constant 0 : i32
    return %arg0, %c0_i32, %arg1, %c0_i32_0 : i32, i32, i32, i32
  }
}

</mosaic_0001>

<llo_original>
// kernel: tpu_custom_call.1
$region0: #{tpu_custom_call.1}
  #allocation0 [shape = 'u32[]', space=smem, size = 0x4, offset = 0x4, fixed_abs, tag = 'smem constant byte address 0x4 - core index']
  #allocation1 [shape = 'u32[144,128]{1,0:T(1,128)}', space=vmem, size = 0x12000, scoped, tag = 'internal scratch']
  #allocation2 [shape = 'bf16[12,8,64]{2,1,0:T(8,128)(2,1)}', space=vmem, size = 0x6000, scoped, tag = 'scratch operand']
  #allocation3 [shape = 'bf16[12,8,64]{2,1,0:T(8,128)(2,1)}', space=vmem, size = 0x6000, scoped, tag = 'scratch operand']
  %s0 = inlined_call_operand.hbm [shape: f32[2,8,1280], index: 0, kind: input, shape index: {}]
  %s1 = inlined_call_operand.hbm [shape: f32[2,8,128], index: 1, kind: input, shape index: {}]
  %s2 = inlined_call_operand.hbm [shape: bf16[1280,768], index: 2, kind: input, shape index: {}]
  %s3 = inlined_call_operand.hbm [shape: f32[1,768], index: 3, kind: input, shape index: {}]
  %s4 = inlined_call_operand.hbm [shape: bf16[128,1536], index: 4, kind: input, shape index: {}]
  %s5 = inlined_call_operand.hbm [shape: f32[1,1536], index: 5, kind: input, shape index: {}]
  %s6 = inlined_call_operand.hbm [shape: f32[8,64], index: 6, kind: input, shape index: {}]
  %s7 = inlined_call_operand.hbm [shape: f32[8,64], index: 7, kind: input, shape index: {}]
  %s8 = inlined_call_operand.hbm [shape: bf16[2,8,768], index: 8, kind: output, shape index: {0}]
  %s9 = inlined_call_operand.vmem [shape: f32[2,12,8,8], index: 9, kind: output, shape index: {1}]
  %10 = xla_tuple %s8, %s9
  %s11 = sld [smem:[#allocation0]]
  $region109: #{tpu_custom_call.1} parent=0
    _
  %s13 = ssub.s32 1, %s11
  %s14 = scalar_select 0, %s13, %s11
  $region1: #{tpu_custom_call.1} parent=0
    #allocation4 [shape = 'u8[81920]{0}', space=vmem, size = 0x14000, scoped, tag = 'input window, operand 0']
    #allocation5 [shape = 's32[2]{0}', space=sflag, size = 0x8, scoped, tag = 'scoped memory for tpu_custom_call.1']
    #allocation6 [shape = 's32[2]{0}', space=sflag, size = 0x8, scoped, tag = 'scoped memory for tpu_custom_call.1']
    #allocation7 [shape = 'u8[8192]{0}', space=vmem, size = 0x2000, scoped, tag = 'input window, operand 1']
    #allocation8 [shape = 's32[2]{0}', space=sflag, size = 0x8, scoped, tag = 'scoped memory for tpu_custom_call.1']
    #allocation9 [shape = 'u8[1966080]{0}', space=vmem, size = 0x1e0000, scoped, tag = 'input window, operand 2, single buffered']
    #allocation10 [shape = 'u8[3072]{0}', space=vmem, size = 0xc00, scoped, tag = 'input window, operand 3, single buffered']
    #allocation11 [shape = 's32[1]{0}', space=sflag, size = 0x4, scoped, tag = 'scoped memory for tpu_custom_call.1']
    #allocation12 [shape = 'u8[393216]{0}', space=vmem, size = 0x60000, scoped, tag = 'input window, operand 4, single buffered']
    #allocation13 [shape = 'u8[6144]{0}', space=vmem, size = 0x1800, scoped, tag = 'input window, operand 5, single buffered']
    #allocation14 [shape = 's32[1]{0}', space=sflag, size = 0x4, scoped, tag = 'scoped memory for tpu_custom_call.1']
    #allocation15 [shape = 'u8[4096]{0}', space=vmem, size = 0x1000, scoped, tag = 'input window, operand 6, single buffered']
    #allocation16 [shape = 'u8[4096]{0}', space=vmem, size = 0x1000, scoped, tag = 'input window, operand 7, single buffered']
    #allocation17 [shape = 's32[1]{0}', space=sflag, size = 0x4, scoped, tag = 'scoped memory for tpu_custom_call.1']
    #allocation18 [shape = 'u8[24576]{0}', space=vmem, size = 0x6000, scoped, tag = 'output window, operand 0']
    %15 = vsyncpa [#allocation5], 0
    %s16 = scalar_lea.sflag [#allocation5], 1
    %17 = vsyncpa %s16, 0
    %18 = vsyncpa [#allocation8], 0
    %s19 = scalar_lea.sflag [#allocation8], 1
    %20 = vsyncpa %s19, 0
    %21 = vsyncpa [#allocation11], 0
    %22 = vsyncpa [#allocation14], 0
    %23 = vsyncpa [#allocation17], 0
    %24 = vsyncpa [#allocation6], 0
    %s25 = scalar_lea.sflag [#allocation6], 1
    %26 = vsyncpa %s25, 0
    loop: start=0, step=1, limit=4
    $region2: #{tpu_custom_call.1} parent=1 // loop_pre_header
      _
    $region3: #{tpu_custom_call.1} parent=1 // loop_header
      %s28 = sphi 0, %s32
      %p29 = scmp.ge.s32.totalorder %s28, 4
      %s35 = sphi 0, %s47
      %s36 = sphi 0, %s43
      %s37 = sphi 0, %s35
      %s38 = sphi 0, %s36
      %s39 = sphi 0, %s37
      %s40 = sphi 0, %s38
      %s52 = sphi 0, %s54
      %s55 = sphi 0, %s52
      %s56 = sphi 0, %s55
      %s72 = sphi 0, %s56
      %s78 = sphi 0, %s80
      %s81 = sphi 0, %s78
      %s82 = sphi 0, %s81
      %s98 = sphi 0, %s82
      %s102 = sphi 0, %s102
      %s104 = sphi 0, %s102
      %s105 = sphi 0, %s104
      %s119 = sphi 0, %s105
      %s123 = sphi 0, %s123
      %s125 = sphi 0, %s123
      %s126 = sphi 0, %s125
      %s140 = sphi 0, %s126
      %s144 = sphi 0, %s144
      %s146 = sphi 0, %s144
      %s147 = sphi 0, %s146
      %s161 = sphi 0, %s147
      %s165 = sphi 0, %s165
      %s167 = sphi 0, %s165
      %s168 = sphi 0, %s167
      %s182 = sphi 0, %s168
      %s186 = sphi 0, %s186
      %s188 = sphi 0, %s186
      %s189 = sphi 0, %s188
      %s203 = sphi 0, %s189
      %s207 = sphi 0, %s207
      %s209 = sphi 0, %s207
      %s210 = sphi 0, %s209
      %s224 = sphi 0, %s210
      %s232 = sphi 0, %s234
      %s235 = sphi 0, %s232
      %s236 = sphi 0, %s235
      %s252 = sphi 0, %s236
      %s260 = sphi 0, %s262
      %s263 = sphi 0, %s260
      %s264 = sphi 0, %s263
      %s280 = sphi 0, %s264
    $region4: #{tpu_custom_call.1} parent=1 // loop_header_branch
      %31 = sbr.rel (%p29) target = $region8
    $region5: #{tpu_custom_call.1} parent=1 // loop_body
      %s33 = ssub.s32 %s28, 1
      %s34 = ssub.s32 %s28, 2
      %s41 = sadd.s32 1, %s36
      %p42 = scmp.ge.s32.totalorder %s41, 1
      %s43 = scalar_select %p42, 0, %s41
      %s44 = sadd.s32 1, %s35
      %s45 = scalar_select %p42, %s44, %s35
      %p46 = scmp.ge.s32.totalorder %s45, 2
      %s47 = scalar_select %p46, 0, %s45
      %s48 = ssub.s32 %s35, %s47
      %s49 = ssub.s32 %s36, %s43
      %s50 = sor.u32 %s48, %s49
      %p51 = scmp.eq.s32.totalorder %s50, 0
      %s53 = sadd.s32 %s52, 1
      %s54 = scalar_select %p51, %s52, %s53
      %p57 = pneg %p51
      %p58 = scmp.eq.s32.totalorder %s28, 1
      %p59 = por %p57, %p58
      %p60 = scmp.ne.s32.totalorder %s52, %s55
      %p61 = scmp.eq.s32.totalorder %s28, 0
      %p62 = por %p60, %p61
      %p63 = scmp.ne.s32.totalorder %s52, %s55
      %p64 = scmp.eq.s32.totalorder %s33, 1
      %p65 = por %p63, %p64
      %p66 = scmp.ne.s32.totalorder %s55, %s56
      %p67 = scmp.eq.s32.totalorder %s33, 0
      %p68 = por %p66, %p67
      %p69 = scmp.ne.s32.totalorder %s55, %s56
      %p70 = scmp.eq.s32.totalorder %s34, 1
      %p71 = por %p69, %p70
      %p73 = scmp.ne.s32.totalorder %s56, %s72
      %p74 = scmp.eq.s32.totalorder %s34, 0
      %p75 = por %p73, %p74
      %s76 = ssub.s32 %s35, %s47
      %p77 = scmp.eq.s32.totalorder %s76, 0
      %s79 = sadd.s32 %s78, 1
      %s80 = scalar_select %p77, %s78, %s79
      %p83 = pneg %p77
      %p84 = scmp.eq.s32.totalorder %s28, 1
      %p85 = por %p83, %p84
      %p86 = scmp.ne.s32.totalorder %s78, %s81
      %p87 = scmp.eq.s32.totalorder %s28, 0
      %p88 = por %p86, %p87
      %p89 = scmp.ne.s32.totalorder %s78, %s81
      %p90 = scmp.eq.s32.totalorder %s33, 1
      %p91 = por %p89, %p90
      %p92 = scmp.ne.s32.totalorder %s81, %s82
      %p93 = scmp.eq.s32.totalorder %s33, 0
      %p94 = por %p92, %p93
      %p95 = scmp.ne.s32.totalorder %s81, %s82
      %p96 = scmp.eq.s32.totalorder %s34, 1
      %p97 = por %p95, %p96
      %p99 = scmp.ne.s32.totalorder %s82, %s98
      %p100 = scmp.eq.s32.totalorder %s34, 0
      %p101 = por %p99, %p100
      %s103 = sadd.s32 %s102, 1
      %p106 = scmp.eq.s32.totalorder %s28, 1
      %p107 = scmp.ne.s32.totalorder %s102, %s104
      %p108 = scmp.eq.s32.totalorder %s28, 0
      %p109 = por %p107, %p108
      %p110 = scmp.ne.s32.totalorder %s102, %s104
      %p111 = scmp.eq.s32.totalorder %s33, 1
      %p112 = por %p110, %p111
      %p113 = scmp.ne.s32.totalorder %s104, %s105
      %p114 = scmp.eq.s32.totalorder %s33, 0
      %p115 = por %p113, %p114
      %p116 = scmp.ne.s32.totalorder %s104, %s105
      %p117 = scmp.eq.s32.totalorder %s34, 1
      %p118 = por %p116, %p117
      %p120 = scmp.ne.s32.totalorder %s105, %s119
      %p121 = scmp.eq.s32.totalorder %s34, 0
      %p122 = por %p120, %p121
      %s124 = sadd.s32 %s123, 1
      %p127 = scmp.eq.s32.totalorder %s28, 1
      %p128 = scmp.ne.s32.totalorder %s123, %s125
      %p129 = scmp.eq.s32.totalorder %s28, 0
      %p130 = por %p128, %p129
      %p131 = scmp.ne.s32.totalorder %s123, %s125
      %p132 = scmp.eq.s32.totalorder %s33, 1
      %p133 = por %p131, %p132
      %p134 = scmp.ne.s32.totalorder %s125, %s126
      %p135 = scmp.eq.s32.totalorder %s33, 0
      %p136 = por %p134, %p135
      %p137 = scmp.ne.s32.totalorder %s125, %s126
      %p138 = scmp.eq.s32.totalorder %s34, 1
      %p139 = por %p137, %p138
      %p141 = scmp.ne.s32.totalorder %s126, %s140
      %p142 = scmp.eq.s32.totalorder %s34, 0
      %p143 = por %p141, %p142
      %s145 = sadd.s32 %s144, 1
      %p148 = scmp.eq.s32.totalorder %s28, 1
      %p149 = scmp.ne.s32.totalorder %s144, %s146
      %p150 = scmp.eq.s32.totalorder %s28, 0
      %p151 = por %p149, %p150
      %p152 = scmp.ne.s32.totalorder %s144, %s146
      %p153 = scmp.eq.s32.totalorder %s33, 1
      %p154 = por %p152, %p153
      %p155 = scmp.ne.s32.totalorder %s146, %s147
      %p156 = scmp.eq.s32.totalorder %s33, 0
      %p157 = por %p155, %p156
      %p158 = scmp.ne.s32.totalorder %s146, %s147
      %p159 = scmp.eq.s32.totalorder %s34, 1
      %p160 = por %p158, %p159
      %p162 = scmp.ne.s32.totalorder %s147, %s161
      %p163 = scmp.eq.s32.totalorder %s34, 0
      %p164 = por %p162, %p163
      %s166 = sadd.s32 %s165, 1
      %p169 = scmp.eq.s32.totalorder %s28, 1
      %p170 = scmp.ne.s32.totalorder %s165, %s167
      %p171 = scmp.eq.s32.totalorder %s28, 0
      %p172 = por %p170, %p171
      %p173 = scmp.ne.s32.totalorder %s165, %s167
      %p174 = scmp.eq.s32.totalorder %s33, 1
      %p175 = por %p173, %p174
      %p176 = scmp.ne.s32.totalorder %s167, %s168
      %p177 = scmp.eq.s32.totalorder %s33, 0
      %p178 = por %p176, %p177
      %p179 = scmp.ne.s32.totalorder %s167, %s168
      %p180 = scmp.eq.s32.totalorder %s34, 1
      %p181 = por %p179, %p180
      %p183 = scmp.ne.s32.totalorder %s168, %s182
      %p184 = scmp.eq.s32.totalorder %s34, 0
      %p185 = por %p183, %p184
      %s187 = sadd.s32 %s186, 1
      %p190 = scmp.eq.s32.totalorder %s28, 1
      %p191 = scmp.ne.s32.totalorder %s186, %s188
      %p192 = scmp.eq.s32.totalorder %s28, 0
      %p193 = por %p191, %p192
      %p194 = scmp.ne.s32.totalorder %s186, %s188
      %p195 = scmp.eq.s32.totalorder %s33, 1
      %p196 = por %p194, %p195
      %p197 = scmp.ne.s32.totalorder %s188, %s189
      %p198 = scmp.eq.s32.totalorder %s33, 0
      %p199 = por %p197, %p198
      %p200 = scmp.ne.s32.totalorder %s188, %s189
      %p201 = scmp.eq.s32.totalorder %s34, 1
      %p202 = por %p200, %p201
      %p204 = scmp.ne.s32.totalorder %s189, %s203
      %p205 = scmp.eq.s32.totalorder %s34, 0
      %p206 = por %p204, %p205
      %s208 = sadd.s32 %s207, 1
      %p211 = scmp.eq.s32.totalorder %s28, 1
      %p212 = scmp.ne.s32.totalorder %s207, %s209
      %p213 = scmp.eq.s32.totalorder %s28, 0
      %p214 = por %p212, %p213
      %p215 = scmp.ne.s32.totalorder %s207, %s209
      %p216 = scmp.eq.s32.totalorder %s33, 1
      %p217 = por %p215, %p216
      %p218 = scmp.ne.s32.totalorder %s209, %s210
      %p219 = scmp.eq.s32.totalorder %s33, 0
      %p220 = por %p218, %p219
      %p221 = scmp.ne.s32.totalorder %s209, %s210
      %p222 = scmp.eq.s32.totalorder %s34, 1
      %p223 = por %p221, %p222
      %p225 = scmp.ne.s32.totalorder %s210, %s224
      %p226 = scmp.eq.s32.totalorder %s34, 0
      %p227 = por %p225, %p226
      %s228 = ssub.s32 %s35, %s47
      %s229 = ssub.s32 %s36, %s43
      %s230 = sor.u32 %s228, %s229
      %p231 = scmp.eq.s32.totalorder %s230, 0
      %s233 = sadd.s32 %s232, 1
      %s234 = scalar_select %p231, %s232, %s233
      %p237 = pneg %p231
      %p238 = scmp.eq.s32.totalorder %s28, 1
      %p239 = por %p237, %p238
      %p240 = scmp.ne.s32.totalorder %s232, %s235
      %p241 = scmp.eq.s32.totalorder %s28, 0
      %p242 = por %p240, %p241
      %p243 = scmp.ne.s32.totalorder %s232, %s235
      %p244 = scmp.eq.s32.totalorder %s33, 1
      %p245 = por %p243, %p244
      %p246 = scmp.ne.s32.totalorder %s235, %s236
      %p247 = scmp.eq.s32.totalorder %s33, 0
      %p248 = por %p246, %p247
      %p249 = scmp.ne.s32.totalorder %s235, %s236
      %p250 = scmp.eq.s32.totalorder %s34, 1
      %p251 = por %p249, %p250
      %p253 = scmp.ne.s32.totalorder %s236, %s252
      %p254 = scmp.eq.s32.totalorder %s34, 0
      %p255 = por %p253, %p254
      %s256 = ssub.s32 %s35, %s47
      %s257 = ssub.s32 %s36, %s43
      %s258 = sor.u32 %s256, %s257
      %p259 = scmp.eq.s32.totalorder %s258, 0
      %s261 = sadd.s32 %s260, 1
      %s262 = scalar_select %p259, %s260, %s261
      %p265 = pneg %p259
      %p266 = scmp.eq.s32.totalorder %s28, 1
      %p267 = por %p265, %p266
      %p268 = scmp.ne.s32.totalorder %s260, %s263
      %p269 = scmp.eq.s32.totalorder %s28, 0
      %p270 = por %p268, %p269
      %p271 = scmp.ne.s32.totalorder %s260, %s263
      %p272 = scmp.eq.s32.totalorder %s33, 1
      %p273 = por %p271, %p272
      %p274 = scmp.ne.s32.totalorder %s263, %s264
      %p275 = scmp.eq.s32.totalorder %s33, 0
      %p276 = por %p274, %p275
      %p277 = scmp.ne.s32.totalorder %s263, %s264
      %p278 = scmp.eq.s32.totalorder %s34, 1
      %p279 = por %p277, %p278
      %p281 = scmp.ne.s32.totalorder %s264, %s280
      %p282 = scmp.eq.s32.totalorder %s34, 0
      %p283 = por %p281, %p282
      %p284 = scmp.le.s32.totalorder 1, %s28
      %p285 = scmp.lt.s32.totalorder %s28, 3
      %p286 = pnand %p284, %p285
      %p287 = pneg %p286
      // Predicated region
      $region9: #{tpu_custom_call.1} parent=5 // pred_check
        _
      $region10: #{tpu_custom_call.1} parent=5 // pred_check_branch
        %289 = sbr.rel (%p286) target = $region12
      $region11: #{tpu_custom_call.1} parent=5 // pred_region
        %s290 = ssub.s32 %s28, 1
        // Predicated region
        $region13: #{tpu_custom_call.1} parent=11 // pred_check
          %p291 = pneg %p115
        $region14: #{tpu_custom_call.1} parent=11 // pred_check_branch
          %293 = sbr.rel (%p291) target = $region16
        $region15: #{tpu_custom_call.1} parent=11 // pred_region
          %s295 = ssub.s32 61440, 61440
          %296 = vsyncadd [#allocation8], %s295
          %s297 = sshll.u32 [#allocation9], 4
          %s298 = int_to_ptr.vmem [resolvable:$true] %s297
          %303 = dma.hbm_to_vmem [thread:$0]  %s2, 61440, %s298, [#allocation8], 384, 384, 24
        $region16: #{tpu_custom_call.1} parent=11 // pred_fallthru
          _
        // Predicated region
        $region17: #{tpu_custom_call.1} parent=11 // pred_check
          %p304 = pneg %p136
        $region18: #{tpu_custom_call.1} parent=11 // pred_check_branch
          %306 = sbr.rel (%p304) target = $region20
        $region19: #{tpu_custom_call.1} parent=11 // pred_region
          %s308 = ssub.s32 96, 96
          %309 = vsyncadd [#allocation11], %s308
          %s311 = sshll.u32 [#allocation10], 4
          %s312 = int_to_ptr.vmem [resolvable:$true] %s311
          %314 = dma.hbm_to_vmem [thread:$0]  %s3, 96, %s312, [#allocation11]
        $region20: #{tpu_custom_call.1} parent=11 // pred_fallthru
          _
        // Predicated region
        $region21: #{tpu_custom_call.1} parent=11 // pred_check
          %p315 = pneg %p157
        $region22: #{tpu_custom_call.1} parent=11 // pred_check_branch
          %317 = sbr.rel (%p315) target = $region24
        $region23: #{tpu_custom_call.1} parent=11 // pred_region
          %s319 = ssub.s32 12288, 12288
          %320 = vsyncadd [#allocation11], %s319
          %s321 = sshll.u32 [#allocation12], 4
          %s322 = int_to_ptr.vmem [resolvable:$true] %s321
          %327 = dma.hbm_to_vmem [thread:$0]  %s4, 12288, %s322, [#allocation11], 768, 768, 48
        $region24: #{tpu_custom_call.1} parent=11 // pred_fallthru
          _
        // Predicated region
        $region25: #{tpu_custom_call.1} parent=11 // pred_check
          %p328 = pneg %p178
        $region26: #{tpu_custom_call.1} parent=11 // pred_check_branch
          %330 = sbr.rel (%p328) target = $region28
        $region27: #{tpu_custom_call.1} parent=11 // pred_region
          %s332 = ssub.s32 192, 192
          %333 = vsyncadd [#allocation14], %s332
          %s335 = sshll.u32 [#allocation13], 4
          %s336 = int_to_ptr.vmem [resolvable:$true] %s335
          %338 = dma.hbm_to_vmem [thread:$0]  %s5, 192, %s336, [#allocation14]
        $region28: #{tpu_custom_call.1} parent=11 // pred_fallthru
          _
        // Predicated region
        $region29: #{tpu_custom_call.1} parent=11 // pred_check
          %p339 = pneg %p199
        $region30: #{tpu_custom_call.1} parent=11 // pred_check_branch
          %341 = sbr.rel (%p339) target = $region32
        $region31: #{tpu_custom_call.1} parent=11 // pred_region
          %s343 = ssub.s32 128, 128
          %344 = vsyncadd [#allocation14], %s343
          %s346 = sshll.u32 [#allocation15], 4
          %s347 = int_to_ptr.vmem [resolvable:$true] %s346
          %349 = dma.hbm_to_vmem [thread:$0]  %s6, 128, %s347, [#allocation14]
        $region32: #{tpu_custom_call.1} parent=11 // pred_fallthru
          _
        // Predicated region
        $region33: #{tpu_custom_call.1} parent=11 // pred_check
          %p350 = pneg %p220
        $region34: #{tpu_custom_call.1} parent=11 // pred_check_branch
          %352 = sbr.rel (%p350) target = $region36
        $region35: #{tpu_custom_call.1} parent=11 // pred_region
          %s354 = ssub.s32 128, 128
          %355 = vsyncadd [#allocation17], %s354
          %s357 = sshll.u32 [#allocation16], 4
          %s358 = int_to_ptr.vmem [resolvable:$true] %s357
          %360 = dma.hbm_to_vmem [thread:$0]  %s7, 128, %s358, [#allocation17]
        $region36: #{tpu_custom_call.1} parent=11 // pred_fallthru
          _
      $region12: #{tpu_custom_call.1} parent=5 // pred_fallthru
        _
      %p361 = scmp.lt.s32.totalorder %s28, 2
      // Predicated region
      $region37: #{tpu_custom_call.1} parent=5 // pred_check
        %p362 = pneg %p361
      $region38: #{tpu_custom_call.1} parent=5 // pred_check_branch
        %364 = sbr.rel (%p362) target = $region40
      $region39: #{tpu_custom_call.1} parent=5 // pred_region
        // Predicated region
        $region41: #{tpu_custom_call.1} parent=39 // pred_check
          %p365 = pneg %p62
        $region42: #{tpu_custom_call.1} parent=39 // pred_check_branch
          %367 = sbr.rel (%p365) target = $region44
        $region43: #{tpu_custom_call.1} parent=39 // pred_region
          %s368 = sand.u32 %s52, 1
          %s369 = scalar_lea.sflag [#allocation5], %s368
          %s370 = sand.u32 %s52, 1
          %s371 = smul.addr %s370, 80
          %s372 = scalar_lea.vmem [#allocation4], %s371
          %s374 = ssub.s32 1280, 1280
          %375 = vsyncadd %s369, %s374
          %s376 = smul.addr %s36, 10
          %s377 = smul.addr %s35, 10
          %s378 = sadd.s32 %s376, %s377
          %s379 = smul.addr %s378, 128
          %s380 = scalar_lea.hbm %s0, %s379
          %s382 = sshll.u32 %s372, 4
          %s383 = int_to_ptr.vmem [resolvable:$true] %s382
          %385 = dma.hbm_to_vmem [thread:$0]  %s380, 1280, %s383, %s369
        $region44: #{tpu_custom_call.1} parent=39 // pred_fallthru
          _
        // Predicated region
        $region45: #{tpu_custom_call.1} parent=39 // pred_check
          %p386 = pneg %p88
        $region46: #{tpu_custom_call.1} parent=39 // pred_check_branch
          %388 = sbr.rel (%p386) target = $region48
        $region47: #{tpu_custom_call.1} parent=39 // pred_region
          %s389 = sand.u32 %s28, 1
          %s390 = scalar_lea.sflag [#allocation8], %s389
          %s391 = sand.u32 %s78, 1
          %s392 = smul.addr %s391, 8
          %s393 = scalar_lea.vmem [#allocation7], %s392
          %s395 = ssub.s32 128, 128
          %396 = vsyncadd %s390, %s395
          %s397 = smul.addr %s35, 128
          %s398 = scalar_lea.hbm %s1, %s397
          %s400 = sshll.u32 %s393, 4
          %s401 = int_to_ptr.vmem [resolvable:$true] %s400
          %403 = dma.hbm_to_vmem [thread:$0]  %s398, 128, %s401, %s390
        $region48: #{tpu_custom_call.1} parent=39 // pred_fallthru
          _
      $region40: #{tpu_custom_call.1} parent=5 // pred_fallthru
        _
      %p404 = scmp.le.s32.totalorder 1, %s28
      %p405 = scmp.lt.s32.totalorder %s28, 3
      %p406 = pnand %p404, %p405
      %p407 = pneg %p406
      // Predicated region
      $region49: #{tpu_custom_call.1} parent=5 // pred_check
        _
      $region50: #{tpu_custom_call.1} parent=5 // pred_check_branch
        %409 = sbr.rel (%p406) target = $region52
      $region51: #{tpu_custom_call.1} parent=5 // pred_region
        %s410 = ssub.s32 %s28, 1
        %s411 = sand.u32 %s55, 1
        %s412 = scalar_lea.sflag [#allocation5], %s411
        %s413 = sand.u32 %s55, 1
        %s414 = smul.addr %s413, 80
        %s415 = scalar_lea.vmem [#allocation4], %s414
        // Predicated region
        $region53: #{tpu_custom_call.1} parent=51 // pred_check
          %p416 = pneg %p68
        $region54: #{tpu_custom_call.1} parent=51 // pred_check_branch
          %418 = sbr.rel (%p416) target = $region56
        $region55: #{tpu_custom_call.1} parent=51 // pred_region
          %419 = dma.done %s412, 1280
        $region56: #{tpu_custom_call.1} parent=51 // pred_fallthru
          _
        %s420 = sand.u32 %s33, 1
        %s421 = scalar_lea.sflag [#allocation8], %s420
        %s422 = sand.u32 %s81, 1
        %s423 = smul.addr %s422, 8
        %s424 = scalar_lea.vmem [#allocation7], %s423
        // Predicated region
        $region57: #{tpu_custom_call.1} parent=51 // pred_check
          %p425 = pneg %p94
        $region58: #{tpu_custom_call.1} parent=51 // pred_check_branch
          %427 = sbr.rel (%p425) target = $region60
        $region59: #{tpu_custom_call.1} parent=51 // pred_region
          %428 = dma.done %s421, 128
        $region60: #{tpu_custom_call.1} parent=51 // pred_fallthru
          _
        // Predicated region
        $region61: #{tpu_custom_call.1} parent=51 // pred_check
          %p429 = pneg %p115
        $region62: #{tpu_custom_call.1} parent=51 // pred_check_branch
          %431 = sbr.rel (%p429) target = $region64
        $region63: #{tpu_custom_call.1} parent=51 // pred_region
          %432 = dma.done [#allocation8], 61440
        $region64: #{tpu_custom_call.1} parent=51 // pred_fallthru
          _
        // Predicated region
        $region65: #{tpu_custom_call.1} parent=51 // pred_check
          %p433 = pneg %p136
        $region66: #{tpu_custom_call.1} parent=51 // pred_check_branch
          %435 = sbr.rel (%p433) target = $region68
        $region67: #{tpu_custom_call.1} parent=51 // pred_region
          %436 = dma.done [#allocation11], 96
        $region68: #{tpu_custom_call.1} parent=51 // pred_fallthru
          _
        // Predicated region
        $region69: #{tpu_custom_call.1} parent=51 // pred_check
          %p437 = pneg %p157
        $region70: #{tpu_custom_call.1} parent=51 // pred_check_branch
          %439 = sbr.rel (%p437) target = $region72
        $region71: #{tpu_custom_call.1} parent=51 // pred_region
          %440 = dma.done [#allocation11], 12288
        $region72: #{tpu_custom_call.1} parent=51 // pred_fallthru
          _
        // Predicated region
        $region73: #{tpu_custom_call.1} parent=51 // pred_check
          %p441 = pneg %p178
        $region74: #{tpu_custom_call.1} parent=51 // pred_check_branch
          %443 = sbr.rel (%p441) target = $region76
        $region75: #{tpu_custom_call.1} parent=51 // pred_region
          %444 = dma.done [#allocation14], 192
        $region76: #{tpu_custom_call.1} parent=51 // pred_fallthru
          _
        // Predicated region
        $region77: #{tpu_custom_call.1} parent=51 // pred_check
          %p445 = pneg %p199
        $region78: #{tpu_custom_call.1} parent=51 // pred_check_branch
          %447 = sbr.rel (%p445) target = $region80
        $region79: #{tpu_custom_call.1} parent=51 // pred_region
          %448 = dma.done [#allocation14], 128
        $region80: #{tpu_custom_call.1} parent=51 // pred_fallthru
          _
        // Predicated region
        $region81: #{tpu_custom_call.1} parent=51 // pred_check
          %p449 = pneg %p220
        $region82: #{tpu_custom_call.1} parent=51 // pred_check_branch
          %451 = sbr.rel (%p449) target = $region84
        $region83: #{tpu_custom_call.1} parent=51 // pred_region
          %452 = dma.done [#allocation17], 128
        $region84: #{tpu_custom_call.1} parent=51 // pred_fallthru
          _
        %s453 = sand.u32 %s55, 1
        %s454 = scalar_lea.sflag [#allocation5], %s453
        %s455 = sand.u32 %s55, 1
        %s456 = smul.addr %s455, 80
        %s457 = scalar_lea.vmem [#allocation4], %s456
        %p458 = pneg %p68
        %p459 = pneg %p65
        %s460 = sand.u32 %s33, 1
        %s461 = scalar_lea.sflag [#allocation8], %s460
        %s462 = sand.u32 %s81, 1
        %s463 = smul.addr %s462, 8
        %s464 = scalar_lea.vmem [#allocation7], %s463
        %p465 = pneg %p94
        %p466 = pneg %p91
        %p467 = pneg %p115
        %p468 = pneg %p112
        %p469 = pneg %p136
        %p470 = pneg %p133
        %p471 = pneg %p157
        %p472 = pneg %p154
        %p473 = pneg %p178
        %p474 = pneg %p175
        %p475 = pneg %p199
        %p476 = pneg %p196
        %p477 = pneg %p220
        %p478 = pneg %p217
        %p479 = pneg %p248
        %p480 = pneg %p245
        %s481 = sand.u32 %s235, 1
        %s482 = scalar_lea.sflag [#allocation6], %s481
        %s483 = sand.u32 %s235, 1
        %s484 = smul.addr %s483, 24
        %s485 = scalar_lea.vmem [#allocation18], %s484
        %p486 = pneg %p276
        %p487 = pneg %p273
        %p488 = scmp.lt.s32.totalorder %s37, 1
        %s489 = scalar_select %p488, %s37, 1
        %p490 = scmp.lt.s32.totalorder %s38, 0
        %s491 = scalar_select %p490, %s38, 0
        %s492 = smul.addr %s489, 12
        %s493 = sadd.s32 %s491, %s492
        %s494 = smul.addr %s493, 8
        %s495 = scalar_lea.vmem %s9, %s494
        %p496 = scmp.lt.s32.totalorder %s37, 1
        %s497 = scalar_select %p496, %s37, 1
        %p498 = scmp.lt.s32.totalorder %s38, 0
        %s499 = scalar_select %p498, %s38, 0
        %s500 = smul.addr %s497, 12
        %s501 = sadd.s32 %s499, %s500
        %s502 = smul.addr %s501, 8
        %s503 = scalar_lea.vmem %s9, %s502
        %p505 = scmp.eq.s32.totalorder %s38, 0
        // Predicated region
        $region85: #{tpu_custom_call.1} parent=51 // pred_check
          %p506 = pneg %p505
        $region86: #{tpu_custom_call.1} parent=51 // pred_check_branch
          %508 = sbr.rel (%p506) target = $region88
        $region87: #{tpu_custom_call.1} parent=51 // pred_region
          %v509 = vld [vmem:[%s424] sm:$0xff]
          %v510 = vpack.c.bf16 %v509, %v509
          %v511 = vld [vmem:[#allocation12] sm:$0xff]
          %v512 = vld [vmem:[#allocation12 + $0x8] sm:$0xff]
          %v513 = vld [vmem:[#allocation12 + $0x10] sm:$0xff]
          %v514 = vld [vmem:[#allocation12 + $0x18] sm:$0xff]
          %v515 = vld [vmem:[#allocation12 + $0x20] sm:$0xff]
          %v516 = vld [vmem:[#allocation12 + $0x28] sm:$0xff]
          %v517 = vld [vmem:[#allocation12 + $0x30] sm:$0xff]
          %v518 = vld [vmem:[#allocation12 + $0x38] sm:$0xff]
          %v519 = vld [vmem:[#allocation12 + $0x40] sm:$0xff]
          %v520 = vld [vmem:[#allocation12 + $0x48] sm:$0xff]
          %v521 = vld [vmem:[#allocation12 + $0x50] sm:$0xff]
          %v522 = vld [vmem:[#allocation12 + $0x58] sm:$0xff]
          %v523 = vld [vmem:[#allocation12 + $0x60] sm:$0xff]
          %v524 = vld [vmem:[#allocation12 + $0x68] sm:$0xff]
          %v525 = vld [vmem:[#allocation12 + $0x70] sm:$0xff]
          %v526 = vld [vmem:[#allocation12 + $0x78] sm:$0xff]
          %v527 = vld [vmem:[#allocation12 + $0x80] sm:$0xff]
          %v528 = vld [vmem:[#allocation12 + $0x88] sm:$0xff]
          %v529 = vld [vmem:[#allocation12 + $0x90] sm:$0xff]
          %v530 = vld [vmem:[#allocation12 + $0x98] sm:$0xff]
          %v531 = vld [vmem:[#allocation12 + $0xa0] sm:$0xff]
          %v532 = vld [vmem:[#allocation12 + $0xa8] sm:$0xff]
          %v533 = vld [vmem:[#allocation12 + $0xb0] sm:$0xff]
          %v534 = vld [vmem:[#allocation12 + $0xb8] sm:$0xff]
          %v535 = vld [vmem:[#allocation12 + $0xc0] sm:$0xff]
          %v536 = vld [vmem:[#allocation12 + $0xc8] sm:$0xff]
          %v537 = vld [vmem:[#allocation12 + $0xd0] sm:$0xff]
          %v538 = vld [vmem:[#allocation12 + $0xd8] sm:$0xff]
          %v539 = vld [vmem:[#allocation12 + $0xe0] sm:$0xff]
          %v540 = vld [vmem:[#allocation12 + $0xe8] sm:$0xff]
          %v541 = vld [vmem:[#allocation12 + $0xf0] sm:$0xff]
          %v542 = vld [vmem:[#allocation12 + $0xf8] sm:$0xff]
          %v543 = vld [vmem:[#allocation12 + $0x100] sm:$0xff]
          %v544 = vld [vmem:[#allocation12 + $0x108] sm:$0xff]
          %v545 = vld [vmem:[#allocation12 + $0x110] sm:$0xff]
          %v546 = vld [vmem:[#allocation12 + $0x118] sm:$0xff]
          %v547 = vld [vmem:[#allocation12 + $0x120] sm:$0xff]
          %v548 = vld [vmem:[#allocation12 + $0x128] sm:$0xff]
          %v549 = vld [vmem:[#allocation12 + $0x130] sm:$0xff]
          %v550 = vld [vmem:[#allocation12 + $0x138] sm:$0xff]
          %v551 = vld [vmem:[#allocation12 + $0x140] sm:$0xff]
          %v552 = vld [vmem:[#allocation12 + $0x148] sm:$0xff]
          %v553 = vld [vmem:[#allocation12 + $0x150] sm:$0xff]
          %v554 = vld [vmem:[#allocation12 + $0x158] sm:$0xff]
          %v555 = vld [vmem:[#allocation12 + $0x160] sm:$0xff]
          %v556 = vld [vmem:[#allocation12 + $0x168] sm:$0xff]
          %v557 = vld [vmem:[#allocation12 + $0x170] sm:$0xff]
          %v558 = vld [vmem:[#allocation12 + $0x178] sm:$0xff]
          %v559 = vld [vmem:[#allocation12 + $0x180] sm:$0xff]
          %v560 = vld [vmem:[#allocation12 + $0x188] sm:$0xff]
          %v561 = vld [vmem:[#allocation12 + $0x190] sm:$0xff]
          %v562 = vld [vmem:[#allocation12 + $0x198] sm:$0xff]
          %v563 = vld [vmem:[#allocation12 + $0x1a0] sm:$0xff]
          %v564 = vld [vmem:[#allocation12 + $0x1a8] sm:$0xff]
          %v565 = vld [vmem:[#allocation12 + $0x1b0] sm:$0xff]
          %v566 = vld [vmem:[#allocation12 + $0x1b8] sm:$0xff]
          %v567 = vld [vmem:[#allocation12 + $0x1c0] sm:$0xff]
          %v568 = vld [vmem:[#allocation12 + $0x1c8] sm:$0xff]
          %v569 = vld [vmem:[#allocation12 + $0x1d0] sm:$0xff]
          %v570 = vld [vmem:[#allocation12 + $0x1d8] sm:$0xff]
          %v571 = vld [vmem:[#allocation12 + $0x1e0] sm:$0xff]
          %v572 = vld [vmem:[#allocation12 + $0x1e8] sm:$0xff]
          %v573 = vld [vmem:[#allocation12 + $0x1f0] sm:$0xff]
          %v574 = vld [vmem:[#allocation12 + $0x1f8] sm:$0xff]
          %v575 = vld [vmem:[#allocation12 + $0x200] sm:$0xff]
          %v576 = vld [vmem:[#allocation12 + $0x208] sm:$0xff]
          %v577 = vld [vmem:[#allocation12 + $0x210] sm:$0xff]
          %v578 = vld [vmem:[#allocation12 + $0x218] sm:$0xff]
          %v579 = vld [vmem:[#allocation12 + $0x220] sm:$0xff]
          %v580 = vld [vmem:[#allocation12 + $0x228] sm:$0xff]
          %v581 = vld [vmem:[#allocation12 + $0x230] sm:$0xff]
          %v582 = vld [vmem:[#allocation12 + $0x238] sm:$0xff]
          %v583 = vld [vmem:[#allocation12 + $0x240] sm:$0xff]
          %v584 = vld [vmem:[#allocation12 + $0x248] sm:$0xff]
          %v585 = vld [vmem:[#allocation12 + $0x250] sm:$0xff]
          %v586 = vld [vmem:[#allocation12 + $0x258] sm:$0xff]
          %v587 = vld [vmem:[#allocation12 + $0x260] sm:$0xff]
          %v588 = vld [vmem:[#allocation12 + $0x268] sm:$0xff]
          %v589 = vld [vmem:[#allocation12 + $0x270] sm:$0xff]
          %v590 = vld [vmem:[#allocation12 + $0x278] sm:$0xff]
          %v591 = vld [vmem:[#allocation12 + $0x280] sm:$0xff]
          %v592 = vld [vmem:[#allocation12 + $0x288] sm:$0xff]
          %v593 = vld [vmem:[#allocation12 + $0x290] sm:$0xff]
          %v594 = vld [vmem:[#allocation12 + $0x298] sm:$0xff]
          %v595 = vld [vmem:[#allocation12 + $0x2a0] sm:$0xff]
          %v596 = vld [vmem:[#allocation12 + $0x2a8] sm:$0xff]
          %v597 = vld [vmem:[#allocation12 + $0x2b0] sm:$0xff]
          %v598 = vld [vmem:[#allocation12 + $0x2b8] sm:$0xff]
          %v599 = vld [vmem:[#allocation12 + $0x2c0] sm:$0xff]
          %v600 = vld [vmem:[#allocation12 + $0x2c8] sm:$0xff]
          %v601 = vld [vmem:[#allocation12 + $0x2d0] sm:$0xff]
          %v602 = vld [vmem:[#allocation12 + $0x2d8] sm:$0xff]
          %v603 = vld [vmem:[#allocation12 + $0x2e0] sm:$0xff]
          %v604 = vld [vmem:[#allocation12 + $0x2e8] sm:$0xff]
          %v605 = vld [vmem:[#allocation12 + $0x2f0] sm:$0xff]
          %v606 = vld [vmem:[#allocation12 + $0x2f8] sm:$0xff]
          %v607 = vld [vmem:[#allocation13] sm:$0xff]
          %v608 = vld [vmem:[#allocation13 + $0x8] sm:$0xf]
          %v611 = vlaneseq
          %v612 = vshrl.u32 %v611, 7
          %v613 = vsub.s32 0, %v612
          %v614 = vrot.slane %v607, %v613
          %v615 = vlaneseq
          %v616 = vshrl.u32 %v615, 7
          %v617 = vsub.s32 1, %v616
          %v618 = vrot.slane %v607, %v617
          %v619 = vlaneseq
          %v620 = vshrl.u32 %v619, 7
          %v621 = vsub.s32 2, %v620
          %v622 = vrot.slane %v607, %v621
          %v623 = vlaneseq
          %v624 = vshrl.u32 %v623, 7
          %v625 = vsub.s32 3, %v624
          %v626 = vrot.slane %v607, %v625
          %v627 = vlaneseq
          %v628 = vshrl.u32 %v627, 7
          %v629 = vsub.s32 4, %v628
          %v630 = vrot.slane %v607, %v629
          %v631 = vlaneseq
          %v632 = vshrl.u32 %v631, 7
          %v633 = vsub.s32 5, %v632
          %v634 = vrot.slane %v607, %v633
          %v635 = vlaneseq
          %v636 = vshrl.u32 %v635, 7
          %v637 = vsub.s32 6, %v636
          %v638 = vrot.slane %v607, %v637
          %v639 = vlaneseq
          %v640 = vshrl.u32 %v639, 7
          %v641 = vsub.s32 7, %v640
          %v642 = vrot.slane %v607, %v641
          %v643 = vlaneseq
          %v644 = vshrl.u32 %v643, 7
          %v645 = vsub.s32 0, %v644
          %v646 = vrot.slane %v608, %v645
          %v647 = vlaneseq
          %v648 = vshrl.u32 %v647, 7
          %v649 = vsub.s32 1, %v648
          %v650 = vrot.slane %v608, %v649
          %v651 = vlaneseq
          %v652 = vshrl.u32 %v651, 7
          %v653 = vsub.s32 2, %v652
          %v654 = vrot.slane %v608, %v653
          %v655 = vlaneseq
          %v656 = vshrl.u32 %v655, 7
          %v657 = vsub.s32 3, %v656
          %v658 = vrot.slane %v608, %v657
          %v767 = vunpack.c.l.b16 %v511
          %v768 = vunpack.c.h.b16 %v511
          %v769 = vunpack.c.l.b16 %v512
          %v770 = vunpack.c.h.b16 %v512
          %v771 = vunpack.c.l.b16 %v513
          %v772 = vunpack.c.h.b16 %v513
          %v773 = vunpack.c.l.b16 %v514
          %v774 = vunpack.c.h.b16 %v514
          %v775 = vunpack.c.l.b16 %v515
          %v776 = vunpack.c.h.b16 %v515
          %v777 = vunpack.c.l.b16 %v516
          %v778 = vunpack.c.h.b16 %v516
          %v779 = vunpack.c.l.b16 %v517
          %v780 = vunpack.c.h.b16 %v517
          %v781 = vunpack.c.l.b16 %v518
          %v782 = vunpack.c.h.b16 %v518
          %v783 = vunpack.c.l.b16 %v519
          %v784 = vunpack.c.h.b16 %v519
          %v785 = vunpack.c.l.b16 %v520
          %v786 = vunpack.c.h.b16 %v520
          %v787 = vunpack.c.l.b16 %v521
          %v788 = vunpack.c.h.b16 %v521
          %v789 = vunpack.c.l.b16 %v522
          %v790 = vunpack.c.h.b16 %v522
          %v791 = vunpack.c.l.b16 %v523
          %v792 = vunpack.c.h.b16 %v523
          %v793 = vunpack.c.l.b16 %v524
          %v794 = vunpack.c.h.b16 %v524
          %v795 = vunpack.c.l.b16 %v525
          %v796 = vunpack.c.h.b16 %v525
          %v797 = vunpack.c.l.b16 %v526
          %v798 = vunpack.c.h.b16 %v526
          %v799 = vunpack.c.l.b16 %v527
          %v800 = vunpack.c.h.b16 %v527
          %v801 = vunpack.c.l.b16 %v528
          %v802 = vunpack.c.h.b16 %v528
          %v803 = vunpack.c.l.b16 %v529
          %v804 = vunpack.c.h.b16 %v529
          %v805 = vunpack.c.l.b16 %v530
          %v806 = vunpack.c.h.b16 %v530
          %v807 = vunpack.c.l.b16 %v531
          %v808 = vunpack.c.h.b16 %v531
          %v809 = vunpack.c.l.b16 %v532
          %v810 = vunpack.c.h.b16 %v532
          %v811 = vunpack.c.l.b16 %v533
          %v812 = vunpack.c.h.b16 %v533
          %v813 = vunpack.c.l.b16 %v534
          %v814 = vunpack.c.h.b16 %v534
          %v815 = vunpack.c.l.b16 %v535
          %v816 = vunpack.c.h.b16 %v535
          %v817 = vunpack.c.l.b16 %v536
          %v818 = vunpack.c.h.b16 %v536
          %v819 = vunpack.c.l.b16 %v537
          %v820 = vunpack.c.h.b16 %v537
          %v821 = vunpack.c.l.b16 %v538
          %v822 = vunpack.c.h.b16 %v538
          %v823 = vunpack.c.l.b16 %v539
          %v824 = vunpack.c.h.b16 %v539
          %v825 = vunpack.c.l.b16 %v540
          %v826 = vunpack.c.h.b16 %v540
          %v827 = vunpack.c.l.b16 %v541
          %v828 = vunpack.c.h.b16 %v541
          %v829 = vunpack.c.l.b16 %v542
          %v830 = vunpack.c.h.b16 %v542
          %v831 = vunpack.c.l.b16 %v543
          %v832 = vunpack.c.h.b16 %v543
          %v833 = vunpack.c.l.b16 %v544
          %v834 = vunpack.c.h.b16 %v544
          %v835 = vunpack.c.l.b16 %v545
          %v836 = vunpack.c.h.b16 %v545
          %v837 = vunpack.c.l.b16 %v546
          %v838 = vunpack.c.h.b16 %v546
          %v839 = vunpack.c.l.b16 %v547
          %v840 = vunpack.c.h.b16 %v547
          %v841 = vunpack.c.l.b16 %v548
          %v842 = vunpack.c.h.b16 %v548
          %v843 = vunpack.c.l.b16 %v549
          %v844 = vunpack.c.h.b16 %v549
          %v845 = vunpack.c.l.b16 %v550
          %v846 = vunpack.c.h.b16 %v550
          %v847 = vunpack.c.l.b16 %v551
          %v848 = vunpack.c.h.b16 %v551
          %v849 = vunpack.c.l.b16 %v552
          %v850 = vunpack.c.h.b16 %v552
          %v851 = vunpack.c.l.b16 %v553
          %v852 = vunpack.c.h.b16 %v553
          %v853 = vunpack.c.l.b16 %v554
          %v854 = vunpack.c.h.b16 %v554
          %v855 = vunpack.c.l.b16 %v555
          %v856 = vunpack.c.h.b16 %v555
          %v857 = vunpack.c.l.b16 %v556
          %v858 = vunpack.c.h.b16 %v556
          %v859 = vunpack.c.l.b16 %v557
          %v860 = vunpack.c.h.b16 %v557
          %v861 = vunpack.c.l.b16 %v558
          %v862 = vunpack.c.h.b16 %v558
          %v863 = vunpack.c.l.b16 %v559
          %v864 = vunpack.c.h.b16 %v559
          %v865 = vunpack.c.l.b16 %v560
          %v866 = vunpack.c.h.b16 %v560
          %v867 = vunpack.c.l.b16 %v561
          %v868 = vunpack.c.h.b16 %v561
          %v869 = vunpack.c.l.b16 %v562
          %v870 = vunpack.c.h.b16 %v562
          %v871 = vunpack.c.l.b16 %v563
          %v872 = vunpack.c.h.b16 %v563
          %v873 = vunpack.c.l.b16 %v564
          %v874 = vunpack.c.h.b16 %v564
          %v875 = vunpack.c.l.b16 %v565
          %v876 = vunpack.c.h.b16 %v565
          %v877 = vunpack.c.l.b16 %v566
          %v878 = vunpack.c.h.b16 %v566
          %v879 = vunpack.c.l.b16 %v567
          %v880 = vunpack.c.h.b16 %v567
          %v881 = vunpack.c.l.b16 %v568
          %v882 = vunpack.c.h.b16 %v568
          %v883 = vunpack.c.l.b16 %v569
          %v884 = vunpack.c.h.b16 %v569
          %v885 = vunpack.c.l.b16 %v570
          %v886 = vunpack.c.h.b16 %v570
          %v887 = vunpack.c.l.b16 %v571
          %v888 = vunpack.c.h.b16 %v571
          %v889 = vunpack.c.l.b16 %v572
          %v890 = vunpack.c.h.b16 %v572
          %v891 = vunpack.c.l.b16 %v573
          %v892 = vunpack.c.h.b16 %v573
          %v893 = vunpack.c.l.b16 %v574
          %v894 = vunpack.c.h.b16 %v574
          %v895 = vunpack.c.l.b16 %v575
          %v896 = vunpack.c.h.b16 %v575
          %v897 = vunpack.c.l.b16 %v576
          %v898 = vunpack.c.h.b16 %v576
          %v899 = vunpack.c.l.b16 %v577
          %v900 = vunpack.c.h.b16 %v577
          %v901 = vunpack.c.l.b16 %v578
          %v902 = vunpack.c.h.b16 %v578
          %v903 = vunpack.c.l.b16 %v579
          %v904 = vunpack.c.h.b16 %v579
          %v905 = vunpack.c.l.b16 %v580
          %v906 = vunpack.c.h.b16 %v580
          %v907 = vunpack.c.l.b16 %v581
          %v908 = vunpack.c.h.b16 %v581
          %v909 = vunpack.c.l.b16 %v582
          %v910 = vunpack.c.h.b16 %v582
          %v911 = vunpack.c.l.b16 %v583
          %v912 = vunpack.c.h.b16 %v583
          %v913 = vunpack.c.l.b16 %v584
          %v914 = vunpack.c.h.b16 %v584
          %v915 = vunpack.c.l.b16 %v585
          %v916 = vunpack.c.h.b16 %v585
          %v917 = vunpack.c.l.b16 %v586
          %v918 = vunpack.c.h.b16 %v586
          %v919 = vunpack.c.l.b16 %v587
          %v920 = vunpack.c.h.b16 %v587
          %v921 = vunpack.c.l.b16 %v588
          %v922 = vunpack.c.h.b16 %v588
          %v923 = vunpack.c.l.b16 %v589
          %v924 = vunpack.c.h.b16 %v589
          %v925 = vunpack.c.l.b16 %v590
          %v926 = vunpack.c.h.b16 %v590
          %v927 = vunpack.c.l.b16 %v591
          %v928 = vunpack.c.h.b16 %v591
          %v929 = vunpack.c.l.b16 %v592
          %v930 = vunpack.c.h.b16 %v592
          %v931 = vunpack.c.l.b16 %v593
          %v932 = vunpack.c.h.b16 %v593
          %v933 = vunpack.c.l.b16 %v594
          %v934 = vunpack.c.h.b16 %v594
          %v935 = vunpack.c.l.b16 %v595
          %v936 = vunpack.c.h.b16 %v595
          %v937 = vunpack.c.l.b16 %v596
          %v938 = vunpack.c.h.b16 %v596
          %v939 = vunpack.c.l.b16 %v597
          %v940 = vunpack.c.h.b16 %v597
          %v941 = vunpack.c.l.b16 %v598
          %v942 = vunpack.c.h.b16 %v598
          %v943 = vunpack.c.l.b16 %v599
          %v944 = vunpack.c.h.b16 %v599
          %v945 = vunpack.c.l.b16 %v600
          %v946 = vunpack.c.h.b16 %v600
          %v947 = vunpack.c.l.b16 %v601
          %v948 = vunpack.c.h.b16 %v601
          %v949 = vunpack.c.l.b16 %v602
          %v950 = vunpack.c.h.b16 %v602
          %v951 = vunpack.c.l.b16 %v603
          %v952 = vunpack.c.h.b16 %v603
          %v953 = vunpack.c.l.b16 %v604
          %v954 = vunpack.c.h.b16 %v604
          %v955 = vunpack.c.l.b16 %v605
          %v956 = vunpack.c.h.b16 %v605
          %v957 = vunpack.c.l.b16 %v606
          %v958 = vunpack.c.h.b16 %v606
          %v959 = vpack.c.b16 %v779, %v767
          %v960 = vpack.c.b16 %v780, %v768
          %v961 = vpack.c.b16 %v781, %v769
          %v962 = vpack.c.b16 %v782, %v770
          %v963 = vpack.c.b16 %v783, %v771
          %v964 = vpack.c.b16 %v784, %v772
          %v965 = vpack.c.b16 %v785, %v773
          %v966 = vpack.c.b16 %v786, %v774
          %v967 = vpack.c.b16 %v787, %v775
          %v968 = vpack.c.b16 %v788, %v776
          %v969 = vpack.c.b16 %v789, %v777
          %v970 = vpack.c.b16 %v790, %v778
          %v971 = vpack.c.b16 %v803, %v791
          %v972 = vpack.c.b16 %v804, %v792
          %v973 = vpack.c.b16 %v805, %v793
          %v974 = vpack.c.b16 %v806, %v794
          %v975 = vpack.c.b16 %v807, %v795
          %v976 = vpack.c.b16 %v808, %v796
          %v977 = vpack.c.b16 %v809, %v797
          %v978 = vpack.c.b16 %v810, %v798
          %v979 = vpack.c.b16 %v811, %v799
          %v980 = vpack.c.b16 %v812, %v800
          %v981 = vpack.c.b16 %v813, %v801
          %v982 = vpack.c.b16 %v814, %v802
          %v983 = vpack.c.b16 %v827, %v815
          %v984 = vpack.c.b16 %v828, %v816
          %v985 = vpack.c.b16 %v829, %v817
          %v986 = vpack.c.b16 %v830, %v818
          %v987 = vpack.c.b16 %v831, %v819
          %v988 = vpack.c.b16 %v832, %v820
          %v989 = vpack.c.b16 %v833, %v821
          %v990 = vpack.c.b16 %v834, %v822
          %v991 = vpack.c.b16 %v835, %v823
          %v992 = vpack.c.b16 %v836, %v824
          %v993 = vpack.c.b16 %v837, %v825
          %v994 = vpack.c.b16 %v838, %v826
          %v995 = vpack.c.b16 %v851, %v839
          %v996 = vpack.c.b16 %v852, %v840
          %v997 = vpack.c.b16 %v853, %v841
          %v998 = vpack.c.b16 %v854, %v842
          %v999 = vpack.c.b16 %v855, %v843
          %v1000 = vpack.c.b16 %v856, %v844
          %v1001 = vpack.c.b16 %v857, %v845
          %v1002 = vpack.c.b16 %v858, %v846
          %v1003 = vpack.c.b16 %v859, %v847
          %v1004 = vpack.c.b16 %v860, %v848
          %v1005 = vpack.c.b16 %v861, %v849
          %v1006 = vpack.c.b16 %v862, %v850
          %v1007 = vpack.c.b16 %v875, %v863
          %v1008 = vpack.c.b16 %v876, %v864
          %v1009 = vpack.c.b16 %v877, %v865
          %v1010 = vpack.c.b16 %v878, %v866
          %v1011 = vpack.c.b16 %v879, %v867
          %v1012 = vpack.c.b16 %v880, %v868
          %v1013 = vpack.c.b16 %v881, %v869
          %v1014 = vpack.c.b16 %v882, %v870
          %v1015 = vpack.c.b16 %v883, %v871
          %v1016 = vpack.c.b16 %v884, %v872
          %v1017 = vpack.c.b16 %v885, %v873
          %v1018 = vpack.c.b16 %v886, %v874
          %v1019 = vpack.c.b16 %v899, %v887
          %v1020 = vpack.c.b16 %v900, %v888
          %v1021 = vpack.c.b16 %v901, %v889
          %v1022 = vpack.c.b16 %v902, %v890
          %v1023 = vpack.c.b16 %v903, %v891
          %v1024 = vpack.c.b16 %v904, %v892
          %v1025 = vpack.c.b16 %v905, %v893
          %v1026 = vpack.c.b16 %v906, %v894
          %v1027 = vpack.c.b16 %v907, %v895
          %v1028 = vpack.c.b16 %v908, %v896
          %v1029 = vpack.c.b16 %v909, %v897
          %v1030 = vpack.c.b16 %v910, %v898
          %v1031 = vpack.c.b16 %v923, %v911
          %v1032 = vpack.c.b16 %v924, %v912
          %v1033 = vpack.c.b16 %v925, %v913
          %v1034 = vpack.c.b16 %v926, %v914
          %v1035 = vpack.c.b16 %v927, %v915
          %v1036 = vpack.c.b16 %v928, %v916
          %v1037 = vpack.c.b16 %v929, %v917
          %v1038 = vpack.c.b16 %v930, %v918
          %v1039 = vpack.c.b16 %v931, %v919
          %v1040 = vpack.c.b16 %v932, %v920
          %v1041 = vpack.c.b16 %v933, %v921
          %v1042 = vpack.c.b16 %v934, %v922
          %v1043 = vpack.c.b16 %v947, %v935
          %v1044 = vpack.c.b16 %v948, %v936
          %v1045 = vpack.c.b16 %v949, %v937
          %v1046 = vpack.c.b16 %v950, %v938
          %v1047 = vpack.c.b16 %v951, %v939
          %v1048 = vpack.c.b16 %v952, %v940
          %v1049 = vpack.c.b16 %v953, %v941
          %v1050 = vpack.c.b16 %v954, %v942
          %v1051 = vpack.c.b16 %v955, %v943
          %v1052 = vpack.c.b16 %v956, %v944
          %v1053 = vpack.c.b16 %v957, %v945
          %v1054 = vpack.c.b16 %v958, %v946
          %1151 = vmatprep.subr.bf16.mxu0 %v960
          %1152 = vmatpush1.bf16.msra.mxu0 %v959
          %1153 = vmatprep.subr.bf16.mxu0 %v972
          %1154 = vmatpush1.bf16.msra.mxu0 %v971
          %1155 = vmatprep.subr.bf16.mxu0 %v984
          %1156 = vmatpush1.bf16.msra.mxu0 %v983
          %1157 = vmatprep.subr.bf16.mxu0 %v996
          %1158 = vmatpush1.bf16.msra.mxu0 %v995
          %1159 = vmatprep.subr.bf16.mxu0 %v1008
          %1160 = vmatpush1.bf16.msra.mxu0 %v1007
          %1161 = vmatprep.subr.bf16.mxu0 %v1020
          %1162 = vmatpush1.bf16.msra.mxu0 %v1019
          %1163 = vmatprep.subr.bf16.mxu0 %v1032
          %1164 = vmatpush1.bf16.msra.mxu0 %v1031
          %1165 = vmatprep.subr.bf16.mxu0 %v1044
          %1166 = vmatpush1.bf16.msra.mxu0 %v1043
          %1167 = vmatprep.subr.bf16.mxu0 0
          %1168 = vmatpush1.bf16.msra.mxu0 0
          %1169 = vmatprep.subr.bf16.mxu0 0
          %1170 = vmatpush1.bf16.msra.mxu0 0
          %1171 = vmatprep.subr.bf16.mxu0 0
          %1172 = vmatpush1.bf16.msra.mxu0 0
          %1173 = vmatprep.subr.bf16.mxu0 0
          %1174 = vmatpush1.bf16.msra.mxu0 0
          %1175 = vmatprep.subr.bf16.mxu0 0
          %1176 = vmatpush1.bf16.msra.mxu0 0
          %1177 = vmatprep.subr.bf16.mxu0 0
          %1178 = vmatpush1.bf16.msra.mxu0 0
          %1179 = vmatprep.subr.bf16.mxu0 0
          %1180 = vmatpush1.bf16.msra.mxu0 0
          %1181 = vmatprep.subr.bf16.mxu0 0
          %1182 = vmatpush1.bf16.msra.mxu0 0
          %1183 = vmatprep.mubr.bf16.mxu0 0
          %1184 = vmatmul.mubr.bf16.gmra.mrb[0].mxu0 %v510
          %v1185 = vpop.f32.mrb[0].mxu0
          %v1186 = vadd.f32 %v614, %v1185
          %v1187 = vpop.f32.mrb[0].mxu0
          %v1188 = vadd.f32 %v618, %v1187
          %v1189 = vpop.f32.mrb[0].mxu0
          %v1190 = vpop.f32.mrb[0].mxu0
          %1191 = vdwg.mxu0
          %1192 = vmatprep.subr.bf16.mxu0 %v962
          %1193 = vmatpush1.bf16.msra.mxu0 %v961
          %1194 = vmatprep.subr.bf16.mxu0 %v974
          %1195 = vmatpush1.bf16.msra.mxu0 %v973
          %1196 = vmatprep.subr.bf16.mxu0 %v986
          %1197 = vmatpush1.bf16.msra.mxu0 %v985
          %1198 = vmatprep.subr.bf16.mxu0 %v998
          %1199 = vmatpush1.bf16.msra.mxu0 %v997
          %1200 = vmatprep.subr.bf16.mxu0 %v1010
          %1201 = vmatpush1.bf16.msra.mxu0 %v1009
          %1202 = vmatprep.subr.bf16.mxu0 %v1022
          %1203 = vmatpush1.bf16.msra.mxu0 %v1021
          %1204 = vmatprep.subr.bf16.mxu0 %v1034
          %1205 = vmatpush1.bf16.msra.mxu0 %v1033
          %1206 = vmatprep.subr.bf16.mxu0 %v1046
          %1207 = vmatpush1.bf16.msra.mxu0 %v1045
          %1208 = vmatprep.subr.bf16.mxu0 0
          %1209 = vmatpush1.bf16.msra.mxu0 0
          %1210 = vmatprep.subr.bf16.mxu0 0
          %1211 = vmatpush1.bf16.msra.mxu0 0
          %1212 = vmatprep.subr.bf16.mxu0 0
          %1213 = vmatpush1.bf16.msra.mxu0 0
          %1214 = vmatprep.subr.bf16.mxu0 0
          %1215 = vmatpush1.bf16.msra.mxu0 0
          %1216 = vmatprep.subr.bf16.mxu0 0
          %1217 = vmatpush1.bf16.msra.mxu0 0
          %1218 = vmatprep.subr.bf16.mxu0 0
          %1219 = vmatpush1.bf16.msra.mxu0 0
          %1220 = vmatprep.subr.bf16.mxu0 0
          %1221 = vmatpush1.bf16.msra.mxu0 0
          %1222 = vmatprep.subr.bf16.mxu0 0
          %1223 = vmatpush1.bf16.msra.mxu0 0
          %1224 = vmatprep.mubr.bf16.mxu0 0
          %1225 = vmatmul.mubr.bf16.gmra.mrb[0].mxu0 %v510
          %v1226 = vpop.f32.mrb[0].mxu0
          %v1227 = vadd.f32 %v622, %v1226
          %v1228 = vpop.f32.mrb[0].mxu0
          %v1229 = vadd.f32 %v626, %v1228
          %v1230 = vpop.f32.mrb[0].mxu0
          %v1231 = vpop.f32.mrb[0].mxu0
          %1232 = vdwg.mxu0
          %1233 = vmatprep.subr.bf16.mxu0 %v964
          %1234 = vmatpush1.bf16.msra.mxu0 %v963
          %1235 = vmatprep.subr.bf16.mxu0 %v976
          %1236 = vmatpush1.bf16.msra.mxu0 %v975
          %1237 = vmatprep.subr.bf16.mxu0 %v988
          %1238 = vmatpush1.bf16.msra.mxu0 %v987
          %1239 = vmatprep.subr.bf16.mxu0 %v1000
          %1240 = vmatpush1.bf16.msra.mxu0 %v999
          %1241 = vmatprep.subr.bf16.mxu0 %v1012
          %1242 = vmatpush1.bf16.msra.mxu0 %v1011
          %1243 = vmatprep.subr.bf16.mxu0 %v1024
          %1244 = vmatpush1.bf16.msra.mxu0 %v1023
          %1245 = vmatprep.subr.bf16.mxu0 %v1036
          %1246 = vmatpush1.bf16.msra.mxu0 %v1035
          %1247 = vmatprep.subr.bf16.mxu0 %v1048
          %1248 = vmatpush1.bf16.msra.mxu0 %v1047
          %1249 = vmatprep.subr.bf16.mxu0 0
          %1250 = vmatpush1.bf16.msra.mxu0 0
          %1251 = vmatprep.subr.bf16.mxu0 0
          %1252 = vmatpush1.bf16.msra.mxu0 0
          %1253 = vmatprep.subr.bf16.mxu0 0
          %1254 = vmatpush1.bf16.msra.mxu0 0
          %1255 = vmatprep.subr.bf16.mxu0 0
          %1256 = vmatpush1.bf16.msra.mxu0 0
          %1257 = vmatprep.subr.bf16.mxu0 0
          %1258 = vmatpush1.bf16.msra.mxu0 0
          %1259 = vmatprep.subr.bf16.mxu0 0
          %1260 = vmatpush1.bf16.msra.mxu0 0
          %1261 = vmatprep.subr.bf16.mxu0 0
          %1262 = vmatpush1.bf16.msra.mxu0 0
          %1263 = vmatprep.subr.bf16.mxu0 0
          %1264 = vmatpush1.bf16.msra.mxu0 0
          %1265 = vmatprep.mubr.bf16.mxu0 0
          %1266 = vmatmul.mubr.bf16.gmra.mrb[0].mxu0 %v510
          %v1267 = vpop.f32.mrb[0].mxu0
          %v1268 = vadd.f32 %v630, %v1267
          %v1269 = vpop.f32.mrb[0].mxu0
          %v1270 = vadd.f32 %v634, %v1269
          %v1271 = vpop.f32.mrb[0].mxu0
          %v1272 = vpop.f32.mrb[0].mxu0
          %1273 = vdwg.mxu0
          %1274 = vmatprep.subr.bf16.mxu0 %v966
          %1275 = vmatpush1.bf16.msra.mxu0 %v965
          %1276 = vmatprep.subr.bf16.mxu0 %v978
          %1277 = vmatpush1.bf16.msra.mxu0 %v977
          %1278 = vmatprep.subr.bf16.mxu0 %v990
          %1279 = vmatpush1.bf16.msra.mxu0 %v989
          %1280 = vmatprep.subr.bf16.mxu0 %v1002
          %1281 = vmatpush1.bf16.msra.mxu0 %v1001
          %1282 = vmatprep.subr.bf16.mxu0 %v1014
          %1283 = vmatpush1.bf16.msra.mxu0 %v1013
          %1284 = vmatprep.subr.bf16.mxu0 %v1026
          %1285 = vmatpush1.bf16.msra.mxu0 %v1025
          %1286 = vmatprep.subr.bf16.mxu0 %v1038
          %1287 = vmatpush1.bf16.msra.mxu0 %v1037
          %1288 = vmatprep.subr.bf16.mxu0 %v1050
          %1289 = vmatpush1.bf16.msra.mxu0 %v1049
          %1290 = vmatprep.subr.bf16.mxu0 0
          %1291 = vmatpush1.bf16.msra.mxu0 0
          %1292 = vmatprep.subr.bf16.mxu0 0
          %1293 = vmatpush1.bf16.msra.mxu0 0
          %1294 = vmatprep.subr.bf16.mxu0 0
          %1295 = vmatpush1.bf16.msra.mxu0 0
          %1296 = vmatprep.subr.bf16.mxu0 0
          %1297 = vmatpush1.bf16.msra.mxu0 0
          %1298 = vmatprep.subr.bf16.mxu0 0
          %1299 = vmatpush1.bf16.msra.mxu0 0
          %1300 = vmatprep.subr.bf16.mxu0 0
          %1301 = vmatpush1.bf16.msra.mxu0 0
          %1302 = vmatprep.subr.bf16.mxu0 0
          %1303 = vmatpush1.bf16.msra.mxu0 0
          %1304 = vmatprep.subr.bf16.mxu0 0
          %1305 = vmatpush1.bf16.msra.mxu0 0
          %1306 = vmatprep.mubr.bf16.mxu0 0
          %1307 = vmatmul.mubr.bf16.gmra.mrb[0].mxu0 %v510
          %v1308 = vpop.f32.mrb[0].mxu0
          %v1309 = vadd.f32 %v638, %v1308
          %v1310 = vpop.f32.mrb[0].mxu0
          %v1311 = vadd.f32 %v642, %v1310
          %v1312 = vpop.f32.mrb[0].mxu0
          %v1313 = vpop.f32.mrb[0].mxu0
          %1314 = vdwg.mxu0
          %1315 = vmatprep.subr.bf16.mxu0 %v968
          %1316 = vmatpush1.bf16.msra.mxu0 %v967
          %1317 = vmatprep.subr.bf16.mxu0 %v980
          %1318 = vmatpush1.bf16.msra.mxu0 %v979
          %1319 = vmatprep.subr.bf16.mxu0 %v992
          %1320 = vmatpush1.bf16.msra.mxu0 %v991
          %1321 = vmatprep.subr.bf16.mxu0 %v1004
          %1322 = vmatpush1.bf16.msra.mxu0 %v1003
          %1323 = vmatprep.subr.bf16.mxu0 %v1016
          %1324 = vmatpush1.bf16.msra.mxu0 %v1015
          %1325 = vmatprep.subr.bf16.mxu0 %v1028
          %1326 = vmatpush1.bf16.msra.mxu0 %v1027
          %1327 = vmatprep.subr.bf16.mxu0 %v1040
          %1328 = vmatpush1.bf16.msra.mxu0 %v1039
          %1329 = vmatprep.subr.bf16.mxu0 %v1052
          %1330 = vmatpush1.bf16.msra.mxu0 %v1051
          %1331 = vmatprep.subr.bf16.mxu0 0
          %1332 = vmatpush1.bf16.msra.mxu0 0
          %1333 = vmatprep.subr.bf16.mxu0 0
          %1334 = vmatpush1.bf16.msra.mxu0 0
          %1335 = vmatprep.subr.bf16.mxu0 0
          %1336 = vmatpush1.bf16.msra.mxu0 0
          %1337 = vmatprep.subr.bf16.mxu0 0
          %1338 = vmatpush1.bf16.msra.mxu0 0
          %1339 = vmatprep.subr.bf16.mxu0 0
          %1340 = vmatpush1.bf16.msra.mxu0 0
          %1341 = vmatprep.subr.bf16.mxu0 0
          %1342 = vmatpush1.bf16.msra.mxu0 0
          %1343 = vmatprep.subr.bf16.mxu0 0
          %1344 = vmatpush1.bf16.msra.mxu0 0
          %1345 = vmatprep.subr.bf16.mxu0 0
          %1346 = vmatpush1.bf16.msra.mxu0 0
          %1347 = vmatprep.mubr.bf16.mxu0 0
          %1348 = vmatmul.mubr.bf16.gmra.mrb[0].mxu0 %v510
          %v1349 = vpop.f32.mrb[0].mxu0
          %v1350 = vadd.f32 %v646, %v1349
          %v1351 = vpop.f32.mrb[0].mxu0
          %v1352 = vadd.f32 %v650, %v1351
          %v1353 = vpop.f32.mrb[0].mxu0
          %v1354 = vpop.f32.mrb[0].mxu0
          %1355 = vdwg.mxu0
          %1356 = vmatprep.subr.bf16.mxu0 %v970
          %1357 = vmatpush1.bf16.msra.mxu0 %v969
          %1358 = vmatprep.subr.bf16.mxu0 %v982
          %1359 = vmatpush1.bf16.msra.mxu0 %v981
          %1360 = vmatprep.subr.bf16.mxu0 %v994
          %1361 = vmatpush1.bf16.msra.mxu0 %v993
          %1362 = vmatprep.subr.bf16.mxu0 %v1006
          %1363 = vmatpush1.bf16.msra.mxu0 %v1005
          %1364 = vmatprep.subr.bf16.mxu0 %v1018
          %1365 = vmatpush1.bf16.msra.mxu0 %v1017
          %1366 = vmatprep.subr.bf16.mxu0 %v1030
          %1367 = vmatpush1.bf16.msra.mxu0 %v1029
          %1368 = vmatprep.subr.bf16.mxu0 %v1042
          %1369 = vmatpush1.bf16.msra.mxu0 %v1041
          %1370 = vmatprep.subr.bf16.mxu0 %v1054
          %1371 = vmatpush1.bf16.msra.mxu0 %v1053
          %1372 = vmatprep.subr.bf16.mxu0 0
          %1373 = vmatpush1.bf16.msra.mxu0 0
          %1374 = vmatprep.subr.bf16.mxu0 0
          %1375 = vmatpush1.bf16.msra.mxu0 0
          %1376 = vmatprep.subr.bf16.mxu0 0
          %1377 = vmatpush1.bf16.msra.mxu0 0
          %1378 = vmatprep.subr.bf16.mxu0 0
          %1379 = vmatpush1.bf16.msra.mxu0 0
          %1380 = vmatprep.subr.bf16.mxu0 0
          %1381 = vmatpush1.bf16.msra.mxu0 0
          %1382 = vmatprep.subr.bf16.mxu0 0
          %1383 = vmatpush1.bf16.msra.mxu0 0
          %1384 = vmatprep.subr.bf16.mxu0 0
          %1385 = vmatpush1.bf16.msra.mxu0 0
          %1386 = vmatprep.subr.bf16.mxu0 0
          %1387 = vmatpush1.bf16.msra.mxu0 0
          %1388 = vmatprep.mubr.bf16.mxu0 0
          %1389 = vmatmul.mubr.bf16.gmra.mrb[0].mxu0 %v510
          %v1390 = vpop.f32.mrb[0].mxu0
          %v1391 = vadd.f32 %v654, %v1390
          %v1392 = vpop.f32.mrb[0].mxu0
          %v1393 = vadd.f32 %v658, %v1392
          %v1394 = vpop.f32.mrb[0].mxu0
          %v1395 = vpop.f32.mrb[0].mxu0
          %1396 = vdwg.mxu0
          %1398 = vrot.lane.b32.xlu0 %v1186, 64
          %v1399 = vpop.permute.xlu0 %1398
          %1402 = vrot.lane.b32.xlu0 %v1188, 64
          %v1403 = vpop.permute.xlu0 %1402
          %1406 = vrot.lane.b32.xlu0 %v1227, 64
          %v1407 = vpop.permute.xlu0 %1406
          %1410 = vrot.lane.b32.xlu0 %v1229, 64
          %v1411 = vpop.permute.xlu0 %1410
          %1414 = vrot.lane.b32.xlu0 %v1268, 64
          %v1415 = vpop.permute.xlu0 %1414
          %1418 = vrot.lane.b32.xlu0 %v1270, 64
          %v1419 = vpop.permute.xlu0 %1418
          %v1421 = vcombine.low %v1186, %v1188
          %v1422 = vcombine.high %v1186, %v1188
          %v1424 = vunpack.c.l.s4 1983009808
          %v1425 = vunpack.c.0.s8 %v1424
          %v1426 = vlaneseq
          %v1427 = vshrl.u32 %v1426, 7
          %v1428 = vsub.s32 %v1425, %v1427
          %v1429 = vrot.slane %v1421, %v1428
          %v1431 = vunpack.c.l.s4 1983009808
          %v1432 = vunpack.c.0.s8 %v1431
          %v1433 = vlaneseq
          %v1434 = vshrl.u32 %v1433, 7
          %v1435 = vsub.s32 %v1432, %v1434
          %v1436 = vrot.slane %v1422, %v1435
          %v1437 = vcombine.low %v1399, %v1403
          %v1438 = vcombine.high %v1399, %v1403
          %v1440 = vunpack.c.l.s4 1983009808
          %v1441 = vunpack.c.0.s8 %v1440
          %v1442 = vlaneseq
          %v1443 = vshrl.u32 %v1442, 7
          %v1444 = vsub.s32 %v1441, %v1443
          %v1445 = vrot.slane %v1437, %v1444
          %v1447 = vunpack.c.l.s4 1983009808
          %v1448 = vunpack.c.0.s8 %v1447
          %v1449 = vlaneseq
          %v1450 = vshrl.u32 %v1449, 7
          %v1451 = vsub.s32 %v1448, %v1450
          %v1452 = vrot.slane %v1438, %v1451
          %v1453 = vcombine.low %v1227, %v1229
          %v1454 = vcombine.high %v1227, %v1229
          %v1456 = vunpack.c.l.s4 1983009808
          %v1457 = vunpack.c.0.s8 %v1456
          %v1458 = vlaneseq
          %v1459 = vshrl.u32 %v1458, 7
          %v1460 = vsub.s32 %v1457, %v1459
          %v1461 = vrot.slane %v1453, %v1460
          %v1463 = vunpack.c.l.s4 1983009808
          %v1464 = vunpack.c.0.s8 %v1463
          %v1465 = vlaneseq
          %v1466 = vshrl.u32 %v1465, 7
          %v1467 = vsub.s32 %v1464, %v1466
          %v1468 = vrot.slane %v1454, %v1467
          %v1469 = vcombine.low %v1407, %v1411
          %v1470 = vcombine.high %v1407, %v1411
          %v1472 = vunpack.c.l.s4 1983009808
          %v1473 = vunpack.c.0.s8 %v1472
          %v1474 = vlaneseq
          %v1475 = vshrl.u32 %v1474, 7
          %v1476 = vsub.s32 %v1473, %v1475
          %v1477 = vrot.slane %v1469, %v1476
          %v1479 = vunpack.c.l.s4 1983009808
          %v1480 = vunpack.c.0.s8 %v1479
          %v1481 = vlaneseq
          %v1482 = vshrl.u32 %v1481, 7
          %v1483 = vsub.s32 %v1480, %v1482
          %v1484 = vrot.slane %v1470, %v1483
          %v1485 = vcombine.low %v1429, %v1445
          %v1486 = vcombine.high %v1429, %v1445
          %v1488 = vunpack.c.l.s4 1934713408
          %v1489 = vunpack.c.0.s8 %v1488
          %v1490 = vlaneseq
          %v1491 = vshrl.u32 %v1490, 7
          %v1492 = vsub.s32 %v1489, %v1491
          %v1493 = vrot.slane %v1485, %v1492
          %v1495 = vunpack.c.l.s4 1934713408
          %v1496 = vunpack.c.0.s8 %v1495
          %v1497 = vlaneseq
          %v1498 = vshrl.u32 %v1497, 7
          %v1499 = vsub.s32 %v1496, %v1498
          %v1500 = vrot.slane %v1486, %v1499
          %v1501 = vcombine.low %v1436, %v1452
          %v1502 = vcombine.high %v1436, %v1452
          %v1504 = vunpack.c.l.s4 1934713408
          %v1505 = vunpack.c.0.s8 %v1504
          %v1506 = vlaneseq
          %v1507 = vshrl.u32 %v1506, 7
          %v1508 = vsub.s32 %v1505, %v1507
          %v1509 = vrot.slane %v1501, %v1508
          %v1511 = vunpack.c.l.s4 1934713408
          %v1512 = vunpack.c.0.s8 %v1511
          %v1513 = vlaneseq
          %v1514 = vshrl.u32 %v1513, 7
          %v1515 = vsub.s32 %v1512, %v1514
          %v1516 = vrot.slane %v1502, %v1515
          %v1517 = vcombine.low %v1461, %v1477
          %v1518 = vcombine.high %v1461, %v1477
          %v1520 = vunpack.c.l.s4 1934713408
          %v1521 = vunpack.c.0.s8 %v1520
          %v1522 = vlaneseq
          %v1523 = vshrl.u32 %v1522, 7
          %v1524 = vsub.s32 %v1521, %v1523
          %v1525 = vrot.slane %v1517, %v1524
          %v1527 = vunpack.c.l.s4 1934713408
          %v1528 = vunpack.c.0.s8 %v1527
          %v1529 = vlaneseq
          %v1530 = vshrl.u32 %v1529, 7
          %v1531 = vsub.s32 %v1528, %v1530
          %v1532 = vrot.slane %v1518, %v1531
          %v1533 = vcombine.low %v1468, %v1484
          %v1534 = vcombine.high %v1468, %v1484
          %v1536 = vunpack.c.l.s4 1934713408
          %v1537 = vunpack.c.0.s8 %v1536
          %v1538 = vlaneseq
          %v1539 = vshrl.u32 %v1538, 7
          %v1540 = vsub.s32 %v1537, %v1539
          %v1541 = vrot.slane %v1533, %v1540
          %v1543 = vunpack.c.l.s4 1934713408
          %v1544 = vunpack.c.0.s8 %v1543
          %v1545 = vlaneseq
          %v1546 = vshrl.u32 %v1545, 7
          %v1547 = vsub.s32 %v1544, %v1546
          %v1548 = vrot.slane %v1534, %v1547
          %v1549 = vcombine.low %v1493, %v1525
          %v1550 = vcombine.high %v1493, %v1525
          %v1551 = vcombine.low %v1500, %v1532
          %v1552 = vcombine.high %v1500, %v1532
          %v1553 = vcombine.low %v1509, %v1541
          %v1554 = vcombine.high %v1509, %v1541
          %v1555 = vcombine.low %v1516, %v1548
          %v1556 = vcombine.high %v1516, %v1548
          %v1557 = vcombine.low %v1268, %v1270
          %v1558 = vcombine.high %v1268, %v1270
          %v1560 = vunpack.c.l.s4 1983009808
          %v1561 = vunpack.c.0.s8 %v1560
          %v1562 = vlaneseq
          %v1563 = vshrl.u32 %v1562, 7
          %v1564 = vsub.s32 %v1561, %v1563
          %v1565 = vrot.slane %v1557, %v1564
          %v1567 = vunpack.c.l.s4 1983009808
          %v1568 = vunpack.c.0.s8 %v1567
          %v1569 = vlaneseq
          %v1570 = vshrl.u32 %v1569, 7
          %v1571 = vsub.s32 %v1568, %v1570
          %v1572 = vrot.slane %v1558, %v1571
          %v1573 = vcombine.low %v1415, %v1419
          %v1574 = vcombine.high %v1415, %v1419
          %v1576 = vunpack.c.l.s4 1983009808
          %v1577 = vunpack.c.0.s8 %v1576
          %v1578 = vlaneseq
          %v1579 = vshrl.u32 %v1578, 7
          %v1580 = vsub.s32 %v1577, %v1579
          %v1581 = vrot.slane %v1573, %v1580
          %v1583 = vunpack.c.l.s4 1983009808
          %v1584 = vunpack.c.0.s8 %v1583
          %v1585 = vlaneseq
          %v1586 = vshrl.u32 %v1585, 7
          %v1587 = vsub.s32 %v1584, %v1586
          %v1588 = vrot.slane %v1574, %v1587
          %v1589 = vcombine.low %v1565, %v1581
          %v1590 = vcombine.high %v1565, %v1581
          %v1592 = vunpack.c.l.s4 1934713408
          %v1593 = vunpack.c.0.s8 %v1592
          %v1594 = vlaneseq
          %v1595 = vshrl.u32 %v1594, 7
          %v1596 = vsub.s32 %v1593, %v1595
          %v1597 = vrot.slane %v1589, %v1596
          %v1599 = vunpack.c.l.s4 1934713408
          %v1600 = vunpack.c.0.s8 %v1599
          %v1601 = vlaneseq
          %v1602 = vshrl.u32 %v1601, 7
          %v1603 = vsub.s32 %v1600, %v1602
          %v1604 = vrot.slane %v1590, %v1603
          %v1605 = vcombine.low %v1572, %v1588
          %v1606 = vcombine.high %v1572, %v1588
          %v1608 = vunpack.c.l.s4 1934713408
          %v1609 = vunpack.c.0.s8 %v1608
          %v1610 = vlaneseq
          %v1611 = vshrl.u32 %v1610, 7
          %v1612 = vsub.s32 %v1609, %v1611
          %v1613 = vrot.slane %v1605, %v1612
          %v1615 = vunpack.c.l.s4 1934713408
          %v1616 = vunpack.c.0.s8 %v1615
          %v1617 = vlaneseq
          %v1618 = vshrl.u32 %v1617, 7
          %v1619 = vsub.s32 %v1616, %v1618
          %v1620 = vrot.slane %v1606, %v1619
          %v1621 = vcombine.high %v1597, 0.0
          %v1622 = vcombine.high %v1604, 0.0
          %v1623 = vcombine.high %v1613, 0.0
          %v1624 = vcombine.high %v1620, 0.0
          %v1625 = vcombine.low %v1549, %v1551
          %v1626 = vcombine.high %v1549, %v1551
          %v1628 = vunpack.c.l.s4 1983009808
          %v1629 = vunpack.c.0.s8 %v1628
          %v1630 = vlaneseq
          %v1631 = vshrl.u32 %v1630, 7
          %v1632 = vsub.s32 %v1629, %v1631
          %v1633 = vrot.slane %v1625, %v1632
          %v1635 = vunpack.c.l.s4 1983009808
          %v1636 = vunpack.c.0.s8 %v1635
          %v1637 = vlaneseq
          %v1638 = vshrl.u32 %v1637, 7
          %v1639 = vsub.s32 %v1636, %v1638
          %v1640 = vrot.slane %v1626, %v1639
          %v1641 = vcombine.low %v1550, %v1552
          %v1642 = vcombine.high %v1550, %v1552
          %v1644 = vunpack.c.l.s4 1983009808
          %v1645 = vunpack.c.0.s8 %v1644
          %v1646 = vlaneseq
          %v1647 = vshrl.u32 %v1646, 7
          %v1648 = vsub.s32 %v1645, %v1647
          %v1649 = vrot.slane %v1641, %v1648
          %v1651 = vunpack.c.l.s4 1983009808
          %v1652 = vunpack.c.0.s8 %v1651
          %v1653 = vlaneseq
          %v1654 = vshrl.u32 %v1653, 7
          %v1655 = vsub.s32 %v1652, %v1654
          %v1656 = vrot.slane %v1642, %v1655
          %v1657 = vcombine.low %v1553, %v1555
          %v1658 = vcombine.high %v1553, %v1555
          %v1660 = vunpack.c.l.s4 1983009808
          %v1661 = vunpack.c.0.s8 %v1660
          %v1662 = vlaneseq
          %v1663 = vshrl.u32 %v1662, 7
          %v1664 = vsub.s32 %v1661, %v1663
          %v1665 = vrot.slane %v1657, %v1664
          %v1667 = vunpack.c.l.s4 1983009808
          %v1668 = vunpack.c.0.s8 %v1667
          %v1669 = vlaneseq
          %v1670 = vshrl.u32 %v1669, 7
          %v1671 = vsub.s32 %v1668, %v1670
          %v1672 = vrot.slane %v1658, %v1671
          %v1673 = vcombine.low %v1554, %v1556
          %v1674 = vcombine.high %v1554, %v1556
          %v1676 = vunpack.c.l.s4 1983009808
          %v1677 = vunpack.c.0.s8 %v1676
          %v1678 = vlaneseq
          %v1679 = vshrl.u32 %v1678, 7
          %v1680 = vsub.s32 %v1677, %v1679
          %v1681 = vrot.slane %v1673, %v1680
          %v1683 = vunpack.c.l.s4 1983009808
          %v1684 = vunpack.c.0.s8 %v1683
          %v1685 = vlaneseq
          %v1686 = vshrl.u32 %v1685, 7
          %v1687 = vsub.s32 %v1684, %v1686
          %v1688 = vrot.slane %v1674, %v1687
          %v1689 = vcombine.low %v1633, %v1649
          %v1690 = vcombine.high %v1633, %v1649
          %v1692 = vunpack.c.l.s4 1934713408
          %v1693 = vunpack.c.0.s8 %v1692
          %v1694 = vlaneseq
          %v1695 = vshrl.u32 %v1694, 7
          %v1696 = vsub.s32 %v1693, %v1695
          %v1697 = vrot.slane %v1689, %v1696
          %v1699 = vunpack.c.l.s4 1934713408
          %v1700 = vunpack.c.0.s8 %v1699
          %v1701 = vlaneseq
          %v1702 = vshrl.u32 %v1701, 7
          %v1703 = vsub.s32 %v1700, %v1702
          %v1704 = vrot.slane %v1690, %v1703
          %v1705 = vcombine.low %v1640, %v1656
          %v1706 = vcombine.high %v1640, %v1656
          %v1708 = vunpack.c.l.s4 1934713408
          %v1709 = vunpack.c.0.s8 %v1708
          %v1710 = vlaneseq
          %v1711 = vshrl.u32 %v1710, 7
          %v1712 = vsub.s32 %v1709, %v1711
          %v1713 = vrot.slane %v1705, %v1712
          %v1715 = vunpack.c.l.s4 1934713408
          %v1716 = vunpack.c.0.s8 %v1715
          %v1717 = vlaneseq
          %v1718 = vshrl.u32 %v1717, 7
          %v1719 = vsub.s32 %v1716, %v1718
          %v1720 = vrot.slane %v1706, %v1719
          %v1721 = vcombine.low %v1665, %v1681
          %v1722 = vcombine.high %v1665, %v1681
          %v1724 = vunpack.c.l.s4 1934713408
          %v1725 = vunpack.c.0.s8 %v1724
          %v1726 = vlaneseq
          %v1727 = vshrl.u32 %v1726, 7
          %v1728 = vsub.s32 %v1725, %v1727
          %v1729 = vrot.slane %v1721, %v1728
          %v1731 = vunpack.c.l.s4 1934713408
          %v1732 = vunpack.c.0.s8 %v1731
          %v1733 = vlaneseq
          %v1734 = vshrl.u32 %v1733, 7
          %v1735 = vsub.s32 %v1732, %v1734
          %v1736 = vrot.slane %v1722, %v1735
          %v1737 = vcombine.low %v1672, %v1688
          %v1738 = vcombine.high %v1672, %v1688
          %v1740 = vunpack.c.l.s4 1934713408
          %v1741 = vunpack.c.0.s8 %v1740
          %v1742 = vlaneseq
          %v1743 = vshrl.u32 %v1742, 7
          %v1744 = vsub.s32 %v1741, %v1743
          %v1745 = vrot.slane %v1737, %v1744
          %v1747 = vunpack.c.l.s4 1934713408
          %v1748 = vunpack.c.0.s8 %v1747
          %v1749 = vlaneseq
          %v1750 = vshrl.u32 %v1749, 7
          %v1751 = vsub.s32 %v1748, %v1750
          %v1752 = vrot.slane %v1738, %v1751
          %v1753 = vcombine.low %v1697, %v1729
          %v1754 = vcombine.high %v1697, %v1729
          %v1755 = vcombine.low %v1704, %v1736
          %v1756 = vcombine.high %v1704, %v1736
          %v1757 = vcombine.low %v1713, %v1745
          %v1758 = vcombine.high %v1713, %v1745
          %v1759 = vcombine.low %v1720, %v1752
          %v1760 = vcombine.high %v1720, %v1752
          %v1761 = vcombine.low %v1597, %v1604
          %v1763 = vunpack.c.l.s4 1983009808
          %v1764 = vunpack.c.0.s8 %v1763
          %v1765 = vlaneseq
          %v1766 = vshrl.u32 %v1765, 7
          %v1767 = vsub.s32 %v1764, %v1766
          %v1768 = vrot.slane %v1761, %v1767
          %v1769 = vcombine.low %v1621, %v1622
          %v1771 = vunpack.c.l.s4 1983009808
          %v1772 = vunpack.c.0.s8 %v1771
          %v1773 = vlaneseq
          %v1774 = vshrl.u32 %v1773, 7
          %v1775 = vsub.s32 %v1772, %v1774
          %v1776 = vrot.slane %v1769, %v1775
          %v1777 = vcombine.low %v1613, %v1620
          %v1779 = vunpack.c.l.s4 1983009808
          %v1780 = vunpack.c.0.s8 %v1779
          %v1781 = vlaneseq
          %v1782 = vshrl.u32 %v1781, 7
          %v1783 = vsub.s32 %v1780, %v1782
          %v1784 = vrot.slane %v1777, %v1783
          %v1785 = vcombine.low %v1623, %v1624
          %v1787 = vunpack.c.l.s4 1983009808
          %v1788 = vunpack.c.0.s8 %v1787
          %v1789 = vlaneseq
          %v1790 = vshrl.u32 %v1789, 7
          %v1791 = vsub.s32 %v1788, %v1790
          %v1792 = vrot.slane %v1785, %v1791
          %v1793 = vcombine.low %v1768, %v1776
          %v1794 = vcombine.high %v1768, %v1776
          %v1796 = vunpack.c.l.s4 1934713408
          %v1797 = vunpack.c.0.s8 %v1796
          %v1798 = vlaneseq
          %v1799 = vshrl.u32 %v1798, 7
          %v1800 = vsub.s32 %v1797, %v1799
          %v1801 = vrot.slane %v1793, %v1800
          %v1803 = vunpack.c.l.s4 1934713408
          %v1804 = vunpack.c.0.s8 %v1803
          %v1805 = vlaneseq
          %v1806 = vshrl.u32 %v1805, 7
          %v1807 = vsub.s32 %v1804, %v1806
          %v1808 = vrot.slane %v1794, %v1807
          %v1809 = vcombine.low %v1784, %v1792
          %v1810 = vcombine.high %v1784, %v1792
          %v1812 = vunpack.c.l.s4 1934713408
          %v1813 = vunpack.c.0.s8 %v1812
          %v1814 = vlaneseq
          %v1815 = vshrl.u32 %v1814, 7
          %v1816 = vsub.s32 %v1813, %v1815
          %v1817 = vrot.slane %v1809, %v1816
          %v1819 = vunpack.c.l.s4 1934713408
          %v1820 = vunpack.c.0.s8 %v1819
          %v1821 = vlaneseq
          %v1822 = vshrl.u32 %v1821, 7
          %v1823 = vsub.s32 %v1820, %v1822
          %v1824 = vrot.slane %v1810, %v1823
          %v1825 = vcombine.low %v1801, %v1817
          %v1826 = vcombine.high %v1801, %v1817
          %v1827 = vcombine.low %v1808, %v1824
          %v1828 = vcombine.high %v1808, %v1824
          %1830 = vrot.lane.b32.xlu0 %v1309, 64
          %v1831 = vpop.permute.xlu0 %1830
          %1834 = vrot.lane.b32.xlu0 %v1311, 64
          %v1835 = vpop.permute.xlu0 %1834
          %1838 = vrot.lane.b32.xlu0 %v1350, 64
          %v1839 = vpop.permute.xlu0 %1838
          %1842 = vrot.lane.b32.xlu0 %v1352, 64
          %v1843 = vpop.permute.xlu0 %1842
          %1846 = vrot.lane.b32.xlu0 %v1391, 64
          %v1847 = vpop.permute.xlu0 %1846
          %1850 = vrot.lane.b32.xlu0 %v1393, 64
          %v1851 = vpop.permute.xlu0 %1850
          %v1853 = vcombine.low %v1309, %v1311
          %v1854 = vcombine.high %v1309, %v1311
          %v1856 = vunpack.c.l.s4 1983009808
          %v1857 = vunpack.c.0.s8 %v1856
          %v1858 = vlaneseq
          %v1859 = vshrl.u32 %v1858, 7
          %v1860 = vsub.s32 %v1857, %v1859
          %v1861 = vrot.slane %v1853, %v1860
          %v1863 = vunpack.c.l.s4 1983009808
          %v1864 = vunpack.c.0.s8 %v1863
          %v1865 = vlaneseq
          %v1866 = vshrl.u32 %v1865, 7
          %v1867 = vsub.s32 %v1864, %v1866
          %v1868 = vrot.slane %v1854, %v1867
          %v1869 = vcombine.low %v1831, %v1835
          %v1870 = vcombine.high %v1831, %v1835
          %v1872 = vunpack.c.l.s4 1983009808
          %v1873 = vunpack.c.0.s8 %v1872
          %v1874 = vlaneseq
          %v1875 = vshrl.u32 %v1874, 7
          %v1876 = vsub.s32 %v1873, %v1875
          %v1877 = vrot.slane %v1869, %v1876
          %v1879 = vunpack.c.l.s4 1983009808
          %v1880 = vunpack.c.0.s8 %v1879
          %v1881 = vlaneseq
          %v1882 = vshrl.u32 %v1881, 7
          %v1883 = vsub.s32 %v1880, %v1882
          %v1884 = vrot.slane %v1870, %v1883
          %v1885 = vcombine.low %v1350, %v1352
          %v1886 = vcombine.high %v1350, %v1352
          %v1888 = vunpack.c.l.s4 1983009808
          %v1889 = vunpack.c.0.s8 %v1888
          %v1890 = vlaneseq
          %v1891 = vshrl.u32 %v1890, 7
          %v1892 = vsub.s32 %v1889, %v1891
          %v1893 = vrot.slane %v1885, %v1892
          %v1895 = vunpack.c.l.s4 1983009808
          %v1896 = vunpack.c.0.s8 %v1895
          %v1897 = vlaneseq
          %v1898 = vshrl.u32 %v1897, 7
          %v1899 = vsub.s32 %v1896, %v1898
          %v1900 = vrot.slane %v1886, %v1899
          %v1901 = vcombine.low %v1839, %v1843
          %v1902 = vcombine.high %v1839, %v1843
          %v1904 = vunpack.c.l.s4 1983009808
          %v1905 = vunpack.c.0.s8 %v1904
          %v1906 = vlaneseq
          %v1907 = vshrl.u32 %v1906, 7
          %v1908 = vsub.s32 %v1905, %v1907
          %v1909 = vrot.slane %v1901, %v1908
          %v1911 = vunpack.c.l.s4 1983009808
          %v1912 = vunpack.c.0.s8 %v1911
          %v1913 = vlaneseq
          %v1914 = vshrl.u32 %v1913, 7
          %v1915 = vsub.s32 %v1912, %v1914
          %v1916 = vrot.slane %v1902, %v1915
          %v1917 = vcombine.low %v1861, %v1877
          %v1918 = vcombine.high %v1861, %v1877
          %v1920 = vunpack.c.l.s4 1934713408
          %v1921 = vunpack.c.0.s8 %v1920
          %v1922 = vlaneseq
          %v1923 = vshrl.u32 %v1922, 7
          %v1924 = vsub.s32 %v1921, %v1923
          %v1925 = vrot.slane %v1917, %v1924
          %v1927 = vunpack.c.l.s4 1934713408
          %v1928 = vunpack.c.0.s8 %v1927
          %v1929 = vlaneseq
          %v1930 = vshrl.u32 %v1929, 7
          %v1931 = vsub.s32 %v1928, %v1930
          %v1932 = vrot.slane %v1918, %v1931
          %v1933 = vcombine.low %v1868, %v1884
          %v1934 = vcombine.high %v1868, %v1884
          %v1936 = vunpack.c.l.s4 1934713408
          %v1937 = vunpack.c.0.s8 %v1936
          %v1938 = vlaneseq
          %v1939 = vshrl.u32 %v1938, 7
          %v1940 = vsub.s32 %v1937, %v1939
          %v1941 = vrot.slane %v1933, %v1940
          %v1943 = vunpack.c.l.s4 1934713408
          %v1944 = vunpack.c.0.s8 %v1943
          %v1945 = vlaneseq
          %v1946 = vshrl.u32 %v1945, 7
          %v1947 = vsub.s32 %v1944, %v1946
          %v1948 = vrot.slane %v1934, %v1947
          %v1949 = vcombine.low %v1893, %v1909
          %v1950 = vcombine.high %v1893, %v1909
          %v1952 = vunpack.c.l.s4 1934713408
          %v1953 = vunpack.c.0.s8 %v1952
          %v1954 = vlaneseq
          %v1955 = vshrl.u32 %v1954, 7
          %v1956 = vsub.s32 %v1953, %v1955
          %v1957 = vrot.slane %v1949, %v1956
          %v1959 = vunpack.c.l.s4 1934713408
          %v1960 = vunpack.c.0.s8 %v1959
          %v1961 = vlaneseq
          %v1962 = vshrl.u32 %v1961, 7
          %v1963 = vsub.s32 %v1960, %v1962
          %v1964 = vrot.slane %v1950, %v1963
          %v1965 = vcombine.low %v1900, %v1916
          %v1966 = vcombine.high %v1900, %v1916
          %v1968 = vunpack.c.l.s4 1934713408
          %v1969 = vunpack.c.0.s8 %v1968
          %v1970 = vlaneseq
          %v1971 = vshrl.u32 %v1970, 7
          %v1972 = vsub.s32 %v1969, %v1971
          %v1973 = vrot.slane %v1965, %v1972
          %v1975 = vunpack.c.l.s4 1934713408
          %v1976 = vunpack.c.0.s8 %v1975
          %v1977 = vlaneseq
          %v1978 = vshrl.u32 %v1977, 7
          %v1979 = vsub.s32 %v1976, %v1978
          %v1980 = vrot.slane %v1966, %v1979
          %v1981 = vcombine.low %v1925, %v1957
          %v1982 = vcombine.high %v1925, %v1957
          %v1983 = vcombine.low %v1932, %v1964
          %v1984 = vcombine.high %v1932, %v1964
          %v1985 = vcombine.low %v1941, %v1973
          %v1986 = vcombine.high %v1941, %v1973
          %v1987 = vcombine.low %v1948, %v1980
          %v1988 = vcombine.high %v1948, %v1980
          %v1989 = vcombine.low %v1391, %v1393
          %v1990 = vcombine.high %v1391, %v1393
          %v1992 = vunpack.c.l.s4 1983009808
          %v1993 = vunpack.c.0.s8 %v1992
          %v1994 = vlaneseq
          %v1995 = vshrl.u32 %v1994, 7
          %v1996 = vsub.s32 %v1993, %v1995
          %v1997 = vrot.slane %v1989, %v1996
          %v1999 = vunpack.c.l.s4 1983009808
          %v2000 = vunpack.c.0.s8 %v1999
          %v2001 = vlaneseq
          %v2002 = vshrl.u32 %v2001, 7
          %v2003 = vsub.s32 %v2000, %v2002
          %v2004 = vrot.slane %v1990, %v2003
          %v2005 = vcombine.low %v1847, %v1851
          %v2006 = vcombine.high %v1847, %v1851
          %v2008 = vunpack.c.l.s4 1983009808
          %v2009 = vunpack.c.0.s8 %v2008
          %v2010 = vlaneseq
          %v2011 = vshrl.u32 %v2010, 7
          %v2012 = vsub.s32 %v2009, %v2011
          %v2013 = vrot.slane %v2005, %v2012
          %v2015 = vunpack.c.l.s4 1983009808
          %v2016 = vunpack.c.0.s8 %v2015
          %v2017 = vlaneseq
          %v2018 = vshrl.u32 %v2017, 7
          %v2019 = vsub.s32 %v2016, %v2018
          %v2020 = vrot.slane %v2006, %v2019
          %v2021 = vcombine.low %v1997, %v2013
          %v2022 = vcombine.high %v1997, %v2013
          %v2024 = vunpack.c.l.s4 1934713408
          %v2025 = vunpack.c.0.s8 %v2024
          %v2026 = vlaneseq
          %v2027 = vshrl.u32 %v2026, 7
          %v2028 = vsub.s32 %v2025, %v2027
          %v2029 = vrot.slane %v2021, %v2028
          %v2031 = vunpack.c.l.s4 1934713408
          %v2032 = vunpack.c.0.s8 %v2031
          %v2033 = vlaneseq
          %v2034 = vshrl.u32 %v2033, 7
          %v2035 = vsub.s32 %v2032, %v2034
          %v2036 = vrot.slane %v2022, %v2035
          %v2037 = vcombine.low %v2004, %v2020
          %v2038 = vcombine.high %v2004, %v2020
          %v2040 = vunpack.c.l.s4 1934713408
          %v2041 = vunpack.c.0.s8 %v2040
          %v2042 = vlaneseq
          %v2043 = vshrl.u32 %v2042, 7
          %v2044 = vsub.s32 %v2041, %v2043
          %v2045 = vrot.slane %v2037, %v2044
          %v2047 = vunpack.c.l.s4 1934713408
          %v2048 = vunpack.c.0.s8 %v2047
          %v2049 = vlaneseq
          %v2050 = vshrl.u32 %v2049, 7
          %v2051 = vsub.s32 %v2048, %v2050
          %v2052 = vrot.slane %v2038, %v2051
          %v2053 = vcombine.high %v2029, 0.0
          %v2054 = vcombine.high %v2036, 0.0
          %v2055 = vcombine.high %v2045, 0.0
          %v2056 = vcombine.high %v2052, 0.0
          %v2057 = vcombine.low %v1981, %v1983
          %v2058 = vcombine.high %v1981, %v1983
          %v2060 = vunpack.c.l.s4 1983009808
          %v2061 = vunpack.c.0.s8 %v2060
          %v2062 = vlaneseq
          %v2063 = vshrl.u32 %v2062, 7
          %v2064 = vsub.s32 %v2061, %v2063
          %v2065 = vrot.slane %v2057, %v2064
          %v2067 = vunpack.c.l.s4 1983009808
          %v2068 = vunpack.c.0.s8 %v2067
          %v2069 = vlaneseq
          %v2070 = vshrl.u32 %v2069, 7
          %v2071 = vsub.s32 %v2068, %v2070
          %v2072 = vrot.slane %v2058, %v2071
          %v2073 = vcombine.low %v1982, %v1984
          %v2074 = vcombine.high %v1982, %v1984
          %v2076 = vunpack.c.l.s4 1983009808
          %v2077 = vunpack.c.0.s8 %v2076
          %v2078 = vlaneseq
          %v2079 = vshrl.u32 %v2078, 7
          %v2080 = vsub.s32 %v2077, %v2079
          %v2081 = vrot.slane %v2073, %v2080
          %v2083 = vunpack.c.l.s4 1983009808
          %v2084 = vunpack.c.0.s8 %v2083
          %v2085 = vlaneseq
          %v2086 = vshrl.u32 %v2085, 7
          %v2087 = vsub.s32 %v2084, %v2086
          %v2088 = vrot.slane %v2074, %v2087
          %v2089 = vcombine.low %v1985, %v1987
          %v2090 = vcombine.high %v1985, %v1987
          %v2092 = vunpack.c.l.s4 1983009808
          %v2093 = vunpack.c.0.s8 %v2092
          %v2094 = vlaneseq
          %v2095 = vshrl.u32 %v2094, 7
          %v2096 = vsub.s32 %v2093, %v2095
          %v2097 = vrot.slane %v2089, %v2096
          %v2099 = vunpack.c.l.s4 1983009808
          %v2100 = vunpack.c.0.s8 %v2099
          %v2101 = vlaneseq
          %v2102 = vshrl.u32 %v2101, 7
          %v2103 = vsub.s32 %v2100, %v2102
          %v2104 = vrot.slane %v2090, %v2103
          %v2105 = vcombine.low %v1986, %v1988
          %v2106 = vcombine.high %v1986, %v1988
          %v2108 = vunpack.c.l.s4 1983009808
          %v2109 = vunpack.c.0.s8 %v2108
          %v2110 = vlaneseq
          %v2111 = vshrl.u32 %v2110, 7
          %v2112 = vsub.s32 %v2109, %v2111
          %v2113 = vrot.slane %v2105, %v2112
          %v2115 = vunpack.c.l.s4 1983009808
          %v2116 = vunpack.c.0.s8 %v2115
          %v2117 = vlaneseq
          %v2118 = vshrl.u32 %v2117, 7
          %v2119 = vsub.s32 %v2116, %v2118
          %v2120 = vrot.slane %v2106, %v2119
          %v2121 = vcombine.low %v2065, %v2081
          %v2122 = vcombine.high %v2065, %v2081
          %v2124 = vunpack.c.l.s4 1934713408
          %v2125 = vunpack.c.0.s8 %v2124
          %v2126 = vlaneseq
          %v2127 = vshrl.u32 %v2126, 7
          %v2128 = vsub.s32 %v2125, %v2127
          %v2129 = vrot.slane %v2121, %v2128
          %v2131 = vunpack.c.l.s4 1934713408
          %v2132 = vunpack.c.0.s8 %v2131
          %v2133 = vlaneseq
          %v2134 = vshrl.u32 %v2133, 7
          %v2135 = vsub.s32 %v2132, %v2134
          %v2136 = vrot.slane %v2122, %v2135
          %v2137 = vcombine.low %v2072, %v2088
          %v2138 = vcombine.high %v2072, %v2088
          %v2140 = vunpack.c.l.s4 1934713408
          %v2141 = vunpack.c.0.s8 %v2140
          %v2142 = vlaneseq
          %v2143 = vshrl.u32 %v2142, 7
          %v2144 = vsub.s32 %v2141, %v2143
          %v2145 = vrot.slane %v2137, %v2144
          %v2147 = vunpack.c.l.s4 1934713408
          %v2148 = vunpack.c.0.s8 %v2147
          %v2149 = vlaneseq
          %v2150 = vshrl.u32 %v2149, 7
          %v2151 = vsub.s32 %v2148, %v2150
          %v2152 = vrot.slane %v2138, %v2151
          %v2153 = vcombine.low %v2097, %v2113
          %v2154 = vcombine.high %v2097, %v2113
          %v2156 = vunpack.c.l.s4 1934713408
          %v2157 = vunpack.c.0.s8 %v2156
          %v2158 = vlaneseq
          %v2159 = vshrl.u32 %v2158, 7
          %v2160 = vsub.s32 %v2157, %v2159
          %v2161 = vrot.slane %v2153, %v2160
          %v2163 = vunpack.c.l.s4 1934713408
          %v2164 = vunpack.c.0.s8 %v2163
          %v2165 = vlaneseq
          %v2166 = vshrl.u32 %v2165, 7
          %v2167 = vsub.s32 %v2164, %v2166
          %v2168 = vrot.slane %v2154, %v2167
          %v2169 = vcombine.low %v2104, %v2120
          %v2170 = vcombine.high %v2104, %v2120
          %v2172 = vunpack.c.l.s4 1934713408
          %v2173 = vunpack.c.0.s8 %v2172
          %v2174 = vlaneseq
          %v2175 = vshrl.u32 %v2174, 7
          %v2176 = vsub.s32 %v2173, %v2175
          %v2177 = vrot.slane %v2169, %v2176
          %v2179 = vunpack.c.l.s4 1934713408
          %v2180 = vunpack.c.0.s8 %v2179
          %v2181 = vlaneseq
          %v2182 = vshrl.u32 %v2181, 7
          %v2183 = vsub.s32 %v2180, %v2182
          %v2184 = vrot.slane %v2170, %v2183
          %v2185 = vcombine.low %v2129, %v2161
          %v2186 = vcombine.high %v2129, %v2161
          %v2187 = vcombine.low %v2136, %v2168
          %v2188 = vcombine.high %v2136, %v2168
          %v2189 = vcombine.low %v2145, %v2177
          %v2190 = vcombine.high %v2145, %v2177
          %v2191 = vcombine.low %v2152, %v2184
          %v2192 = vcombine.high %v2152, %v2184
          %v2193 = vcombine.low %v2029, %v2036
          %v2195 = vunpack.c.l.s4 1983009808
          %v2196 = vunpack.c.0.s8 %v2195
          %v2197 = vlaneseq
          %v2198 = vshrl.u32 %v2197, 7
          %v2199 = vsub.s32 %v2196, %v2198
          %v2200 = vrot.slane %v2193, %v2199
          %v2201 = vcombine.low %v2053, %v2054
          %v2203 = vunpack.c.l.s4 1983009808
          %v2204 = vunpack.c.0.s8 %v2203
          %v2205 = vlaneseq
          %v2206 = vshrl.u32 %v2205, 7
          %v2207 = vsub.s32 %v2204, %v2206
          %v2208 = vrot.slane %v2201, %v2207
          %v2209 = vcombine.low %v2045, %v2052
          %v2211 = vunpack.c.l.s4 1983009808
          %v2212 = vunpack.c.0.s8 %v2211
          %v2213 = vlaneseq
          %v2214 = vshrl.u32 %v2213, 7
          %v2215 = vsub.s32 %v2212, %v2214
          %v2216 = vrot.slane %v2209, %v2215
          %v2217 = vcombine.low %v2055, %v2056
          %v2219 = vunpack.c.l.s4 1983009808
          %v2220 = vunpack.c.0.s8 %v2219
          %v2221 = vlaneseq
          %v2222 = vshrl.u32 %v2221, 7
          %v2223 = vsub.s32 %v2220, %v2222
          %v2224 = vrot.slane %v2217, %v2223
          %v2225 = vcombine.low %v2200, %v2208
          %v2226 = vcombine.high %v2200, %v2208
          %v2228 = vunpack.c.l.s4 1934713408
          %v2229 = vunpack.c.0.s8 %v2228
          %v2230 = vlaneseq
          %v2231 = vshrl.u32 %v2230, 7
          %v2232 = vsub.s32 %v2229, %v2231
          %v2233 = vrot.slane %v2225, %v2232
          %v2235 = vunpack.c.l.s4 1934713408
          %v2236 = vunpack.c.0.s8 %v2235
          %v2237 = vlaneseq
          %v2238 = vshrl.u32 %v2237, 7
          %v2239 = vsub.s32 %v2236, %v2238
          %v2240 = vrot.slane %v2226, %v2239
          %v2241 = vcombine.low %v2216, %v2224
          %v2242 = vcombine.high %v2216, %v2224
          %v2244 = vunpack.c.l.s4 1934713408
          %v2245 = vunpack.c.0.s8 %v2244
          %v2246 = vlaneseq
          %v2247 = vshrl.u32 %v2246, 7
          %v2248 = vsub.s32 %v2245, %v2247
          %v2249 = vrot.slane %v2241, %v2248
          %v2251 = vunpack.c.l.s4 1934713408
          %v2252 = vunpack.c.0.s8 %v2251
          %v2253 = vlaneseq
          %v2254 = vshrl.u32 %v2253, 7
          %v2255 = vsub.s32 %v2252, %v2254
          %v2256 = vrot.slane %v2242, %v2255
          %v2257 = vcombine.low %v2233, %v2249
          %v2258 = vcombine.high %v2233, %v2249
          %v2259 = vcombine.low %v2240, %v2256
          %v2260 = vcombine.high %v2240, %v2256
          %v2261 = vld [vmem:[#allocation15] sm:$0xff]
          %v2262 = vld [vmem:[#allocation16] sm:$0xff]
          %v2263 = vmul.f32 %v1753, %v2261
          %v2264 = vmul.f32 %v1754, %v2261
          %v2265 = vmul.f32 %v1755, %v2261
          %v2266 = vmul.f32 %v1756, %v2261
          %v2267 = vmul.f32 %v1757, %v2261
          %v2268 = vmul.f32 %v1758, %v2261
          %v2269 = vmul.f32 %v1759, %v2261
          %v2270 = vmul.f32 %v1760, %v2261
          %v2271 = vmul.f32 %v1825, %v2261
          %v2272 = vmul.f32 %v1826, %v2261
          %v2273 = vmul.f32 %v1827, %v2261
          %v2274 = vmul.f32 %v1828, %v2261
          %vm2275 = vcmask 1048064
          %2276 = vrot.lane.b32.xlu0 %v1753, 64
          %v2277 = vpop.permute.xlu0 %2276
          %v2278 = vsel %vm2275, %v2277, %v1753
          %2279 = vrot.lane.b32.xlu0 %v1754, 64
          %v2280 = vpop.permute.xlu0 %2279
          %v2281 = vsel %vm2275, %v2280, %v1754
          %2282 = vrot.lane.b32.xlu0 %v1755, 64
          %v2283 = vpop.permute.xlu0 %2282
          %v2284 = vsel %vm2275, %v2283, %v1755
          %2285 = vrot.lane.b32.xlu0 %v1756, 64
          %v2286 = vpop.permute.xlu0 %2285
          %v2287 = vsel %vm2275, %v2286, %v1756
          %2288 = vrot.lane.b32.xlu0 %v1757, 64
          %v2289 = vpop.permute.xlu0 %2288
          %v2290 = vsel %vm2275, %v2289, %v1757
          %2291 = vrot.lane.b32.xlu0 %v1758, 64
          %v2292 = vpop.permute.xlu0 %2291
          %v2293 = vsel %vm2275, %v2292, %v1758
          %2294 = vrot.lane.b32.xlu0 %v1759, 64
          %v2295 = vpop.permute.xlu0 %2294
          %v2296 = vsel %vm2275, %v2295, %v1759
          %2297 = vrot.lane.b32.xlu0 %v1760, 64
          %v2298 = vpop.permute.xlu0 %2297
          %v2299 = vsel %vm2275, %v2298, %v1760
          %2300 = vrot.lane.b32.xlu0 %v1825, 64
          %v2301 = vpop.permute.xlu0 %2300
          %v2302 = vsel %vm2275, %v2301, %v1825
          %2303 = vrot.lane.b32.xlu0 %v1826, 64
          %v2304 = vpop.permute.xlu0 %2303
          %v2305 = vsel %vm2275, %v2304, %v1826
          %2306 = vrot.lane.b32.xlu0 %v1827, 64
          %v2307 = vpop.permute.xlu0 %2306
          %v2308 = vsel %vm2275, %v2307, %v1827
          %2309 = vrot.lane.b32.xlu0 %v1828, 64
          %v2310 = vpop.permute.xlu0 %2309
          %v2311 = vsel %vm2275, %v2310, %v1828
          %2312 = vrot.lane.b32.xlu0 %v2278, 64
          %v2313 = vpop.permute.xlu0 %2312
          %2314 = vrot.lane.b32.xlu0 %v2281, 64
          %v2315 = vpop.permute.xlu0 %2314
          %2316 = vrot.lane.b32.xlu0 %v2284, 64
          %v2317 = vpop.permute.xlu0 %2316
          %2318 = vrot.lane.b32.xlu0 %v2287, 64
          %v2319 = vpop.permute.xlu0 %2318
          %2320 = vrot.lane.b32.xlu0 %v2290, 64
          %v2321 = vpop.permute.xlu0 %2320
          %2322 = vrot.lane.b32.xlu0 %v2293, 64
          %v2323 = vpop.permute.xlu0 %2322
          %2324 = vrot.lane.b32.xlu0 %v2296, 64
          %v2325 = vpop.permute.xlu0 %2324
          %2326 = vrot.lane.b32.xlu0 %v2299, 64
          %v2327 = vpop.permute.xlu0 %2326
          %2328 = vrot.lane.b32.xlu0 %v2302, 64
          %v2329 = vpop.permute.xlu0 %2328
          %2330 = vrot.lane.b32.xlu0 %v2305, 64
          %v2331 = vpop.permute.xlu0 %2330
          %2332 = vrot.lane.b32.xlu0 %v2308, 64
          %v2333 = vpop.permute.xlu0 %2332
          %2334 = vrot.lane.b32.xlu0 %v2311, 64
          %v2335 = vpop.permute.xlu0 %2334
          %v2336 = vsel %vm2275, %v2313, %v1753
          %v2337 = vsel %vm2275, %v2315, %v1754
          %v2338 = vsel %vm2275, %v2317, %v1755
          %v2339 = vsel %vm2275, %v2319, %v1756
          %v2340 = vsel %vm2275, %v2321, %v1757
          %v2341 = vsel %vm2275, %v2323, %v1758
          %v2342 = vsel %vm2275, %v2325, %v1759
          %v2343 = vsel %vm2275, %v2327, %v1760
          %v2344 = vsel %vm2275, %v2329, %v1825
          %v2345 = vsel %vm2275, %v2331, %v1826
          %v2346 = vsel %vm2275, %v2333, %v1827
          %v2347 = vsel %vm2275, %v2335, %v1828
          %2349 = vrot.lane.b32.xlu0 %v2262, 32
          %v2350 = vpop.permute.xlu0 %2349
          %v2352 = vmul.f32 %v2336, %v2350
          %v2353 = vmul.f32 %v2337, %v2350
          %v2354 = vmul.f32 %v2338, %v2350
          %v2355 = vmul.f32 %v2339, %v2350
          %v2356 = vmul.f32 %v2340, %v2350
          %v2357 = vmul.f32 %v2341, %v2350
          %v2358 = vmul.f32 %v2342, %v2350
          %v2359 = vmul.f32 %v2343, %v2350
          %v2360 = vmul.f32 %v2344, %v2350
          %v2361 = vmul.f32 %v2345, %v2350
          %v2362 = vmul.f32 %v2346, %v2350
          %v2363 = vmul.f32 %v2347, %v2350
          %2376 = vrot.lane.b32.xlu0 %v2352, 96
          %v2377 = vpop.permute.xlu0 %2376
          %2378 = vrot.lane.b32.xlu0 %v2353, 96
          %v2379 = vpop.permute.xlu0 %2378
          %2380 = vrot.lane.b32.xlu0 %v2354, 96
          %v2381 = vpop.permute.xlu0 %2380
          %2382 = vrot.lane.b32.xlu0 %v2355, 96
          %v2383 = vpop.permute.xlu0 %2382
          %2384 = vrot.lane.b32.xlu0 %v2356, 96
          %v2385 = vpop.permute.xlu0 %2384
          %2386 = vrot.lane.b32.xlu0 %v2357, 96
          %v2387 = vpop.permute.xlu0 %2386
          %2388 = vrot.lane.b32.xlu0 %v2358, 96
          %v2389 = vpop.permute.xlu0 %2388
          %2390 = vrot.lane.b32.xlu0 %v2359, 96
          %v2391 = vpop.permute.xlu0 %2390
          %2392 = vrot.lane.b32.xlu0 %v2360, 96
          %v2393 = vpop.permute.xlu0 %2392
          %2394 = vrot.lane.b32.xlu0 %v2361, 96
          %v2395 = vpop.permute.xlu0 %2394
          %2396 = vrot.lane.b32.xlu0 %v2362, 96
          %v2397 = vpop.permute.xlu0 %2396
          %2398 = vrot.lane.b32.xlu0 %v2363, 96
          %v2399 = vpop.permute.xlu0 %2398
          %v2412 = vadd.f32 %v2263, %v2377
          %v2413 = vadd.f32 %v2264, %v2379
          %v2414 = vadd.f32 %v2265, %v2381
          %v2415 = vadd.f32 %v2266, %v2383
          %v2416 = vadd.f32 %v2267, %v2385
          %v2417 = vadd.f32 %v2268, %v2387
          %v2418 = vadd.f32 %v2269, %v2389
          %v2419 = vadd.f32 %v2270, %v2391
          %v2420 = vadd.f32 %v2271, %v2393
          %v2421 = vadd.f32 %v2272, %v2395
          %v2422 = vadd.f32 %v2273, %v2397
          %v2423 = vadd.f32 %v2274, %v2399
          %v2424 = vpack.c.bf16 %v2412, %v2412
          %v2425 = vpack.c.bf16 %v2413, %v2413
          %v2426 = vpack.c.bf16 %v2414, %v2414
          %v2427 = vpack.c.bf16 %v2415, %v2415
          %v2428 = vpack.c.bf16 %v2416, %v2416
          %v2429 = vpack.c.bf16 %v2417, %v2417
          %v2430 = vpack.c.bf16 %v2418, %v2418
          %v2431 = vpack.c.bf16 %v2419, %v2419
          %v2432 = vpack.c.bf16 %v2420, %v2420
          %v2433 = vpack.c.bf16 %v2421, %v2421
          %v2434 = vpack.c.bf16 %v2422, %v2422
          %v2435 = vpack.c.bf16 %v2423, %v2423
          %vm2436 = vcmask 519168
          %2437 = vst.msk [vmem:[#allocation2] sm:$0xf] %vm2436, %v2424
          %2438 = vst.msk [vmem:[#allocation2 + $0x4] sm:$0xf] %vm2436, %v2425
          %2439 = vst.msk [vmem:[#allocation2 + $0x8] sm:$0xf] %vm2436, %v2426
          %2440 = vst.msk [vmem:[#allocation2 + $0xc] sm:$0xf] %vm2436, %v2427
          %2441 = vst.msk [vmem:[#allocation2 + $0x10] sm:$0xf] %vm2436, %v2428
          %2442 = vst.msk [vmem:[#allocation2 + $0x14] sm:$0xf] %vm2436, %v2429
          %2443 = vst.msk [vmem:[#allocation2 + $0x18] sm:$0xf] %vm2436, %v2430
          %2444 = vst.msk [vmem:[#allocation2 + $0x1c] sm:$0xf] %vm2436, %v2431
          %2445 = vst.msk [vmem:[#allocation2 + $0x20] sm:$0xf] %vm2436, %v2432
          %2446 = vst.msk [vmem:[#allocation2 + $0x24] sm:$0xf] %vm2436, %v2433
          %2447 = vst.msk [vmem:[#allocation2 + $0x28] sm:$0xf] %vm2436, %v2434
          %2448 = vst.msk [vmem:[#allocation2 + $0x2c] sm:$0xf] %vm2436, %v2435
          %v2449 = vpack.c.bf16 %v2185, %v2185
          %v2450 = vpack.c.bf16 %v2186, %v2186
          %v2451 = vpack.c.bf16 %v2187, %v2187
          %v2452 = vpack.c.bf16 %v2188, %v2188
          %v2453 = vpack.c.bf16 %v2189, %v2189
          %v2454 = vpack.c.bf16 %v2190, %v2190
          %v2455 = vpack.c.bf16 %v2191, %v2191
          %v2456 = vpack.c.bf16 %v2192, %v2192
          %v2457 = vpack.c.bf16 %v2257, %v2257
          %v2458 = vpack.c.bf16 %v2258, %v2258
          %v2459 = vpack.c.bf16 %v2259, %v2259
          %v2460 = vpack.c.bf16 %v2260, %v2260
          %2461 = vst.msk [vmem:[#allocation3] sm:$0xf] %vm2436, %v2449
          %2462 = vst.msk [vmem:[#allocation3 + $0x4] sm:$0xf] %vm2436, %v2450
          %2463 = vst.msk [vmem:[#allocation3 + $0x8] sm:$0xf] %vm2436, %v2451
          %2464 = vst.msk [vmem:[#allocation3 + $0xc] sm:$0xf] %vm2436, %v2452
          %2465 = vst.msk [vmem:[#allocation3 + $0x10] sm:$0xf] %vm2436, %v2453
          %2466 = vst.msk [vmem:[#allocation3 + $0x14] sm:$0xf] %vm2436, %v2454
          %2467 = vst.msk [vmem:[#allocation3 + $0x18] sm:$0xf] %vm2436, %v2455
          %2468 = vst.msk [vmem:[#allocation3 + $0x1c] sm:$0xf] %vm2436, %v2456
          %2469 = vst.msk [vmem:[#allocation3 + $0x20] sm:$0xf] %vm2436, %v2457
          %2470 = vst.msk [vmem:[#allocation3 + $0x24] sm:$0xf] %vm2436, %v2458
          %2471 = vst.msk [vmem:[#allocation3 + $0x28] sm:$0xf] %vm2436, %v2459
          %2472 = vst.msk [vmem:[#allocation3 + $0x2c] sm:$0xf] %vm2436, %v2460
        $region88: #{tpu_custom_call.1} parent=51 // pred_fallthru
          _
        %v2473 = vld [vmem:[%s415] sm:$0xff]
        %v2474 = vld [vmem:[%s415 + $0x8] sm:$0xff]
        %v2475 = vld [vmem:[%s415 + $0x10] sm:$0xff]
        %v2476 = vld [vmem:[%s415 + $0x18] sm:$0xff]
        %v2477 = vld [vmem:[%s415 + $0x20] sm:$0xff]
        %v2478 = vld [vmem:[%s415 + $0x28] sm:$0xff]
        %v2479 = vld [vmem:[%s415 + $0x30] sm:$0xff]
        %v2480 = vld [vmem:[%s415 + $0x38] sm:$0xff]
        %v2481 = vld [vmem:[%s415 + $0x40] sm:$0xff]
        %v2482 = vld [vmem:[%s415 + $0x48] sm:$0xff]
        %v2483 = vpack.c.bf16 %v2473, %v2473
        %v2484 = vpack.c.bf16 %v2474, %v2474
        %v2485 = vpack.c.bf16 %v2475, %v2475
        %v2486 = vpack.c.bf16 %v2476, %v2476
        %v2487 = vpack.c.bf16 %v2477, %v2477
        %v2488 = vpack.c.bf16 %v2478, %v2478
        %v2489 = vpack.c.bf16 %v2479, %v2479
        %v2490 = vpack.c.bf16 %v2480, %v2480
        %v2491 = vpack.c.bf16 %v2481, %v2481
        %v2492 = vpack.c.bf16 %v2482, %v2482
        %v2493 = vld [vmem:[#allocation9] sm:$0xff]
        %v2494 = vld [vmem:[#allocation9 + $0x8] sm:$0xff]
        %v2495 = vld [vmem:[#allocation9 + $0x10] sm:$0xff]
        %v2496 = vld [vmem:[#allocation9 + $0x18] sm:$0xff]
        %v2497 = vld [vmem:[#allocation9 + $0x20] sm:$0xff]
        %v2498 = vld [vmem:[#allocation9 + $0x28] sm:$0xff]
        %v2499 = vld [vmem:[#allocation9 + $0x30] sm:$0xff]
        %v2500 = vld [vmem:[#allocation9 + $0x38] sm:$0xff]
        %v2501 = vld [vmem:[#allocation9 + $0x40] sm:$0xff]
        %v2502 = vld [vmem:[#allocation9 + $0x48] sm:$0xff]
        %v2503 = vld [vmem:[#allocation9 + $0x50] sm:$0xff]
        %v2504 = vld [vmem:[#allocation9 + $0x58] sm:$0xff]
        %v2505 = vld [vmem:[#allocation9 + $0x60] sm:$0xff]
        %v2506 = vld [vmem:[#allocation9 + $0x68] sm:$0xff]
        %v2507 = vld [vmem:[#allocation9 + $0x70] sm:$0xff]
        %v2508 = vld [vmem:[#allocation9 + $0x78] sm:$0xff]
        %v2509 = vld [vmem:[#allocation9 + $0x80] sm:$0xff]
        %v2510 = vld [vmem:[#allocation9 + $0x88] sm:$0xff]
        %v2511 = vld [vmem:[#allocation9 + $0x90] sm:$0xff]
        %v2512 = vld [vmem:[#allocation9 + $0x98] sm:$0xff]
        %v2513 = vld [vmem:[#allocation9 + $0xa0] sm:$0xff]
        %v2514 = vld [vmem:[#allocation9 + $0xa8] sm:$0xff]
        %v2515 = vld [vmem:[#allocation9 + $0xb0] sm:$0xff]
        %v2516 = vld [vmem:[#allocation9 + $0xb8] sm:$0xff]
        %v2517 = vld [vmem:[#allocation9 + $0xc0] sm:$0xff]
        %v2518 = vld [vmem:[#allocation9 + $0xc8] sm:$0xff]
        %v2519 = vld [vmem:[#allocation9 + $0xd0] sm:$0xff]
        %v2520 = vld [vmem:[#allocation9 + $0xd8] sm:$0xff]
        %v2521 = vld [vmem:[#allocation9 + $0xe0] sm:$0xff]
        %v2522 = vld [vmem:[#allocation9 + $0xe8] sm:$0xff]
        %v2523 = vld [vmem:[#allocation9 + $0xf0] sm:$0xff]
        %v2524 = vld [vmem:[#allocation9 + $0xf8] sm:$0xff]
        %v2525 = vld [vmem:[#allocation9 + $0x100] sm:$0xff]
        %v2526 = vld [vmem:[#allocation9 + $0x108] sm:$0xff]
        %v2527 = vld [vmem:[#allocation9 + $0x110] sm:$0xff]
        %v2528 = vld [vmem:[#allocation9 + $0x118] sm:$0xff]
        %v2529 = vld [vmem:[#allocation9 + $0x120] sm:$0xff]
        %v2530 = vld [vmem:[#allocation9 + $0x128] sm:$0xff]
        %v2531 = vld [vmem:[#allocation9 + $0x130] sm:$0xff]
        %v2532 = vld [vmem:[#allocation9 + $0x138] sm:$0xff]
        %v2533 = vld [vmem:[#allocation9 + $0x140] sm:$0xff]
        %v2534 = vld [vmem:[#allocation9 + $0x148] sm:$0xff]
        %v2535 = vld [vmem:[#allocation9 + $0x150] sm:$0xff]
        %v2536 = vld [vmem:[#allocation9 + $0x158] sm:$0xff]
        %v2537 = vld [vmem:[#allocation9 + $0x160] sm:$0xff]
        %v2538 = vld [vmem:[#allocation9 + $0x168] sm:$0xff]
        %v2539 = vld [vmem:[#allocation9 + $0x170] sm:$0xff]
        %v2540 = vld [vmem:[#allocation9 + $0x178] sm:$0xff]
        %v2541 = vld [vmem:[#allocation9 + $0x180] sm:$0xff]
        %v2542 = vld [vmem:[#allocation9 + $0x188] sm:$0xff]
        %v2543 = vld [vmem:[#allocation9 + $0x190] sm:$0xff]
        %v2544 = vld [vmem:[#allocation9 + $0x198] sm:$0xff]
        %v2545 = vld [vmem:[#allocation9 + $0x1a0] sm:$0xff]
        %v2546 = vld [vmem:[#allocation9 + $0x1a8] sm:$0xff]
        %v2547 = vld [vmem:[#allocation9 + $0x1b0] sm:$0xff]
        %v2548 = vld [vmem:[#allocation9 + $0x1b8] sm:$0xff]
        %v2549 = vld [vmem:[#allocation9 + $0x1c0] sm:$0xff]
        %v2550 = vld [vmem:[#allocation9 + $0x1c8] sm:$0xff]
        %v2551 = vld [vmem:[#allocation9 + $0x1d0] sm:$0xff]
        %v2552 = vld [vmem:[#allocation9 + $0x1d8] sm:$0xff]
        %v2553 = vld [vmem:[#allocation9 + $0x1e0] sm:$0xff]
        %v2554 = vld [vmem:[#allocation9 + $0x1e8] sm:$0xff]
        %v2555 = vld [vmem:[#allocation9 + $0x1f0] sm:$0xff]
        %v2556 = vld [vmem:[#allocation9 + $0x1f8] sm:$0xff]
        %v2557 = vld [vmem:[#allocation9 + $0x200] sm:$0xff]
        %v2558 = vld [vmem:[#allocation9 + $0x208] sm:$0xff]
        %v2559 = vld [vmem:[#allocation9 + $0x210] sm:$0xff]
        %v2560 = vld [vmem:[#allocation9 + $0x218] sm:$0xff]
        %v2561 = vld [vmem:[#allocation9 + $0x220] sm:$0xff]
        %v2562 = vld [vmem:[#allocation9 + $0x228] sm:$0xff]
        %v2563 = vld [vmem:[#allocation9 + $0x230] sm:$0xff]
        %v2564 = vld [vmem:[#allocation9 + $0x238] sm:$0xff]
        %v2565 = vld [vmem:[#allocation9 + $0x240] sm:$0xff]
        %v2566 = vld [vmem:[#allocation9 + $0x248] sm:$0xff]
        %v2567 = vld [vmem:[#allocation9 + $0x250] sm:$0xff]
        %v2568 = vld [vmem:[#allocation9 + $0x258] sm:$0xff]
        %v2569 = vld [vmem:[#allocation9 + $0x260] sm:$0xff]
        %v2570 = vld [vmem:[#allocation9 + $0x268] sm:$0xff]
        %v2571 = vld [vmem:[#allocation9 + $0x270] sm:$0xff]
        %v2572 = vld [vmem:[#allocation9 + $0x278] sm:$0xff]
        %v2573 = vld [vmem:[#allocation9 + $0x280] sm:$0xff]
        %v2574 = vld [vmem:[#allocation9 + $0x288] sm:$0xff]
        %v2575 = vld [vmem:[#allocation9 + $0x290] sm:$0xff]
        %v2576 = vld [vmem:[#allocation9 + $0x298] sm:$0xff]
        %v2577 = vld [vmem:[#allocation9 + $0x2a0] sm:$0xff]
        %v2578 = vld [vmem:[#allocation9 + $0x2a8] sm:$0xff]
        %v2579 = vld [vmem:[#allocation9 + $0x2b0] sm:$0xff]
        %v2580 = vld [vmem:[#allocation9 + $0x2b8] sm:$0xff]
        %v2581 = vld [vmem:[#allocation9 + $0x2c0] sm:$0xff]
        %v2582 = vld [vmem:[#allocation9 + $0x2c8] sm:$0xff]
        %v2583 = vld [vmem:[#allocation9 + $0x2d0] sm:$0xff]
        %v2584 = vld [vmem:[#allocation9 + $0x2d8] sm:$0xff]
        %v2585 = vld [vmem:[#allocation9 + $0x2e0] sm:$0xff]
        %v2586 = vld [vmem:[#allocation9 + $0x2e8] sm:$0xff]
        %v2587 = vld [vmem:[#allocation9 + $0x2f0] sm:$0xff]
        %v2588 = vld [vmem:[#allocation9 + $0x2f8] sm:$0xff]
        %v2589 = vld [vmem:[#allocation9 + $0x300] sm:$0xff]
        %v2590 = vld [vmem:[#allocation9 + $0x308] sm:$0xff]
        %v2591 = vld [vmem:[#allocation9 + $0x310] sm:$0xff]
        %v2592 = vld [vmem:[#allocation9 + $0x318] sm:$0xff]
        %v2593 = vld [vmem:[#allocation9 + $0x320] sm:$0xff]
        %v2594 = vld [vmem:[#allocation9 + $0x328] sm:$0xff]
        %v2595 = vld [vmem:[#allocation9 + $0x330] sm:$0xff]
        %v2596 = vld [vmem:[#allocation9 + $0x338] sm:$0xff]
        %v2597 = vld [vmem:[#allocation9 + $0x340] sm:$0xff]
        %v2598 = vld [vmem:[#allocation9 + $0x348] sm:$0xff]
        %v2599 = vld [vmem:[#allocation9 + $0x350] sm:$0xff]
        %v2600 = vld [vmem:[#allocation9 + $0x358] sm:$0xff]
        %v2601 = vld [vmem:[#allocation9 + $0x360] sm:$0xff]
        %v2602 = vld [vmem:[#allocation9 + $0x368] sm:$0xff]
        %v2603 = vld [vmem:[#allocation9 + $0x370] sm:$0xff]
        %v2604 = vld [vmem:[#allocation9 + $0x378] sm:$0xff]
        %v2605 = vld [vmem:[#allocation9 + $0x380] sm:$0xff]
        %v2606 = vld [vmem:[#allocation9 + $0x388] sm:$0xff]
        %v2607 = vld [vmem:[#allocation9 + $0x390] sm:$0xff]
        %v2608 = vld [vmem:[#allocation9 + $0x398] sm:$0xff]
        %v2609 = vld [vmem:[#allocation9 + $0x3a0] sm:$0xff]
        %v2610 = vld [vmem:[#allocation9 + $0x3a8] sm:$0xff]
        %v2611 = vld [vmem:[#allocation9 + $0x3b0] sm:$0xff]
        %v2612 = vld [vmem:[#allocation9 + $0x3b8] sm:$0xff]
        %v2613 = vld [vmem:[#allocation9 + $0x3c0] sm:$0xff]
        %v2614 = vld [vmem:[#allocation9 + $0x3c8] sm:$0xff]
        %v2615 = vld [vmem:[#allocation9 + $0x3d0] sm:$0xff]
        %v2616 = vld [vmem:[#allocation9 + $0x3d8] sm:$0xff]
        %v2617 = vld [vmem:[#allocation9 + $0x3e0] sm:$0xff]
        %v2618 = vld [vmem:[#allocation9 + $0x3e8] sm:$0xff]
        %v2619 = vld [vmem:[#allocation9 + $0x3f0] sm:$0xff]
        %v2620 = vld [vmem:[#allocation9 + $0x3f8] sm:$0xff]
        %v2621 = vld [vmem:[#allocation9 + $0x400] sm:$0xff]
        %v2622 = vld [vmem:[#allocation9 + $0x408] sm:$0xff]
        %v2623 = vld [vmem:[#allocation9 + $0x410] sm:$0xff]
        %v2624 = vld [vmem:[#allocation9 + $0x418] sm:$0xff]
        %v2625 = vld [vmem:[#allocation9 + $0x420] sm:$0xff]
        %v2626 = vld [vmem:[#allocation9 + $0x428] sm:$0xff]
        %v2627 = vld [vmem:[#allocation9 + $0x430] sm:$0xff]
        %v2628 = vld [vmem:[#allocation9 + $0x438] sm:$0xff]
        %v2629 = vld [vmem:[#allocation9 + $0x440] sm:$0xff]
        %v2630 = vld [vmem:[#allocation9 + $0x448] sm:$0xff]
        %v2631 = vld [vmem:[#allocation9 + $0x450] sm:$0xff]
        %v2632 = vld [vmem:[#allocation9 + $0x458] sm:$0xff]
        %v2633 = vld [vmem:[#allocation9 + $0x460] sm:$0xff]
        %v2634 = vld [vmem:[#allocation9 + $0x468] sm:$0xff]
        %v2635 = vld [vmem:[#allocation9 + $0x470] sm:$0xff]
        %v2636 = vld [vmem:[#allocation9 + $0x478] sm:$0xff]
        %v2637 = vld [vmem:[#allocation9 + $0x480] sm:$0xff]
        %v2638 = vld [vmem:[#allocation9 + $0x488] sm:$0xff]
        %v2639 = vld [vmem:[#allocation9 + $0x490] sm:$0xff]
        %v2640 = vld [vmem:[#allocation9 + $0x498] sm:$0xff]
        %v2641 = vld [vmem:[#allocation9 + $0x4a0] sm:$0xff]
        %v2642 = vld [vmem:[#allocation9 + $0x4a8] sm:$0xff]
        %v2643 = vld [vmem:[#allocation9 + $0x4b0] sm:$0xff]
        %v2644 = vld [vmem:[#allocation9 + $0x4b8] sm:$0xff]
        %v2645 = vld [vmem:[#allocation9 + $0x4c0] sm:$0xff]
        %v2646 = vld [vmem:[#allocation9 + $0x4c8] sm:$0xff]
        %v2647 = vld [vmem:[#allocation9 + $0x4d0] sm:$0xff]
        %v2648 = vld [vmem:[#allocation9 + $0x4d8] sm:$0xff]
        %v2649 = vld [vmem:[#allocation9 + $0x4e0] sm:$0xff]
        %v2650 = vld [vmem:[#allocation9 + $0x4e8] sm:$0xff]
        %v2651 = vld [vmem:[#allocation9 + $0x4f0] sm:$0xff]
        %v2652 = vld [vmem:[#allocation9 + $0x4f8] sm:$0xff]
        %v2653 = vld [vmem:[#allocation9 + $0x500] sm:$0xff]
        %v2654 = vld [vmem:[#allocation9 + $0x508] sm:$0xff]
        %v2655 = vld [vmem:[#allocation9 + $0x510] sm:$0xff]
        %v2656 = vld [vmem:[#allocation9 + $0x518] sm:$0xff]
        %v2657 = vld [vmem:[#allocation9 + $0x520] sm:$0xff]
        %v2658 = vld [vmem:[#allocation9 + $0x528] sm:$0xff]
        %v2659 = vld [vmem:[#allocation9 + $0x530] sm:$0xff]
        %v2660 = vld [vmem:[#allocation9 + $0x538] sm:$0xff]
        %v2661 = vld [vmem:[#allocation9 + $0x540] sm:$0xff]
        %v2662 = vld [vmem:[#allocation9 + $0x548] sm:$0xff]
        %v2663 = vld [vmem:[#allocation9 + $0x550] sm:$0xff]
        %v2664 = vld [vmem:[#allocation9 + $0x558] sm:$0xff]
        %v2665 = vld [vmem:[#allocation9 + $0x560] sm:$0xff]
        %v2666 = vld [vmem:[#allocation9 + $0x568] sm:$0xff]
        %v2667 = vld [vmem:[#allocation9 + $0x570] sm:$0xff]
        %v2668 = vld [vmem:[#allocation9 + $0x578] sm:$0xff]
        %v2669 = vld [vmem:[#allocation9 + $0x580] sm:$0xff]
        %v2670 = vld [vmem:[#allocation9 + $0x588] sm:$0xff]
        %v2671 = vld [vmem:[#allocation9 + $0x590] sm:$0xff]
        %v2672 = vld [vmem:[#allocation9 + $0x598] sm:$0xff]
        %v2673 = vld [vmem:[#allocation9 + $0x5a0] sm:$0xff]
        %v2674 = vld [vmem:[#allocation9 + $0x5a8] sm:$0xff]
        %v2675 = vld [vmem:[#allocation9 + $0x5b0] sm:$0xff]
        %v2676 = vld [vmem:[#allocation9 + $0x5b8] sm:$0xff]
        %v2677 = vld [vmem:[#allocation9 + $0x5c0] sm:$0xff]
        %v2678 = vld [vmem:[#allocation9 + $0x5c8] sm:$0xff]
        %v2679 = vld [vmem:[#allocation9 + $0x5d0] sm:$0xff]
        %v2680 = vld [vmem:[#allocation9 + $0x5d8] sm:$0xff]
        %v2681 = vld [vmem:[#allocation9 + $0x5e0] sm:$0xff]
        %v2682 = vld [vmem:[#allocation9 + $0x5e8] sm:$0xff]
        %v2683 = vld [vmem:[#allocation9 + $0x5f0] sm:$0xff]
        %v2684 = vld [vmem:[#allocation9 + $0x5f8] sm:$0xff]
        %v2685 = vld [vmem:[#allocation9 + $0x600] sm:$0xff]
        %v2686 = vld [vmem:[#allocation9 + $0x608] sm:$0xff]
        %v2687 = vld [vmem:[#allocation9 + $0x610] sm:$0xff]
        %v2688 = vld [vmem:[#allocation9 + $0x618] sm:$0xff]
        %v2689 = vld [vmem:[#allocation9 + $0x620] sm:$0xff]
        %v2690 = vld [vmem:[#allocation9 + $0x628] sm:$0xff]
        %v2691 = vld [vmem:[#allocation9 + $0x630] sm:$0xff]
        %v2692 = vld [vmem:[#allocation9 + $0x638] sm:$0xff]
        %v2693 = vld [vmem:[#allocation9 + $0x640] sm:$0xff]
        %v2694 = vld [vmem:[#allocation9 + $0x648] sm:$0xff]
        %v2695 = vld [vmem:[#allocation9 + $0x650] sm:$0xff]
        %v2696 = vld [vmem:[#allocation9 + $0x658] sm:$0xff]
        %v2697 = vld [vmem:[#allocation9 + $0x660] sm:$0xff]
        %v2698 = vld [vmem:[#allocation9 + $0x668] sm:$0xff]
        %v2699 = vld [vmem:[#allocation9 + $0x670] sm:$0xff]
        %v2700 = vld [vmem:[#allocation9 + $0x678] sm:$0xff]
        %v2701 = vld [vmem:[#allocation9 + $0x680] sm:$0xff]
        %v2702 = vld [vmem:[#allocation9 + $0x688] sm:$0xff]
        %v2703 = vld [vmem:[#allocation9 + $0x690] sm:$0xff]
        %v2704 = vld [vmem:[#allocation9 + $0x698] sm:$0xff]
        %v2705 = vld [vmem:[#allocation9 + $0x6a0] sm:$0xff]
        %v2706 = vld [vmem:[#allocation9 + $0x6a8] sm:$0xff]
        %v2707 = vld [vmem:[#allocation9 + $0x6b0] sm:$0xff]
        %v2708 = vld [vmem:[#allocation9 + $0x6b8] sm:$0xff]
        %v2709 = vld [vmem:[#allocation9 + $0x6c0] sm:$0xff]
        %v2710 = vld [vmem:[#allocation9 + $0x6c8] sm:$0xff]
        %v2711 = vld [vmem:[#allocation9 + $0x6d0] sm:$0xff]
        %v2712 = vld [vmem:[#allocation9 + $0x6d8] sm:$0xff]
        %v2713 = vld [vmem:[#allocation9 + $0x6e0] sm:$0xff]
        %v2714 = vld [vmem:[#allocation9 + $0x6e8] sm:$0xff]
        %v2715 = vld [vmem:[#allocation9 + $0x6f0] sm:$0xff]
        %v2716 = vld [vmem:[#allocation9 + $0x6f8] sm:$0xff]
        %v2717 = vld [vmem:[#allocation9 + $0x700] sm:$0xff]
        %v2718 = vld [vmem:[#allocation9 + $0x708] sm:$0xff]
        %v2719 = vld [vmem:[#allocation9 + $0x710] sm:$0xff]
        %v2720 = vld [vmem:[#allocation9 + $0x718] sm:$0xff]
        %v2721 = vld [vmem:[#allocation9 + $0x720] sm:$0xff]
        %v2722 = vld [vmem:[#allocation9 + $0x728] sm:$0xff]
        %v2723 = vld [vmem:[#allocation9 + $0x730] sm:$0xff]
        %v2724 = vld [vmem:[#allocation9 + $0x738] sm:$0xff]
        %v2725 = vld [vmem:[#allocation9 + $0x740] sm:$0xff]
        %v2726 = vld [vmem:[#allocation9 + $0x748] sm:$0xff]
        %v2727 = vld [vmem:[#allocation9 + $0x750] sm:$0xff]
        %v2728 = vld [vmem:[#allocation9 + $0x758] sm:$0xff]
        %v2729 = vld [vmem:[#allocation9 + $0x760] sm:$0xff]
        %v2730 = vld [vmem:[#allocation9 + $0x768] sm:$0xff]
        %v2731 = vld [vmem:[#allocation9 + $0x770] sm:$0xff]
        %v2732 = vld [vmem:[#allocation9 + $0x778] sm:$0xff]
        %v2733 = vld [vmem:[#allocation9 + $0x780] sm:$0xff]
        %v2734 = vld [vmem:[#allocation9 + $0x788] sm:$0xff]
        %v2735 = vld [vmem:[#allocation9 + $0x790] sm:$0xff]
        %v2736 = vld [vmem:[#allocation9 + $0x798] sm:$0xff]
        %v2737 = vld [vmem:[#allocation9 + $0x7a0] sm:$0xff]
        %v2738 = vld [vmem:[#allocation9 + $0x7a8] sm:$0xff]
        %v2739 = vld [vmem:[#allocation9 + $0x7b0] sm:$0xff]
        %v2740 = vld [vmem:[#allocation9 + $0x7b8] sm:$0xff]
        %v2741 = vld [vmem:[#allocation9 + $0x7c0] sm:$0xff]
        %v2742 = vld [vmem:[#allocation9 + $0x7c8] sm:$0xff]
        %v2743 = vld [vmem:[#allocation9 + $0x7d0] sm:$0xff]
        %v2744 = vld [vmem:[#allocation9 + $0x7d8] sm:$0xff]
        %v2745 = vld [vmem:[#allocation9 + $0x7e0] sm:$0xff]
        %v2746 = vld [vmem:[#allocation9 + $0x7e8] sm:$0xff]
        %v2747 = vld [vmem:[#allocation9 + $0x7f0] sm:$0xff]
        %v2748 = vld [vmem:[#allocation9 + $0x7f8] sm:$0xff]
        %v2749 = vld [vmem:[#allocation9 + $0x800] sm:$0xff]
        %v2750 = vld [vmem:[#allocation9 + $0x808] sm:$0xff]
        %v2751 = vld [vmem:[#allocation9 + $0x810] sm:$0xff]
        %v2752 = vld [vmem:[#allocation9 + $0x818] sm:$0xff]
        %v2753 = vld [vmem:[#allocation9 + $0x820] sm:$0xff]
        %v2754 = vld [vmem:[#allocation9 + $0x828] sm:$0xff]
        %v2755 = vld [vmem:[#allocation9 + $0x830] sm:$0xff]
        %v2756 = vld [vmem:[#allocation9 + $0x838] sm:$0xff]
        %v2757 = vld [vmem:[#allocation9 + $0x840] sm:$0xff]
        %v2758 = vld [vmem:[#allocation9 + $0x848] sm:$0xff]
        %v2759 = vld [vmem:[#allocation9 + $0x850] sm:$0xff]
        %v2760 = vld [vmem:[#allocation9 + $0x858] sm:$0xff]
        %v2761 = vld [vmem:[#allocation9 + $0x860] sm:$0xff]
        %v2762 = vld [vmem:[#allocation9 + $0x868] sm:$0xff]
        %v2763 = vld [vmem:[#allocation9 + $0x870] sm:$0xff]
        %v2764 = vld [vmem:[#allocation9 + $0x878] sm:$0xff]
        %v2765 = vld [vmem:[#allocation9 + $0x880] sm:$0xff]
        %v2766 = vld [vmem:[#allocation9 + $0x888] sm:$0xff]
        %v2767 = vld [vmem:[#allocation9 + $0x890] sm:$0xff]
        %v2768 = vld [vmem:[#allocation9 + $0x898] sm:$0xff]
        %v2769 = vld [vmem:[#allocation9 + $0x8a0] sm:$0xff]
        %v2770 = vld [vmem:[#allocation9 + $0x8a8] sm:$0xff]
        %v2771 = vld [vmem:[#allocation9 + $0x8b0] sm:$0xff]
        %v2772 = vld [vmem:[#allocation9 + $0x8b8] sm:$0xff]
        %v2773 = vld [vmem:[#allocation9 + $0x8c0] sm:$0xff]
        %v2774 = vld [vmem:[#allocation9 + $0x8c8] sm:$0xff]
        %v2775 = vld [vmem:[#allocation9 + $0x8d0] sm:$0xff]
        %v2776 = vld [vmem:[#allocation9 + $0x8d8] sm:$0xff]
        %v2777 = vld [vmem:[#allocation9 + $0x8e0] sm:$0xff]
        %v2778 = vld [vmem:[#allocation9 + $0x8e8] sm:$0xff]
        %v2779 = vld [vmem:[#allocation9 + $0x8f0] sm:$0xff]
        %v2780 = vld [vmem:[#allocation9 + $0x8f8] sm:$0xff]
        %v2781 = vld [vmem:[#allocation9 + $0x900] sm:$0xff]
        %v2782 = vld [vmem:[#allocation9 + $0x908] sm:$0xff]
        %v2783 = vld [vmem:[#allocation9 + $0x910] sm:$0xff]
        %v2784 = vld [vmem:[#allocation9 + $0x918] sm:$0xff]
        %v2785 = vld [vmem:[#allocation9 + $0x920] sm:$0xff]
        %v2786 = vld [vmem:[#allocation9 + $0x928] sm:$0xff]
        %v2787 = vld [vmem:[#allocation9 + $0x930] sm:$0xff]
        %v2788 = vld [vmem:[#allocation9 + $0x938] sm:$0xff]
        %v2789 = vld [vmem:[#allocation9 + $0x940] sm:$0xff]
        %v2790 = vld [vmem:[#allocation9 + $0x948] sm:$0xff]
        %v2791 = vld [vmem:[#allocation9 + $0x950] sm:$0xff]
        %v2792 = vld [vmem:[#allocation9 + $0x958] sm:$0xff]
        %v2793 = vld [vmem:[#allocation9 + $0x960] sm:$0xff]
        %v2794 = vld [vmem:[#allocation9 + $0x968] sm:$0xff]
        %v2795 = vld [vmem:[#allocation9 + $0x970] sm:$0xff]
        %v2796 = vld [vmem:[#allocation9 + $0x978] sm:$0xff]
        %v2797 = vld [vmem:[#allocation9 + $0x980] sm:$0xff]
        %v2798 = vld [vmem:[#allocation9 + $0x988] sm:$0xff]
        %v2799 = vld [vmem:[#allocation9 + $0x990] sm:$0xff]
        %v2800 = vld [vmem:[#allocation9 + $0x998] sm:$0xff]
        %v2801 = vld [vmem:[#allocation9 + $0x9a0] sm:$0xff]
        %v2802 = vld [vmem:[#allocation9 + $0x9a8] sm:$0xff]
        %v2803 = vld [vmem:[#allocation9 + $0x9b0] sm:$0xff]
        %v2804 = vld [vmem:[#allocation9 + $0x9b8] sm:$0xff]
        %v2805 = vld [vmem:[#allocation9 + $0x9c0] sm:$0xff]
        %v2806 = vld [vmem:[#allocation9 + $0x9c8] sm:$0xff]
        %v2807 = vld [vmem:[#allocation9 + $0x9d0] sm:$0xff]
        %v2808 = vld [vmem:[#allocation9 + $0x9d8] sm:$0xff]
        %v2809 = vld [vmem:[#allocation9 + $0x9e0] sm:$0xff]
        %v2810 = vld [vmem:[#allocation9 + $0x9e8] sm:$0xff]
        %v2811 = vld [vmem:[#allocation9 + $0x9f0] sm:$0xff]
        %v2812 = vld [vmem:[#allocation9 + $0x9f8] sm:$0xff]
        %v2813 = vld [vmem:[#allocation9 + $0xa00] sm:$0xff]
        %v2814 = vld [vmem:[#allocation9 + $0xa08] sm:$0xff]
        %v2815 = vld [vmem:[#allocation9 + $0xa10] sm:$0xff]
        %v2816 = vld [vmem:[#allocation9 + $0xa18] sm:$0xff]
        %v2817 = vld [vmem:[#allocation9 + $0xa20] sm:$0xff]
        %v2818 = vld [vmem:[#allocation9 + $0xa28] sm:$0xff]
        %v2819 = vld [vmem:[#allocation9 + $0xa30] sm:$0xff]
        %v2820 = vld [vmem:[#allocation9 + $0xa38] sm:$0xff]
        %v2821 = vld [vmem:[#allocation9 + $0xa40] sm:$0xff]
        %v2822 = vld [vmem:[#allocation9 + $0xa48] sm:$0xff]
        %v2823 = vld [vmem:[#allocation9 + $0xa50] sm:$0xff]
        %v2824 = vld [vmem:[#allocation9 + $0xa58] sm:$0xff]
        %v2825 = vld [vmem:[#allocation9 + $0xa60] sm:$0xff]
        %v2826 = vld [vmem:[#allocation9 + $0xa68] sm:$0xff]
        %v2827 = vld [vmem:[#allocation9 + $0xa70] sm:$0xff]
        %v2828 = vld [vmem:[#allocation9 + $0xa78] sm:$0xff]
        %v2829 = vld [vmem:[#allocation9 + $0xa80] sm:$0xff]
        %v2830 = vld [vmem:[#allocation9 + $0xa88] sm:$0xff]
        %v2831 = vld [vmem:[#allocation9 + $0xa90] sm:$0xff]
        %v2832 = vld [vmem:[#allocation9 + $0xa98] sm:$0xff]
        %v2833 = vld [vmem:[#allocation9 + $0xaa0] sm:$0xff]
        %v2834 = vld [vmem:[#allocation9 + $0xaa8] sm:$0xff]
        %v2835 = vld [vmem:[#allocation9 + $0xab0] sm:$0xff]
        %v2836 = vld [vmem:[#allocation9 + $0xab8] sm:$0xff]
        %v2837 = vld [vmem:[#allocation9 + $0xac0] sm:$0xff]
        %v2838 = vld [vmem:[#allocation9 + $0xac8] sm:$0xff]
        %v2839 = vld [vmem:[#allocation9 + $0xad0] sm:$0xff]
        %v2840 = vld [vmem:[#allocation9 + $0xad8] sm:$0xff]
        %v2841 = vld [vmem:[#allocation9 + $0xae0] sm:$0xff]
        %v2842 = vld [vmem:[#allocation9 + $0xae8] sm:$0xff]
        %v2843 = vld [vmem:[#allocation9 + $0xaf0] sm:$0xff]
        %v2844 = vld [vmem:[#allocation9 + $0xaf8] sm:$0xff]
        %v2845 = vld [vmem:[#allocation9 + $0xb00] sm:$0xff]
        %v2846 = vld [vmem:[#allocation9 + $0xb08] sm:$0xff]
        %v2847 = vld [vmem:[#allocation9 + $0xb10] sm:$0xff]
        %v2848 = vld [vmem:[#allocation9 + $0xb18] sm:$0xff]
        %v2849 = vld [vmem:[#allocation9 + $0xb20] sm:$0xff]
        %v2850 = vld [vmem:[#allocation9 + $0xb28] sm:$0xff]
        %v2851 = vld [vmem:[#allocation9 + $0xb30] sm:$0xff]
        %v2852 = vld [vmem:[#allocation9 + $0xb38] sm:$0xff]
        %v2853 = vld [vmem:[#allocation9 + $0xb40] sm:$0xff]
        %v2854 = vld [vmem:[#allocation9 + $0xb48] sm:$0xff]
        %v2855 = vld [vmem:[#allocation9 + $0xb50] sm:$0xff]
        %v2856 = vld [vmem:[#allocation9 + $0xb58] sm:$0xff]
        %v2857 = vld [vmem:[#allocation9 + $0xb60] sm:$0xff]
        %v2858 = vld [vmem:[#allocation9 + $0xb68] sm:$0xff]
        %v2859 = vld [vmem:[#allocation9 + $0xb70] sm:$0xff]
        %v2860 = vld [vmem:[#allocation9 + $0xb78] sm:$0xff]
        %v2861 = vld [vmem:[#allocation9 + $0xb80] sm:$0xff]
        %v2862 = vld [vmem:[#allocation9 + $0xb88] sm:$0xff]
        %v2863 = vld [vmem:[#allocation9 + $0xb90] sm:$0xff]
        %v2864 = vld [vmem:[#allocation9 + $0xb98] sm:$0xff]
        %v2865 = vld [vmem:[#allocation9 + $0xba0] sm:$0xff]
        %v2866 = vld [vmem:[#allocation9 + $0xba8] sm:$0xff]
        %v2867 = vld [vmem:[#allocation9 + $0xbb0] sm:$0xff]
        %v2868 = vld [vmem:[#allocation9 + $0xbb8] sm:$0xff]
        %v2869 = vld [vmem:[#allocation9 + $0xbc0] sm:$0xff]
        %v2870 = vld [vmem:[#allocation9 + $0xbc8] sm:$0xff]
        %v2871 = vld [vmem:[#allocation9 + $0xbd0] sm:$0xff]
        %v2872 = vld [vmem:[#allocation9 + $0xbd8] sm:$0xff]
        %v2873 = vld [vmem:[#allocation9 + $0xbe0] sm:$0xff]
        %v2874 = vld [vmem:[#allocation9 + $0xbe8] sm:$0xff]
        %v2875 = vld [vmem:[#allocation9 + $0xbf0] sm:$0xff]
        %v2876 = vld [vmem:[#allocation9 + $0xbf8] sm:$0xff]
        %v2877 = vld [vmem:[#allocation9 + $0xc00] sm:$0xff]
        %v2878 = vld [vmem:[#allocation9 + $0xc08] sm:$0xff]
        %v2879 = vld [vmem:[#allocation9 + $0xc10] sm:$0xff]
        %v2880 = vld [vmem:[#allocation9 + $0xc18] sm:$0xff]
        %v2881 = vld [vmem:[#allocation9 + $0xc20] sm:$0xff]
        %v2882 = vld [vmem:[#allocation9 + $0xc28] sm:$0xff]
        %v2883 = vld [vmem:[#allocation9 + $0xc30] sm:$0xff]
        %v2884 = vld [vmem:[#allocation9 + $0xc38] sm:$0xff]
        %v2885 = vld [vmem:[#allocation9 + $0xc40] sm:$0xff]
        %v2886 = vld [vmem:[#allocation9 + $0xc48] sm:$0xff]
        %v2887 = vld [vmem:[#allocation9 + $0xc50] sm:$0xff]
        %v2888 = vld [vmem:[#allocation9 + $0xc58] sm:$0xff]
        %v2889 = vld [vmem:[#allocation9 + $0xc60] sm:$0xff]
        %v2890 = vld [vmem:[#allocation9 + $0xc68] sm:$0xff]
        %v2891 = vld [vmem:[#allocation9 + $0xc70] sm:$0xff]
        %v2892 = vld [vmem:[#allocation9 + $0xc78] sm:$0xff]
        %v2893 = vld [vmem:[#allocation9 + $0xc80] sm:$0xff]
        %v2894 = vld [vmem:[#allocation9 + $0xc88] sm:$0xff]
        %v2895 = vld [vmem:[#allocation9 + $0xc90] sm:$0xff]
        %v2896 = vld [vmem:[#allocation9 + $0xc98] sm:$0xff]
        %v2897 = vld [vmem:[#allocation9 + $0xca0] sm:$0xff]
        %v2898 = vld [vmem:[#allocation9 + $0xca8] sm:$0xff]
        %v2899 = vld [vmem:[#allocation9 + $0xcb0] sm:$0xff]
        %v2900 = vld [vmem:[#allocation9 + $0xcb8] sm:$0xff]
        %v2901 = vld [vmem:[#allocation9 + $0xcc0] sm:$0xff]
        %v2902 = vld [vmem:[#allocation9 + $0xcc8] sm:$0xff]
        %v2903 = vld [vmem:[#allocation9 + $0xcd0] sm:$0xff]
        %v2904 = vld [vmem:[#allocation9 + $0xcd8] sm:$0xff]
        %v2905 = vld [vmem:[#allocation9 + $0xce0] sm:$0xff]
        %v2906 = vld [vmem:[#allocation9 + $0xce8] sm:$0xff]
        %v2907 = vld [vmem:[#allocation9 + $0xcf0] sm:$0xff]
        %v2908 = vld [vmem:[#allocation9 + $0xcf8] sm:$0xff]
        %v2909 = vld [vmem:[#allocation9 + $0xd00] sm:$0xff]
        %v2910 = vld [vmem:[#allocation9 + $0xd08] sm:$0xff]
        %v2911 = vld [vmem:[#allocation9 + $0xd10] sm:$0xff]
        %v2912 = vld [vmem:[#allocation9 + $0xd18] sm:$0xff]
        %v2913 = vld [vmem:[#allocation9 + $0xd20] sm:$0xff]
        %v2914 = vld [vmem:[#allocation9 + $0xd28] sm:$0xff]
        %v2915 = vld [vmem:[#allocation9 + $0xd30] sm:$0xff]
        %v2916 = vld [vmem:[#allocation9 + $0xd38] sm:$0xff]
        %v2917 = vld [vmem:[#allocation9 + $0xd40] sm:$0xff]
        %v2918 = vld [vmem:[#allocation9 + $0xd48] sm:$0xff]
        %v2919 = vld [vmem:[#allocation9 + $0xd50] sm:$0xff]
        %v2920 = vld [vmem:[#allocation9 + $0xd58] sm:$0xff]
        %v2921 = vld [vmem:[#allocation9 + $0xd60] sm:$0xff]
        %v2922 = vld [vmem:[#allocation9 + $0xd68] sm:$0xff]
        %v2923 = vld [vmem:[#allocation9 + $0xd70] sm:$0xff]
        %v2924 = vld [vmem:[#allocation9 + $0xd78] sm:$0xff]
        %v2925 = vld [vmem:[#allocation9 + $0xd80] sm:$0xff]
        %v2926 = vld [vmem:[#allocation9 + $0xd88] sm:$0xff]
        %v2927 = vld [vmem:[#allocation9 + $0xd90] sm:$0xff]
        %v2928 = vld [vmem:[#allocation9 + $0xd98] sm:$0xff]
        %v2929 = vld [vmem:[#allocation9 + $0xda0] sm:$0xff]
        %v2930 = vld [vmem:[#allocation9 + $0xda8] sm:$0xff]
        %v2931 = vld [vmem:[#allocation9 + $0xdb0] sm:$0xff]
        %v2932 = vld [vmem:[#allocation9 + $0xdb8] sm:$0xff]
        %v2933 = vld [vmem:[#allocation9 + $0xdc0] sm:$0xff]
        %v2934 = vld [vmem:[#allocation9 + $0xdc8] sm:$0xff]
        %v2935 = vld [vmem:[#allocation9 + $0xdd0] sm:$0xff]
        %v2936 = vld [vmem:[#allocation9 + $0xdd8] sm:$0xff]
        %v2937 = vld [vmem:[#allocation9 + $0xde0] sm:$0xff]
        %v2938 = vld [vmem:[#allocation9 + $0xde8] sm:$0xff]
        %v2939 = vld [vmem:[#allocation9 + $0xdf0] sm:$0xff]
        %v2940 = vld [vmem:[#allocation9 + $0xdf8] sm:$0xff]
        %v2941 = vld [vmem:[#allocation9 + $0xe00] sm:$0xff]
        %v2942 = vld [vmem:[#allocation9 + $0xe08] sm:$0xff]
        %v2943 = vld [vmem:[#allocation9 + $0xe10] sm:$0xff]
        %v2944 = vld [vmem:[#allocation9 + $0xe18] sm:$0xff]
        %v2945 = vld [vmem:[#allocation9 + $0xe20] sm:$0xff]
        %v2946 = vld [vmem:[#allocation9 + $0xe28] sm:$0xff]
        %v2947 = vld [vmem:[#allocation9 + $0xe30] sm:$0xff]
        %v2948 = vld [vmem:[#allocation9 + $0xe38] sm:$0xff]
        %v2949 = vld [vmem:[#allocation9 + $0xe40] sm:$0xff]
        %v2950 = vld [vmem:[#allocation9 + $0xe48] sm:$0xff]
        %v2951 = vld [vmem:[#allocation9 + $0xe50] sm:$0xff]
        %v2952 = vld [vmem:[#allocation9 + $0xe58] sm:$0xff]
        %v2953 = vld [vmem:[#allocation9 + $0xe60] sm:$0xff]
        %v2954 = vld [vmem:[#allocation9 + $0xe68] sm:$0xff]
        %v2955 = vld [vmem:[#allocation9 + $0xe70] sm:$0xff]
        %v2956 = vld [vmem:[#allocation9 + $0xe78] sm:$0xff]
        %v2957 = vld [vmem:[#allocation9 + $0xe80] sm:$0xff]
        %v2958 = vld [vmem:[#allocation9 + $0xe88] sm:$0xff]
        %v2959 = vld [vmem:[#allocation9 + $0xe90] sm:$0xff]
        %v2960 = vld [vmem:[#allocation9 + $0xe98] sm:$0xff]
        %v2961 = vld [vmem:[#allocation9 + $0xea0] sm:$0xff]
        %v2962 = vld [vmem:[#allocation9 + $0xea8] sm:$0xff]
        %v2963 = vld [vmem:[#allocation9 + $0xeb0] sm:$0xff]
        %v2964 = vld [vmem:[#allocation9 + $0xeb8] sm:$0xff]
        %v2965 = vld [vmem:[#allocation9 + $0xec0] sm:$0xff]
        %v2966 = vld [vmem:[#allocation9 + $0xec8] sm:$0xff]
        %v2967 = vld [vmem:[#allocation9 + $0xed0] sm:$0xff]
        %v2968 = vld [vmem:[#allocation9 + $0xed8] sm:$0xff]
        %v2969 = vld [vmem:[#allocation9 + $0xee0] sm:$0xff]
        %v2970 = vld [vmem:[#allocation9 + $0xee8] sm:$0xff]
        %v2971 = vld [vmem:[#allocation9 + $0xef0] sm:$0xff]
        %v2972 = vld [vmem:[#allocation9 + $0xef8] sm:$0xff]
        %v2973 = vld [vmem:[#allocation10] sm:$0x3f]
        %v2975 = vlaneseq
        %v2976 = vshrl.u32 %v2975, 7
        %v2977 = vsub.s32 0, %v2976
        %v2978 = vrot.slane %v2973, %v2977
        %v2979 = vlaneseq
        %v2980 = vshrl.u32 %v2979, 7
        %v2981 = vsub.s32 1, %v2980
        %v2982 = vrot.slane %v2973, %v2981
        %v2983 = vlaneseq
        %v2984 = vshrl.u32 %v2983, 7
        %v2985 = vsub.s32 2, %v2984
        %v2986 = vrot.slane %v2973, %v2985
        %v2987 = vlaneseq
        %v2988 = vshrl.u32 %v2987, 7
        %v2989 = vsub.s32 3, %v2988
        %v2990 = vrot.slane %v2973, %v2989
        %v2991 = vlaneseq
        %v2992 = vshrl.u32 %v2991, 7
        %v2993 = vsub.s32 4, %v2992
        %v2994 = vrot.slane %v2973, %v2993
        %v2995 = vlaneseq
        %v2996 = vshrl.u32 %v2995, 7
        %v2997 = vsub.s32 5, %v2996
        %v2998 = vrot.slane %v2973, %v2997
        %v3485 = vunpack.c.l.b16 %v2493
        %v3486 = vunpack.c.h.b16 %v2493
        %v3487 = vunpack.c.l.b16 %v2494
        %v3488 = vunpack.c.h.b16 %v2494
        %v3489 = vunpack.c.l.b16 %v2495
        %v3490 = vunpack.c.h.b16 %v2495
        %v3491 = vunpack.c.l.b16 %v2496
        %v3492 = vunpack.c.h.b16 %v2496
        %v3493 = vunpack.c.l.b16 %v2497
        %v3494 = vunpack.c.h.b16 %v2497
        %v3495 = vunpack.c.l.b16 %v2498
        %v3496 = vunpack.c.h.b16 %v2498
        %v3497 = vunpack.c.l.b16 %v2499
        %v3498 = vunpack.c.h.b16 %v2499
        %v3499 = vunpack.c.l.b16 %v2500
        %v3500 = vunpack.c.h.b16 %v2500
        %v3501 = vunpack.c.l.b16 %v2501
        %v3502 = vunpack.c.h.b16 %v2501
        %v3503 = vunpack.c.l.b16 %v2502
        %v3504 = vunpack.c.h.b16 %v2502
        %v3505 = vunpack.c.l.b16 %v2503
        %v3506 = vunpack.c.h.b16 %v2503
        %v3507 = vunpack.c.l.b16 %v2504
        %v3508 = vunpack.c.h.b16 %v2504
        %v3509 = vunpack.c.l.b16 %v2505
        %v3510 = vunpack.c.h.b16 %v2505
        %v3511 = vunpack.c.l.b16 %v2506
        %v3512 = vunpack.c.h.b16 %v2506
        %v3513 = vunpack.c.l.b16 %v2507
        %v3514 = vunpack.c.h.b16 %v2507
        %v3515 = vunpack.c.l.b16 %v2508
        %v3516 = vunpack.c.h.b16 %v2508
        %v3517 = vunpack.c.l.b16 %v2509
        %v3518 = vunpack.c.h.b16 %v2509
        %v3519 = vunpack.c.l.b16 %v2510
        %v3520 = vunpack.c.h.b16 %v2510
        %v3521 = vunpack.c.l.b16 %v2511
        %v3522 = vunpack.c.h.b16 %v2511
        %v3523 = vunpack.c.l.b16 %v2512
        %v3524 = vunpack.c.h.b16 %v2512
        %v3525 = vunpack.c.l.b16 %v2513
        %v3526 = vunpack.c.h.b16 %v2513
        %v3527 = vunpack.c.l.b16 %v2514
        %v3528 = vunpack.c.h.b16 %v2514
        %v3529 = vunpack.c.l.b16 %v2515
        %v3530 = vunpack.c.h.b16 %v2515
        %v3531 = vunpack.c.l.b16 %v2516
        %v3532 = vunpack.c.h.b16 %v2516
        %v3533 = vunpack.c.l.b16 %v2517
        %v3534 = vunpack.c.h.b16 %v2517
        %v3535 = vunpack.c.l.b16 %v2518
        %v3536 = vunpack.c.h.b16 %v2518
        %v3537 = vunpack.c.l.b16 %v2519
        %v3538 = vunpack.c.h.b16 %v2519
        %v3539 = vunpack.c.l.b16 %v2520
        %v3540 = vunpack.c.h.b16 %v2520
        %v3541 = vunpack.c.l.b16 %v2521
        %v3542 = vunpack.c.h.b16 %v2521
        %v3543 = vunpack.c.l.b16 %v2522
        %v3544 = vunpack.c.h.b16 %v2522
        %v3545 = vunpack.c.l.b16 %v2523
        %v3546 = vunpack.c.h.b16 %v2523
        %v3547 = vunpack.c.l.b16 %v2524
        %v3548 = vunpack.c.h.b16 %v2524
        %v3549 = vunpack.c.l.b16 %v2525
        %v3550 = vunpack.c.h.b16 %v2525
        %v3551 = vunpack.c.l.b16 %v2526
        %v3552 = vunpack.c.h.b16 %v2526
        %v3553 = vunpack.c.l.b16 %v2527
        %v3554 = vunpack.c.h.b16 %v2527
        %v3555 = vunpack.c.l.b16 %v2528
        %v3556 = vunpack.c.h.b16 %v2528
        %v3557 = vunpack.c.l.b16 %v2529
        %v3558 = vunpack.c.h.b16 %v2529
        %v3559 = vunpack.c.l.b16 %v2530
        %v3560 = vunpack.c.h.b16 %v2530
        %v3561 = vunpack.c.l.b16 %v2531
        %v3562 = vunpack.c.h.b16 %v2531
        %v3563 = vunpack.c.l.b16 %v2532
        %v3564 = vunpack.c.h.b16 %v2532
        %v3565 = vunpack.c.l.b16 %v2533
        %v3566 = vunpack.c.h.b16 %v2533
        %v3567 = vunpack.c.l.b16 %v2534
        %v3568 = vunpack.c.h.b16 %v2534
        %v3569 = vunpack.c.l.b16 %v2535
        %v3570 = vunpack.c.h.b16 %v2535
        %v3571 = vunpack.c.l.b16 %v2536
        %v3572 = vunpack.c.h.b16 %v2536
        %v3573 = vunpack.c.l.b16 %v2537
        %v3574 = vunpack.c.h.b16 %v2537
        %v3575 = vunpack.c.l.b16 %v2538
        %v3576 = vunpack.c.h.b16 %v2538
        %v3577 = vunpack.c.l.b16 %v2539
        %v3578 = vunpack.c.h.b16 %v2539
        %v3579 = vunpack.c.l.b16 %v2540
        %v3580 = vunpack.c.h.b16 %v2540
        %v3581 = vunpack.c.l.b16 %v2541
        %v3582 = vunpack.c.h.b16 %v2541
        %v3583 = vunpack.c.l.b16 %v2542
        %v3584 = vunpack.c.h.b16 %v2542
        %v3585 = vunpack.c.l.b16 %v2543
        %v3586 = vunpack.c.h.b16 %v2543
        %v3587 = vunpack.c.l.b16 %v2544
        %v3588 = vunpack.c.h.b16 %v2544
        %v3589 = vunpack.c.l.b16 %v2545
        %v3590 = vunpack.c.h.b16 %v2545
        %v3591 = vunpack.c.l.b16 %v2546
        %v3592 = vunpack.c.h.b16 %v2546
        %v3593 = vunpack.c.l.b16 %v2547
        %v3594 = vunpack.c.h.b16 %v2547
        %v3595 = vunpack.c.l.b16 %v2548
        %v3596 = vunpack.c.h.b16 %v2548
        %v3597 = vunpack.c.l.b16 %v2549
        %v3598 = vunpack.c.h.b16 %v2549
        %v3599 = vunpack.c.l.b16 %v2550
        %v3600 = vunpack.c.h.b16 %v2550
        %v3601 = vunpack.c.l.b16 %v2551
        %v3602 = vunpack.c.h.b16 %v2551
        %v3603 = vunpack.c.l.b16 %v2552
        %v3604 = vunpack.c.h.b16 %v2552
        %v3605 = vunpack.c.l.b16 %v2553
        %v3606 = vunpack.c.h.b16 %v2553
        %v3607 = vunpack.c.l.b16 %v2554
        %v3608 = vunpack.c.h.b16 %v2554
        %v3609 = vunpack.c.l.b16 %v2555
        %v3610 = vunpack.c.h.b16 %v2555
        %v3611 = vunpack.c.l.b16 %v2556
        %v3612 = vunpack.c.h.b16 %v2556
        %v3613 = vunpack.c.l.b16 %v2557
        %v3614 = vunpack.c.h.b16 %v2557
        %v3615 = vunpack.c.l.b16 %v2558
        %v3616 = vunpack.c.h.b16 %v2558
        %v3617 = vunpack.c.l.b16 %v2559
        %v3618 = vunpack.c.h.b16 %v2559
        %v3619 = vunpack.c.l.b16 %v2560
        %v3620 = vunpack.c.h.b16 %v2560
        %v3621 = vunpack.c.l.b16 %v2561
        %v3622 = vunpack.c.h.b16 %v2561
        %v3623 = vunpack.c.l.b16 %v2562
        %v3624 = vunpack.c.h.b16 %v2562
        %v3625 = vunpack.c.l.b16 %v2563
        %v3626 = vunpack.c.h.b16 %v2563
        %v3627 = vunpack.c.l.b16 %v2564
        %v3628 = vunpack.c.h.b16 %v2564
        %v3629 = vunpack.c.l.b16 %v2565
        %v3630 = vunpack.c.h.b16 %v2565
        %v3631 = vunpack.c.l.b16 %v2566
        %v3632 = vunpack.c.h.b16 %v2566
        %v3633 = vunpack.c.l.b16 %v2567
        %v3634 = vunpack.c.h.b16 %v2567
        %v3635 = vunpack.c.l.b16 %v2568
        %v3636 = vunpack.c.h.b16 %v2568
        %v3637 = vunpack.c.l.b16 %v2569
        %v3638 = vunpack.c.h.b16 %v2569
        %v3639 = vunpack.c.l.b16 %v2570
        %v3640 = vunpack.c.h.b16 %v2570
        %v3641 = vunpack.c.l.b16 %v2571
        %v3642 = vunpack.c.h.b16 %v2571
        %v3643 = vunpack.c.l.b16 %v2572
        %v3644 = vunpack.c.h.b16 %v2572
        %v3645 = vunpack.c.l.b16 %v2573
        %v3646 = vunpack.c.h.b16 %v2573
        %v3647 = vunpack.c.l.b16 %v2574
        %v3648 = vunpack.c.h.b16 %v2574
        %v3649 = vunpack.c.l.b16 %v2575
        %v3650 = vunpack.c.h.b16 %v2575
        %v3651 = vunpack.c.l.b16 %v2576
        %v3652 = vunpack.c.h.b16 %v2576
        %v3653 = vunpack.c.l.b16 %v2577
        %v3654 = vunpack.c.h.b16 %v2577
        %v3655 = vunpack.c.l.b16 %v2578
        %v3656 = vunpack.c.h.b16 %v2578
        %v3657 = vunpack.c.l.b16 %v2579
        %v3658 = vunpack.c.h.b16 %v2579
        %v3659 = vunpack.c.l.b16 %v2580
        %v3660 = vunpack.c.h.b16 %v2580
        %v3661 = vunpack.c.l.b16 %v2581
        %v3662 = vunpack.c.h.b16 %v2581
        %v3663 = vunpack.c.l.b16 %v2582
        %v3664 = vunpack.c.h.b16 %v2582
        %v3665 = vunpack.c.l.b16 %v2583
        %v3666 = vunpack.c.h.b16 %v2583
        %v3667 = vunpack.c.l.b16 %v2584
        %v3668 = vunpack.c.h.b16 %v2584
        %v3669 = vunpack.c.l.b16 %v2585
        %v3670 = vunpack.c.h.b16 %v2585
        %v3671 = vunpack.c.l.b16 %v2586
        %v3672 = vunpack.c.h.b16 %v2586
        %v3673 = vunpack.c.l.b16 %v2587
        %v3674 = vunpack.c.h.b16 %v2587
        %v3675 = vunpack.c.l.b16 %v2588
        %v3676 = vunpack.c.h.b16 %v2588
        %v3677 = vunpack.c.l.b16 %v2589
        %v3678 = vunpack.c.h.b16 %v2589
        %v3679 = vunpack.c.l.b16 %v2590
        %v3680 = vunpack.c.h.b16 %v2590
        %v3681 = vunpack.c.l.b16 %v2591
        %v3682 = vunpack.c.h.b16 %v2591
        %v3683 = vunpack.c.l.b16 %v2592
        %v3684 = vunpack.c.h.b16 %v2592
        %v3685 = vunpack.c.l.b16 %v2593
        %v3686 = vunpack.c.h.b16 %v2593
        %v3687 = vunpack.c.l.b16 %v2594
        %v3688 = vunpack.c.h.b16 %v2594
        %v3689 = vunpack.c.l.b16 %v2595
        %v3690 = vunpack.c.h.b16 %v2595
        %v3691 = vunpack.c.l.b16 %v2596
        %v3692 = vunpack.c.h.b16 %v2596
        %v3693 = vunpack.c.l.b16 %v2597
        %v3694 = vunpack.c.h.b16 %v2597
        %v3695 = vunpack.c.l.b16 %v2598
        %v3696 = vunpack.c.h.b16 %v2598
        %v3697 = vunpack.c.l.b16 %v2599
        %v3698 = vunpack.c.h.b16 %v2599
        %v3699 = vunpack.c.l.b16 %v2600
        %v3700 = vunpack.c.h.b16 %v2600
        %v3701 = vunpack.c.l.b16 %v2601
        %v3702 = vunpack.c.h.b16 %v2601
        %v3703 = vunpack.c.l.b16 %v2602
        %v3704 = vunpack.c.h.b16 %v2602
        %v3705 = vunpack.c.l.b16 %v2603
        %v3706 = vunpack.c.h.b16 %v2603
        %v3707 = vunpack.c.l.b16 %v2604
        %v3708 = vunpack.c.h.b16 %v2604
        %v3709 = vunpack.c.l.b16 %v2605
        %v3710 = vunpack.c.h.b16 %v2605
        %v3711 = vunpack.c.l.b16 %v2606
        %v3712 = vunpack.c.h.b16 %v2606
        %v3713 = vunpack.c.l.b16 %v2607
        %v3714 = vunpack.c.h.b16 %v2607
        %v3715 = vunpack.c.l.b16 %v2608
        %v3716 = vunpack.c.h.b16 %v2608
        %v3717 = vunpack.c.l.b16 %v2609
        %v3718 = vunpack.c.h.b16 %v2609
        %v3719 = vunpack.c.l.b16 %v2610
        %v3720 = vunpack.c.h.b16 %v2610
        %v3721 = vunpack.c.l.b16 %v2611
        %v3722 = vunpack.c.h.b16 %v2611
        %v3723 = vunpack.c.l.b16 %v2612
        %v3724 = vunpack.c.h.b16 %v2612
        %v3725 = vunpack.c.l.b16 %v2613
        %v3726 = vunpack.c.h.b16 %v2613
        %v3727 = vunpack.c.l.b16 %v2614
        %v3728 = vunpack.c.h.b16 %v2614
        %v3729 = vunpack.c.l.b16 %v2615
        %v3730 = vunpack.c.h.b16 %v2615
        %v3731 = vunpack.c.l.b16 %v2616
        %v3732 = vunpack.c.h.b16 %v2616
        %v3733 = vunpack.c.l.b16 %v2617
        %v3734 = vunpack.c.h.b16 %v2617
        %v3735 = vunpack.c.l.b16 %v2618
        %v3736 = vunpack.c.h.b16 %v2618
        %v3737 = vunpack.c.l.b16 %v2619
        %v3738 = vunpack.c.h.b16 %v2619
        %v3739 = vunpack.c.l.b16 %v2620
        %v3740 = vunpack.c.h.b16 %v2620
        %v3741 = vunpack.c.l.b16 %v2621
        %v3742 = vunpack.c.h.b16 %v2621
        %v3743 = vunpack.c.l.b16 %v2622
        %v3744 = vunpack.c.h.b16 %v2622
        %v3745 = vunpack.c.l.b16 %v2623
        %v3746 = vunpack.c.h.b16 %v2623
        %v3747 = vunpack.c.l.b16 %v2624
        %v3748 = vunpack.c.h.b16 %v2624
        %v3749 = vunpack.c.l.b16 %v2625
        %v3750 = vunpack.c.h.b16 %v2625
        %v3751 = vunpack.c.l.b16 %v2626
        %v3752 = vunpack.c.h.b16 %v2626
        %v3753 = vunpack.c.l.b16 %v2627
        %v3754 = vunpack.c.h.b16 %v2627
        %v3755 = vunpack.c.l.b16 %v2628
        %v3756 = vunpack.c.h.b16 %v2628
        %v3757 = vunpack.c.l.b16 %v2629
        %v3758 = vunpack.c.h.b16 %v2629
        %v3759 = vunpack.c.l.b16 %v2630
        %v3760 = vunpack.c.h.b16 %v2630
        %v3761 = vunpack.c.l.b16 %v2631
        %v3762 = vunpack.c.h.b16 %v2631
        %v3763 = vunpack.c.l.b16 %v2632
        %v3764 = vunpack.c.h.b16 %v2632
        %v3765 = vunpack.c.l.b16 %v2633
        %v3766 = vunpack.c.h.b16 %v2633
        %v3767 = vunpack.c.l.b16 %v2634
        %v3768 = vunpack.c.h.b16 %v2634
        %v3769 = vunpack.c.l.b16 %v2635
        %v3770 = vunpack.c.h.b16 %v2635
        %v3771 = vunpack.c.l.b16 %v2636
        %v3772 = vunpack.c.h.b16 %v2636
        %v3773 = vunpack.c.l.b16 %v2637
        %v3774 = vunpack.c.h.b16 %v2637
        %v3775 = vunpack.c.l.b16 %v2638
        %v3776 = vunpack.c.h.b16 %v2638
        %v3777 = vunpack.c.l.b16 %v2639
        %v3778 = vunpack.c.h.b16 %v2639
        %v3779 = vunpack.c.l.b16 %v2640
        %v3780 = vunpack.c.h.b16 %v2640
        %v3781 = vunpack.c.l.b16 %v2641
        %v3782 = vunpack.c.h.b16 %v2641
        %v3783 = vunpack.c.l.b16 %v2642
        %v3784 = vunpack.c.h.b16 %v2642
        %v3785 = vunpack.c.l.b16 %v2643
        %v3786 = vunpack.c.h.b16 %v2643
        %v3787 = vunpack.c.l.b16 %v2644
        %v3788 = vunpack.c.h.b16 %v2644
        %v3789 = vunpack.c.l.b16 %v2645
        %v3790 = vunpack.c.h.b16 %v2645
        %v3791 = vunpack.c.l.b16 %v2646
        %v3792 = vunpack.c.h.b16 %v2646
        %v3793 = vunpack.c.l.b16 %v2647
        %v3794 = vunpack.c.h.b16 %v2647
        %v3795 = vunpack.c.l.b16 %v2648
        %v3796 = vunpack.c.h.b16 %v2648
        %v3797 = vunpack.c.l.b16 %v2649
        %v3798 = vunpack.c.h.b16 %v2649
        %v3799 = vunpack.c.l.b16 %v2650
        %v3800 = vunpack.c.h.b16 %v2650
        %v3801 = vunpack.c.l.b16 %v2651
        %v3802 = vunpack.c.h.b16 %v2651
        %v3803 = vunpack.c.l.b16 %v2652
        %v3804 = vunpack.c.h.b16 %v2652
        %v3805 = vunpack.c.l.b16 %v2653
        %v3806 = vunpack.c.h.b16 %v2653
        %v3807 = vunpack.c.l.b16 %v2654
        %v3808 = vunpack.c.h.b16 %v2654
        %v3809 = vunpack.c.l.b16 %v2655
        %v3810 = vunpack.c.h.b16 %v2655
        %v3811 = vunpack.c.l.b16 %v2656
        %v3812 = vunpack.c.h.b16 %v2656
        %v3813 = vunpack.c.l.b16 %v2657
        %v3814 = vunpack.c.h.b16 %v2657
        %v3815 = vunpack.c.l.b16 %v2658
        %v3816 = vunpack.c.h.b16 %v2658
        %v3817 = vunpack.c.l.b16 %v2659
        %v3818 = vunpack.c.h.b16 %v2659
        %v3819 = vunpack.c.l.b16 %v2660
        %v3820 = vunpack.c.h.b16 %v2660
        %v3821 = vunpack.c.l.b16 %v2661
        %v3822 = vunpack.c.h.b16 %v2661
        %v3823 = vunpack.c.l.b16 %v2662
        %v3824 = vunpack.c.h.b16 %v2662
        %v3825 = vunpack.c.l.b16 %v2663
        %v3826 = vunpack.c.h.b16 %v2663
        %v3827 = vunpack.c.l.b16 %v2664
        %v3828 = vunpack.c.h.b16 %v2664
        %v3829 = vunpack.c.l.b16 %v2665
        %v3830 = vunpack.c.h.b16 %v2665
        %v3831 = vunpack.c.l.b16 %v2666
        %v3832 = vunpack.c.h.b16 %v2666
        %v3833 = vunpack.c.l.b16 %v2667
        %v3834 = vunpack.c.h.b16 %v2667
        %v3835 = vunpack.c.l.b16 %v2668
        %v3836 = vunpack.c.h.b16 %v2668
        %v3837 = vunpack.c.l.b16 %v2669
        %v3838 = vunpack.c.h.b16 %v2669
        %v3839 = vunpack.c.l.b16 %v2670
        %v3840 = vunpack.c.h.b16 %v2670
        %v3841 = vunpack.c.l.b16 %v2671
        %v3842 = vunpack.c.h.b16 %v2671
        %v3843 = vunpack.c.l.b16 %v2672
        %v3844 = vunpack.c.h.b16 %v2672
        %v3845 = vunpack.c.l.b16 %v2673
        %v3846 = vunpack.c.h.b16 %v2673
        %v3847 = vunpack.c.l.b16 %v2674
        %v3848 = vunpack.c.h.b16 %v2674
        %v3849 = vunpack.c.l.b16 %v2675
        %v3850 = vunpack.c.h.b16 %v2675
        %v3851 = vunpack.c.l.b16 %v2676
        %v3852 = vunpack.c.h.b16 %v2676
        %v3853 = vunpack.c.l.b16 %v2677
        %v3854 = vunpack.c.h.b16 %v2677
        %v3855 = vunpack.c.l.b16 %v2678
        %v3856 = vunpack.c.h.b16 %v2678
        %v3857 = vunpack.c.l.b16 %v2679
        %v3858 = vunpack.c.h.b16 %v2679
        %v3859 = vunpack.c.l.b16 %v2680
        %v3860 = vunpack.c.h.b16 %v2680
        %v3861 = vunpack.c.l.b16 %v2681
        %v3862 = vunpack.c.h.b16 %v2681
        %v3863 = vunpack.c.l.b16 %v2682
        %v3864 = vunpack.c.h.b16 %v2682
        %v3865 = vunpack.c.l.b16 %v2683
        %v3866 = vunpack.c.h.b16 %v2683
        %v3867 = vunpack.c.l.b16 %v2684
        %v3868 = vunpack.c.h.b16 %v2684
        %v3869 = vunpack.c.l.b16 %v2685
        %v3870 = vunpack.c.h.b16 %v2685
        %v3871 = vunpack.c.l.b16 %v2686
        %v3872 = vunpack.c.h.b16 %v2686
        %v3873 = vunpack.c.l.b16 %v2687
        %v3874 = vunpack.c.h.b16 %v2687
        %v3875 = vunpack.c.l.b16 %v2688
        %v3876 = vunpack.c.h.b16 %v2688
        %v3877 = vunpack.c.l.b16 %v2689
        %v3878 = vunpack.c.h.b16 %v2689
        %v3879 = vunpack.c.l.b16 %v2690
        %v3880 = vunpack.c.h.b16 %v2690
        %v3881 = vunpack.c.l.b16 %v2691
        %v3882 = vunpack.c.h.b16 %v2691
        %v3883 = vunpack.c.l.b16 %v2692
        %v3884 = vunpack.c.h.b16 %v2692
        %v3885 = vunpack.c.l.b16 %v2693
        %v3886 = vunpack.c.h.b16 %v2693
        %v3887 = vunpack.c.l.b16 %v2694
        %v3888 = vunpack.c.h.b16 %v2694
        %v3889 = vunpack.c.l.b16 %v2695
        %v3890 = vunpack.c.h.b16 %v2695
        %v3891 = vunpack.c.l.b16 %v2696
        %v3892 = vunpack.c.h.b16 %v2696
        %v3893 = vunpack.c.l.b16 %v2697
        %v3894 = vunpack.c.h.b16 %v2697
        %v3895 = vunpack.c.l.b16 %v2698
        %v3896 = vunpack.c.h.b16 %v2698
        %v3897 = vunpack.c.l.b16 %v2699
        %v3898 = vunpack.c.h.b16 %v2699
        %v3899 = vunpack.c.l.b16 %v2700
        %v3900 = vunpack.c.h.b16 %v2700
        %v3901 = vunpack.c.l.b16 %v2701
        %v3902 = vunpack.c.h.b16 %v2701
        %v3903 = vunpack.c.l.b16 %v2702
        %v3904 = vunpack.c.h.b16 %v2702
        %v3905 = vunpack.c.l.b16 %v2703
        %v3906 = vunpack.c.h.b16 %v2703
        %v3907 = vunpack.c.l.b16 %v2704
        %v3908 = vunpack.c.h.b16 %v2704
        %v3909 = vunpack.c.l.b16 %v2705
        %v3910 = vunpack.c.h.b16 %v2705
        %v3911 = vunpack.c.l.b16 %v2706
        %v3912 = vunpack.c.h.b16 %v2706
        %v3913 = vunpack.c.l.b16 %v2707
        %v3914 = vunpack.c.h.b16 %v2707
        %v3915 = vunpack.c.l.b16 %v2708
        %v3916 = vunpack.c.h.b16 %v2708
        %v3917 = vunpack.c.l.b16 %v2709
        %v3918 = vunpack.c.h.b16 %v2709
        %v3919 = vunpack.c.l.b16 %v2710
        %v3920 = vunpack.c.h.b16 %v2710
        %v3921 = vunpack.c.l.b16 %v2711
        %v3922 = vunpack.c.h.b16 %v2711
        %v3923 = vunpack.c.l.b16 %v2712
        %v3924 = vunpack.c.h.b16 %v2712
        %v3925 = vunpack.c.l.b16 %v2713
        %v3926 = vunpack.c.h.b16 %v2713
        %v3927 = vunpack.c.l.b16 %v2714
        %v3928 = vunpack.c.h.b16 %v2714
        %v3929 = vunpack.c.l.b16 %v2715
        %v3930 = vunpack.c.h.b16 %v2715
        %v3931 = vunpack.c.l.b16 %v2716
        %v3932 = vunpack.c.h.b16 %v2716
        %v3933 = vunpack.c.l.b16 %v2717
        %v3934 = vunpack.c.h.b16 %v2717
        %v3935 = vunpack.c.l.b16 %v2718
        %v3936 = vunpack.c.h.b16 %v2718
        %v3937 = vunpack.c.l.b16 %v2719
        %v3938 = vunpack.c.h.b16 %v2719
        %v3939 = vunpack.c.l.b16 %v2720
        %v3940 = vunpack.c.h.b16 %v2720
        %v3941 = vunpack.c.l.b16 %v2721
        %v3942 = vunpack.c.h.b16 %v2721
        %v3943 = vunpack.c.l.b16 %v2722
        %v3944 = vunpack.c.h.b16 %v2722
        %v3945 = vunpack.c.l.b16 %v2723
        %v3946 = vunpack.c.h.b16 %v2723
        %v3947 = vunpack.c.l.b16 %v2724
        %v3948 = vunpack.c.h.b16 %v2724
        %v3949 = vunpack.c.l.b16 %v2725
        %v3950 = vunpack.c.h.b16 %v2725
        %v3951 = vunpack.c.l.b16 %v2726
        %v3952 = vunpack.c.h.b16 %v2726
        %v3953 = vunpack.c.l.b16 %v2727
        %v3954 = vunpack.c.h.b16 %v2727
        %v3955 = vunpack.c.l.b16 %v2728
        %v3956 = vunpack.c.h.b16 %v2728
        %v3957 = vunpack.c.l.b16 %v2729
        %v3958 = vunpack.c.h.b16 %v2729
        %v3959 = vunpack.c.l.b16 %v2730
        %v3960 = vunpack.c.h.b16 %v2730
        %v3961 = vunpack.c.l.b16 %v2731
        %v3962 = vunpack.c.h.b16 %v2731
        %v3963 = vunpack.c.l.b16 %v2732
        %v3964 = vunpack.c.h.b16 %v2732
        %v3965 = vunpack.c.l.b16 %v2733
        %v3966 = vunpack.c.h.b16 %v2733
        %v3967 = vunpack.c.l.b16 %v2734
        %v3968 = vunpack.c.h.b16 %v2734
        %v3969 = vunpack.c.l.b16 %v2735
        %v3970 = vunpack.c.h.b16 %v2735
        %v3971 = vunpack.c.l.b16 %v2736
        %v3972 = vunpack.c.h.b16 %v2736
        %v3973 = vunpack.c.l.b16 %v2737
        %v3974 = vunpack.c.h.b16 %v2737
        %v3975 = vunpack.c.l.b16 %v2738
        %v3976 = vunpack.c.h.b16 %v2738
        %v3977 = vunpack.c.l.b16 %v2739
        %v3978 = vunpack.c.h.b16 %v2739
        %v3979 = vunpack.c.l.b16 %v2740
        %v3980 = vunpack.c.h.b16 %v2740
        %v3981 = vunpack.c.l.b16 %v2741
        %v3982 = vunpack.c.h.b16 %v2741
        %v3983 = vunpack.c.l.b16 %v2742
        %v3984 = vunpack.c.h.b16 %v2742
        %v3985 = vunpack.c.l.b16 %v2743
        %v3986 = vunpack.c.h.b16 %v2743
        %v3987 = vunpack.c.l.b16 %v2744
        %v3988 = vunpack.c.h.b16 %v2744
        %v3989 = vunpack.c.l.b16 %v2745
        %v3990 = vunpack.c.h.b16 %v2745
        %v3991 = vunpack.c.l.b16 %v2746
        %v3992 = vunpack.c.h.b16 %v2746
        %v3993 = vunpack.c.l.b16 %v2747
        %v3994 = vunpack.c.h.b16 %v2747
        %v3995 = vunpack.c.l.b16 %v2748
        %v3996 = vunpack.c.h.b16 %v2748
        %v3997 = vunpack.c.l.b16 %v2749
        %v3998 = vunpack.c.h.b16 %v2749
        %v3999 = vunpack.c.l.b16 %v2750
        %v4000 = vunpack.c.h.b16 %v2750
        %v4001 = vunpack.c.l.b16 %v2751
        %v4002 = vunpack.c.h.b16 %v2751
        %v4003 = vunpack.c.l.b16 %v2752
        %v4004 = vunpack.c.h.b16 %v2752
        %v4005 = vunpack.c.l.b16 %v2753
        %v4006 = vunpack.c.h.b16 %v2753
        %v4007 = vunpack.c.l.b16 %v2754
        %v4008 = vunpack.c.h.b16 %v2754
        %v4009 = vunpack.c.l.b16 %v2755
        %v4010 = vunpack.c.h.b16 %v2755
        %v4011 = vunpack.c.l.b16 %v2756
        %v4012 = vunpack.c.h.b16 %v2756
        %v4013 = vunpack.c.l.b16 %v2757
        %v4014 = vunpack.c.h.b16 %v2757
        %v4015 = vunpack.c.l.b16 %v2758
        %v4016 = vunpack.c.h.b16 %v2758
        %v4017 = vunpack.c.l.b16 %v2759
        %v4018 = vunpack.c.h.b16 %v2759
        %v4019 = vunpack.c.l.b16 %v2760
        %v4020 = vunpack.c.h.b16 %v2760
        %v4021 = vunpack.c.l.b16 %v2761
        %v4022 = vunpack.c.h.b16 %v2761
        %v4023 = vunpack.c.l.b16 %v2762
        %v4024 = vunpack.c.h.b16 %v2762
        %v4025 = vunpack.c.l.b16 %v2763
        %v4026 = vunpack.c.h.b16 %v2763
        %v4027 = vunpack.c.l.b16 %v2764
        %v4028 = vunpack.c.h.b16 %v2764
        %v4029 = vunpack.c.l.b16 %v2765
        %v4030 = vunpack.c.h.b16 %v2765
        %v4031 = vunpack.c.l.b16 %v2766
        %v4032 = vunpack.c.h.b16 %v2766
        %v4033 = vunpack.c.l.b16 %v2767
        %v4034 = vunpack.c.h.b16 %v2767
        %v4035 = vunpack.c.l.b16 %v2768
        %v4036 = vunpack.c.h.b16 %v2768
        %v4037 = vunpack.c.l.b16 %v2769
        %v4038 = vunpack.c.h.b16 %v2769
        %v4039 = vunpack.c.l.b16 %v2770
        %v4040 = vunpack.c.h.b16 %v2770
        %v4041 = vunpack.c.l.b16 %v2771
        %v4042 = vunpack.c.h.b16 %v2771
        %v4043 = vunpack.c.l.b16 %v2772
        %v4044 = vunpack.c.h.b16 %v2772
        %v4045 = vunpack.c.l.b16 %v2773
        %v4046 = vunpack.c.h.b16 %v2773
        %v4047 = vunpack.c.l.b16 %v2774
        %v4048 = vunpack.c.h.b16 %v2774
        %v4049 = vunpack.c.l.b16 %v2775
        %v4050 = vunpack.c.h.b16 %v2775
        %v4051 = vunpack.c.l.b16 %v2776
        %v4052 = vunpack.c.h.b16 %v2776
        %v4053 = vunpack.c.l.b16 %v2777
        %v4054 = vunpack.c.h.b16 %v2777
        %v4055 = vunpack.c.l.b16 %v2778
        %v4056 = vunpack.c.h.b16 %v2778
        %v4057 = vunpack.c.l.b16 %v2779
        %v4058 = vunpack.c.h.b16 %v2779
        %v4059 = vunpack.c.l.b16 %v2780
        %v4060 = vunpack.c.h.b16 %v2780
        %v4061 = vunpack.c.l.b16 %v2781
        %v4062 = vunpack.c.h.b16 %v2781
        %v4063 = vunpack.c.l.b16 %v2782
        %v4064 = vunpack.c.h.b16 %v2782
        %v4065 = vunpack.c.l.b16 %v2783
        %v4066 = vunpack.c.h.b16 %v2783
        %v4067 = vunpack.c.l.b16 %v2784
        %v4068 = vunpack.c.h.b16 %v2784
        %v4069 = vunpack.c.l.b16 %v2785
        %v4070 = vunpack.c.h.b16 %v2785
        %v4071 = vunpack.c.l.b16 %v2786
        %v4072 = vunpack.c.h.b16 %v2786
        %v4073 = vunpack.c.l.b16 %v2787
        %v4074 = vunpack.c.h.b16 %v2787
        %v4075 = vunpack.c.l.b16 %v2788
        %v4076 = vunpack.c.h.b16 %v2788
        %v4077 = vunpack.c.l.b16 %v2789
        %v4078 = vunpack.c.h.b16 %v2789
        %v4079 = vunpack.c.l.b16 %v2790
        %v4080 = vunpack.c.h.b16 %v2790
        %v4081 = vunpack.c.l.b16 %v2791
        %v4082 = vunpack.c.h.b16 %v2791
        %v4083 = vunpack.c.l.b16 %v2792
        %v4084 = vunpack.c.h.b16 %v2792
        %v4085 = vunpack.c.l.b16 %v2793
        %v4086 = vunpack.c.h.b16 %v2793
        %v4087 = vunpack.c.l.b16 %v2794
        %v4088 = vunpack.c.h.b16 %v2794
        %v4089 = vunpack.c.l.b16 %v2795
        %v4090 = vunpack.c.h.b16 %v2795
        %v4091 = vunpack.c.l.b16 %v2796
        %v4092 = vunpack.c.h.b16 %v2796
        %v4093 = vunpack.c.l.b16 %v2797
        %v4094 = vunpack.c.h.b16 %v2797
        %v4095 = vunpack.c.l.b16 %v2798
        %v4096 = vunpack.c.h.b16 %v2798
        %v4097 = vunpack.c.l.b16 %v2799
        %v4098 = vunpack.c.h.b16 %v2799
        %v4099 = vunpack.c.l.b16 %v2800
        %v4100 = vunpack.c.h.b16 %v2800
        %v4101 = vunpack.c.l.b16 %v2801
        %v4102 = vunpack.c.h.b16 %v2801
        %v4103 = vunpack.c.l.b16 %v2802
        %v4104 = vunpack.c.h.b16 %v2802
        %v4105 = vunpack.c.l.b16 %v2803
        %v4106 = vunpack.c.h.b16 %v2803
        %v4107 = vunpack.c.l.b16 %v2804
        %v4108 = vunpack.c.h.b16 %v2804
        %v4109 = vunpack.c.l.b16 %v2805
        %v4110 = vunpack.c.h.b16 %v2805
        %v4111 = vunpack.c.l.b16 %v2806
        %v4112 = vunpack.c.h.b16 %v2806
        %v4113 = vunpack.c.l.b16 %v2807
        %v4114 = vunpack.c.h.b16 %v2807
        %v4115 = vunpack.c.l.b16 %v2808
        %v4116 = vunpack.c.h.b16 %v2808
        %v4117 = vunpack.c.l.b16 %v2809
        %v4118 = vunpack.c.h.b16 %v2809
        %v4119 = vunpack.c.l.b16 %v2810
        %v4120 = vunpack.c.h.b16 %v2810
        %v4121 = vunpack.c.l.b16 %v2811
        %v4122 = vunpack.c.h.b16 %v2811
        %v4123 = vunpack.c.l.b16 %v2812
        %v4124 = vunpack.c.h.b16 %v2812
        %v4125 = vunpack.c.l.b16 %v2813
        %v4126 = vunpack.c.h.b16 %v2813
        %v4127 = vunpack.c.l.b16 %v2814
        %v4128 = vunpack.c.h.b16 %v2814
        %v4129 = vunpack.c.l.b16 %v2815
        %v4130 = vunpack.c.h.b16 %v2815
        %v4131 = vunpack.c.l.b16 %v2816
        %v4132 = vunpack.c.h.b16 %v2816
        %v4133 = vunpack.c.l.b16 %v2817
        %v4134 = vunpack.c.h.b16 %v2817
        %v4135 = vunpack.c.l.b16 %v2818
        %v4136 = vunpack.c.h.b16 %v2818
        %v4137 = vunpack.c.l.b16 %v2819
        %v4138 = vunpack.c.h.b16 %v2819
        %v4139 = vunpack.c.l.b16 %v2820
        %v4140 = vunpack.c.h.b16 %v2820
        %v4141 = vunpack.c.l.b16 %v2821
        %v4142 = vunpack.c.h.b16 %v2821
        %v4143 = vunpack.c.l.b16 %v2822
        %v4144 = vunpack.c.h.b16 %v2822
        %v4145 = vunpack.c.l.b16 %v2823
        %v4146 = vunpack.c.h.b16 %v2823
        %v4147 = vunpack.c.l.b16 %v2824
        %v4148 = vunpack.c.h.b16 %v2824
        %v4149 = vunpack.c.l.b16 %v2825
        %v4150 = vunpack.c.h.b16 %v2825
        %v4151 = vunpack.c.l.b16 %v2826
        %v4152 = vunpack.c.h.b16 %v2826
        %v4153 = vunpack.c.l.b16 %v2827
        %v4154 = vunpack.c.h.b16 %v2827
        %v4155 = vunpack.c.l.b16 %v2828
        %v4156 = vunpack.c.h.b16 %v2828
        %v4157 = vunpack.c.l.b16 %v2829
        %v4158 = vunpack.c.h.b16 %v2829
        %v4159 = vunpack.c.l.b16 %v2830
        %v4160 = vunpack.c.h.b16 %v2830
        %v4161 = vunpack.c.l.b16 %v2831
        %v4162 = vunpack.c.h.b16 %v2831
        %v4163 = vunpack.c.l.b16 %v2832
        %v4164 = vunpack.c.h.b16 %v2832
        %v4165 = vunpack.c.l.b16 %v2833
        %v4166 = vunpack.c.h.b16 %v2833
        %v4167 = vunpack.c.l.b16 %v2834
        %v4168 = vunpack.c.h.b16 %v2834
        %v4169 = vunpack.c.l.b16 %v2835
        %v4170 = vunpack.c.h.b16 %v2835
        %v4171 = vunpack.c.l.b16 %v2836
        %v4172 = vunpack.c.h.b16 %v2836
        %v4173 = vunpack.c.l.b16 %v2837
        %v4174 = vunpack.c.h.b16 %v2837
        %v4175 = vunpack.c.l.b16 %v2838
        %v4176 = vunpack.c.h.b16 %v2838
        %v4177 = vunpack.c.l.b16 %v2839
        %v4178 = vunpack.c.h.b16 %v2839
        %v4179 = vunpack.c.l.b16 %v2840
        %v4180 = vunpack.c.h.b16 %v2840
        %v4181 = vunpack.c.l.b16 %v2841
        %v4182 = vunpack.c.h.b16 %v2841
        %v4183 = vunpack.c.l.b16 %v2842
        %v4184 = vunpack.c.h.b16 %v2842
        %v4185 = vunpack.c.l.b16 %v2843
        %v4186 = vunpack.c.h.b16 %v2843
        %v4187 = vunpack.c.l.b16 %v2844
        %v4188 = vunpack.c.h.b16 %v2844
        %v4189 = vunpack.c.l.b16 %v2845
        %v4190 = vunpack.c.h.b16 %v2845
        %v4191 = vunpack.c.l.b16 %v2846
        %v4192 = vunpack.c.h.b16 %v2846
        %v4193 = vunpack.c.l.b16 %v2847
        %v4194 = vunpack.c.h.b16 %v2847
        %v4195 = vunpack.c.l.b16 %v2848
        %v4196 = vunpack.c.h.b16 %v2848
        %v4197 = vunpack.c.l.b16 %v2849
        %v4198 = vunpack.c.h.b16 %v2849
        %v4199 = vunpack.c.l.b16 %v2850
        %v4200 = vunpack.c.h.b16 %v2850
        %v4201 = vunpack.c.l.b16 %v2851
        %v4202 = vunpack.c.h.b16 %v2851
        %v4203 = vunpack.c.l.b16 %v2852
        %v4204 = vunpack.c.h.b16 %v2852
        %v4205 = vunpack.c.l.b16 %v2853
        %v4206 = vunpack.c.h.b16 %v2853
        %v4207 = vunpack.c.l.b16 %v2854
        %v4208 = vunpack.c.h.b16 %v2854
        %v4209 = vunpack.c.l.b16 %v2855
        %v4210 = vunpack.c.h.b16 %v2855
        %v4211 = vunpack.c.l.b16 %v2856
        %v4212 = vunpack.c.h.b16 %v2856
        %v4213 = vunpack.c.l.b16 %v2857
        %v4214 = vunpack.c.h.b16 %v2857
        %v4215 = vunpack.c.l.b16 %v2858
        %v4216 = vunpack.c.h.b16 %v2858
        %v4217 = vunpack.c.l.b16 %v2859
        %v4218 = vunpack.c.h.b16 %v2859
        %v4219 = vunpack.c.l.b16 %v2860
        %v4220 = vunpack.c.h.b16 %v2860
        %v4221 = vunpack.c.l.b16 %v2861
        %v4222 = vunpack.c.h.b16 %v2861
        %v4223 = vunpack.c.l.b16 %v2862
        %v4224 = vunpack.c.h.b16 %v2862
        %v4225 = vunpack.c.l.b16 %v2863
        %v4226 = vunpack.c.h.b16 %v2863
        %v4227 = vunpack.c.l.b16 %v2864
        %v4228 = vunpack.c.h.b16 %v2864
        %v4229 = vunpack.c.l.b16 %v2865
        %v4230 = vunpack.c.h.b16 %v2865
        %v4231 = vunpack.c.l.b16 %v2866
        %v4232 = vunpack.c.h.b16 %v2866
        %v4233 = vunpack.c.l.b16 %v2867
        %v4234 = vunpack.c.h.b16 %v2867
        %v4235 = vunpack.c.l.b16 %v2868
        %v4236 = vunpack.c.h.b16 %v2868
        %v4237 = vunpack.c.l.b16 %v2869
        %v4238 = vunpack.c.h.b16 %v2869
        %v4239 = vunpack.c.l.b16 %v2870
        %v4240 = vunpack.c.h.b16 %v2870
        %v4241 = vunpack.c.l.b16 %v2871
        %v4242 = vunpack.c.h.b16 %v2871
        %v4243 = vunpack.c.l.b16 %v2872
        %v4244 = vunpack.c.h.b16 %v2872
        %v4245 = vunpack.c.l.b16 %v2873
        %v4246 = vunpack.c.h.b16 %v2873
        %v4247 = vunpack.c.l.b16 %v2874
        %v4248 = vunpack.c.h.b16 %v2874
        %v4249 = vunpack.c.l.b16 %v2875
        %v4250 = vunpack.c.h.b16 %v2875
        %v4251 = vunpack.c.l.b16 %v2876
        %v4252 = vunpack.c.h.b16 %v2876
        %v4253 = vunpack.c.l.b16 %v2877
        %v4254 = vunpack.c.h.b16 %v2877
        %v4255 = vunpack.c.l.b16 %v2878
        %v4256 = vunpack.c.h.b16 %v2878
        %v4257 = vunpack.c.l.b16 %v2879
        %v4258 = vunpack.c.h.b16 %v2879
        %v4259 = vunpack.c.l.b16 %v2880
        %v4260 = vunpack.c.h.b16 %v2880
        %v4261 = vunpack.c.l.b16 %v2881
        %v4262 = vunpack.c.h.b16 %v2881
        %v4263 = vunpack.c.l.b16 %v2882
        %v4264 = vunpack.c.h.b16 %v2882
        %v4265 = vunpack.c.l.b16 %v2883
        %v4266 = vunpack.c.h.b16 %v2883
        %v4267 = vunpack.c.l.b16 %v2884
        %v4268 = vunpack.c.h.b16 %v2884
        %v4269 = vunpack.c.l.b16 %v2885
        %v4270 = vunpack.c.h.b16 %v2885
        %v4271 = vunpack.c.l.b16 %v2886
        %v4272 = vunpack.c.h.b16 %v2886
        %v4273 = vunpack.c.l.b16 %v2887
        %v4274 = vunpack.c.h.b16 %v2887
        %v4275 = vunpack.c.l.b16 %v2888
        %v4276 = vunpack.c.h.b16 %v2888
        %v4277 = vunpack.c.l.b16 %v2889
        %v4278 = vunpack.c.h.b16 %v2889
        %v4279 = vunpack.c.l.b16 %v2890
        %v4280 = vunpack.c.h.b16 %v2890
        %v4281 = vunpack.c.l.b16 %v2891
        %v4282 = vunpack.c.h.b16 %v2891
        %v4283 = vunpack.c.l.b16 %v2892
        %v4284 = vunpack.c.h.b16 %v2892
        %v4285 = vunpack.c.l.b16 %v2893
        %v4286 = vunpack.c.h.b16 %v2893
        %v4287 = vunpack.c.l.b16 %v2894
        %v4288 = vunpack.c.h.b16 %v2894
        %v4289 = vunpack.c.l.b16 %v2895
        %v4290 = vunpack.c.h.b16 %v2895
        %v4291 = vunpack.c.l.b16 %v2896
        %v4292 = vunpack.c.h.b16 %v2896
        %v4293 = vunpack.c.l.b16 %v2897
        %v4294 = vunpack.c.h.b16 %v2897
        %v4295 = vunpack.c.l.b16 %v2898
        %v4296 = vunpack.c.h.b16 %v2898
        %v4297 = vunpack.c.l.b16 %v2899
        %v4298 = vunpack.c.h.b16 %v2899
        %v4299 = vunpack.c.l.b16 %v2900
        %v4300 = vunpack.c.h.b16 %v2900
        %v4301 = vunpack.c.l.b16 %v2901
        %v4302 = vunpack.c.h.b16 %v2901
        %v4303 = vunpack.c.l.b16 %v2902
        %v4304 = vunpack.c.h.b16 %v2902
        %v4305 = vunpack.c.l.b16 %v2903
        %v4306 = vunpack.c.h.b16 %v2903
        %v4307 = vunpack.c.l.b16 %v2904
        %v4308 = vunpack.c.h.b16 %v2904
        %v4309 = vunpack.c.l.b16 %v2905
        %v4310 = vunpack.c.h.b16 %v2905
        %v4311 = vunpack.c.l.b16 %v2906
        %v4312 = vunpack.c.h.b16 %v2906
        %v4313 = vunpack.c.l.b16 %v2907
        %v4314 = vunpack.c.h.b16 %v2907
        %v4315 = vunpack.c.l.b16 %v2908
        %v4316 = vunpack.c.h.b16 %v2908
        %v4317 = vunpack.c.l.b16 %v2909
        %v4318 = vunpack.c.h.b16 %v2909
        %v4319 = vunpack.c.l.b16 %v2910
        %v4320 = vunpack.c.h.b16 %v2910
        %v4321 = vunpack.c.l.b16 %v2911
        %v4322 = vunpack.c.h.b16 %v2911
        %v4323 = vunpack.c.l.b16 %v2912
        %v4324 = vunpack.c.h.b16 %v2912
        %v4325 = vunpack.c.l.b16 %v2913
        %v4326 = vunpack.c.h.b16 %v2913
        %v4327 = vunpack.c.l.b16 %v2914
        %v4328 = vunpack.c.h.b16 %v2914
        %v4329 = vunpack.c.l.b16 %v2915
        %v4330 = vunpack.c.h.b16 %v2915
        %v4331 = vunpack.c.l.b16 %v2916
        %v4332 = vunpack.c.h.b16 %v2916
        %v4333 = vunpack.c.l.b16 %v2917
        %v4334 = vunpack.c.h.b16 %v2917
        %v4335 = vunpack.c.l.b16 %v2918
        %v4336 = vunpack.c.h.b16 %v2918
        %v4337 = vunpack.c.l.b16 %v2919
        %v4338 = vunpack.c.h.b16 %v2919
        %v4339 = vunpack.c.l.b16 %v2920
        %v4340 = vunpack.c.h.b16 %v2920
        %v4341 = vunpack.c.l.b16 %v2921
        %v4342 = vunpack.c.h.b16 %v2921
        %v4343 = vunpack.c.l.b16 %v2922
        %v4344 = vunpack.c.h.b16 %v2922
        %v4345 = vunpack.c.l.b16 %v2923
        %v4346 = vunpack.c.h.b16 %v2923
        %v4347 = vunpack.c.l.b16 %v2924
        %v4348 = vunpack.c.h.b16 %v2924
        %v4349 = vunpack.c.l.b16 %v2925
        %v4350 = vunpack.c.h.b16 %v2925
        %v4351 = vunpack.c.l.b16 %v2926
        %v4352 = vunpack.c.h.b16 %v2926
        %v4353 = vunpack.c.l.b16 %v2927
        %v4354 = vunpack.c.h.b16 %v2927
        %v4355 = vunpack.c.l.b16 %v2928
        %v4356 = vunpack.c.h.b16 %v2928
        %v4357 = vunpack.c.l.b16 %v2929
        %v4358 = vunpack.c.h.b16 %v2929
        %v4359 = vunpack.c.l.b16 %v2930
        %v4360 = vunpack.c.h.b16 %v2930
        %v4361 = vunpack.c.l.b16 %v2931
        %v4362 = vunpack.c.h.b16 %v2931
        %v4363 = vunpack.c.l.b16 %v2932
        %v4364 = vunpack.c.h.b16 %v2932
        %v4365 = vunpack.c.l.b16 %v2933
        %v4366 = vunpack.c.h.b16 %v2933
        %v4367 = vunpack.c.l.b16 %v2934
        %v4368 = vunpack.c.h.b16 %v2934
        %v4369 = vunpack.c.l.b16 %v2935
        %v4370 = vunpack.c.h.b16 %v2935
        %v4371 = vunpack.c.l.b16 %v2936
        %v4372 = vunpack.c.h.b16 %v2936
        %v4373 = vunpack.c.l.b16 %v2937
        %v4374 = vunpack.c.h.b16 %v2937
        %v4375 = vunpack.c.l.b16 %v2938
        %v4376 = vunpack.c.h.b16 %v2938
        %v4377 = vunpack.c.l.b16 %v2939
        %v4378 = vunpack.c.h.b16 %v2939
        %v4379 = vunpack.c.l.b16 %v2940
        %v4380 = vunpack.c.h.b16 %v2940
        %v4381 = vunpack.c.l.b16 %v2941
        %v4382 = vunpack.c.h.b16 %v2941
        %v4383 = vunpack.c.l.b16 %v2942
        %v4384 = vunpack.c.h.b16 %v2942
        %v4385 = vunpack.c.l.b16 %v2943
        %v4386 = vunpack.c.h.b16 %v2943
        %v4387 = vunpack.c.l.b16 %v2944
        %v4388 = vunpack.c.h.b16 %v2944
        %v4389 = vunpack.c.l.b16 %v2945
        %v4390 = vunpack.c.h.b16 %v2945
        %v4391 = vunpack.c.l.b16 %v2946
        %v4392 = vunpack.c.h.b16 %v2946
        %v4393 = vunpack.c.l.b16 %v2947
        %v4394 = vunpack.c.h.b16 %v2947
        %v4395 = vunpack.c.l.b16 %v2948
        %v4396 = vunpack.c.h.b16 %v2948
        %v4397 = vunpack.c.l.b16 %v2949
        %v4398 = vunpack.c.h.b16 %v2949
        %v4399 = vunpack.c.l.b16 %v2950
        %v4400 = vunpack.c.h.b16 %v2950
        %v4401 = vunpack.c.l.b16 %v2951
        %v4402 = vunpack.c.h.b16 %v2951
        %v4403 = vunpack.c.l.b16 %v2952
        %v4404 = vunpack.c.h.b16 %v2952
        %v4405 = vunpack.c.l.b16 %v2953
        %v4406 = vunpack.c.h.b16 %v2953
        %v4407 = vunpack.c.l.b16 %v2954
        %v4408 = vunpack.c.h.b16 %v2954
        %v4409 = vunpack.c.l.b16 %v2955
        %v4410 = vunpack.c.h.b16 %v2955
        %v4411 = vunpack.c.l.b16 %v2956
        %v4412 = vunpack.c.h.b16 %v2956
        %v4413 = vunpack.c.l.b16 %v2957
        %v4414 = vunpack.c.h.b16 %v2957
        %v4415 = vunpack.c.l.b16 %v2958
        %v4416 = vunpack.c.h.b16 %v2958
        %v4417 = vunpack.c.l.b16 %v2959
        %v4418 = vunpack.c.h.b16 %v2959
        %v4419 = vunpack.c.l.b16 %v2960
        %v4420 = vunpack.c.h.b16 %v2960
        %v4421 = vunpack.c.l.b16 %v2961
        %v4422 = vunpack.c.h.b16 %v2961
        %v4423 = vunpack.c.l.b16 %v2962
        %v4424 = vunpack.c.h.b16 %v2962
        %v4425 = vunpack.c.l.b16 %v2963
        %v4426 = vunpack.c.h.b16 %v2963
        %v4427 = vunpack.c.l.b16 %v2964
        %v4428 = vunpack.c.h.b16 %v2964
        %v4429 = vunpack.c.l.b16 %v2965
        %v4430 = vunpack.c.h.b16 %v2965
        %v4431 = vunpack.c.l.b16 %v2966
        %v4432 = vunpack.c.h.b16 %v2966
        %v4433 = vunpack.c.l.b16 %v2967
        %v4434 = vunpack.c.h.b16 %v2967
        %v4435 = vunpack.c.l.b16 %v2968
        %v4436 = vunpack.c.h.b16 %v2968
        %v4437 = vunpack.c.l.b16 %v2969
        %v4438 = vunpack.c.h.b16 %v2969
        %v4439 = vunpack.c.l.b16 %v2970
        %v4440 = vunpack.c.h.b16 %v2970
        %v4441 = vunpack.c.l.b16 %v2971
        %v4442 = vunpack.c.h.b16 %v2971
        %v4443 = vunpack.c.l.b16 %v2972
        %v4444 = vunpack.c.h.b16 %v2972
        %v4445 = vpack.c.b16 %v3491, %v3485
        %v4446 = vpack.c.b16 %v3492, %v3486
        %v4447 = vpack.c.b16 %v3493, %v3487
        %v4448 = vpack.c.b16 %v3494, %v3488
        %v4449 = vpack.c.b16 %v3495, %v3489
        %v4450 = vpack.c.b16 %v3496, %v3490
        %v4451 = vpack.c.b16 %v3503, %v3497
        %v4452 = vpack.c.b16 %v3504, %v3498
        %v4453 = vpack.c.b16 %v3505, %v3499
        %v4454 = vpack.c.b16 %v3506, %v3500
        %v4455 = vpack.c.b16 %v3507, %v3501
        %v4456 = vpack.c.b16 %v3508, %v3502
        %v4457 = vpack.c.b16 %v3515, %v3509
        %v4458 = vpack.c.b16 %v3516, %v3510
        %v4459 = vpack.c.b16 %v3517, %v3511
        %v4460 = vpack.c.b16 %v3518, %v3512
        %v4461 = vpack.c.b16 %v3519, %v3513
        %v4462 = vpack.c.b16 %v3520, %v3514
        %v4463 = vpack.c.b16 %v3527, %v3521
        %v4464 = vpack.c.b16 %v3528, %v3522
        %v4465 = vpack.c.b16 %v3529, %v3523
        %v4466 = vpack.c.b16 %v3530, %v3524
        %v4467 = vpack.c.b16 %v3531, %v3525
        %v4468 = vpack.c.b16 %v3532, %v3526
        %v4469 = vpack.c.b16 %v3539, %v3533
        %v4470 = vpack.c.b16 %v3540, %v3534
        %v4471 = vpack.c.b16 %v3541, %v3535
        %v4472 = vpack.c.b16 %v3542, %v3536
        %v4473 = vpack.c.b16 %v3543, %v3537
        %v4474 = vpack.c.b16 %v3544, %v3538
        %v4475 = vpack.c.b16 %v3551, %v3545
        %v4476 = vpack.c.b16 %v3552, %v3546
        %v4477 = vpack.c.b16 %v3553, %v3547
        %v4478 = vpack.c.b16 %v3554, %v3548
        %v4479 = vpack.c.b16 %v3555, %v3549
        %v4480 = vpack.c.b16 %v3556, %v3550
        %v4481 = vpack.c.b16 %v3563, %v3557
        %v4482 = vpack.c.b16 %v3564, %v3558
        %v4483 = vpack.c.b16 %v3565, %v3559
        %v4484 = vpack.c.b16 %v3566, %v3560
        %v4485 = vpack.c.b16 %v3567, %v3561
        %v4486 = vpack.c.b16 %v3568, %v3562
        %v4487 = vpack.c.b16 %v3575, %v3569
        %v4488 = vpack.c.b16 %v3576, %v3570
        %v4489 = vpack.c.b16 %v3577, %v3571
        %v4490 = vpack.c.b16 %v3578, %v3572
        %v4491 = vpack.c.b16 %v3579, %v3573
        %v4492 = vpack.c.b16 %v3580, %v3574
        %v4493 = vpack.c.b16 %v3587, %v3581
        %v4494 = vpack.c.b16 %v3588, %v3582
        %v4495 = vpack.c.b16 %v3589, %v3583
        %v4496 = vpack.c.b16 %v3590, %v3584
        %v4497 = vpack.c.b16 %v3591, %v3585
        %v4498 = vpack.c.b16 %v3592, %v3586
        %v4499 = vpack.c.b16 %v3599, %v3593
        %v4500 = vpack.c.b16 %v3600, %v3594
        %v4501 = vpack.c.b16 %v3601, %v3595
        %v4502 = vpack.c.b16 %v3602, %v3596
        %v4503 = vpack.c.b16 %v3603, %v3597
        %v4504 = vpack.c.b16 %v3604, %v3598
        %v4505 = vpack.c.b16 %v3611, %v3605
        %v4506 = vpack.c.b16 %v3612, %v3606
        %v4507 = vpack.c.b16 %v3613, %v3607
        %v4508 = vpack.c.b16 %v3614, %v3608
        %v4509 = vpack.c.b16 %v3615, %v3609
        %v4510 = vpack.c.b16 %v3616, %v3610
        %v4511 = vpack.c.b16 %v3623, %v3617
        %v4512 = vpack.c.b16 %v3624, %v3618
        %v4513 = vpack.c.b16 %v3625, %v3619
        %v4514 = vpack.c.b16 %v3626, %v3620
        %v4515 = vpack.c.b16 %v3627, %v3621
        %v4516 = vpack.c.b16 %v3628, %v3622
        %v4517 = vpack.c.b16 %v3635, %v3629
        %v4518 = vpack.c.b16 %v3636, %v3630
        %v4519 = vpack.c.b16 %v3637, %v3631
        %v4520 = vpack.c.b16 %v3638, %v3632
        %v4521 = vpack.c.b16 %v3639, %v3633
        %v4522 = vpack.c.b16 %v3640, %v3634
        %v4523 = vpack.c.b16 %v3647, %v3641
        %v4524 = vpack.c.b16 %v3648, %v3642
        %v4525 = vpack.c.b16 %v3649, %v3643
        %v4526 = vpack.c.b16 %v3650, %v3644
        %v4527 = vpack.c.b16 %v3651, %v3645
        %v4528 = vpack.c.b16 %v3652, %v3646
        %v4529 = vpack.c.b16 %v3659, %v3653
        %v4530 = vpack.c.b16 %v3660, %v3654
        %v4531 = vpack.c.b16 %v3661, %v3655
        %v4532 = vpack.c.b16 %v3662, %v3656
        %v4533 = vpack.c.b16 %v3663, %v3657
        %v4534 = vpack.c.b16 %v3664, %v3658
        %v4535 = vpack.c.b16 %v3671, %v3665
        %v4536 = vpack.c.b16 %v3672, %v3666
        %v4537 = vpack.c.b16 %v3673, %v3667
        %v4538 = vpack.c.b16 %v3674, %v3668
        %v4539 = vpack.c.b16 %v3675, %v3669
        %v4540 = vpack.c.b16 %v3676, %v3670
        %v4541 = vpack.c.b16 %v3683, %v3677
        %v4542 = vpack.c.b16 %v3684, %v3678
        %v4543 = vpack.c.b16 %v3685, %v3679
        %v4544 = vpack.c.b16 %v3686, %v3680
        %v4545 = vpack.c.b16 %v3687, %v3681
        %v4546 = vpack.c.b16 %v3688, %v3682
        %v4547 = vpack.c.b16 %v3695, %v3689
        %v4548 = vpack.c.b16 %v3696, %v3690
        %v4549 = vpack.c.b16 %v3697, %v3691
        %v4550 = vpack.c.b16 %v3698, %v3692
        %v4551 = vpack.c.b16 %v3699, %v3693
        %v4552 = vpack.c.b16 %v3700, %v3694
        %v4553 = vpack.c.b16 %v3707, %v3701
        %v4554 = vpack.c.b16 %v3708, %v3702
        %v4555 = vpack.c.b16 %v3709, %v3703
        %v4556 = vpack.c.b16 %v3710, %v3704
        %v4557 = vpack.c.b16 %v3711, %v3705
        %v4558 = vpack.c.b16 %v3712, %v3706
        %v4559 = vpack.c.b16 %v3719, %v3713
        %v4560 = vpack.c.b16 %v3720, %v3714
        %v4561 = vpack.c.b16 %v3721, %v3715
        %v4562 = vpack.c.b16 %v3722, %v3716
        %v4563 = vpack.c.b16 %v3723, %v3717
        %v4564 = vpack.c.b16 %v3724, %v3718
        %v4565 = vpack.c.b16 %v3731, %v3725
        %v4566 = vpack.c.b16 %v3732, %v3726
        %v4567 = vpack.c.b16 %v3733, %v3727
        %v4568 = vpack.c.b16 %v3734, %v3728
        %v4569 = vpack.c.b16 %v3735, %v3729
        %v4570 = vpack.c.b16 %v3736, %v3730
        %v4571 = vpack.c.b16 %v3743, %v3737
        %v4572 = vpack.c.b16 %v3744, %v3738
        %v4573 = vpack.c.b16 %v3745, %v3739
        %v4574 = vpack.c.b16 %v3746, %v3740
        %v4575 = vpack.c.b16 %v3747, %v3741
        %v4576 = vpack.c.b16 %v3748, %v3742
        %v4577 = vpack.c.b16 %v3755, %v3749
        %v4578 = vpack.c.b16 %v3756, %v3750
        %v4579 = vpack.c.b16 %v3757, %v3751
        %v4580 = vpack.c.b16 %v3758, %v3752
        %v4581 = vpack.c.b16 %v3759, %v3753
        %v4582 = vpack.c.b16 %v3760, %v3754
        %v4583 = vpack.c.b16 %v3767, %v3761
        %v4584 = vpack.c.b16 %v3768, %v3762
        %v4585 = vpack.c.b16 %v3769, %v3763
        %v4586 = vpack.c.b16 %v3770, %v3764
        %v4587 = vpack.c.b16 %v3771, %v3765
        %v4588 = vpack.c.b16 %v3772, %v3766
        %v4589 = vpack.c.b16 %v3779, %v3773
        %v4590 = vpack.c.b16 %v3780, %v3774
        %v4591 = vpack.c.b16 %v3781, %v3775
        %v4592 = vpack.c.b16 %v3782, %v3776
        %v4593 = vpack.c.b16 %v3783, %v3777
        %v4594 = vpack.c.b16 %v3784, %v3778
        %v4595 = vpack.c.b16 %v3791, %v3785
        %v4596 = vpack.c.b16 %v3792, %v3786
        %v4597 = vpack.c.b16 %v3793, %v3787
        %v4598 = vpack.c.b16 %v3794, %v3788
        %v4599 = vpack.c.b16 %v3795, %v3789
        %v4600 = vpack.c.b16 %v3796, %v3790
        %v4601 = vpack.c.b16 %v3803, %v3797
        %v4602 = vpack.c.b16 %v3804, %v3798
        %v4603 = vpack.c.b16 %v3805, %v3799
        %v4604 = vpack.c.b16 %v3806, %v3800
        %v4605 = vpack.c.b16 %v3807, %v3801
        %v4606 = vpack.c.b16 %v3808, %v3802
        %v4607 = vpack.c.b16 %v3815, %v3809
        %v4608 = vpack.c.b16 %v3816, %v3810
        %v4609 = vpack.c.b16 %v3817, %v3811
        %v4610 = vpack.c.b16 %v3818, %v3812
        %v4611 = vpack.c.b16 %v3819, %v3813
        %v4612 = vpack.c.b16 %v3820, %v3814
        %v4613 = vpack.c.b16 %v3827, %v3821
        %v4614 = vpack.c.b16 %v3828, %v3822
        %v4615 = vpack.c.b16 %v3829, %v3823
        %v4616 = vpack.c.b16 %v3830, %v3824
        %v4617 = vpack.c.b16 %v3831, %v3825
        %v4618 = vpack.c.b16 %v3832, %v3826
        %v4619 = vpack.c.b16 %v3839, %v3833
        %v4620 = vpack.c.b16 %v3840, %v3834
        %v4621 = vpack.c.b16 %v3841, %v3835
        %v4622 = vpack.c.b16 %v3842, %v3836
        %v4623 = vpack.c.b16 %v3843, %v3837
        %v4624 = vpack.c.b16 %v3844, %v3838
        %v4625 = vpack.c.b16 %v3851, %v3845
        %v4626 = vpack.c.b16 %v3852, %v3846
        %v4627 = vpack.c.b16 %v3853, %v3847
        %v4628 = vpack.c.b16 %v3854, %v3848
        %v4629 = vpack.c.b16 %v3855, %v3849
        %v4630 = vpack.c.b16 %v3856, %v3850
        %v4631 = vpack.c.b16 %v3863, %v3857
        %v4632 = vpack.c.b16 %v3864, %v3858
        %v4633 = vpack.c.b16 %v3865, %v3859
        %v4634 = vpack.c.b16 %v3866, %v3860
        %v4635 = vpack.c.b16 %v3867, %v3861
        %v4636 = vpack.c.b16 %v3868, %v3862
        %v4637 = vpack.c.b16 %v3875, %v3869
        %v4638 = vpack.c.b16 %v3876, %v3870
        %v4639 = vpack.c.b16 %v3877, %v3871
        %v4640 = vpack.c.b16 %v3878, %v3872
        %v4641 = vpack.c.b16 %v3879, %v3873
        %v4642 = vpack.c.b16 %v3880, %v3874
        %v4643 = vpack.c.b16 %v3887, %v3881
        %v4644 = vpack.c.b16 %v3888, %v3882
        %v4645 = vpack.c.b16 %v3889, %v3883
        %v4646 = vpack.c.b16 %v3890, %v3884
        %v4647 = vpack.c.b16 %v3891, %v3885
        %v4648 = vpack.c.b16 %v3892, %v3886
        %v4649 = vpack.c.b16 %v3899, %v3893
        %v4650 = vpack.c.b16 %v3900, %v3894
        %v4651 = vpack.c.b16 %v3901, %v3895
        %v4652 = vpack.c.b16 %v3902, %v3896
        %v4653 = vpack.c.b16 %v3903, %v3897
        %v4654 = vpack.c.b16 %v3904, %v3898
        %v4655 = vpack.c.b16 %v3911, %v3905
        %v4656 = vpack.c.b16 %v3912, %v3906
        %v4657 = vpack.c.b16 %v3913, %v3907
        %v4658 = vpack.c.b16 %v3914, %v3908
        %v4659 = vpack.c.b16 %v3915, %v3909
        %v4660 = vpack.c.b16 %v3916, %v3910
        %v4661 = vpack.c.b16 %v3923, %v3917
        %v4662 = vpack.c.b16 %v3924, %v3918
        %v4663 = vpack.c.b16 %v3925, %v3919
        %v4664 = vpack.c.b16 %v3926, %v3920
        %v4665 = vpack.c.b16 %v3927, %v3921
        %v4666 = vpack.c.b16 %v3928, %v3922
        %v4667 = vpack.c.b16 %v3935, %v3929
        %v4668 = vpack.c.b16 %v3936, %v3930
        %v4669 = vpack.c.b16 %v3937, %v3931
        %v4670 = vpack.c.b16 %v3938, %v3932
        %v4671 = vpack.c.b16 %v3939, %v3933
        %v4672 = vpack.c.b16 %v3940, %v3934
        %v4673 = vpack.c.b16 %v3947, %v3941
        %v4674 = vpack.c.b16 %v3948, %v3942
        %v4675 = vpack.c.b16 %v3949, %v3943
        %v4676 = vpack.c.b16 %v3950, %v3944
        %v4677 = vpack.c.b16 %v3951, %v3945
        %v4678 = vpack.c.b16 %v3952, %v3946
        %v4679 = vpack.c.b16 %v3959, %v3953
        %v4680 = vpack.c.b16 %v3960, %v3954
        %v4681 = vpack.c.b16 %v3961, %v3955
        %v4682 = vpack.c.b16 %v3962, %v3956
        %v4683 = vpack.c.b16 %v3963, %v3957
        %v4684 = vpack.c.b16 %v3964, %v3958
        %v4685 = vpack.c.b16 %v3971, %v3965
        %v4686 = vpack.c.b16 %v3972, %v3966
        %v4687 = vpack.c.b16 %v3973, %v3967
        %v4688 = vpack.c.b16 %v3974, %v3968
        %v4689 = vpack.c.b16 %v3975, %v3969
        %v4690 = vpack.c.b16 %v3976, %v3970
        %v4691 = vpack.c.b16 %v3983, %v3977
        %v4692 = vpack.c.b16 %v3984, %v3978
        %v4693 = vpack.c.b16 %v3985, %v3979
        %v4694 = vpack.c.b16 %v3986, %v3980
        %v4695 = vpack.c.b16 %v3987, %v3981
        %v4696 = vpack.c.b16 %v3988, %v3982
        %v4697 = vpack.c.b16 %v3995, %v3989
        %v4698 = vpack.c.b16 %v3996, %v3990
        %v4699 = vpack.c.b16 %v3997, %v3991
        %v4700 = vpack.c.b16 %v3998, %v3992
        %v4701 = vpack.c.b16 %v3999, %v3993
        %v4702 = vpack.c.b16 %v4000, %v3994
        %v4703 = vpack.c.b16 %v4007, %v4001
        %v4704 = vpack.c.b16 %v4008, %v4002
        %v4705 = vpack.c.b16 %v4009, %v4003
        %v4706 = vpack.c.b16 %v4010, %v4004
        %v4707 = vpack.c.b16 %v4011, %v4005
        %v4708 = vpack.c.b16 %v4012, %v4006
        %v4709 = vpack.c.b16 %v4019, %v4013
        %v4710 = vpack.c.b16 %v4020, %v4014
        %v4711 = vpack.c.b16 %v4021, %v4015
        %v4712 = vpack.c.b16 %v4022, %v4016
        %v4713 = vpack.c.b16 %v4023, %v4017
        %v4714 = vpack.c.b16 %v4024, %v4018
        %v4715 = vpack.c.b16 %v4031, %v4025
        %v4716 = vpack.c.b16 %v4032, %v4026
        %v4717 = vpack.c.b16 %v4033, %v4027
        %v4718 = vpack.c.b16 %v4034, %v4028
        %v4719 = vpack.c.b16 %v4035, %v4029
        %v4720 = vpack.c.b16 %v4036, %v4030
        %v4721 = vpack.c.b16 %v4043, %v4037
        %v4722 = vpack.c.b16 %v4044, %v4038
        %v4723 = vpack.c.b16 %v4045, %v4039
        %v4724 = vpack.c.b16 %v4046, %v4040
        %v4725 = vpack.c.b16 %v4047, %v4041
        %v4726 = vpack.c.b16 %v4048, %v4042
        %v4727 = vpack.c.b16 %v4055, %v4049
        %v4728 = vpack.c.b16 %v4056, %v4050
        %v4729 = vpack.c.b16 %v4057, %v4051
        %v4730 = vpack.c.b16 %v4058, %v4052
        %v4731 = vpack.c.b16 %v4059, %v4053
        %v4732 = vpack.c.b16 %v4060, %v4054
        %v4733 = vpack.c.b16 %v4067, %v4061
        %v4734 = vpack.c.b16 %v4068, %v4062
        %v4735 = vpack.c.b16 %v4069, %v4063
        %v4736 = vpack.c.b16 %v4070, %v4064
        %v4737 = vpack.c.b16 %v4071, %v4065
        %v4738 = vpack.c.b16 %v4072, %v4066
        %v4739 = vpack.c.b16 %v4079, %v4073
        %v4740 = vpack.c.b16 %v4080, %v4074
        %v4741 = vpack.c.b16 %v4081, %v4075
        %v4742 = vpack.c.b16 %v4082, %v4076
        %v4743 = vpack.c.b16 %v4083, %v4077
        %v4744 = vpack.c.b16 %v4084, %v4078
        %v4745 = vpack.c.b16 %v4091, %v4085
        %v4746 = vpack.c.b16 %v4092, %v4086
        %v4747 = vpack.c.b16 %v4093, %v4087
        %v4748 = vpack.c.b16 %v4094, %v4088
        %v4749 = vpack.c.b16 %v4095, %v4089
        %v4750 = vpack.c.b16 %v4096, %v4090
        %v4751 = vpack.c.b16 %v4103, %v4097
        %v4752 = vpack.c.b16 %v4104, %v4098
        %v4753 = vpack.c.b16 %v4105, %v4099
        %v4754 = vpack.c.b16 %v4106, %v4100
        %v4755 = vpack.c.b16 %v4107, %v4101
        %v4756 = vpack.c.b16 %v4108, %v4102
        %v4757 = vpack.c.b16 %v4115, %v4109
        %v4758 = vpack.c.b16 %v4116, %v4110
        %v4759 = vpack.c.b16 %v4117, %v4111
        %v4760 = vpack.c.b16 %v4118, %v4112
        %v4761 = vpack.c.b16 %v4119, %v4113
        %v4762 = vpack.c.b16 %v4120, %v4114
        %v4763 = vpack.c.b16 %v4127, %v4121
        %v4764 = vpack.c.b16 %v4128, %v4122
        %v4765 = vpack.c.b16 %v4129, %v4123
        %v4766 = vpack.c.b16 %v4130, %v4124
        %v4767 = vpack.c.b16 %v4131, %v4125
        %v4768 = vpack.c.b16 %v4132, %v4126
        %v4769 = vpack.c.b16 %v4139, %v4133
        %v4770 = vpack.c.b16 %v4140, %v4134
        %v4771 = vpack.c.b16 %v4141, %v4135
        %v4772 = vpack.c.b16 %v4142, %v4136
        %v4773 = vpack.c.b16 %v4143, %v4137
        %v4774 = vpack.c.b16 %v4144, %v4138
        %v4775 = vpack.c.b16 %v4151, %v4145
        %v4776 = vpack.c.b16 %v4152, %v4146
        %v4777 = vpack.c.b16 %v4153, %v4147
        %v4778 = vpack.c.b16 %v4154, %v4148
        %v4779 = vpack.c.b16 %v4155, %v4149
        %v4780 = vpack.c.b16 %v4156, %v4150
        %v4781 = vpack.c.b16 %v4163, %v4157
        %v4782 = vpack.c.b16 %v4164, %v4158
        %v4783 = vpack.c.b16 %v4165, %v4159
        %v4784 = vpack.c.b16 %v4166, %v4160
        %v4785 = vpack.c.b16 %v4167, %v4161
        %v4786 = vpack.c.b16 %v4168, %v4162
        %v4787 = vpack.c.b16 %v4175, %v4169
        %v4788 = vpack.c.b16 %v4176, %v4170
        %v4789 = vpack.c.b16 %v4177, %v4171
        %v4790 = vpack.c.b16 %v4178, %v4172
        %v4791 = vpack.c.b16 %v4179, %v4173
        %v4792 = vpack.c.b16 %v4180, %v4174
        %v4793 = vpack.c.b16 %v4187, %v4181
        %v4794 = vpack.c.b16 %v4188, %v4182
        %v4795 = vpack.c.b16 %v4189, %v4183
        %v4796 = vpack.c.b16 %v4190, %v4184
        %v4797 = vpack.c.b16 %v4191, %v4185
        %v4798 = vpack.c.b16 %v4192, %v4186
        %v4799 = vpack.c.b16 %v4199, %v4193
        %v4800 = vpack.c.b16 %v4200, %v4194
        %v4801 = vpack.c.b16 %v4201, %v4195
        %v4802 = vpack.c.b16 %v4202, %v4196
        %v4803 = vpack.c.b16 %v4203, %v4197
        %v4804 = vpack.c.b16 %v4204, %v4198
        %v4805 = vpack.c.b16 %v4211, %v4205
        %v4806 = vpack.c.b16 %v4212, %v4206
        %v4807 = vpack.c.b16 %v4213, %v4207
        %v4808 = vpack.c.b16 %v4214, %v4208
        %v4809 = vpack.c.b16 %v4215, %v4209
        %v4810 = vpack.c.b16 %v4216, %v4210
        %v4811 = vpack.c.b16 %v4223, %v4217
        %v4812 = vpack.c.b16 %v4224, %v4218
        %v4813 = vpack.c.b16 %v4225, %v4219
        %v4814 = vpack.c.b16 %v4226, %v4220
        %v4815 = vpack.c.b16 %v4227, %v4221
        %v4816 = vpack.c.b16 %v4228, %v4222
        %v4817 = vpack.c.b16 %v4235, %v4229
        %v4818 = vpack.c.b16 %v4236, %v4230
        %v4819 = vpack.c.b16 %v4237, %v4231
        %v4820 = vpack.c.b16 %v4238, %v4232
        %v4821 = vpack.c.b16 %v4239, %v4233
        %v4822 = vpack.c.b16 %v4240, %v4234
        %v4823 = vpack.c.b16 %v4247, %v4241
        %v4824 = vpack.c.b16 %v4248, %v4242
        %v4825 = vpack.c.b16 %v4249, %v4243
        %v4826 = vpack.c.b16 %v4250, %v4244
        %v4827 = vpack.c.b16 %v4251, %v4245
        %v4828 = vpack.c.b16 %v4252, %v4246
        %v4829 = vpack.c.b16 %v4259, %v4253
        %v4830 = vpack.c.b16 %v4260, %v4254
        %v4831 = vpack.c.b16 %v4261, %v4255
        %v4832 = vpack.c.b16 %v4262, %v4256
        %v4833 = vpack.c.b16 %v4263, %v4257
        %v4834 = vpack.c.b16 %v4264, %v4258
        %v4835 = vpack.c.b16 %v4271, %v4265
        %v4836 = vpack.c.b16 %v4272, %v4266
        %v4837 = vpack.c.b16 %v4273, %v4267
        %v4838 = vpack.c.b16 %v4274, %v4268
        %v4839 = vpack.c.b16 %v4275, %v4269
        %v4840 = vpack.c.b16 %v4276, %v4270
        %v4841 = vpack.c.b16 %v4283, %v4277
        %v4842 = vpack.c.b16 %v4284, %v4278
        %v4843 = vpack.c.b16 %v4285, %v4279
        %v4844 = vpack.c.b16 %v4286, %v4280
        %v4845 = vpack.c.b16 %v4287, %v4281
        %v4846 = vpack.c.b16 %v4288, %v4282
        %v4847 = vpack.c.b16 %v4295, %v4289
        %v4848 = vpack.c.b16 %v4296, %v4290
        %v4849 = vpack.c.b16 %v4297, %v4291
        %v4850 = vpack.c.b16 %v4298, %v4292
        %v4851 = vpack.c.b16 %v4299, %v4293
        %v4852 = vpack.c.b16 %v4300, %v4294
        %v4853 = vpack.c.b16 %v4307, %v4301
        %v4854 = vpack.c.b16 %v4308, %v4302
        %v4855 = vpack.c.b16 %v4309, %v4303
        %v4856 = vpack.c.b16 %v4310, %v4304
        %v4857 = vpack.c.b16 %v4311, %v4305
        %v4858 = vpack.c.b16 %v4312, %v4306
        %v4859 = vpack.c.b16 %v4319, %v4313
        %v4860 = vpack.c.b16 %v4320, %v4314
        %v4861 = vpack.c.b16 %v4321, %v4315
        %v4862 = vpack.c.b16 %v4322, %v4316
        %v4863 = vpack.c.b16 %v4323, %v4317
        %v4864 = vpack.c.b16 %v4324, %v4318
        %v4865 = vpack.c.b16 %v4331, %v4325
        %v4866 = vpack.c.b16 %v4332, %v4326
        %v4867 = vpack.c.b16 %v4333, %v4327
        %v4868 = vpack.c.b16 %v4334, %v4328
        %v4869 = vpack.c.b16 %v4335, %v4329
        %v4870 = vpack.c.b16 %v4336, %v4330
        %v4871 = vpack.c.b16 %v4343, %v4337
        %v4872 = vpack.c.b16 %v4344, %v4338
        %v4873 = vpack.c.b16 %v4345, %v4339
        %v4874 = vpack.c.b16 %v4346, %v4340
        %v4875 = vpack.c.b16 %v4347, %v4341
        %v4876 = vpack.c.b16 %v4348, %v4342
        %v4877 = vpack.c.b16 %v4355, %v4349
        %v4878 = vpack.c.b16 %v4356, %v4350
        %v4879 = vpack.c.b16 %v4357, %v4351
        %v4880 = vpack.c.b16 %v4358, %v4352
        %v4881 = vpack.c.b16 %v4359, %v4353
        %v4882 = vpack.c.b16 %v4360, %v4354
        %v4883 = vpack.c.b16 %v4367, %v4361
        %v4884 = vpack.c.b16 %v4368, %v4362
        %v4885 = vpack.c.b16 %v4369, %v4363
        %v4886 = vpack.c.b16 %v4370, %v4364
        %v4887 = vpack.c.b16 %v4371, %v4365
        %v4888 = vpack.c.b16 %v4372, %v4366
        %v4889 = vpack.c.b16 %v4379, %v4373
        %v4890 = vpack.c.b16 %v4380, %v4374
        %v4891 = vpack.c.b16 %v4381, %v4375
        %v4892 = vpack.c.b16 %v4382, %v4376
        %v4893 = vpack.c.b16 %v4383, %v4377
        %v4894 = vpack.c.b16 %v4384, %v4378
        %v4895 = vpack.c.b16 %v4391, %v4385
        %v4896 = vpack.c.b16 %v4392, %v4386
        %v4897 = vpack.c.b16 %v4393, %v4387
        %v4898 = vpack.c.b16 %v4394, %v4388
        %v4899 = vpack.c.b16 %v4395, %v4389
        %v4900 = vpack.c.b16 %v4396, %v4390
        %v4901 = vpack.c.b16 %v4403, %v4397
        %v4902 = vpack.c.b16 %v4404, %v4398
        %v4903 = vpack.c.b16 %v4405, %v4399
        %v4904 = vpack.c.b16 %v4406, %v4400
        %v4905 = vpack.c.b16 %v4407, %v4401
        %v4906 = vpack.c.b16 %v4408, %v4402
        %v4907 = vpack.c.b16 %v4415, %v4409
        %v4908 = vpack.c.b16 %v4416, %v4410
        %v4909 = vpack.c.b16 %v4417, %v4411
        %v4910 = vpack.c.b16 %v4418, %v4412
        %v4911 = vpack.c.b16 %v4419, %v4413
        %v4912 = vpack.c.b16 %v4420, %v4414
        %v4913 = vpack.c.b16 %v4427, %v4421
        %v4914 = vpack.c.b16 %v4428, %v4422
        %v4915 = vpack.c.b16 %v4429, %v4423
        %v4916 = vpack.c.b16 %v4430, %v4424
        %v4917 = vpack.c.b16 %v4431, %v4425
        %v4918 = vpack.c.b16 %v4432, %v4426
        %v4919 = vpack.c.b16 %v4439, %v4433
        %v4920 = vpack.c.b16 %v4440, %v4434
        %v4921 = vpack.c.b16 %v4441, %v4435
        %v4922 = vpack.c.b16 %v4442, %v4436
        %v4923 = vpack.c.b16 %v4443, %v4437
        %v4924 = vpack.c.b16 %v4444, %v4438
        %5405 = vmatprep.subr.bf16.mxu0 %v4446
        %5406 = vmatpush1.bf16.msra.mxu0 %v4445
        %5407 = vmatprep.subr.bf16.mxu0 %v4452
        %5408 = vmatpush1.bf16.msra.mxu0 %v4451
        %5409 = vmatprep.subr.bf16.mxu0 %v4458
        %5410 = vmatpush1.bf16.msra.mxu0 %v4457
        %5411 = vmatprep.subr.bf16.mxu0 %v4464
        %5412 = vmatpush1.bf16.msra.mxu0 %v4463
        %5413 = vmatprep.subr.bf16.mxu0 %v4470
        %5414 = vmatpush1.bf16.msra.mxu0 %v4469
        %5415 = vmatprep.subr.bf16.mxu0 %v4476
        %5416 = vmatpush1.bf16.msra.mxu0 %v4475
        %5417 = vmatprep.subr.bf16.mxu0 %v4482
        %5418 = vmatpush1.bf16.msra.mxu0 %v4481
        %5419 = vmatprep.subr.bf16.mxu0 %v4488
        %5420 = vmatpush1.bf16.msra.mxu0 %v4487
        %5421 = vmatprep.subr.bf16.mxu0 %v4494
        %5422 = vmatpush1.bf16.msra.mxu0 %v4493
        %5423 = vmatprep.subr.bf16.mxu0 %v4500
        %5424 = vmatpush1.bf16.msra.mxu0 %v4499
        %5425 = vmatprep.subr.bf16.mxu0 %v4506
        %5426 = vmatpush1.bf16.msra.mxu0 %v4505
        %5427 = vmatprep.subr.bf16.mxu0 %v4512
        %5428 = vmatpush1.bf16.msra.mxu0 %v4511
        %5429 = vmatprep.subr.bf16.mxu0 %v4518
        %5430 = vmatpush1.bf16.msra.mxu0 %v4517
        %5431 = vmatprep.subr.bf16.mxu0 %v4524
        %5432 = vmatpush1.bf16.msra.mxu0 %v4523
        %5433 = vmatprep.subr.bf16.mxu0 %v4530
        %5434 = vmatpush1.bf16.msra.mxu0 %v4529
        %5435 = vmatprep.subr.bf16.mxu0 %v4536
        %5436 = vmatpush1.bf16.msra.mxu0 %v4535
        %5437 = vmatprep.mubr.bf16.mxu0 %v2484
        %5438 = vmatmul.mubr.bf16.gmra.mrb[0].mxu0 %v2483
        %v5439 = vpop.f32.mrb[0].mxu0
        %v5440 = vadd.f32 %v2978, %v5439
        %v5441 = vpop.f32.mrb[0].mxu0
        %v5442 = vadd.f32 %v2982, %v5441
        %v5443 = vpop.f32.mrb[0].mxu0
        %v5444 = vpop.f32.mrb[0].mxu0
        %5445 = vdwg.mxu0
        %5446 = vmatprep.subr.bf16.mxu0 %v4542
        %5447 = vmatpush1.bf16.msra.mxu0 %v4541
        %5448 = vmatprep.subr.bf16.mxu0 %v4548
        %5449 = vmatpush1.bf16.msra.mxu0 %v4547
        %5450 = vmatprep.subr.bf16.mxu0 %v4554
        %5451 = vmatpush1.bf16.msra.mxu0 %v4553
        %5452 = vmatprep.subr.bf16.mxu0 %v4560
        %5453 = vmatpush1.bf16.msra.mxu0 %v4559
        %5454 = vmatprep.subr.bf16.mxu0 %v4566
        %5455 = vmatpush1.bf16.msra.mxu0 %v4565
        %5456 = vmatprep.subr.bf16.mxu0 %v4572
        %5457 = vmatpush1.bf16.msra.mxu0 %v4571
        %5458 = vmatprep.subr.bf16.mxu0 %v4578
        %5459 = vmatpush1.bf16.msra.mxu0 %v4577
        %5460 = vmatprep.subr.bf16.mxu0 %v4584
        %5461 = vmatpush1.bf16.msra.mxu0 %v4583
        %5462 = vmatprep.subr.bf16.mxu0 %v4590
        %5463 = vmatpush1.bf16.msra.mxu0 %v4589
        %5464 = vmatprep.subr.bf16.mxu0 %v4596
        %5465 = vmatpush1.bf16.msra.mxu0 %v4595
        %5466 = vmatprep.subr.bf16.mxu0 %v4602
        %5467 = vmatpush1.bf16.msra.mxu0 %v4601
        %5468 = vmatprep.subr.bf16.mxu0 %v4608
        %5469 = vmatpush1.bf16.msra.mxu0 %v4607
        %5470 = vmatprep.subr.bf16.mxu0 %v4614
        %5471 = vmatpush1.bf16.msra.mxu0 %v4613
        %5472 = vmatprep.subr.bf16.mxu0 %v4620
        %5473 = vmatpush1.bf16.msra.mxu0 %v4619
        %5474 = vmatprep.subr.bf16.mxu0 %v4626
        %5475 = vmatpush1.bf16.msra.mxu0 %v4625
        %5476 = vmatprep.subr.bf16.mxu0 %v4632
        %5477 = vmatpush1.bf16.msra.mxu0 %v4631
        %5478 = vmatprep.mubr.bf16.mxu0 %v2486
        %5479 = vmatmul.mubr.bf16.gmra.mrb[0].mxu0 %v2485
        %v5480 = vpop.f32.mrb[0].mxu0
        %v5481 = vadd.f32 %v5440, %v5480
        %v5482 = vpop.f32.mrb[0].mxu0
        %v5483 = vadd.f32 %v5442, %v5482
        %v5484 = vpop.f32.mrb[0].mxu0
        %v5485 = vpop.f32.mrb[0].mxu0
        %5486 = vdwg.mxu0
        %5487 = vmatprep.subr.bf16.mxu0 %v4638
        %5488 = vmatpush1.bf16.msra.mxu0 %v4637
        %5489 = vmatprep.subr.bf16.mxu0 %v4644
        %5490 = vmatpush1.bf16.msra.mxu0 %v4643
        %5491 = vmatprep.subr.bf16.mxu0 %v4650
        %5492 = vmatpush1.bf16.msra.mxu0 %v4649
        %5493 = vmatprep.subr.bf16.mxu0 %v4656
        %5494 = vmatpush1.bf16.msra.mxu0 %v4655
        %5495 = vmatprep.subr.bf16.mxu0 %v4662
        %5496 = vmatpush1.bf16.msra.mxu0 %v4661
        %5497 = vmatprep.subr.bf16.mxu0 %v4668
        %5498 = vmatpush1.bf16.msra.mxu0 %v4667
        %5499 = vmatprep.subr.bf16.mxu0 %v4674
        %5500 = vmatpush1.bf16.msra.mxu0 %v4673
        %5501 = vmatprep.subr.bf16.mxu0 %v4680
        %5502 = vmatpush1.bf16.msra.mxu0 %v4679
        %5503 = vmatprep.subr.bf16.mxu0 %v4686
        %5504 = vmatpush1.bf16.msra.mxu0 %v4685
        %5505 = vmatprep.subr.bf16.mxu0 %v4692
        %5506 = vmatpush1.bf16.msra.mxu0 %v4691
        %5507 = vmatprep.subr.bf16.mxu0 %v4698
        %5508 = vmatpush1.bf16.msra.mxu0 %v4697
        %5509 = vmatprep.subr.bf16.mxu0 %v4704
        %5510 = vmatpush1.bf16.msra.mxu0 %v4703
        %5511 = vmatprep.subr.bf16.mxu0 %v4710
        %5512 = vmatpush1.bf16.msra.mxu0 %v4709
        %5513 = vmatprep.subr.bf16.mxu0 %v4716
        %5514 = vmatpush1.bf16.msra.mxu0 %v4715
        %5515 = vmatprep.subr.bf16.mxu0 %v4722
        %5516 = vmatpush1.bf16.msra.mxu0 %v4721
        %5517 = vmatprep.subr.bf16.mxu0 %v4728
        %5518 = vmatpush1.bf16.msra.mxu0 %v4727
        %5519 = vmatprep.mubr.bf16.mxu0 %v2488
        %5520 = vmatmul.mubr.bf16.gmra.mrb[0].mxu0 %v2487
        %v5521 = vpop.f32.mrb[0].mxu0
        %v5522 = vadd.f32 %v5481, %v5521
        %v5523 = vpop.f32.mrb[0].mxu0
        %v5524 = vadd.f32 %v5483, %v5523
        %v5525 = vpop.f32.mrb[0].mxu0
        %v5526 = vpop.f32.mrb[0].mxu0
        %5527 = vdwg.mxu0
        %5528 = vmatprep.subr.bf16.mxu0 %v4734
        %5529 = vmatpush1.bf16.msra.mxu0 %v4733
        %5530 = vmatprep.subr.bf16.mxu0 %v4740
        %5531 = vmatpush1.bf16.msra.mxu0 %v4739
        %5532 = vmatprep.subr.bf16.mxu0 %v4746
        %5533 = vmatpush1.bf16.msra.mxu0 %v4745
        %5534 = vmatprep.subr.bf16.mxu0 %v4752
        %5535 = vmatpush1.bf16.msra.mxu0 %v4751
        %5536 = vmatprep.subr.bf16.mxu0 %v4758
        %5537 = vmatpush1.bf16.msra.mxu0 %v4757
        %5538 = vmatprep.subr.bf16.mxu0 %v4764
        %5539 = vmatpush1.bf16.msra.mxu0 %v4763
        %5540 = vmatprep.subr.bf16.mxu0 %v4770
        %5541 = vmatpush1.bf16.msra.mxu0 %v4769
        %5542 = vmatprep.subr.bf16.mxu0 %v4776
        %5543 = vmatpush1.bf16.msra.mxu0 %v4775
        %5544 = vmatprep.subr.bf16.mxu0 %v4782
        %5545 = vmatpush1.bf16.msra.mxu0 %v4781
        %5546 = vmatprep.subr.bf16.mxu0 %v4788
        %5547 = vmatpush1.bf16.msra.mxu0 %v4787
        %5548 = vmatprep.subr.bf16.mxu0 %v4794
        %5549 = vmatpush1.bf16.msra.mxu0 %v4793
        %5550 = vmatprep.subr.bf16.mxu0 %v4800
        %5551 = vmatpush1.bf16.msra.mxu0 %v4799
        %5552 = vmatprep.subr.bf16.mxu0 %v4806
        %5553 = vmatpush1.bf16.msra.mxu0 %v4805
        %5554 = vmatprep.subr.bf16.mxu0 %v4812
        %5555 = vmatpush1.bf16.msra.mxu0 %v4811
        %5556 = vmatprep.subr.bf16.mxu0 %v4818
        %5557 = vmatpush1.bf16.msra.mxu0 %v4817
        %5558 = vmatprep.subr.bf16.mxu0 %v4824
        %5559 = vmatpush1.bf16.msra.mxu0 %v4823
        %5560 = vmatprep.mubr.bf16.mxu0 %v2490
        %5561 = vmatmul.mubr.bf16.gmra.mrb[0].mxu0 %v2489
        %v5562 = vpop.f32.mrb[0].mxu0
        %v5563 = vadd.f32 %v5522, %v5562
        %v5564 = vpop.f32.mrb[0].mxu0
        %v5565 = vadd.f32 %v5524, %v5564
        %v5566 = vpop.f32.mrb[0].mxu0
        %v5567 = vpop.f32.mrb[0].mxu0
        %5568 = vdwg.mxu0
        %5569 = vmatprep.subr.bf16.mxu0 %v4830
        %5570 = vmatpush1.bf16.msra.mxu0 %v4829
        %5571 = vmatprep.subr.bf16.mxu0 %v4836
        %5572 = vmatpush1.bf16.msra.mxu0 %v4835
        %5573 = vmatprep.subr.bf16.mxu0 %v4842
        %5574 = vmatpush1.bf16.msra.mxu0 %v4841
        %5575 = vmatprep.subr.bf16.mxu0 %v4848
        %5576 = vmatpush1.bf16.msra.mxu0 %v4847
        %5577 = vmatprep.subr.bf16.mxu0 %v4854
        %5578 = vmatpush1.bf16.msra.mxu0 %v4853
        %5579 = vmatprep.subr.bf16.mxu0 %v4860
        %5580 = vmatpush1.bf16.msra.mxu0 %v4859
        %5581 = vmatprep.subr.bf16.mxu0 %v4866
        %5582 = vmatpush1.bf16.msra.mxu0 %v4865
        %5583 = vmatprep.subr.bf16.mxu0 %v4872
        %5584 = vmatpush1.bf16.msra.mxu0 %v4871
        %5585 = vmatprep.subr.bf16.mxu0 %v4878
        %5586 = vmatpush1.bf16.msra.mxu0 %v4877
        %5587 = vmatprep.subr.bf16.mxu0 %v4884
        %5588 = vmatpush1.bf16.msra.mxu0 %v4883
        %5589 = vmatprep.subr.bf16.mxu0 %v4890
        %5590 = vmatpush1.bf16.msra.mxu0 %v4889
        %5591 = vmatprep.subr.bf16.mxu0 %v4896
        %5592 = vmatpush1.bf16.msra.mxu0 %v4895
        %5593 = vmatprep.subr.bf16.mxu0 %v4902
        %5594 = vmatpush1.bf16.msra.mxu0 %v4901
        %5595 = vmatprep.subr.bf16.mxu0 %v4908
        %5596 = vmatpush1.bf16.msra.mxu0 %v4907
        %5597 = vmatprep.subr.bf16.mxu0 %v4914
        %5598 = vmatpush1.bf16.msra.mxu0 %v4913
        %5599 = vmatprep.subr.bf16.mxu0 %v4920
        %5600 = vmatpush1.bf16.msra.mxu0 %v4919
        %5601 = vmatprep.mubr.bf16.mxu0 %v2492
        %5602 = vmatmul.mubr.bf16.gmra.mrb[0].mxu0 %v2491
        %v5603 = vpop.f32.mrb[0].mxu0
        %v5604 = vadd.f32 %v5563, %v5603
        %v5605 = vpop.f32.mrb[0].mxu0
        %v5606 = vadd.f32 %v5565, %v5605
        %v5607 = vpop.f32.mrb[0].mxu0
        %v5608 = vpop.f32.mrb[0].mxu0
        %5609 = vdwg.mxu0
        %5610 = vmatprep.subr.bf16.mxu0 %v4448
        %5611 = vmatpush1.bf16.msra.mxu0 %v4447
        %5612 = vmatprep.subr.bf16.mxu0 %v4454
        %5613 = vmatpush1.bf16.msra.mxu0 %v4453
        %5614 = vmatprep.subr.bf16.mxu0 %v4460
        %5615 = vmatpush1.bf16.msra.mxu0 %v4459
        %5616 = vmatprep.subr.bf16.mxu0 %v4466
        %5617 = vmatpush1.bf16.msra.mxu0 %v4465
        %5618 = vmatprep.subr.bf16.mxu0 %v4472
        %5619 = vmatpush1.bf16.msra.mxu0 %v4471
        %5620 = vmatprep.subr.bf16.mxu0 %v4478
        %5621 = vmatpush1.bf16.msra.mxu0 %v4477
        %5622 = vmatprep.subr.bf16.mxu0 %v4484
        %5623 = vmatpush1.bf16.msra.mxu0 %v4483
        %5624 = vmatprep.subr.bf16.mxu0 %v4490
        %5625 = vmatpush1.bf16.msra.mxu0 %v4489
        %5626 = vmatprep.subr.bf16.mxu0 %v4496
        %5627 = vmatpush1.bf16.msra.mxu0 %v4495
        %5628 = vmatprep.subr.bf16.mxu0 %v4502
        %5629 = vmatpush1.bf16.msra.mxu0 %v4501
        %5630 = vmatprep.subr.bf16.mxu0 %v4508
        %5631 = vmatpush1.bf16.msra.mxu0 %v4507
        %5632 = vmatprep.subr.bf16.mxu0 %v4514
        %5633 = vmatpush1.bf16.msra.mxu0 %v4513
        %5634 = vmatprep.subr.bf16.mxu0 %v4520
        %5635 = vmatpush1.bf16.msra.mxu0 %v4519
        %5636 = vmatprep.subr.bf16.mxu0 %v4526
        %5637 = vmatpush1.bf16.msra.mxu0 %v4525
        %5638 = vmatprep.subr.bf16.mxu0 %v4532
        %5639 = vmatpush1.bf16.msra.mxu0 %v4531
        %5640 = vmatprep.subr.bf16.mxu0 %v4538
        %5641 = vmatpush1.bf16.msra.mxu0 %v4537
        %5642 = vmatprep.mubr.bf16.mxu0 %v2484
        %5643 = vmatmul.mubr.bf16.gmra.mrb[0].mxu0 %v2483
        %v5644 = vpop.f32.mrb[0].mxu0
        %v5645 = vadd.f32 %v2986, %v5644
        %v5646 = vpop.f32.mrb[0].mxu0
        %v5647 = vadd.f32 %v2990, %v5646
        %v5648 = vpop.f32.mrb[0].mxu0
        %v5649 = vpop.f32.mrb[0].mxu0
        %5650 = vdwg.mxu0
        %5651 = vmatprep.subr.bf16.mxu0 %v4544
        %5652 = vmatpush1.bf16.msra.mxu0 %v4543
        %5653 = vmatprep.subr.bf16.mxu0 %v4550
        %5654 = vmatpush1.bf16.msra.mxu0 %v4549
        %5655 = vmatprep.subr.bf16.mxu0 %v4556
        %5656 = vmatpush1.bf16.msra.mxu0 %v4555
        %5657 = vmatprep.subr.bf16.mxu0 %v4562
        %5658 = vmatpush1.bf16.msra.mxu0 %v4561
        %5659 = vmatprep.subr.bf16.mxu0 %v4568
        %5660 = vmatpush1.bf16.msra.mxu0 %v4567
        %5661 = vmatprep.subr.bf16.mxu0 %v4574
        %5662 = vmatpush1.bf16.msra.mxu0 %v4573
        %5663 = vmatprep.subr.bf16.mxu0 %v4580
        %5664 = vmatpush1.bf16.msra.mxu0 %v4579
        %5665 = vmatprep.subr.bf16.mxu0 %v4586
        %5666 = vmatpush1.bf16.msra.mxu0 %v4585
        %5667 = vmatprep.subr.bf16.mxu0 %v4592
        %5668 = vmatpush1.bf16.msra.mxu0 %v4591
        %5669 = vmatprep.subr.bf16.mxu0 %v4598
        %5670 = vmatpush1.bf16.msra.mxu0 %v4597
        %5671 = vmatprep.subr.bf16.mxu0 %v4604
        %5672 = vmatpush1.bf16.msra.mxu0 %v4603
        %5673 = vmatprep.subr.bf16.mxu0 %v4610
        %5674 = vmatpush1.bf16.msra.mxu0 %v4609
        %5675 = vmatprep.subr.bf16.mxu0 %v4616
        %5676 = vmatpush1.bf16.msra.mxu0 %v4615
        %5677 = vmatprep.subr.bf16.mxu0 %v4622
        %5678 = vmatpush1.bf16.msra.mxu0 %v4621
        %5679 = vmatprep.subr.bf16.mxu0 %v4628
        %5680 = vmatpush1.bf16.msra.mxu0 %v4627
        %5681 = vmatprep.subr.bf16.mxu0 %v4634
        %5682 = vmatpush1.bf16.msra.mxu0 %v4633
        %5683 = vmatprep.mubr.bf16.mxu0 %v2486
        %5684 = vmatmul.mubr.bf16.gmra.mrb[0].mxu0 %v2485
        %v5685 = vpop.f32.mrb[0].mxu0
        %v5686 = vadd.f32 %v5645, %v5685
        %v5687 = vpop.f32.mrb[0].mxu0
        %v5688 = vadd.f32 %v5647, %v5687
        %v5689 = vpop.f32.mrb[0].mxu0
        %v5690 = vpop.f32.mrb[0].mxu0
        %5691 = vdwg.mxu0
        %5692 = vmatprep.subr.bf16.mxu0 %v4640
        %5693 = vmatpush1.bf16.msra.mxu0 %v4639
        %5694 = vmatprep.subr.bf16.mxu0 %v4646
        %5695 = vmatpush1.bf16.msra.mxu0 %v4645
        %5696 = vmatprep.subr.bf16.mxu0 %v4652
        %5697 = vmatpush1.bf16.msra.mxu0 %v4651
        %5698 = vmatprep.subr.bf16.mxu0 %v4658
        %5699 = vmatpush1.bf16.msra.mxu0 %v4657
        %5700 = vmatprep.subr.bf16.mxu0 %v4664
        %5701 = vmatpush1.bf16.msra.mxu0 %v4663
        %5702 = vmatprep.subr.bf16.mxu0 %v4670
        %5703 = vmatpush1.bf16.msra.mxu0 %v4669
        %5704 = vmatprep.subr.bf16.mxu0 %v4676
        %5705 = vmatpush1.bf16.msra.mxu0 %v4675
        %5706 = vmatprep.subr.bf16.mxu0 %v4682
        %5707 = vmatpush1.bf16.msra.mxu0 %v4681
        %5708 = vmatprep.subr.bf16.mxu0 %v4688
        %5709 = vmatpush1.bf16.msra.mxu0 %v4687
        %5710 = vmatprep.subr.bf16.mxu0 %v4694
        %5711 = vmatpush1.bf16.msra.mxu0 %v4693
        %5712 = vmatprep.subr.bf16.mxu0 %v4700
        %5713 = vmatpush1.bf16.msra.mxu0 %v4699
        %5714 = vmatprep.subr.bf16.mxu0 %v4706
        %5715 = vmatpush1.bf16.msra.mxu0 %v4705
        %5716 = vmatprep.subr.bf16.mxu0 %v4712
        %5717 = vmatpush1.bf16.msra.mxu0 %v4711
        %5718 = vmatprep.subr.bf16.mxu0 %v4718
        %5719 = vmatpush1.bf16.msra.mxu0 %v4717
        %5720 = vmatprep.subr.bf16.mxu0 %v4724
        %5721 = vmatpush1.bf16.msra.mxu0 %v4723
        %5722 = vmatprep.subr.bf16.mxu0 %v4730
        %5723 = vmatpush1.bf16.msra.mxu0 %v4729
        %5724 = vmatprep.mubr.bf16.mxu0 %v2488
        %5725 = vmatmul.mubr.bf16.gmra.mrb[0].mxu0 %v2487
        %v5726 = vpop.f32.mrb[0].mxu0
        %v5727 = vadd.f32 %v5686, %v5726
        %v5728 = vpop.f32.mrb[0].mxu0
        %v5729 = vadd.f32 %v5688, %v5728
        %v5730 = vpop.f32.mrb[0].mxu0
        %v5731 = vpop.f32.mrb[0].mxu0
        %5732 = vdwg.mxu0
        %5733 = vmatprep.subr.bf16.mxu0 %v4736
        %5734 = vmatpush1.bf16.msra.mxu0 %v4735
        %5735 = vmatprep.subr.bf16.mxu0 %v4742
        %5736 = vmatpush1.bf16.msra.mxu0 %v4741
        %5737 = vmatprep.subr.bf16.mxu0 %v4748
        %5738 = vmatpush1.bf16.msra.mxu0 %v4747
        %5739 = vmatprep.subr.bf16.mxu0 %v4754
        %5740 = vmatpush1.bf16.msra.mxu0 %v4753
        %5741 = vmatprep.subr.bf16.mxu0 %v4760
        %5742 = vmatpush1.bf16.msra.mxu0 %v4759
        %5743 = vmatprep.subr.bf16.mxu0 %v4766
        %5744 = vmatpush1.bf16.msra.mxu0 %v4765
        %5745 = vmatprep.subr.bf16.mxu0 %v4772
        %5746 = vmatpush1.bf16.msra.mxu0 %v4771
        %5747 = vmatprep.subr.bf16.mxu0 %v4778
        %5748 = vmatpush1.bf16.msra.mxu0 %v4777
        %5749 = vmatprep.subr.bf16.mxu0 %v4784
        %5750 = vmatpush1.bf16.msra.mxu0 %v4783
        %5751 = vmatprep.subr.bf16.mxu0 %v4790
        %5752 = vmatpush1.bf16.msra.mxu0 %v4789
        %5753 = vmatprep.subr.bf16.mxu0 %v4796
        %5754 = vmatpush1.bf16.msra.mxu0 %v4795
        %5755 = vmatprep.subr.bf16.mxu0 %v4802
        %5756 = vmatpush1.bf16.msra.mxu0 %v4801
        %5757 = vmatprep.subr.bf16.mxu0 %v4808
        %5758 = vmatpush1.bf16.msra.mxu0 %v4807
        %5759 = vmatprep.subr.bf16.mxu0 %v4814
        %5760 = vmatpush1.bf16.msra.mxu0 %v4813
        %5761 = vmatprep.subr.bf16.mxu0 %v4820
        %5762 = vmatpush1.bf16.msra.mxu0 %v4819
        %5763 = vmatprep.subr.bf16.mxu0 %v4826
        %5764 = vmatpush1.bf16.msra.mxu0 %v4825
        %5765 = vmatprep.mubr.bf16.mxu0 %v2490
        %5766 = vmatmul.mubr.bf16.gmra.mrb[0].mxu0 %v2489
        %v5767 = vpop.f32.mrb[0].mxu0
        %v5768 = vadd.f32 %v5727, %v5767
        %v5769 = vpop.f32.mrb[0].mxu0
        %v5770 = vadd.f32 %v5729, %v5769
        %v5771 = vpop.f32.mrb[0].mxu0
        %v5772 = vpop.f32.mrb[0].mxu0
        %5773 = vdwg.mxu0
        %5774 = vmatprep.subr.bf16.mxu0 %v4832
        %5775 = vmatpush1.bf16.msra.mxu0 %v4831
        %5776 = vmatprep.subr.bf16.mxu0 %v4838
        %5777 = vmatpush1.bf16.msra.mxu0 %v4837
        %5778 = vmatprep.subr.bf16.mxu0 %v4844
        %5779 = vmatpush1.bf16.msra.mxu0 %v4843
        %5780 = vmatprep.subr.bf16.mxu0 %v4850
        %5781 = vmatpush1.bf16.msra.mxu0 %v4849
        %5782 = vmatprep.subr.bf16.mxu0 %v4856
        %5783 = vmatpush1.bf16.msra.mxu0 %v4855
        %5784 = vmatprep.subr.bf16.mxu0 %v4862
        %5785 = vmatpush1.bf16.msra.mxu0 %v4861
        %5786 = vmatprep.subr.bf16.mxu0 %v4868
        %5787 = vmatpush1.bf16.msra.mxu0 %v4867
        %5788 = vmatprep.subr.bf16.mxu0 %v4874
        %5789 = vmatpush1.bf16.msra.mxu0 %v4873
        %5790 = vmatprep.subr.bf16.mxu0 %v4880
        %5791 = vmatpush1.bf16.msra.mxu0 %v4879
        %5792 = vmatprep.subr.bf16.mxu0 %v4886
        %5793 = vmatpush1.bf16.msra.mxu0 %v4885
        %5794 = vmatprep.subr.bf16.mxu0 %v4892
        %5795 = vmatpush1.bf16.msra.mxu0 %v4891
        %5796 = vmatprep.subr.bf16.mxu0 %v4898
        %5797 = vmatpush1.bf16.msra.mxu0 %v4897
        %5798 = vmatprep.subr.bf16.mxu0 %v4904
        %5799 = vmatpush1.bf16.msra.mxu0 %v4903
        %5800 = vmatprep.subr.bf16.mxu0 %v4910
        %5801 = vmatpush1.bf16.msra.mxu0 %v4909
        %5802 = vmatprep.subr.bf16.mxu0 %v4916
        %5803 = vmatpush1.bf16.msra.mxu0 %v4915
        %5804 = vmatprep.subr.bf16.mxu0 %v4922
        %5805 = vmatpush1.bf16.msra.mxu0 %v4921
        %5806 = vmatprep.mubr.bf16.mxu0 %v2492
        %5807 = vmatmul.mubr.bf16.gmra.mrb[0].mxu0 %v2491
        %v5808 = vpop.f32.mrb[0].mxu0
        %v5809 = vadd.f32 %v5768, %v5808
        %v5810 = vpop.f32.mrb[0].mxu0
        %v5811 = vadd.f32 %v5770, %v5810
        %v5812 = vpop.f32.mrb[0].mxu0
        %v5813 = vpop.f32.mrb[0].mxu0
        %5814 = vdwg.mxu0
        %5815 = vmatprep.subr.bf16.mxu0 %v4450
        %5816 = vmatpush1.bf16.msra.mxu0 %v4449
        %5817 = vmatprep.subr.bf16.mxu0 %v4456
        %5818 = vmatpush1.bf16.msra.mxu0 %v4455
        %5819 = vmatprep.subr.bf16.mxu0 %v4462
        %5820 = vmatpush1.bf16.msra.mxu0 %v4461
        %5821 = vmatprep.subr.bf16.mxu0 %v4468
        %5822 = vmatpush1.bf16.msra.mxu0 %v4467
        %5823 = vmatprep.subr.bf16.mxu0 %v4474
        %5824 = vmatpush1.bf16.msra.mxu0 %v4473
        %5825 = vmatprep.subr.bf16.mxu0 %v4480
        %5826 = vmatpush1.bf16.msra.mxu0 %v4479
        %5827 = vmatprep.subr.bf16.mxu0 %v4486
        %5828 = vmatpush1.bf16.msra.mxu0 %v4485
        %5829 = vmatprep.subr.bf16.mxu0 %v4492
        %5830 = vmatpush1.bf16.msra.mxu0 %v4491
        %5831 = vmatprep.subr.bf16.mxu0 %v4498
        %5832 = vmatpush1.bf16.msra.mxu0 %v4497
        %5833 = vmatprep.subr.bf16.mxu0 %v4504
        %5834 = vmatpush1.bf16.msra.mxu0 %v4503
        %5835 = vmatprep.subr.bf16.mxu0 %v4510
        %5836 = vmatpush1.bf16.msra.mxu0 %v4509
        %5837 = vmatprep.subr.bf16.mxu0 %v4516
        %5838 = vmatpush1.bf16.msra.mxu0 %v4515
        %5839 = vmatprep.subr.bf16.mxu0 %v4522
        %5840 = vmatpush1.bf16.msra.mxu0 %v4521
        %5841 = vmatprep.subr.bf16.mxu0 %v4528
        %5842 = vmatpush1.bf16.msra.mxu0 %v4527
        %5843 = vmatprep.subr.bf16.mxu0 %v4534
        %5844 = vmatpush1.bf16.msra.mxu0 %v4533
        %5845 = vmatprep.subr.bf16.mxu0 %v4540
        %5846 = vmatpush1.bf16.msra.mxu0 %v4539
        %5847 = vmatprep.mubr.bf16.mxu0 %v2484
        %5848 = vmatmul.mubr.bf16.gmra.mrb[0].mxu0 %v2483
        %v5849 = vpop.f32.mrb[0].mxu0
        %v5850 = vadd.f32 %v2994, %v5849
        %v5851 = vpop.f32.mrb[0].mxu0
        %v5852 = vadd.f32 %v2998, %v5851
        %v5853 = vpop.f32.mrb[0].mxu0
        %v5854 = vpop.f32.mrb[0].mxu0
        %5855 = vdwg.mxu0
        %5856 = vmatprep.subr.bf16.mxu0 %v4546
        %5857 = vmatpush1.bf16.msra.mxu0 %v4545
        %5858 = vmatprep.subr.bf16.mxu0 %v4552
        %5859 = vmatpush1.bf16.msra.mxu0 %v4551
        %5860 = vmatprep.subr.bf16.mxu0 %v4558
        %5861 = vmatpush1.bf16.msra.mxu0 %v4557
        %5862 = vmatprep.subr.bf16.mxu0 %v4564
        %5863 = vmatpush1.bf16.msra.mxu0 %v4563
        %5864 = vmatprep.subr.bf16.mxu0 %v4570
        %5865 = vmatpush1.bf16.msra.mxu0 %v4569
        %5866 = vmatprep.subr.bf16.mxu0 %v4576
        %5867 = vmatpush1.bf16.msra.mxu0 %v4575
        %5868 = vmatprep.subr.bf16.mxu0 %v4582
        %5869 = vmatpush1.bf16.msra.mxu0 %v4581
        %5870 = vmatprep.subr.bf16.mxu0 %v4588
        %5871 = vmatpush1.bf16.msra.mxu0 %v4587
        %5872 = vmatprep.subr.bf16.mxu0 %v4594
        %5873 = vmatpush1.bf16.msra.mxu0 %v4593
        %5874 = vmatprep.subr.bf16.mxu0 %v4600
        %5875 = vmatpush1.bf16.msra.mxu0 %v4599
        %5876 = vmatprep.subr.bf16.mxu0 %v4606
        %5877 = vmatpush1.bf16.msra.mxu0 %v4605
        %5878 = vmatprep.subr.bf16.mxu0 %v4612
        %5879 = vmatpush1.bf16.msra.mxu0 %v4611
        %5880 = vmatprep.subr.bf16.mxu0 %v4618
        %5881 = vmatpush1.bf16.msra.mxu0 %v4617
        %5882 = vmatprep.subr.bf16.mxu0 %v4624
        %5883 = vmatpush1.bf16.msra.mxu0 %v4623
        %5884 = vmatprep.subr.bf16.mxu0 %v4630
        %5885 = vmatpush1.bf16.msra.mxu0 %v4629
        %5886 = vmatprep.subr.bf16.mxu0 %v4636
        %5887 = vmatpush1.bf16.msra.mxu0 %v4635
        %5888 = vmatprep.mubr.bf16.mxu0 %v2486
        %5889 = vmatmul.mubr.bf16.gmra.mrb[0].mxu0 %v2485
        %v5890 = vpop.f32.mrb[0].mxu0
        %v5891 = vadd.f32 %v5850, %v5890
        %v5892 = vpop.f32.mrb[0].mxu0
        %v5893 = vadd.f32 %v5852, %v5892
        %v5894 = vpop.f32.mrb[0].mxu0
        %v5895 = vpop.f32.mrb[0].mxu0
        %5896 = vdwg.mxu0
        %5897 = vmatprep.subr.bf16.mxu0 %v4642
        %5898 = vmatpush1.bf16.msra.mxu0 %v4641
        %5899 = vmatprep.subr.bf16.mxu0 %v4648
        %5900 = vmatpush1.bf16.msra.mxu0 %v4647
        %5901 = vmatprep.subr.bf16.mxu0 %v4654
        %5902 = vmatpush1.bf16.msra.mxu0 %v4653
        %5903 = vmatprep.subr.bf16.mxu0 %v4660
        %5904 = vmatpush1.bf16.msra.mxu0 %v4659
        %5905 = vmatprep.subr.bf16.mxu0 %v4666
        %5906 = vmatpush1.bf16.msra.mxu0 %v4665
        %5907 = vmatprep.subr.bf16.mxu0 %v4672
        %5908 = vmatpush1.bf16.msra.mxu0 %v4671
        %5909 = vmatprep.subr.bf16.mxu0 %v4678
        %5910 = vmatpush1.bf16.msra.mxu0 %v4677
        %5911 = vmatprep.subr.bf16.mxu0 %v4684
        %5912 = vmatpush1.bf16.msra.mxu0 %v4683
        %5913 = vmatprep.subr.bf16.mxu0 %v4690
        %5914 = vmatpush1.bf16.msra.mxu0 %v4689
        %5915 = vmatprep.subr.bf16.mxu0 %v4696
        %5916 = vmatpush1.bf16.msra.mxu0 %v4695
        %5917 = vmatprep.subr.bf16.mxu0 %v4702
        %5918 = vmatpush1.bf16.msra.mxu0 %v4701
        %5919 = vmatprep.subr.bf16.mxu0 %v4708
        %5920 = vmatpush1.bf16.msra.mxu0 %v4707
        %5921 = vmatprep.subr.bf16.mxu0 %v4714
        %5922 = vmatpush1.bf16.msra.mxu0 %v4713
        %5923 = vmatprep.subr.bf16.mxu0 %v4720
        %5924 = vmatpush1.bf16.msra.mxu0 %v4719
        %5925 = vmatprep.subr.bf16.mxu0 %v4726
        %5926 = vmatpush1.bf16.msra.mxu0 %v4725
        %5927 = vmatprep.subr.bf16.mxu0 %v4732
        %5928 = vmatpush1.bf16.msra.mxu0 %v4731
        %5929 = vmatprep.mubr.bf16.mxu0 %v2488
        %5930 = vmatmul.mubr.bf16.gmra.mrb[0].mxu0 %v2487
        %v5931 = vpop.f32.mrb[0].mxu0
        %v5932 = vadd.f32 %v5891, %v5931
        %v5933 = vpop.f32.mrb[0].mxu0
        %v5934 = vadd.f32 %v5893, %v5933
        %v5935 = vpop.f32.mrb[0].mxu0
        %v5936 = vpop.f32.mrb[0].mxu0
        %5937 = vdwg.mxu0
        %5938 = vmatprep.subr.bf16.mxu0 %v4738
        %5939 = vmatpush1.bf16.msra.mxu0 %v4737
        %5940 = vmatprep.subr.bf16.mxu0 %v4744
        %5941 = vmatpush1.bf16.msra.mxu0 %v4743
        %5942 = vmatprep.subr.bf16.mxu0 %v4750
        %5943 = vmatpush1.bf16.msra.mxu0 %v4749
        %5944 = vmatprep.subr.bf16.mxu0 %v4756
        %5945 = vmatpush1.bf16.msra.mxu0 %v4755
        %5946 = vmatprep.subr.bf16.mxu0 %v4762
        %5947 = vmatpush1.bf16.msra.mxu0 %v4761
        %5948 = vmatprep.subr.bf16.mxu0 %v4768
        %5949 = vmatpush1.bf16.msra.mxu0 %v4767
        %5950 = vmatprep.subr.bf16.mxu0 %v4774
        %5951 = vmatpush1.bf16.msra.mxu0 %v4773
        %5952 = vmatprep.subr.bf16.mxu0 %v4780
        %5953 = vmatpush1.bf16.msra.mxu0 %v4779
        %5954 = vmatprep.subr.bf16.mxu0 %v4786
        %5955 = vmatpush1.bf16.msra.mxu0 %v4785
        %5956 = vmatprep.subr.bf16.mxu0 %v4792
        %5957 = vmatpush1.bf16.msra.mxu0 %v4791
        %5958 = vmatprep.subr.bf16.mxu0 %v4798
        %5959 = vmatpush1.bf16.msra.mxu0 %v4797
        %5960 = vmatprep.subr.bf16.mxu0 %v4804
        %5961 = vmatpush1.bf16.msra.mxu0 %v4803
        %5962 = vmatprep.subr.bf16.mxu0 %v4810
        %5963 = vmatpush1.bf16.msra.mxu0 %v4809
        %5964 = vmatprep.subr.bf16.mxu0 %v4816
        %5965 = vmatpush1.bf16.msra.mxu0 %v4815
        %5966 = vmatprep.subr.bf16.mxu0 %v4822
        %5967 = vmatpush1.bf16.msra.mxu0 %v4821
        %5968 = vmatprep.subr.bf16.mxu0 %v4828
        %5969 = vmatpush1.bf16.msra.mxu0 %v4827
        %5970 = vmatprep.mubr.bf16.mxu0 %v2490
        %5971 = vmatmul.mubr.bf16.gmra.mrb[0].mxu0 %v2489
        %v5972 = vpop.f32.mrb[0].mxu0
        %v5973 = vadd.f32 %v5932, %v5972
        %v5974 = vpop.f32.mrb[0].mxu0
        %v5975 = vadd.f32 %v5934, %v5974
        %v5976 = vpop.f32.mrb[0].mxu0
        %v5977 = vpop.f32.mrb[0].mxu0
        %5978 = vdwg.mxu0
        %5979 = vmatprep.subr.bf16.mxu0 %v4834
        %5980 = vmatpush1.bf16.msra.mxu0 %v4833
        %5981 = vmatprep.subr.bf16.mxu0 %v4840
        %5982 = vmatpush1.bf16.msra.mxu0 %v4839
        %5983 = vmatprep.subr.bf16.mxu0 %v4846
        %5984 = vmatpush1.bf16.msra.mxu0 %v4845
        %5985 = vmatprep.subr.bf16.mxu0 %v4852
        %5986 = vmatpush1.bf16.msra.mxu0 %v4851
        %5987 = vmatprep.subr.bf16.mxu0 %v4858
        %5988 = vmatpush1.bf16.msra.mxu0 %v4857
        %5989 = vmatprep.subr.bf16.mxu0 %v4864
        %5990 = vmatpush1.bf16.msra.mxu0 %v4863
        %5991 = vmatprep.subr.bf16.mxu0 %v4870
        %5992 = vmatpush1.bf16.msra.mxu0 %v4869
        %5993 = vmatprep.subr.bf16.mxu0 %v4876
        %5994 = vmatpush1.bf16.msra.mxu0 %v4875
        %5995 = vmatprep.subr.bf16.mxu0 %v4882
        %5996 = vmatpush1.bf16.msra.mxu0 %v4881
        %5997 = vmatprep.subr.bf16.mxu0 %v4888
        %5998 = vmatpush1.bf16.msra.mxu0 %v4887
        %5999 = vmatprep.subr.bf16.mxu0 %v4894
        %6000 = vmatpush1.bf16.msra.mxu0 %v4893
        %6001 = vmatprep.subr.bf16.mxu0 %v4900
        %6002 = vmatpush1.bf16.msra.mxu0 %v4899
        %6003 = vmatprep.subr.bf16.mxu0 %v4906
        %6004 = vmatpush1.bf16.msra.mxu0 %v4905
        %6005 = vmatprep.subr.bf16.mxu0 %v4912
        %6006 = vmatpush1.bf16.msra.mxu0 %v4911
        %6007 = vmatprep.subr.bf16.mxu0 %v4918
        %6008 = vmatpush1.bf16.msra.mxu0 %v4917
        %6009 = vmatprep.subr.bf16.mxu0 %v4924
        %6010 = vmatpush1.bf16.msra.mxu0 %v4923
        %6011 = vmatprep.mubr.bf16.mxu0 %v2492
        %6012 = vmatmul.mubr.bf16.gmra.mrb[0].mxu0 %v2491
        %v6013 = vpop.f32.mrb[0].mxu0
        %v6014 = vadd.f32 %v5973, %v6013
        %v6015 = vpop.f32.mrb[0].mxu0
        %v6016 = vadd.f32 %v5975, %v6015
        %v6017 = vpop.f32.mrb[0].mxu0
        %v6018 = vpop.f32.mrb[0].mxu0
        %6019 = vdwg.mxu0
        %v6020 = vmul.f32 %v5604, 0.125
        %v6021 = vmul.f32 %v5606, 0.125
        %v6022 = vmul.f32 %v5809, 0.125
        %v6023 = vmul.f32 %v5811, 0.125
        %v6024 = vmul.f32 %v6014, 0.125
        %v6025 = vmul.f32 %v6016, 0.125
        %6027 = vrot.lane.b32.xlu0 %v6020, 64
        %v6028 = vpop.permute.xlu0 %6027
        %6031 = vrot.lane.b32.xlu0 %v6021, 64
        %v6032 = vpop.permute.xlu0 %6031
        %6035 = vrot.lane.b32.xlu0 %v6022, 64
        %v6036 = vpop.permute.xlu0 %6035
        %6039 = vrot.lane.b32.xlu0 %v6023, 64
        %v6040 = vpop.permute.xlu0 %6039
        %6043 = vrot.lane.b32.xlu0 %v6024, 64
        %v6044 = vpop.permute.xlu0 %6043
        %6047 = vrot.lane.b32.xlu0 %v6025, 64
        %v6048 = vpop.permute.xlu0 %6047
        %v6050 = vcombine.low %v6020, %v6021
        %v6051 = vcombine.high %v6020, %v6021
        %v6053 = vunpack.c.l.s4 1983009808
        %v6054 = vunpack.c.0.s8 %v6053
        %v6055 = vlaneseq
        %v6056 = vshrl.u32 %v6055, 7
        %v6057 = vsub.s32 %v6054, %v6056
        %v6058 = vrot.slane %v6050, %v6057
        %v6060 = vunpack.c.l.s4 1983009808
        %v6061 = vunpack.c.0.s8 %v6060
        %v6062 = vlaneseq
        %v6063 = vshrl.u32 %v6062, 7
        %v6064 = vsub.s32 %v6061, %v6063
        %v6065 = vrot.slane %v6051, %v6064
        %v6066 = vcombine.low %v6028, %v6032
        %v6067 = vcombine.high %v6028, %v6032
        %v6069 = vunpack.c.l.s4 1983009808
        %v6070 = vunpack.c.0.s8 %v6069
        %v6071 = vlaneseq
        %v6072 = vshrl.u32 %v6071, 7
        %v6073 = vsub.s32 %v6070, %v6072
        %v6074 = vrot.slane %v6066, %v6073
        %v6076 = vunpack.c.l.s4 1983009808
        %v6077 = vunpack.c.0.s8 %v6076
        %v6078 = vlaneseq
        %v6079 = vshrl.u32 %v6078, 7
        %v6080 = vsub.s32 %v6077, %v6079
        %v6081 = vrot.slane %v6067, %v6080
        %v6082 = vcombine.low %v6022, %v6023
        %v6083 = vcombine.high %v6022, %v6023
        %v6085 = vunpack.c.l.s4 1983009808
        %v6086 = vunpack.c.0.s8 %v6085
        %v6087 = vlaneseq
        %v6088 = vshrl.u32 %v6087, 7
        %v6089 = vsub.s32 %v6086, %v6088
        %v6090 = vrot.slane %v6082, %v6089
        %v6092 = vunpack.c.l.s4 1983009808
        %v6093 = vunpack.c.0.s8 %v6092
        %v6094 = vlaneseq
        %v6095 = vshrl.u32 %v6094, 7
        %v6096 = vsub.s32 %v6093, %v6095
        %v6097 = vrot.slane %v6083, %v6096
        %v6098 = vcombine.low %v6036, %v6040
        %v6099 = vcombine.high %v6036, %v6040
        %v6101 = vunpack.c.l.s4 1983009808
        %v6102 = vunpack.c.0.s8 %v6101
        %v6103 = vlaneseq
        %v6104 = vshrl.u32 %v6103, 7
        %v6105 = vsub.s32 %v6102, %v6104
        %v6106 = vrot.slane %v6098, %v6105
        %v6108 = vunpack.c.l.s4 1983009808
        %v6109 = vunpack.c.0.s8 %v6108
        %v6110 = vlaneseq
        %v6111 = vshrl.u32 %v6110, 7
        %v6112 = vsub.s32 %v6109, %v6111
        %v6113 = vrot.slane %v6099, %v6112
        %v6114 = vcombine.low %v6058, %v6074
        %v6115 = vcombine.high %v6058, %v6074
        %v6117 = vunpack.c.l.s4 1934713408
        %v6118 = vunpack.c.0.s8 %v6117
        %v6119 = vlaneseq
        %v6120 = vshrl.u32 %v6119, 7
        %v6121 = vsub.s32 %v6118, %v6120
        %v6122 = vrot.slane %v6114, %v6121
        %v6124 = vunpack.c.l.s4 1934713408
        %v6125 = vunpack.c.0.s8 %v6124
        %v6126 = vlaneseq
        %v6127 = vshrl.u32 %v6126, 7
        %v6128 = vsub.s32 %v6125, %v6127
        %v6129 = vrot.slane %v6115, %v6128
        %v6130 = vcombine.low %v6065, %v6081
        %v6131 = vcombine.high %v6065, %v6081
        %v6133 = vunpack.c.l.s4 1934713408
        %v6134 = vunpack.c.0.s8 %v6133
        %v6135 = vlaneseq
        %v6136 = vshrl.u32 %v6135, 7
        %v6137 = vsub.s32 %v6134, %v6136
        %v6138 = vrot.slane %v6130, %v6137
        %v6140 = vunpack.c.l.s4 1934713408
        %v6141 = vunpack.c.0.s8 %v6140
        %v6142 = vlaneseq
        %v6143 = vshrl.u32 %v6142, 7
        %v6144 = vsub.s32 %v6141, %v6143
        %v6145 = vrot.slane %v6131, %v6144
        %v6146 = vcombine.low %v6090, %v6106
        %v6147 = vcombine.high %v6090, %v6106
        %v6149 = vunpack.c.l.s4 1934713408
        %v6150 = vunpack.c.0.s8 %v6149
        %v6151 = vlaneseq
        %v6152 = vshrl.u32 %v6151, 7
        %v6153 = vsub.s32 %v6150, %v6152
        %v6154 = vrot.slane %v6146, %v6153
        %v6156 = vunpack.c.l.s4 1934713408
        %v6157 = vunpack.c.0.s8 %v6156
        %v6158 = vlaneseq
        %v6159 = vshrl.u32 %v6158, 7
        %v6160 = vsub.s32 %v6157, %v6159
        %v6161 = vrot.slane %v6147, %v6160
        %v6162 = vcombine.low %v6097, %v6113
        %v6163 = vcombine.high %v6097, %v6113
        %v6165 = vunpack.c.l.s4 1934713408
        %v6166 = vunpack.c.0.s8 %v6165
        %v6167 = vlaneseq
        %v6168 = vshrl.u32 %v6167, 7
        %v6169 = vsub.s32 %v6166, %v6168
        %v6170 = vrot.slane %v6162, %v6169
        %v6172 = vunpack.c.l.s4 1934713408
        %v6173 = vunpack.c.0.s8 %v6172
        %v6174 = vlaneseq
        %v6175 = vshrl.u32 %v6174, 7
        %v6176 = vsub.s32 %v6173, %v6175
        %v6177 = vrot.slane %v6163, %v6176
        %v6178 = vcombine.low %v6122, %v6154
        %v6179 = vcombine.high %v6122, %v6154
        %v6180 = vcombine.low %v6129, %v6161
        %v6181 = vcombine.high %v6129, %v6161
        %v6182 = vcombine.low %v6138, %v6170
        %v6183 = vcombine.high %v6138, %v6170
        %v6184 = vcombine.low %v6145, %v6177
        %v6185 = vcombine.high %v6145, %v6177
        %v6186 = vcombine.low %v6024, %v6025
        %v6187 = vcombine.high %v6024, %v6025
        %v6189 = vunpack.c.l.s4 1983009808
        %v6190 = vunpack.c.0.s8 %v6189
        %v6191 = vlaneseq
        %v6192 = vshrl.u32 %v6191, 7
        %v6193 = vsub.s32 %v6190, %v6192
        %v6194 = vrot.slane %v6186, %v6193
        %v6196 = vunpack.c.l.s4 1983009808
        %v6197 = vunpack.c.0.s8 %v6196
        %v6198 = vlaneseq
        %v6199 = vshrl.u32 %v6198, 7
        %v6200 = vsub.s32 %v6197, %v6199
        %v6201 = vrot.slane %v6187, %v6200
        %v6202 = vcombine.low %v6044, %v6048
        %v6203 = vcombine.high %v6044, %v6048
        %v6205 = vunpack.c.l.s4 1983009808
        %v6206 = vunpack.c.0.s8 %v6205
        %v6207 = vlaneseq
        %v6208 = vshrl.u32 %v6207, 7
        %v6209 = vsub.s32 %v6206, %v6208
        %v6210 = vrot.slane %v6202, %v6209
        %v6212 = vunpack.c.l.s4 1983009808
        %v6213 = vunpack.c.0.s8 %v6212
        %v6214 = vlaneseq
        %v6215 = vshrl.u32 %v6214, 7
        %v6216 = vsub.s32 %v6213, %v6215
        %v6217 = vrot.slane %v6203, %v6216
        %v6218 = vcombine.low %v6194, %v6210
        %v6219 = vcombine.high %v6194, %v6210
        %v6221 = vunpack.c.l.s4 1934713408
        %v6222 = vunpack.c.0.s8 %v6221
        %v6223 = vlaneseq
        %v6224 = vshrl.u32 %v6223, 7
        %v6225 = vsub.s32 %v6222, %v6224
        %v6226 = vrot.slane %v6218, %v6225
        %v6228 = vunpack.c.l.s4 1934713408
        %v6229 = vunpack.c.0.s8 %v6228
        %v6230 = vlaneseq
        %v6231 = vshrl.u32 %v6230, 7
        %v6232 = vsub.s32 %v6229, %v6231
        %v6233 = vrot.slane %v6219, %v6232
        %v6234 = vcombine.low %v6201, %v6217
        %v6235 = vcombine.high %v6201, %v6217
        %v6237 = vunpack.c.l.s4 1934713408
        %v6238 = vunpack.c.0.s8 %v6237
        %v6239 = vlaneseq
        %v6240 = vshrl.u32 %v6239, 7
        %v6241 = vsub.s32 %v6238, %v6240
        %v6242 = vrot.slane %v6234, %v6241
        %v6244 = vunpack.c.l.s4 1934713408
        %v6245 = vunpack.c.0.s8 %v6244
        %v6246 = vlaneseq
        %v6247 = vshrl.u32 %v6246, 7
        %v6248 = vsub.s32 %v6245, %v6247
        %v6249 = vrot.slane %v6235, %v6248
        %v6250 = vcombine.high %v6226, 0.0
        %v6251 = vcombine.high %v6233, 0.0
        %v6252 = vcombine.high %v6242, 0.0
        %v6253 = vcombine.high %v6249, 0.0
        %v6254 = vcombine.low %v6178, %v6180
        %v6255 = vcombine.high %v6178, %v6180
        %v6257 = vunpack.c.l.s4 1983009808
        %v6258 = vunpack.c.0.s8 %v6257
        %v6259 = vlaneseq
        %v6260 = vshrl.u32 %v6259, 7
        %v6261 = vsub.s32 %v6258, %v6260
        %v6262 = vrot.slane %v6254, %v6261
        %v6264 = vunpack.c.l.s4 1983009808
        %v6265 = vunpack.c.0.s8 %v6264
        %v6266 = vlaneseq
        %v6267 = vshrl.u32 %v6266, 7
        %v6268 = vsub.s32 %v6265, %v6267
        %v6269 = vrot.slane %v6255, %v6268
        %v6270 = vcombine.low %v6179, %v6181
        %v6271 = vcombine.high %v6179, %v6181
        %v6273 = vunpack.c.l.s4 1983009808
        %v6274 = vunpack.c.0.s8 %v6273
        %v6275 = vlaneseq
        %v6276 = vshrl.u32 %v6275, 7
        %v6277 = vsub.s32 %v6274, %v6276
        %v6278 = vrot.slane %v6270, %v6277
        %v6280 = vunpack.c.l.s4 1983009808
        %v6281 = vunpack.c.0.s8 %v6280
        %v6282 = vlaneseq
        %v6283 = vshrl.u32 %v6282, 7
        %v6284 = vsub.s32 %v6281, %v6283
        %v6285 = vrot.slane %v6271, %v6284
        %v6286 = vcombine.low %v6182, %v6184
        %v6287 = vcombine.high %v6182, %v6184
        %v6289 = vunpack.c.l.s4 1983009808
        %v6290 = vunpack.c.0.s8 %v6289
        %v6291 = vlaneseq
        %v6292 = vshrl.u32 %v6291, 7
        %v6293 = vsub.s32 %v6290, %v6292
        %v6294 = vrot.slane %v6286, %v6293
        %v6296 = vunpack.c.l.s4 1983009808
        %v6297 = vunpack.c.0.s8 %v6296
        %v6298 = vlaneseq
        %v6299 = vshrl.u32 %v6298, 7
        %v6300 = vsub.s32 %v6297, %v6299
        %v6301 = vrot.slane %v6287, %v6300
        %v6302 = vcombine.low %v6183, %v6185
        %v6303 = vcombine.high %v6183, %v6185
        %v6305 = vunpack.c.l.s4 1983009808
        %v6306 = vunpack.c.0.s8 %v6305
        %v6307 = vlaneseq
        %v6308 = vshrl.u32 %v6307, 7
        %v6309 = vsub.s32 %v6306, %v6308
        %v6310 = vrot.slane %v6302, %v6309
        %v6312 = vunpack.c.l.s4 1983009808
        %v6313 = vunpack.c.0.s8 %v6312
        %v6314 = vlaneseq
        %v6315 = vshrl.u32 %v6314, 7
        %v6316 = vsub.s32 %v6313, %v6315
        %v6317 = vrot.slane %v6303, %v6316
        %v6318 = vcombine.low %v6262, %v6278
        %v6319 = vcombine.high %v6262, %v6278
        %v6321 = vunpack.c.l.s4 1934713408
        %v6322 = vunpack.c.0.s8 %v6321
        %v6323 = vlaneseq
        %v6324 = vshrl.u32 %v6323, 7
        %v6325 = vsub.s32 %v6322, %v6324
        %v6326 = vrot.slane %v6318, %v6325
        %v6328 = vunpack.c.l.s4 1934713408
        %v6329 = vunpack.c.0.s8 %v6328
        %v6330 = vlaneseq
        %v6331 = vshrl.u32 %v6330, 7
        %v6332 = vsub.s32 %v6329, %v6331
        %v6333 = vrot.slane %v6319, %v6332
        %v6334 = vcombine.low %v6269, %v6285
        %v6335 = vcombine.high %v6269, %v6285
        %v6337 = vunpack.c.l.s4 1934713408
        %v6338 = vunpack.c.0.s8 %v6337
        %v6339 = vlaneseq
        %v6340 = vshrl.u32 %v6339, 7
        %v6341 = vsub.s32 %v6338, %v6340
        %v6342 = vrot.slane %v6334, %v6341
        %v6344 = vunpack.c.l.s4 1934713408
        %v6345 = vunpack.c.0.s8 %v6344
        %v6346 = vlaneseq
        %v6347 = vshrl.u32 %v6346, 7
        %v6348 = vsub.s32 %v6345, %v6347
        %v6349 = vrot.slane %v6335, %v6348
        %v6350 = vcombine.low %v6294, %v6310
        %v6351 = vcombine.high %v6294, %v6310
        %v6353 = vunpack.c.l.s4 1934713408
        %v6354 = vunpack.c.0.s8 %v6353
        %v6355 = vlaneseq
        %v6356 = vshrl.u32 %v6355, 7
        %v6357 = vsub.s32 %v6354, %v6356
        %v6358 = vrot.slane %v6350, %v6357
        %v6360 = vunpack.c.l.s4 1934713408
        %v6361 = vunpack.c.0.s8 %v6360
        %v6362 = vlaneseq
        %v6363 = vshrl.u32 %v6362, 7
        %v6364 = vsub.s32 %v6361, %v6363
        %v6365 = vrot.slane %v6351, %v6364
        %v6366 = vcombine.low %v6301, %v6317
        %v6367 = vcombine.high %v6301, %v6317
        %v6369 = vunpack.c.l.s4 1934713408
        %v6370 = vunpack.c.0.s8 %v6369
        %v6371 = vlaneseq
        %v6372 = vshrl.u32 %v6371, 7
        %v6373 = vsub.s32 %v6370, %v6372
        %v6374 = vrot.slane %v6366, %v6373
        %v6376 = vunpack.c.l.s4 1934713408
        %v6377 = vunpack.c.0.s8 %v6376
        %v6378 = vlaneseq
        %v6379 = vshrl.u32 %v6378, 7
        %v6380 = vsub.s32 %v6377, %v6379
        %v6381 = vrot.slane %v6367, %v6380
        %v6382 = vcombine.low %v6326, %v6358
        %v6383 = vcombine.high %v6326, %v6358
        %v6384 = vcombine.low %v6333, %v6365
        %v6385 = vcombine.high %v6333, %v6365
        %v6386 = vcombine.low %v6342, %v6374
        %v6387 = vcombine.high %v6342, %v6374
        %v6388 = vcombine.low %v6349, %v6381
        %v6389 = vcombine.high %v6349, %v6381
        %v6390 = vcombine.low %v6226, %v6233
        %v6392 = vunpack.c.l.s4 1983009808
        %v6393 = vunpack.c.0.s8 %v6392
        %v6394 = vlaneseq
        %v6395 = vshrl.u32 %v6394, 7
        %v6396 = vsub.s32 %v6393, %v6395
        %v6397 = vrot.slane %v6390, %v6396
        %v6398 = vcombine.low %v6250, %v6251
        %v6400 = vunpack.c.l.s4 1983009808
        %v6401 = vunpack.c.0.s8 %v6400
        %v6402 = vlaneseq
        %v6403 = vshrl.u32 %v6402, 7
        %v6404 = vsub.s32 %v6401, %v6403
        %v6405 = vrot.slane %v6398, %v6404
        %v6406 = vcombine.low %v6242, %v6249
        %v6408 = vunpack.c.l.s4 1983009808
        %v6409 = vunpack.c.0.s8 %v6408
        %v6410 = vlaneseq
        %v6411 = vshrl.u32 %v6410, 7
        %v6412 = vsub.s32 %v6409, %v6411
        %v6413 = vrot.slane %v6406, %v6412
        %v6414 = vcombine.low %v6252, %v6253
        %v6416 = vunpack.c.l.s4 1983009808
        %v6417 = vunpack.c.0.s8 %v6416
        %v6418 = vlaneseq
        %v6419 = vshrl.u32 %v6418, 7
        %v6420 = vsub.s32 %v6417, %v6419
        %v6421 = vrot.slane %v6414, %v6420
        %v6422 = vcombine.low %v6397, %v6405
        %v6423 = vcombine.high %v6397, %v6405
        %v6425 = vunpack.c.l.s4 1934713408
        %v6426 = vunpack.c.0.s8 %v6425
        %v6427 = vlaneseq
        %v6428 = vshrl.u32 %v6427, 7
        %v6429 = vsub.s32 %v6426, %v6428
        %v6430 = vrot.slane %v6422, %v6429
        %v6432 = vunpack.c.l.s4 1934713408
        %v6433 = vunpack.c.0.s8 %v6432
        %v6434 = vlaneseq
        %v6435 = vshrl.u32 %v6434, 7
        %v6436 = vsub.s32 %v6433, %v6435
        %v6437 = vrot.slane %v6423, %v6436
        %v6438 = vcombine.low %v6413, %v6421
        %v6439 = vcombine.high %v6413, %v6421
        %v6441 = vunpack.c.l.s4 1934713408
        %v6442 = vunpack.c.0.s8 %v6441
        %v6443 = vlaneseq
        %v6444 = vshrl.u32 %v6443, 7
        %v6445 = vsub.s32 %v6442, %v6444
        %v6446 = vrot.slane %v6438, %v6445
        %v6448 = vunpack.c.l.s4 1934713408
        %v6449 = vunpack.c.0.s8 %v6448
        %v6450 = vlaneseq
        %v6451 = vshrl.u32 %v6450, 7
        %v6452 = vsub.s32 %v6449, %v6451
        %v6453 = vrot.slane %v6439, %v6452
        %v6454 = vcombine.low %v6430, %v6446
        %v6455 = vcombine.high %v6430, %v6446
        %v6456 = vcombine.low %v6437, %v6453
        %v6457 = vcombine.high %v6437, %v6453
        %s6458 = smul.u32 %s38, 8
        %s6459 = scalar_lea.vmem [#allocation15], %s6458
        %v6460 = vld [vmem:[%s6459] sm:$0xff]
        %s6461 = scalar_lea.vmem [#allocation16], %s6458
        %v6462 = vld [vmem:[%s6461] sm:$0xff]
        %v6463 = vmul.f32 %v6382, %v6460
        %v6464 = vmul.f32 %v6383, %v6460
        %v6465 = vmul.f32 %v6384, %v6460
        %v6466 = vmul.f32 %v6385, %v6460
        %v6467 = vmul.f32 %v6386, %v6460
        %v6468 = vmul.f32 %v6387, %v6460
        %v6469 = vmul.f32 %v6388, %v6460
        %v6470 = vmul.f32 %v6389, %v6460
        %v6471 = vmul.f32 %v6454, %v6460
        %v6472 = vmul.f32 %v6455, %v6460
        %v6473 = vmul.f32 %v6456, %v6460
        %v6474 = vmul.f32 %v6457, %v6460
        %vm6475 = vcmask 1048064
        %6476 = vrot.lane.b32.xlu0 %v6382, 64
        %v6477 = vpop.permute.xlu0 %6476
        %v6478 = vsel %vm6475, %v6477, %v6382
        %6479 = vrot.lane.b32.xlu0 %v6383, 64
        %v6480 = vpop.permute.xlu0 %6479
        %v6481 = vsel %vm6475, %v6480, %v6383
        %6482 = vrot.lane.b32.xlu0 %v6384, 64
        %v6483 = vpop.permute.xlu0 %6482
        %v6484 = vsel %vm6475, %v6483, %v6384
        %6485 = vrot.lane.b32.xlu0 %v6385, 64
        %v6486 = vpop.permute.xlu0 %6485
        %v6487 = vsel %vm6475, %v6486, %v6385
        %6488 = vrot.lane.b32.xlu0 %v6386, 64
        %v6489 = vpop.permute.xlu0 %6488
        %v6490 = vsel %vm6475, %v6489, %v6386
        %6491 = vrot.lane.b32.xlu0 %v6387, 64
        %v6492 = vpop.permute.xlu0 %6491
        %v6493 = vsel %vm6475, %v6492, %v6387
        %6494 = vrot.lane.b32.xlu0 %v6388, 64
        %v6495 = vpop.permute.xlu0 %6494
        %v6496 = vsel %vm6475, %v6495, %v6388
        %6497 = vrot.lane.b32.xlu0 %v6389, 64
        %v6498 = vpop.permute.xlu0 %6497
        %v6499 = vsel %vm6475, %v6498, %v6389
        %6500 = vrot.lane.b32.xlu0 %v6454, 64
        %v6501 = vpop.permute.xlu0 %6500
        %v6502 = vsel %vm6475, %v6501, %v6454
        %6503 = vrot.lane.b32.xlu0 %v6455, 64
        %v6504 = vpop.permute.xlu0 %6503
        %v6505 = vsel %vm6475, %v6504, %v6455
        %6506 = vrot.lane.b32.xlu0 %v6456, 64
        %v6507 = vpop.permute.xlu0 %6506
        %v6508 = vsel %vm6475, %v6507, %v6456
        %6509 = vrot.lane.b32.xlu0 %v6457, 64
        %v6510 = vpop.permute.xlu0 %6509
        %v6511 = vsel %vm6475, %v6510, %v6457
        %6512 = vrot.lane.b32.xlu0 %v6478, 64
        %v6513 = vpop.permute.xlu0 %6512
        %6514 = vrot.lane.b32.xlu0 %v6481, 64
        %v6515 = vpop.permute.xlu0 %6514
        %6516 = vrot.lane.b32.xlu0 %v6484, 64
        %v6517 = vpop.permute.xlu0 %6516
        %6518 = vrot.lane.b32.xlu0 %v6487, 64
        %v6519 = vpop.permute.xlu0 %6518
        %6520 = vrot.lane.b32.xlu0 %v6490, 64
        %v6521 = vpop.permute.xlu0 %6520
        %6522 = vrot.lane.b32.xlu0 %v6493, 64
        %v6523 = vpop.permute.xlu0 %6522
        %6524 = vrot.lane.b32.xlu0 %v6496, 64
        %v6525 = vpop.permute.xlu0 %6524
        %6526 = vrot.lane.b32.xlu0 %v6499, 64
        %v6527 = vpop.permute.xlu0 %6526
        %6528 = vrot.lane.b32.xlu0 %v6502, 64
        %v6529 = vpop.permute.xlu0 %6528
        %6530 = vrot.lane.b32.xlu0 %v6505, 64
        %v6531 = vpop.permute.xlu0 %6530
        %6532 = vrot.lane.b32.xlu0 %v6508, 64
        %v6533 = vpop.permute.xlu0 %6532
        %6534 = vrot.lane.b32.xlu0 %v6511, 64
        %v6535 = vpop.permute.xlu0 %6534
        %v6536 = vsel %vm6475, %v6513, %v6382
        %v6537 = vsel %vm6475, %v6515, %v6383
        %v6538 = vsel %vm6475, %v6517, %v6384
        %v6539 = vsel %vm6475, %v6519, %v6385
        %v6540 = vsel %vm6475, %v6521, %v6386
        %v6541 = vsel %vm6475, %v6523, %v6387
        %v6542 = vsel %vm6475, %v6525, %v6388
        %v6543 = vsel %vm6475, %v6527, %v6389
        %v6544 = vsel %vm6475, %v6529, %v6454
        %v6545 = vsel %vm6475, %v6531, %v6455
        %v6546 = vsel %vm6475, %v6533, %v6456
        %v6547 = vsel %vm6475, %v6535, %v6457
        %6549 = vrot.lane.b32.xlu0 %v6462, 32
        %v6550 = vpop.permute.xlu0 %6549
        %v6552 = vmul.f32 %v6536, %v6550
        %v6553 = vmul.f32 %v6537, %v6550
        %v6554 = vmul.f32 %v6538, %v6550
        %v6555 = vmul.f32 %v6539, %v6550
        %v6556 = vmul.f32 %v6540, %v6550
        %v6557 = vmul.f32 %v6541, %v6550
        %v6558 = vmul.f32 %v6542, %v6550
        %v6559 = vmul.f32 %v6543, %v6550
        %v6560 = vmul.f32 %v6544, %v6550
        %v6561 = vmul.f32 %v6545, %v6550
        %v6562 = vmul.f32 %v6546, %v6550
        %v6563 = vmul.f32 %v6547, %v6550
        %6576 = vrot.lane.b32.xlu0 %v6552, 96
        %v6577 = vpop.permute.xlu0 %6576
        %6578 = vrot.lane.b32.xlu0 %v6553, 96
        %v6579 = vpop.permute.xlu0 %6578
        %6580 = vrot.lane.b32.xlu0 %v6554, 96
        %v6581 = vpop.permute.xlu0 %6580
        %6582 = vrot.lane.b32.xlu0 %v6555, 96
        %v6583 = vpop.permute.xlu0 %6582
        %6584 = vrot.lane.b32.xlu0 %v6556, 96
        %v6585 = vpop.permute.xlu0 %6584
        %6586 = vrot.lane.b32.xlu0 %v6557, 96
        %v6587 = vpop.permute.xlu0 %6586
        %6588 = vrot.lane.b32.xlu0 %v6558, 96
        %v6589 = vpop.permute.xlu0 %6588
        %6590 = vrot.lane.b32.xlu0 %v6559, 96
        %v6591 = vpop.permute.xlu0 %6590
        %6592 = vrot.lane.b32.xlu0 %v6560, 96
        %v6593 = vpop.permute.xlu0 %6592
        %6594 = vrot.lane.b32.xlu0 %v6561, 96
        %v6595 = vpop.permute.xlu0 %6594
        %6596 = vrot.lane.b32.xlu0 %v6562, 96
        %v6597 = vpop.permute.xlu0 %6596
        %6598 = vrot.lane.b32.xlu0 %v6563, 96
        %v6599 = vpop.permute.xlu0 %6598
        %v6612 = vadd.f32 %v6463, %v6577
        %v6613 = vadd.f32 %v6464, %v6579
        %v6614 = vadd.f32 %v6465, %v6581
        %v6615 = vadd.f32 %v6466, %v6583
        %v6616 = vadd.f32 %v6467, %v6585
        %v6617 = vadd.f32 %v6468, %v6587
        %v6618 = vadd.f32 %v6469, %v6589
        %v6619 = vadd.f32 %v6470, %v6591
        %v6620 = vadd.f32 %v6471, %v6593
        %v6621 = vadd.f32 %v6472, %v6595
        %v6622 = vadd.f32 %v6473, %v6597
        %v6623 = vadd.f32 %v6474, %v6599
        %v6624 = vpack.c.bf16 %v6612, %v6612
        %v6625 = vpack.c.bf16 %v6613, %v6613
        %v6626 = vpack.c.bf16 %v6614, %v6614
        %v6627 = vpack.c.bf16 %v6615, %v6615
        %v6628 = vpack.c.bf16 %v6616, %v6616
        %v6629 = vpack.c.bf16 %v6617, %v6617
        %v6630 = vpack.c.bf16 %v6618, %v6618
        %v6631 = vpack.c.bf16 %v6619, %v6619
        %v6632 = vpack.c.bf16 %v6620, %v6620
        %v6633 = vpack.c.bf16 %v6621, %v6621
        %v6634 = vpack.c.bf16 %v6622, %v6622
        %v6635 = vpack.c.bf16 %v6623, %v6623
        %v6636 = vld [vmem:[#allocation2] sm:$0xf]
        %v6637 = vld [vmem:[#allocation2 + $0x4] sm:$0xf]
        %v6638 = vld [vmem:[#allocation2 + $0x8] sm:$0xf]
        %v6639 = vld [vmem:[#allocation2 + $0xc] sm:$0xf]
        %v6640 = vld [vmem:[#allocation2 + $0x10] sm:$0xf]
        %v6641 = vld [vmem:[#allocation2 + $0x14] sm:$0xf]
        %v6642 = vld [vmem:[#allocation2 + $0x18] sm:$0xf]
        %v6643 = vld [vmem:[#allocation2 + $0x1c] sm:$0xf]
        %v6644 = vld [vmem:[#allocation2 + $0x20] sm:$0xf]
        %v6645 = vld [vmem:[#allocation2 + $0x24] sm:$0xf]
        %v6646 = vld [vmem:[#allocation2 + $0x28] sm:$0xf]
        %v6647 = vld [vmem:[#allocation2 + $0x2c] sm:$0xf]
        %vm6648 = vcmask 523264
        %v6650 = vsel %vm6648, %v6624, 0
        %v6653 = vsel %vm6648, %v6636, 0
        %6655 = vmatprep.subr.bf16.mxu0 0
        %6656 = vmatpush1.bf16.xpose.msra.mxu0 %v6653
        %6657 = vmatprep.subr.bf16.mxu0 0
        %6658 = vmatpush1.bf16.xpose.msra.mxu0 0
        %6659 = vmatprep.subr.bf16.mxu0 0
        %6660 = vmatpush1.bf16.xpose.msra.mxu0 0
        %6661 = vmatprep.subr.bf16.mxu0 0
        %6662 = vmatpush1.bf16.xpose.msra.mxu0 0
        %6663 = vmatprep.subr.bf16.mxu0 0
        %6664 = vmatpush1.bf16.xpose.msra.mxu0 0
        %6665 = vmatprep.subr.bf16.mxu0 0
        %6666 = vmatpush1.bf16.xpose.msra.mxu0 0
        %6667 = vmatprep.subr.bf16.mxu0 0
        %6668 = vmatpush1.bf16.xpose.msra.mxu0 0
        %6669 = vmatprep.subr.bf16.mxu0 0
        %6670 = vmatpush1.bf16.xpose.msra.mxu0 0
        %6671 = vmatprep.subr.bf16.mxu0 0
        %6672 = vmatpush1.bf16.xpose.msra.mxu0 0
        %6673 = vmatprep.subr.bf16.mxu0 0
        %6674 = vmatpush1.bf16.xpose.msra.mxu0 0
        %6675 = vmatprep.subr.bf16.mxu0 0
        %6676 = vmatpush1.bf16.xpose.msra.mxu0 0
        %6677 = vmatprep.subr.bf16.mxu0 0
        %6678 = vmatpush1.bf16.xpose.msra.mxu0 0
        %6679 = vmatprep.subr.bf16.mxu0 0
        %6680 = vmatpush1.bf16.xpose.msra.mxu0 0
        %6681 = vmatprep.subr.bf16.mxu0 0
        %6682 = vmatpush1.bf16.xpose.msra.mxu0 0
        %6683 = vmatprep.subr.bf16.mxu0 0
        %6684 = vmatpush1.bf16.xpose.msra.mxu0 0
        %6685 = vmatprep.subr.bf16.mxu0 0
        %6686 = vmatpush1.bf16.xpose.msra.mxu0 0
        %6687 = vmatprep.mubr.bf16.mxu0 0
        %6688 = vmatmul.mubr.bf16.gmra.mrb[0].mxu0 %v6650
        %v6689 = vpop.f32.mrb[0].mxu0
        %v6690 = vadd.f32 0.0, %v6689
        %v6691 = vpop.f32.mrb[0].mxu0
        %v6692 = vpop.f32.mrb[0].mxu0
        %v6693 = vpop.f32.mrb[0].mxu0
        %6694 = vdwg.mxu0
        %v6696 = vsel %vm6648, %v6625, 0
        %v6699 = vsel %vm6648, %v6637, 0
        %6701 = vmatprep.subr.bf16.mxu0 0
        %6702 = vmatpush1.bf16.xpose.msra.mxu0 %v6699
        %6703 = vmatprep.subr.bf16.mxu0 0
        %6704 = vmatpush1.bf16.xpose.msra.mxu0 0
        %6705 = vmatprep.subr.bf16.mxu0 0
        %6706 = vmatpush1.bf16.xpose.msra.mxu0 0
        %6707 = vmatprep.subr.bf16.mxu0 0
        %6708 = vmatpush1.bf16.xpose.msra.mxu0 0
        %6709 = vmatprep.subr.bf16.mxu0 0
        %6710 = vmatpush1.bf16.xpose.msra.mxu0 0
        %6711 = vmatprep.subr.bf16.mxu0 0
        %6712 = vmatpush1.bf16.xpose.msra.mxu0 0
        %6713 = vmatprep.subr.bf16.mxu0 0
        %6714 = vmatpush1.bf16.xpose.msra.mxu0 0
        %6715 = vmatprep.subr.bf16.mxu0 0
        %6716 = vmatpush1.bf16.xpose.msra.mxu0 0
        %6717 = vmatprep.subr.bf16.mxu0 0
        %6718 = vmatpush1.bf16.xpose.msra.mxu0 0
        %6719 = vmatprep.subr.bf16.mxu0 0
        %6720 = vmatpush1.bf16.xpose.msra.mxu0 0
        %6721 = vmatprep.subr.bf16.mxu0 0
        %6722 = vmatpush1.bf16.xpose.msra.mxu0 0
        %6723 = vmatprep.subr.bf16.mxu0 0
        %6724 = vmatpush1.bf16.xpose.msra.mxu0 0
        %6725 = vmatprep.subr.bf16.mxu0 0
        %6726 = vmatpush1.bf16.xpose.msra.mxu0 0
        %6727 = vmatprep.subr.bf16.mxu0 0
        %6728 = vmatpush1.bf16.xpose.msra.mxu0 0
        %6729 = vmatprep.subr.bf16.mxu0 0
        %6730 = vmatpush1.bf16.xpose.msra.mxu0 0
        %6731 = vmatprep.subr.bf16.mxu0 0
        %6732 = vmatpush1.bf16.xpose.msra.mxu0 0
        %6733 = vmatprep.mubr.bf16.mxu0 0
        %6734 = vmatmul.mubr.bf16.gmra.mrb[0].mxu0 %v6696
        %v6735 = vpop.f32.mrb[0].mxu0
        %v6736 = vadd.f32 0.0, %v6735
        %v6737 = vpop.f32.mrb[0].mxu0
        %v6738 = vpop.f32.mrb[0].mxu0
        %v6739 = vpop.f32.mrb[0].mxu0
        %6740 = vdwg.mxu0
        %v6742 = vsel %vm6648, %v6626, 0
        %v6745 = vsel %vm6648, %v6638, 0
        %6747 = vmatprep.subr.bf16.mxu0 0
        %6748 = vmatpush1.bf16.xpose.msra.mxu0 %v6745
        %6749 = vmatprep.subr.bf16.mxu0 0
        %6750 = vmatpush1.bf16.xpose.msra.mxu0 0
        %6751 = vmatprep.subr.bf16.mxu0 0
        %6752 = vmatpush1.bf16.xpose.msra.mxu0 0
        %6753 = vmatprep.subr.bf16.mxu0 0
        %6754 = vmatpush1.bf16.xpose.msra.mxu0 0
        %6755 = vmatprep.subr.bf16.mxu0 0
        %6756 = vmatpush1.bf16.xpose.msra.mxu0 0
        %6757 = vmatprep.subr.bf16.mxu0 0
        %6758 = vmatpush1.bf16.xpose.msra.mxu0 0
        %6759 = vmatprep.subr.bf16.mxu0 0
        %6760 = vmatpush1.bf16.xpose.msra.mxu0 0
        %6761 = vmatprep.subr.bf16.mxu0 0
        %6762 = vmatpush1.bf16.xpose.msra.mxu0 0
        %6763 = vmatprep.subr.bf16.mxu0 0
        %6764 = vmatpush1.bf16.xpose.msra.mxu0 0
        %6765 = vmatprep.subr.bf16.mxu0 0
        %6766 = vmatpush1.bf16.xpose.msra.mxu0 0
        %6767 = vmatprep.subr.bf16.mxu0 0
        %6768 = vmatpush1.bf16.xpose.msra.mxu0 0
        %6769 = vmatprep.subr.bf16.mxu0 0
        %6770 = vmatpush1.bf16.xpose.msra.mxu0 0
        %6771 = vmatprep.subr.bf16.mxu0 0
        %6772 = vmatpush1.bf16.xpose.msra.mxu0 0
        %6773 = vmatprep.subr.bf16.mxu0 0
        %6774 = vmatpush1.bf16.xpose.msra.mxu0 0
        %6775 = vmatprep.subr.bf16.mxu0 0
        %6776 = vmatpush1.bf16.xpose.msra.mxu0 0
        %6777 = vmatprep.subr.bf16.mxu0 0
        %6778 = vmatpush1.bf16.xpose.msra.mxu0 0
        %6779 = vmatprep.mubr.bf16.mxu0 0
        %6780 = vmatmul.mubr.bf16.gmra.mrb[0].mxu0 %v6742
        %v6781 = vpop.f32.mrb[0].mxu0
        %v6782 = vadd.f32 0.0, %v6781
        %v6783 = vpop.f32.mrb[0].mxu0
        %v6784 = vpop.f32.mrb[0].mxu0
        %v6785 = vpop.f32.mrb[0].mxu0
        %6786 = vdwg.mxu0
        %v6788 = vsel %vm6648, %v6627, 0
        %v6791 = vsel %vm6648, %v6639, 0
        %6793 = vmatprep.subr.bf16.mxu0 0
        %6794 = vmatpush1.bf16.xpose.msra.mxu0 %v6791
        %6795 = vmatprep.subr.bf16.mxu0 0
        %6796 = vmatpush1.bf16.xpose.msra.mxu0 0
        %6797 = vmatprep.subr.bf16.mxu0 0
        %6798 = vmatpush1.bf16.xpose.msra.mxu0 0
        %6799 = vmatprep.subr.bf16.mxu0 0
        %6800 = vmatpush1.bf16.xpose.msra.mxu0 0
        %6801 = vmatprep.subr.bf16.mxu0 0
        %6802 = vmatpush1.bf16.xpose.msra.mxu0 0
        %6803 = vmatprep.subr.bf16.mxu0 0
        %6804 = vmatpush1.bf16.xpose.msra.mxu0 0
        %6805 = vmatprep.subr.bf16.mxu0 0
        %6806 = vmatpush1.bf16.xpose.msra.mxu0 0
        %6807 = vmatprep.subr.bf16.mxu0 0
        %6808 = vmatpush1.bf16.xpose.msra.mxu0 0
        %6809 = vmatprep.subr.bf16.mxu0 0
        %6810 = vmatpush1.bf16.xpose.msra.mxu0 0
        %6811 = vmatprep.subr.bf16.mxu0 0
        %6812 = vmatpush1.bf16.xpose.msra.mxu0 0
        %6813 = vmatprep.subr.bf16.mxu0 0
        %6814 = vmatpush1.bf16.xpose.msra.mxu0 0
        %6815 = vmatprep.subr.bf16.mxu0 0
        %6816 = vmatpush1.bf16.xpose.msra.mxu0 0
        %6817 = vmatprep.subr.bf16.mxu0 0
        %6818 = vmatpush1.bf16.xpose.msra.mxu0 0
        %6819 = vmatprep.subr.bf16.mxu0 0
        %6820 = vmatpush1.bf16.xpose.msra.mxu0 0
        %6821 = vmatprep.subr.bf16.mxu0 0
        %6822 = vmatpush1.bf16.xpose.msra.mxu0 0
        %6823 = vmatprep.subr.bf16.mxu0 0
        %6824 = vmatpush1.bf16.xpose.msra.mxu0 0
        %6825 = vmatprep.mubr.bf16.mxu0 0
        %6826 = vmatmul.mubr.bf16.gmra.mrb[0].mxu0 %v6788
        %v6827 = vpop.f32.mrb[0].mxu0
        %v6828 = vadd.f32 0.0, %v6827
        %v6829 = vpop.f32.mrb[0].mxu0
        %v6830 = vpop.f32.mrb[0].mxu0
        %v6831 = vpop.f32.mrb[0].mxu0
        %6832 = vdwg.mxu0
        %v6834 = vsel %vm6648, %v6628, 0
        %v6837 = vsel %vm6648, %v6640, 0
        %6839 = vmatprep.subr.bf16.mxu0 0
        %6840 = vmatpush1.bf16.xpose.msra.mxu0 %v6837
        %6841 = vmatprep.subr.bf16.mxu0 0
        %6842 = vmatpush1.bf16.xpose.msra.mxu0 0
        %6843 = vmatprep.subr.bf16.mxu0 0
        %6844 = vmatpush1.bf16.xpose.msra.mxu0 0
        %6845 = vmatprep.subr.bf16.mxu0 0
        %6846 = vmatpush1.bf16.xpose.msra.mxu0 0
        %6847 = vmatprep.subr.bf16.mxu0 0
        %6848 = vmatpush1.bf16.xpose.msra.mxu0 0
        %6849 = vmatprep.subr.bf16.mxu0 0
        %6850 = vmatpush1.bf16.xpose.msra.mxu0 0
        %6851 = vmatprep.subr.bf16.mxu0 0
        %6852 = vmatpush1.bf16.xpose.msra.mxu0 0
        %6853 = vmatprep.subr.bf16.mxu0 0
        %6854 = vmatpush1.bf16.xpose.msra.mxu0 0
        %6855 = vmatprep.subr.bf16.mxu0 0
        %6856 = vmatpush1.bf16.xpose.msra.mxu0 0
        %6857 = vmatprep.subr.bf16.mxu0 0
        %6858 = vmatpush1.bf16.xpose.msra.mxu0 0
        %6859 = vmatprep.subr.bf16.mxu0 0
        %6860 = vmatpush1.bf16.xpose.msra.mxu0 0
        %6861 = vmatprep.subr.bf16.mxu0 0
        %6862 = vmatpush1.bf16.xpose.msra.mxu0 0
        %6863 = vmatprep.subr.bf16.mxu0 0
        %6864 = vmatpush1.bf16.xpose.msra.mxu0 0
        %6865 = vmatprep.subr.bf16.mxu0 0
        %6866 = vmatpush1.bf16.xpose.msra.mxu0 0
        %6867 = vmatprep.subr.bf16.mxu0 0
        %6868 = vmatpush1.bf16.xpose.msra.mxu0 0
        %6869 = vmatprep.subr.bf16.mxu0 0
        %6870 = vmatpush1.bf16.xpose.msra.mxu0 0
        %6871 = vmatprep.mubr.bf16.mxu0 0
        %6872 = vmatmul.mubr.bf16.gmra.mrb[0].mxu0 %v6834
        %v6873 = vpop.f32.mrb[0].mxu0
        %v6874 = vadd.f32 0.0, %v6873
        %v6875 = vpop.f32.mrb[0].mxu0
        %v6876 = vpop.f32.mrb[0].mxu0
        %v6877 = vpop.f32.mrb[0].mxu0
        %6878 = vdwg.mxu0
        %v6880 = vsel %vm6648, %v6629, 0
        %v6883 = vsel %vm6648, %v6641, 0
        %6885 = vmatprep.subr.bf16.mxu0 0
        %6886 = vmatpush1.bf16.xpose.msra.mxu0 %v6883
        %6887 = vmatprep.subr.bf16.mxu0 0
        %6888 = vmatpush1.bf16.xpose.msra.mxu0 0
        %6889 = vmatprep.subr.bf16.mxu0 0
        %6890 = vmatpush1.bf16.xpose.msra.mxu0 0
        %6891 = vmatprep.subr.bf16.mxu0 0
        %6892 = vmatpush1.bf16.xpose.msra.mxu0 0
        %6893 = vmatprep.subr.bf16.mxu0 0
        %6894 = vmatpush1.bf16.xpose.msra.mxu0 0
        %6895 = vmatprep.subr.bf16.mxu0 0
        %6896 = vmatpush1.bf16.xpose.msra.mxu0 0
        %6897 = vmatprep.subr.bf16.mxu0 0
        %6898 = vmatpush1.bf16.xpose.msra.mxu0 0
        %6899 = vmatprep.subr.bf16.mxu0 0
        %6900 = vmatpush1.bf16.xpose.msra.mxu0 0
        %6901 = vmatprep.subr.bf16.mxu0 0
        %6902 = vmatpush1.bf16.xpose.msra.mxu0 0
        %6903 = vmatprep.subr.bf16.mxu0 0
        %6904 = vmatpush1.bf16.xpose.msra.mxu0 0
        %6905 = vmatprep.subr.bf16.mxu0 0
        %6906 = vmatpush1.bf16.xpose.msra.mxu0 0
        %6907 = vmatprep.subr.bf16.mxu0 0
        %6908 = vmatpush1.bf16.xpose.msra.mxu0 0
        %6909 = vmatprep.subr.bf16.mxu0 0
        %6910 = vmatpush1.bf16.xpose.msra.mxu0 0
        %6911 = vmatprep.subr.bf16.mxu0 0
        %6912 = vmatpush1.bf16.xpose.msra.mxu0 0
        %6913 = vmatprep.subr.bf16.mxu0 0
        %6914 = vmatpush1.bf16.xpose.msra.mxu0 0
        %6915 = vmatprep.subr.bf16.mxu0 0
        %6916 = vmatpush1.bf16.xpose.msra.mxu0 0
        %6917 = vmatprep.mubr.bf16.mxu0 0
        %6918 = vmatmul.mubr.bf16.gmra.mrb[0].mxu0 %v6880
        %v6919 = vpop.f32.mrb[0].mxu0
        %v6920 = vadd.f32 0.0, %v6919
        %v6921 = vpop.f32.mrb[0].mxu0
        %v6922 = vpop.f32.mrb[0].mxu0
        %v6923 = vpop.f32.mrb[0].mxu0
        %6924 = vdwg.mxu0
        %v6926 = vsel %vm6648, %v6630, 0
        %v6929 = vsel %vm6648, %v6642, 0
        %6931 = vmatprep.subr.bf16.mxu0 0
        %6932 = vmatpush1.bf16.xpose.msra.mxu0 %v6929
        %6933 = vmatprep.subr.bf16.mxu0 0
        %6934 = vmatpush1.bf16.xpose.msra.mxu0 0
        %6935 = vmatprep.subr.bf16.mxu0 0
        %6936 = vmatpush1.bf16.xpose.msra.mxu0 0
        %6937 = vmatprep.subr.bf16.mxu0 0
        %6938 = vmatpush1.bf16.xpose.msra.mxu0 0
        %6939 = vmatprep.subr.bf16.mxu0 0
        %6940 = vmatpush1.bf16.xpose.msra.mxu0 0
        %6941 = vmatprep.subr.bf16.mxu0 0
        %6942 = vmatpush1.bf16.xpose.msra.mxu0 0
        %6943 = vmatprep.subr.bf16.mxu0 0
        %6944 = vmatpush1.bf16.xpose.msra.mxu0 0
        %6945 = vmatprep.subr.bf16.mxu0 0
        %6946 = vmatpush1.bf16.xpose.msra.mxu0 0
        %6947 = vmatprep.subr.bf16.mxu0 0
        %6948 = vmatpush1.bf16.xpose.msra.mxu0 0
        %6949 = vmatprep.subr.bf16.mxu0 0
        %6950 = vmatpush1.bf16.xpose.msra.mxu0 0
        %6951 = vmatprep.subr.bf16.mxu0 0
        %6952 = vmatpush1.bf16.xpose.msra.mxu0 0
        %6953 = vmatprep.subr.bf16.mxu0 0
        %6954 = vmatpush1.bf16.xpose.msra.mxu0 0
        %6955 = vmatprep.subr.bf16.mxu0 0
        %6956 = vmatpush1.bf16.xpose.msra.mxu0 0
        %6957 = vmatprep.subr.bf16.mxu0 0
        %6958 = vmatpush1.bf16.xpose.msra.mxu0 0
        %6959 = vmatprep.subr.bf16.mxu0 0
        %6960 = vmatpush1.bf16.xpose.msra.mxu0 0
        %6961 = vmatprep.subr.bf16.mxu0 0
        %6962 = vmatpush1.bf16.xpose.msra.mxu0 0
        %6963 = vmatprep.mubr.bf16.mxu0 0
        %6964 = vmatmul.mubr.bf16.gmra.mrb[0].mxu0 %v6926
        %v6965 = vpop.f32.mrb[0].mxu0
        %v6966 = vadd.f32 0.0, %v6965
        %v6967 = vpop.f32.mrb[0].mxu0
        %v6968 = vpop.f32.mrb[0].mxu0
        %v6969 = vpop.f32.mrb[0].mxu0
        %6970 = vdwg.mxu0
        %v6972 = vsel %vm6648, %v6631, 0
        %v6975 = vsel %vm6648, %v6643, 0
        %6977 = vmatprep.subr.bf16.mxu0 0
        %6978 = vmatpush1.bf16.xpose.msra.mxu0 %v6975
        %6979 = vmatprep.subr.bf16.mxu0 0
        %6980 = vmatpush1.bf16.xpose.msra.mxu0 0
        %6981 = vmatprep.subr.bf16.mxu0 0
        %6982 = vmatpush1.bf16.xpose.msra.mxu0 0
        %6983 = vmatprep.subr.bf16.mxu0 0
        %6984 = vmatpush1.bf16.xpose.msra.mxu0 0
        %6985 = vmatprep.subr.bf16.mxu0 0
        %6986 = vmatpush1.bf16.xpose.msra.mxu0 0
        %6987 = vmatprep.subr.bf16.mxu0 0
        %6988 = vmatpush1.bf16.xpose.msra.mxu0 0
        %6989 = vmatprep.subr.bf16.mxu0 0
        %6990 = vmatpush1.bf16.xpose.msra.mxu0 0
        %6991 = vmatprep.subr.bf16.mxu0 0
        %6992 = vmatpush1.bf16.xpose.msra.mxu0 0
        %6993 = vmatprep.subr.bf16.mxu0 0
        %6994 = vmatpush1.bf16.xpose.msra.mxu0 0
        %6995 = vmatprep.subr.bf16.mxu0 0
        %6996 = vmatpush1.bf16.xpose.msra.mxu0 0
        %6997 = vmatprep.subr.bf16.mxu0 0
        %6998 = vmatpush1.bf16.xpose.msra.mxu0 0
        %6999 = vmatprep.subr.bf16.mxu0 0
        %7000 = vmatpush1.bf16.xpose.msra.mxu0 0
        %7001 = vmatprep.subr.bf16.mxu0 0
        %7002 = vmatpush1.bf16.xpose.msra.mxu0 0
        %7003 = vmatprep.subr.bf16.mxu0 0
        %7004 = vmatpush1.bf16.xpose.msra.mxu0 0
        %7005 = vmatprep.subr.bf16.mxu0 0
        %7006 = vmatpush1.bf16.xpose.msra.mxu0 0
        %7007 = vmatprep.subr.bf16.mxu0 0
        %7008 = vmatpush1.bf16.xpose.msra.mxu0 0
        %7009 = vmatprep.mubr.bf16.mxu0 0
        %7010 = vmatmul.mubr.bf16.gmra.mrb[0].mxu0 %v6972
        %v7011 = vpop.f32.mrb[0].mxu0
        %v7012 = vadd.f32 0.0, %v7011
        %v7013 = vpop.f32.mrb[0].mxu0
        %v7014 = vpop.f32.mrb[0].mxu0
        %v7015 = vpop.f32.mrb[0].mxu0
        %7016 = vdwg.mxu0
        %v7018 = vsel %vm6648, %v6632, 0
        %v7021 = vsel %vm6648, %v6644, 0
        %7023 = vmatprep.subr.bf16.mxu0 0
        %7024 = vmatpush1.bf16.xpose.msra.mxu0 %v7021
        %7025 = vmatprep.subr.bf16.mxu0 0
        %7026 = vmatpush1.bf16.xpose.msra.mxu0 0
        %7027 = vmatprep.subr.bf16.mxu0 0
        %7028 = vmatpush1.bf16.xpose.msra.mxu0 0
        %7029 = vmatprep.subr.bf16.mxu0 0
        %7030 = vmatpush1.bf16.xpose.msra.mxu0 0
        %7031 = vmatprep.subr.bf16.mxu0 0
        %7032 = vmatpush1.bf16.xpose.msra.mxu0 0
        %7033 = vmatprep.subr.bf16.mxu0 0
        %7034 = vmatpush1.bf16.xpose.msra.mxu0 0
        %7035 = vmatprep.subr.bf16.mxu0 0
        %7036 = vmatpush1.bf16.xpose.msra.mxu0 0
        %7037 = vmatprep.subr.bf16.mxu0 0
        %7038 = vmatpush1.bf16.xpose.msra.mxu0 0
        %7039 = vmatprep.subr.bf16.mxu0 0
        %7040 = vmatpush1.bf16.xpose.msra.mxu0 0
        %7041 = vmatprep.subr.bf16.mxu0 0
        %7042 = vmatpush1.bf16.xpose.msra.mxu0 0
        %7043 = vmatprep.subr.bf16.mxu0 0
        %7044 = vmatpush1.bf16.xpose.msra.mxu0 0
        %7045 = vmatprep.subr.bf16.mxu0 0
        %7046 = vmatpush1.bf16.xpose.msra.mxu0 0
        %7047 = vmatprep.subr.bf16.mxu0 0
        %7048 = vmatpush1.bf16.xpose.msra.mxu0 0
        %7049 = vmatprep.subr.bf16.mxu0 0
        %7050 = vmatpush1.bf16.xpose.msra.mxu0 0
        %7051 = vmatprep.subr.bf16.mxu0 0
        %7052 = vmatpush1.bf16.xpose.msra.mxu0 0
        %7053 = vmatprep.subr.bf16.mxu0 0
        %7054 = vmatpush1.bf16.xpose.msra.mxu0 0
        %7055 = vmatprep.mubr.bf16.mxu0 0
        %7056 = vmatmul.mubr.bf16.gmra.mrb[0].mxu0 %v7018
        %v7057 = vpop.f32.mrb[0].mxu0
        %v7058 = vadd.f32 0.0, %v7057
        %v7059 = vpop.f32.mrb[0].mxu0
        %v7060 = vpop.f32.mrb[0].mxu0
        %v7061 = vpop.f32.mrb[0].mxu0
        %7062 = vdwg.mxu0
        %v7064 = vsel %vm6648, %v6633, 0
        %v7067 = vsel %vm6648, %v6645, 0
        %7069 = vmatprep.subr.bf16.mxu0 0
        %7070 = vmatpush1.bf16.xpose.msra.mxu0 %v7067
        %7071 = vmatprep.subr.bf16.mxu0 0
        %7072 = vmatpush1.bf16.xpose.msra.mxu0 0
        %7073 = vmatprep.subr.bf16.mxu0 0
        %7074 = vmatpush1.bf16.xpose.msra.mxu0 0
        %7075 = vmatprep.subr.bf16.mxu0 0
        %7076 = vmatpush1.bf16.xpose.msra.mxu0 0
        %7077 = vmatprep.subr.bf16.mxu0 0
        %7078 = vmatpush1.bf16.xpose.msra.mxu0 0
        %7079 = vmatprep.subr.bf16.mxu0 0
        %7080 = vmatpush1.bf16.xpose.msra.mxu0 0
        %7081 = vmatprep.subr.bf16.mxu0 0
        %7082 = vmatpush1.bf16.xpose.msra.mxu0 0
        %7083 = vmatprep.subr.bf16.mxu0 0
        %7084 = vmatpush1.bf16.xpose.msra.mxu0 0
        %7085 = vmatprep.subr.bf16.mxu0 0
        %7086 = vmatpush1.bf16.xpose.msra.mxu0 0
        %7087 = vmatprep.subr.bf16.mxu0 0
        %7088 = vmatpush1.bf16.xpose.msra.mxu0 0
        %7089 = vmatprep.subr.bf16.mxu0 0
        %7090 = vmatpush1.bf16.xpose.msra.mxu0 0
        %7091 = vmatprep.subr.bf16.mxu0 0
        %7092 = vmatpush1.bf16.xpose.msra.mxu0 0
        %7093 = vmatprep.subr.bf16.mxu0 0
        %7094 = vmatpush1.bf16.xpose.msra.mxu0 0
        %7095 = vmatprep.subr.bf16.mxu0 0
        %7096 = vmatpush1.bf16.xpose.msra.mxu0 0
        %7097 = vmatprep.subr.bf16.mxu0 0
        %7098 = vmatpush1.bf16.xpose.msra.mxu0 0
        %7099 = vmatprep.subr.bf16.mxu0 0
        %7100 = vmatpush1.bf16.xpose.msra.mxu0 0
        %7101 = vmatprep.mubr.bf16.mxu0 0
        %7102 = vmatmul.mubr.bf16.gmra.mrb[0].mxu0 %v7064
        %v7103 = vpop.f32.mrb[0].mxu0
        %v7104 = vadd.f32 0.0, %v7103
        %v7105 = vpop.f32.mrb[0].mxu0
        %v7106 = vpop.f32.mrb[0].mxu0
        %v7107 = vpop.f32.mrb[0].mxu0
        %7108 = vdwg.mxu0
        %v7110 = vsel %vm6648, %v6634, 0
        %v7113 = vsel %vm6648, %v6646, 0
        %7115 = vmatprep.subr.bf16.mxu0 0
        %7116 = vmatpush1.bf16.xpose.msra.mxu0 %v7113
        %7117 = vmatprep.subr.bf16.mxu0 0
        %7118 = vmatpush1.bf16.xpose.msra.mxu0 0
        %7119 = vmatprep.subr.bf16.mxu0 0
        %7120 = vmatpush1.bf16.xpose.msra.mxu0 0
        %7121 = vmatprep.subr.bf16.mxu0 0
        %7122 = vmatpush1.bf16.xpose.msra.mxu0 0
        %7123 = vmatprep.subr.bf16.mxu0 0
        %7124 = vmatpush1.bf16.xpose.msra.mxu0 0
        %7125 = vmatprep.subr.bf16.mxu0 0
        %7126 = vmatpush1.bf16.xpose.msra.mxu0 0
        %7127 = vmatprep.subr.bf16.mxu0 0
        %7128 = vmatpush1.bf16.xpose.msra.mxu0 0
        %7129 = vmatprep.subr.bf16.mxu0 0
        %7130 = vmatpush1.bf16.xpose.msra.mxu0 0
        %7131 = vmatprep.subr.bf16.mxu0 0
        %7132 = vmatpush1.bf16.xpose.msra.mxu0 0
        %7133 = vmatprep.subr.bf16.mxu0 0
        %7134 = vmatpush1.bf16.xpose.msra.mxu0 0
        %7135 = vmatprep.subr.bf16.mxu0 0
        %7136 = vmatpush1.bf16.xpose.msra.mxu0 0
        %7137 = vmatprep.subr.bf16.mxu0 0
        %7138 = vmatpush1.bf16.xpose.msra.mxu0 0
        %7139 = vmatprep.subr.bf16.mxu0 0
        %7140 = vmatpush1.bf16.xpose.msra.mxu0 0
        %7141 = vmatprep.subr.bf16.mxu0 0
        %7142 = vmatpush1.bf16.xpose.msra.mxu0 0
        %7143 = vmatprep.subr.bf16.mxu0 0
        %7144 = vmatpush1.bf16.xpose.msra.mxu0 0
        %7145 = vmatprep.subr.bf16.mxu0 0
        %7146 = vmatpush1.bf16.xpose.msra.mxu0 0
        %7147 = vmatprep.mubr.bf16.mxu0 0
        %7148 = vmatmul.mubr.bf16.gmra.mrb[0].mxu0 %v7110
        %v7149 = vpop.f32.mrb[0].mxu0
        %v7150 = vadd.f32 0.0, %v7149
        %v7151 = vpop.f32.mrb[0].mxu0
        %v7152 = vpop.f32.mrb[0].mxu0
        %v7153 = vpop.f32.mrb[0].mxu0
        %7154 = vdwg.mxu0
        %v7156 = vsel %vm6648, %v6635, 0
        %v7159 = vsel %vm6648, %v6647, 0
        %7161 = vmatprep.subr.bf16.mxu0 0
        %7162 = vmatpush1.bf16.xpose.msra.mxu0 %v7159
        %7163 = vmatprep.subr.bf16.mxu0 0
        %7164 = vmatpush1.bf16.xpose.msra.mxu0 0
        %7165 = vmatprep.subr.bf16.mxu0 0
        %7166 = vmatpush1.bf16.xpose.msra.mxu0 0
        %7167 = vmatprep.subr.bf16.mxu0 0
        %7168 = vmatpush1.bf16.xpose.msra.mxu0 0
        %7169 = vmatprep.subr.bf16.mxu0 0
        %7170 = vmatpush1.bf16.xpose.msra.mxu0 0
        %7171 = vmatprep.subr.bf16.mxu0 0
        %7172 = vmatpush1.bf16.xpose.msra.mxu0 0
        %7173 = vmatprep.subr.bf16.mxu0 0
        %7174 = vmatpush1.bf16.xpose.msra.mxu0 0
        %7175 = vmatprep.subr.bf16.mxu0 0
        %7176 = vmatpush1.bf16.xpose.msra.mxu0 0
        %7177 = vmatprep.subr.bf16.mxu0 0
        %7178 = vmatpush1.bf16.xpose.msra.mxu0 0
        %7179 = vmatprep.subr.bf16.mxu0 0
        %7180 = vmatpush1.bf16.xpose.msra.mxu0 0
        %7181 = vmatprep.subr.bf16.mxu0 0
        %7182 = vmatpush1.bf16.xpose.msra.mxu0 0
        %7183 = vmatprep.subr.bf16.mxu0 0
        %7184 = vmatpush1.bf16.xpose.msra.mxu0 0
        %7185 = vmatprep.subr.bf16.mxu0 0
        %7186 = vmatpush1.bf16.xpose.msra.mxu0 0
        %7187 = vmatprep.subr.bf16.mxu0 0
        %7188 = vmatpush1.bf16.xpose.msra.mxu0 0
        %7189 = vmatprep.subr.bf16.mxu0 0
        %7190 = vmatpush1.bf16.xpose.msra.mxu0 0
        %7191 = vmatprep.subr.bf16.mxu0 0
        %7192 = vmatpush1.bf16.xpose.msra.mxu0 0
        %7193 = vmatprep.mubr.bf16.mxu0 0
        %7194 = vmatmul.mubr.bf16.gmra.mrb[0].mxu0 %v7156
        %v7195 = vpop.f32.mrb[0].mxu0
        %v7196 = vadd.f32 0.0, %v7195
        %v7197 = vpop.f32.mrb[0].mxu0
        %v7198 = vpop.f32.mrb[0].mxu0
        %v7199 = vpop.f32.mrb[0].mxu0
        %7200 = vdwg.mxu0
        %vm7201 = vcmask 64512
        %v7202 = vsel %vm7201, %v6690, -inf
        %7203 = vmax.xlane.f32.xlu0 %v7202
        %v7204 = vpop.xlane.xlu0 %7203
        %v7205 = vsel %vm7201, %v6736, -inf
        %7206 = vmax.xlane.f32.xlu0 %v7205
        %v7207 = vpop.xlane.xlu0 %7206
        %v7208 = vsel %vm7201, %v6782, -inf
        %7209 = vmax.xlane.f32.xlu0 %v7208
        %v7210 = vpop.xlane.xlu0 %7209
        %v7211 = vsel %vm7201, %v6828, -inf
        %7212 = vmax.xlane.f32.xlu0 %v7211
        %v7213 = vpop.xlane.xlu0 %7212
        %v7214 = vsel %vm7201, %v6874, -inf
        %7215 = vmax.xlane.f32.xlu0 %v7214
        %v7216 = vpop.xlane.xlu0 %7215
        %v7217 = vsel %vm7201, %v6920, -inf
        %7218 = vmax.xlane.f32.xlu0 %v7217
        %v7219 = vpop.xlane.xlu0 %7218
        %v7220 = vsel %vm7201, %v6966, -inf
        %7221 = vmax.xlane.f32.xlu0 %v7220
        %v7222 = vpop.xlane.xlu0 %7221
        %v7223 = vsel %vm7201, %v7012, -inf
        %7224 = vmax.xlane.f32.xlu0 %v7223
        %v7225 = vpop.xlane.xlu0 %7224
        %v7226 = vsel %vm7201, %v7058, -inf
        %7227 = vmax.xlane.f32.xlu0 %v7226
        %v7228 = vpop.xlane.xlu0 %7227
        %v7229 = vsel %vm7201, %v7104, -inf
        %7230 = vmax.xlane.f32.xlu0 %v7229
        %v7231 = vpop.xlane.xlu0 %7230
        %v7232 = vsel %vm7201, %v7150, -inf
        %7233 = vmax.xlane.f32.xlu0 %v7232
        %v7234 = vpop.xlane.xlu0 %7233
        %v7235 = vsel %vm7201, %v7196, -inf
        %7236 = vmax.xlane.f32.xlu0 %v7235
        %v7237 = vpop.xlane.xlu0 %7236
        %v7238 = vsub.f32 %v6690, %v7204
        %v7239 = vsub.f32 %v6736, %v7207
        %v7240 = vsub.f32 %v6782, %v7210
        %v7241 = vsub.f32 %v6828, %v7213
        %v7242 = vsub.f32 %v6874, %v7216
        %v7243 = vsub.f32 %v6920, %v7219
        %v7244 = vsub.f32 %v6966, %v7222
        %v7245 = vsub.f32 %v7012, %v7225
        %v7246 = vsub.f32 %v7058, %v7228
        %v7247 = vsub.f32 %v7104, %v7231
        %v7248 = vsub.f32 %v7150, %v7234
        %v7249 = vsub.f32 %v7196, %v7237
        %v7250 = vmul.f32 %v7238, 1.442695
        %v7251 = vpow.pop %v7250
        %v7252 = vmul.f32 %v7239, 1.442695
        %v7253 = vpow.pop %v7252
        %v7254 = vmul.f32 %v7240, 1.442695
        %v7255 = vpow.pop %v7254
        %v7256 = vmul.f32 %v7241, 1.442695
        %v7257 = vpow.pop %v7256
        %v7258 = vmul.f32 %v7242, 1.442695
        %v7259 = vpow.pop %v7258
        %v7260 = vmul.f32 %v7243, 1.442695
        %v7261 = vpow.pop %v7260
        %v7262 = vmul.f32 %v7244, 1.442695
        %v7263 = vpow.pop %v7262
        %v7264 = vmul.f32 %v7245, 1.442695
        %v7265 = vpow.pop %v7264
        %v7266 = vmul.f32 %v7246, 1.442695
        %v7267 = vpow.pop %v7266
        %v7268 = vmul.f32 %v7247, 1.442695
        %v7269 = vpow.pop %v7268
        %v7270 = vmul.f32 %v7248, 1.442695
        %v7271 = vpow.pop %v7270
        %v7272 = vmul.f32 %v7249, 1.442695
        %v7273 = vpow.pop %v7272
        %v7274 = vsel %vm7201, %v7251, 0.0
        %7275 = vadd.xlane.f32.xlu0 %v7274
        %v7276 = vpop.xlane.xlu0 %7275
        %v7277 = vsel %vm7201, %v7253, 0.0
        %7278 = vadd.xlane.f32.xlu0 %v7277
        %v7279 = vpop.xlane.xlu0 %7278
        %v7280 = vsel %vm7201, %v7255, 0.0
        %7281 = vadd.xlane.f32.xlu0 %v7280
        %v7282 = vpop.xlane.xlu0 %7281
        %v7283 = vsel %vm7201, %v7257, 0.0
        %7284 = vadd.xlane.f32.xlu0 %v7283
        %v7285 = vpop.xlane.xlu0 %7284
        %v7286 = vsel %vm7201, %v7259, 0.0
        %7287 = vadd.xlane.f32.xlu0 %v7286
        %v7288 = vpop.xlane.xlu0 %7287
        %v7289 = vsel %vm7201, %v7261, 0.0
        %7290 = vadd.xlane.f32.xlu0 %v7289
        %v7291 = vpop.xlane.xlu0 %7290
        %v7292 = vsel %vm7201, %v7263, 0.0
        %7293 = vadd.xlane.f32.xlu0 %v7292
        %v7294 = vpop.xlane.xlu0 %7293
        %v7295 = vsel %vm7201, %v7265, 0.0
        %7296 = vadd.xlane.f32.xlu0 %v7295
        %v7297 = vpop.xlane.xlu0 %7296
        %v7298 = vsel %vm7201, %v7267, 0.0
        %7299 = vadd.xlane.f32.xlu0 %v7298
        %v7300 = vpop.xlane.xlu0 %7299
        %v7301 = vsel %vm7201, %v7269, 0.0
        %7302 = vadd.xlane.f32.xlu0 %v7301
        %v7303 = vpop.xlane.xlu0 %7302
        %v7304 = vsel %vm7201, %v7271, 0.0
        %7305 = vadd.xlane.f32.xlu0 %v7304
        %v7306 = vpop.xlane.xlu0 %7305
        %v7307 = vsel %vm7201, %v7273, 0.0
        %7308 = vadd.xlane.f32.xlu0 %v7307
        %v7309 = vpop.xlane.xlu0 %7308
        %v7310 = vrcp.pop %v7276
        %v7311 = vrcp.pop %v7279
        %v7312 = vrcp.pop %v7282
        %v7313 = vrcp.pop %v7285
        %v7314 = vrcp.pop %v7288
        %v7315 = vrcp.pop %v7291
        %v7316 = vrcp.pop %v7294
        %v7317 = vrcp.pop %v7297
        %v7318 = vrcp.pop %v7300
        %v7319 = vrcp.pop %v7303
        %v7320 = vrcp.pop %v7306
        %v7321 = vrcp.pop %v7309
        %v7322 = vmul.f32 %v7251, %v7310
        %v7323 = vmul.f32 %v7253, %v7311
        %v7324 = vmul.f32 %v7255, %v7312
        %v7325 = vmul.f32 %v7257, %v7313
        %v7326 = vmul.f32 %v7259, %v7314
        %v7327 = vmul.f32 %v7261, %v7315
        %v7328 = vmul.f32 %v7263, %v7316
        %v7329 = vmul.f32 %v7265, %v7317
        %v7330 = vmul.f32 %v7267, %v7318
        %v7331 = vmul.f32 %v7269, %v7319
        %v7332 = vmul.f32 %v7271, %v7320
        %v7333 = vmul.f32 %v7273, %v7321
        %7334 = vst.msk [vmem:[%s503] sm:$0xff] %vm7201, %v7322
        %7335 = vst.msk [vmem:[%s503 + $0x8] sm:$0xff] %vm7201, %v7323
        %7336 = vst.msk [vmem:[%s503 + $0x10] sm:$0xff] %vm7201, %v7324
        %7337 = vst.msk [vmem:[%s503 + $0x18] sm:$0xff] %vm7201, %v7325
        %7338 = vst.msk [vmem:[%s503 + $0x20] sm:$0xff] %vm7201, %v7326
        %7339 = vst.msk [vmem:[%s503 + $0x28] sm:$0xff] %vm7201, %v7327
        %7340 = vst.msk [vmem:[%s503 + $0x30] sm:$0xff] %vm7201, %v7328
        %7341 = vst.msk [vmem:[%s503 + $0x38] sm:$0xff] %vm7201, %v7329
        %7342 = vst.msk [vmem:[%s503 + $0x40] sm:$0xff] %vm7201, %v7330
        %7343 = vst.msk [vmem:[%s503 + $0x48] sm:$0xff] %vm7201, %v7331
        %7344 = vst.msk [vmem:[%s503 + $0x50] sm:$0xff] %vm7201, %v7332
        %7345 = vst.msk [vmem:[%s503 + $0x58] sm:$0xff] %vm7201, %v7333
        %v7346 = vpack.c.bf16 %v7322, %v7322
        %v7347 = vpack.c.bf16 %v7323, %v7323
        %v7348 = vpack.c.bf16 %v7324, %v7324
        %v7349 = vpack.c.bf16 %v7325, %v7325
        %v7350 = vpack.c.bf16 %v7326, %v7326
        %v7351 = vpack.c.bf16 %v7327, %v7327
        %v7352 = vpack.c.bf16 %v7328, %v7328
        %v7353 = vpack.c.bf16 %v7329, %v7329
        %v7354 = vpack.c.bf16 %v7330, %v7330
        %v7355 = vpack.c.bf16 %v7331, %v7331
        %v7356 = vpack.c.bf16 %v7332, %v7332
        %v7357 = vpack.c.bf16 %v7333, %v7333
        %v7358 = vld [vmem:[#allocation3] sm:$0xf]
        %v7359 = vld [vmem:[#allocation3 + $0x4] sm:$0xf]
        %v7360 = vld [vmem:[#allocation3 + $0x8] sm:$0xf]
        %v7361 = vld [vmem:[#allocation3 + $0xc] sm:$0xf]
        %v7362 = vld [vmem:[#allocation3 + $0x10] sm:$0xf]
        %v7363 = vld [vmem:[#allocation3 + $0x14] sm:$0xf]
        %v7364 = vld [vmem:[#allocation3 + $0x18] sm:$0xf]
        %v7365 = vld [vmem:[#allocation3 + $0x1c] sm:$0xf]
        %v7366 = vld [vmem:[#allocation3 + $0x20] sm:$0xf]
        %v7367 = vld [vmem:[#allocation3 + $0x24] sm:$0xf]
        %v7368 = vld [vmem:[#allocation3 + $0x28] sm:$0xf]
        %v7369 = vld [vmem:[#allocation3 + $0x2c] sm:$0xf]
        %v7371 = vsel %vm7201, %v7346, 0
        %vm7373 = vcmask 1043456
        %v7375 = vsel %vm7373, %v7358, 0
        %7377 = vmatprep.subr.bf16.mxu0 0
        %7378 = vmatpush1.bf16.msra.mxu0 %v7375
        %7379 = vmatprep.subr.bf16.mxu0 0
        %7380 = vmatpush1.bf16.msra.mxu0 0
        %7381 = vmatprep.subr.bf16.mxu0 0
        %7382 = vmatpush1.bf16.msra.mxu0 0
        %7383 = vmatprep.subr.bf16.mxu0 0
        %7384 = vmatpush1.bf16.msra.mxu0 0
        %7385 = vmatprep.subr.bf16.mxu0 0
        %7386 = vmatpush1.bf16.msra.mxu0 0
        %7387 = vmatprep.subr.bf16.mxu0 0
        %7388 = vmatpush1.bf16.msra.mxu0 0
        %7389 = vmatprep.subr.bf16.mxu0 0
        %7390 = vmatpush1.bf16.msra.mxu0 0
        %7391 = vmatprep.subr.bf16.mxu0 0
        %7392 = vmatpush1.bf16.msra.mxu0 0
        %7393 = vmatprep.subr.bf16.mxu0 0
        %7394 = vmatpush1.bf16.msra.mxu0 0
        %7395 = vmatprep.subr.bf16.mxu0 0
        %7396 = vmatpush1.bf16.msra.mxu0 0
        %7397 = vmatprep.subr.bf16.mxu0 0
        %7398 = vmatpush1.bf16.msra.mxu0 0
        %7399 = vmatprep.subr.bf16.mxu0 0
        %7400 = vmatpush1.bf16.msra.mxu0 0
        %7401 = vmatprep.subr.bf16.mxu0 0
        %7402 = vmatpush1.bf16.msra.mxu0 0
        %7403 = vmatprep.subr.bf16.mxu0 0
        %7404 = vmatpush1.bf16.msra.mxu0 0
        %7405 = vmatprep.subr.bf16.mxu0 0
        %7406 = vmatpush1.bf16.msra.mxu0 0
        %7407 = vmatprep.subr.bf16.mxu0 0
        %7408 = vmatpush1.bf16.msra.mxu0 0
        %7409 = vmatprep.mubr.bf16.mxu0 0
        %7410 = vmatmul.mubr.bf16.gmra.mrb[0].mxu0 %v7371
        %v7411 = vpop.f32.mrb[0].mxu0
        %v7412 = vadd.f32 0.0, %v7411
        %v7413 = vpop.f32.mrb[0].mxu0
        %v7414 = vpop.f32.mrb[0].mxu0
        %v7415 = vpop.f32.mrb[0].mxu0
        %7416 = vdwg.mxu0
        %v7418 = vsel %vm7201, %v7347, 0
        %v7421 = vsel %vm7373, %v7359, 0
        %7423 = vmatprep.subr.bf16.mxu0 0
        %7424 = vmatpush1.bf16.msra.mxu0 %v7421
        %7425 = vmatprep.subr.bf16.mxu0 0
        %7426 = vmatpush1.bf16.msra.mxu0 0
        %7427 = vmatprep.subr.bf16.mxu0 0
        %7428 = vmatpush1.bf16.msra.mxu0 0
        %7429 = vmatprep.subr.bf16.mxu0 0
        %7430 = vmatpush1.bf16.msra.mxu0 0
        %7431 = vmatprep.subr.bf16.mxu0 0
        %7432 = vmatpush1.bf16.msra.mxu0 0
        %7433 = vmatprep.subr.bf16.mxu0 0
        %7434 = vmatpush1.bf16.msra.mxu0 0
        %7435 = vmatprep.subr.bf16.mxu0 0
        %7436 = vmatpush1.bf16.msra.mxu0 0
        %7437 = vmatprep.subr.bf16.mxu0 0
        %7438 = vmatpush1.bf16.msra.mxu0 0
        %7439 = vmatprep.subr.bf16.mxu0 0
        %7440 = vmatpush1.bf16.msra.mxu0 0
        %7441 = vmatprep.subr.bf16.mxu0 0
        %7442 = vmatpush1.bf16.msra.mxu0 0
        %7443 = vmatprep.subr.bf16.mxu0 0
        %7444 = vmatpush1.bf16.msra.mxu0 0
        %7445 = vmatprep.subr.bf16.mxu0 0
        %7446 = vmatpush1.bf16.msra.mxu0 0
        %7447 = vmatprep.subr.bf16.mxu0 0
        %7448 = vmatpush1.bf16.msra.mxu0 0
        %7449 = vmatprep.subr.bf16.mxu0 0
        %7450 = vmatpush1.bf16.msra.mxu0 0
        %7451 = vmatprep.subr.bf16.mxu0 0
        %7452 = vmatpush1.bf16.msra.mxu0 0
        %7453 = vmatprep.subr.bf16.mxu0 0
        %7454 = vmatpush1.bf16.msra.mxu0 0
        %7455 = vmatprep.mubr.bf16.mxu0 0
        %7456 = vmatmul.mubr.bf16.gmra.mrb[0].mxu0 %v7418
        %v7457 = vpop.f32.mrb[0].mxu0
        %v7458 = vadd.f32 0.0, %v7457
        %v7459 = vpop.f32.mrb[0].mxu0
        %v7460 = vpop.f32.mrb[0].mxu0
        %v7461 = vpop.f32.mrb[0].mxu0
        %7462 = vdwg.mxu0
        %v7464 = vsel %vm7201, %v7348, 0
        %v7467 = vsel %vm7373, %v7360, 0
        %7469 = vmatprep.subr.bf16.mxu0 0
        %7470 = vmatpush1.bf16.msra.mxu0 %v7467
        %7471 = vmatprep.subr.bf16.mxu0 0
        %7472 = vmatpush1.bf16.msra.mxu0 0
        %7473 = vmatprep.subr.bf16.mxu0 0
        %7474 = vmatpush1.bf16.msra.mxu0 0
        %7475 = vmatprep.subr.bf16.mxu0 0
        %7476 = vmatpush1.bf16.msra.mxu0 0
        %7477 = vmatprep.subr.bf16.mxu0 0
        %7478 = vmatpush1.bf16.msra.mxu0 0
        %7479 = vmatprep.subr.bf16.mxu0 0
        %7480 = vmatpush1.bf16.msra.mxu0 0
        %7481 = vmatprep.subr.bf16.mxu0 0
        %7482 = vmatpush1.bf16.msra.mxu0 0
        %7483 = vmatprep.subr.bf16.mxu0 0
        %7484 = vmatpush1.bf16.msra.mxu0 0
        %7485 = vmatprep.subr.bf16.mxu0 0
        %7486 = vmatpush1.bf16.msra.mxu0 0
        %7487 = vmatprep.subr.bf16.mxu0 0
        %7488 = vmatpush1.bf16.msra.mxu0 0
        %7489 = vmatprep.subr.bf16.mxu0 0
        %7490 = vmatpush1.bf16.msra.mxu0 0
        %7491 = vmatprep.subr.bf16.mxu0 0
        %7492 = vmatpush1.bf16.msra.mxu0 0
        %7493 = vmatprep.subr.bf16.mxu0 0
        %7494 = vmatpush1.bf16.msra.mxu0 0
        %7495 = vmatprep.subr.bf16.mxu0 0
        %7496 = vmatpush1.bf16.msra.mxu0 0
        %7497 = vmatprep.subr.bf16.mxu0 0
        %7498 = vmatpush1.bf16.msra.mxu0 0
        %7499 = vmatprep.subr.bf16.mxu0 0
        %7500 = vmatpush1.bf16.msra.mxu0 0
        %7501 = vmatprep.mubr.bf16.mxu0 0
        %7502 = vmatmul.mubr.bf16.gmra.mrb[0].mxu0 %v7464
        %v7503 = vpop.f32.mrb[0].mxu0
        %v7504 = vadd.f32 0.0, %v7503
        %v7505 = vpop.f32.mrb[0].mxu0
        %v7506 = vpop.f32.mrb[0].mxu0
        %v7507 = vpop.f32.mrb[0].mxu0
        %7508 = vdwg.mxu0
        %v7510 = vsel %vm7201, %v7349, 0
        %v7513 = vsel %vm7373, %v7361, 0
        %7515 = vmatprep.subr.bf16.mxu0 0
        %7516 = vmatpush1.bf16.msra.mxu0 %v7513
        %7517 = vmatprep.subr.bf16.mxu0 0
        %7518 = vmatpush1.bf16.msra.mxu0 0
        %7519 = vmatprep.subr.bf16.mxu0 0
        %7520 = vmatpush1.bf16.msra.mxu0 0
        %7521 = vmatprep.subr.bf16.mxu0 0
        %7522 = vmatpush1.bf16.msra.mxu0 0
        %7523 = vmatprep.subr.bf16.mxu0 0
        %7524 = vmatpush1.bf16.msra.mxu0 0
        %7525 = vmatprep.subr.bf16.mxu0 0
        %7526 = vmatpush1.bf16.msra.mxu0 0
        %7527 = vmatprep.subr.bf16.mxu0 0
        %7528 = vmatpush1.bf16.msra.mxu0 0
        %7529 = vmatprep.subr.bf16.mxu0 0
        %7530 = vmatpush1.bf16.msra.mxu0 0
        %7531 = vmatprep.subr.bf16.mxu0 0
        %7532 = vmatpush1.bf16.msra.mxu0 0
        %7533 = vmatprep.subr.bf16.mxu0 0
        %7534 = vmatpush1.bf16.msra.mxu0 0
        %7535 = vmatprep.subr.bf16.mxu0 0
        %7536 = vmatpush1.bf16.msra.mxu0 0
        %7537 = vmatprep.subr.bf16.mxu0 0
        %7538 = vmatpush1.bf16.msra.mxu0 0
        %7539 = vmatprep.subr.bf16.mxu0 0
        %7540 = vmatpush1.bf16.msra.mxu0 0
        %7541 = vmatprep.subr.bf16.mxu0 0
        %7542 = vmatpush1.bf16.msra.mxu0 0
        %7543 = vmatprep.subr.bf16.mxu0 0
        %7544 = vmatpush1.bf16.msra.mxu0 0
        %7545 = vmatprep.subr.bf16.mxu0 0
        %7546 = vmatpush1.bf16.msra.mxu0 0
        %7547 = vmatprep.mubr.bf16.mxu0 0
        %7548 = vmatmul.mubr.bf16.gmra.mrb[0].mxu0 %v7510
        %v7549 = vpop.f32.mrb[0].mxu0
        %v7550 = vadd.f32 0.0, %v7549
        %v7551 = vpop.f32.mrb[0].mxu0
        %v7552 = vpop.f32.mrb[0].mxu0
        %v7553 = vpop.f32.mrb[0].mxu0
        %7554 = vdwg.mxu0
        %v7556 = vsel %vm7201, %v7350, 0
        %v7559 = vsel %vm7373, %v7362, 0
        %7561 = vmatprep.subr.bf16.mxu0 0
        %7562 = vmatpush1.bf16.msra.mxu0 %v7559
        %7563 = vmatprep.subr.bf16.mxu0 0
        %7564 = vmatpush1.bf16.msra.mxu0 0
        %7565 = vmatprep.subr.bf16.mxu0 0
        %7566 = vmatpush1.bf16.msra.mxu0 0
        %7567 = vmatprep.subr.bf16.mxu0 0
        %7568 = vmatpush1.bf16.msra.mxu0 0
        %7569 = vmatprep.subr.bf16.mxu0 0
        %7570 = vmatpush1.bf16.msra.mxu0 0
        %7571 = vmatprep.subr.bf16.mxu0 0
        %7572 = vmatpush1.bf16.msra.mxu0 0
        %7573 = vmatprep.subr.bf16.mxu0 0
        %7574 = vmatpush1.bf16.msra.mxu0 0
        %7575 = vmatprep.subr.bf16.mxu0 0
        %7576 = vmatpush1.bf16.msra.mxu0 0
        %7577 = vmatprep.subr.bf16.mxu0 0
        %7578 = vmatpush1.bf16.msra.mxu0 0
        %7579 = vmatprep.subr.bf16.mxu0 0
        %7580 = vmatpush1.bf16.msra.mxu0 0
        %7581 = vmatprep.subr.bf16.mxu0 0
        %7582 = vmatpush1.bf16.msra.mxu0 0
        %7583 = vmatprep.subr.bf16.mxu0 0
        %7584 = vmatpush1.bf16.msra.mxu0 0
        %7585 = vmatprep.subr.bf16.mxu0 0
        %7586 = vmatpush1.bf16.msra.mxu0 0
        %7587 = vmatprep.subr.bf16.mxu0 0
        %7588 = vmatpush1.bf16.msra.mxu0 0
        %7589 = vmatprep.subr.bf16.mxu0 0
        %7590 = vmatpush1.bf16.msra.mxu0 0
        %7591 = vmatprep.subr.bf16.mxu0 0
        %7592 = vmatpush1.bf16.msra.mxu0 0
        %7593 = vmatprep.mubr.bf16.mxu0 0
        %7594 = vmatmul.mubr.bf16.gmra.mrb[0].mxu0 %v7556
        %v7595 = vpop.f32.mrb[0].mxu0
        %v7596 = vadd.f32 0.0, %v7595
        %v7597 = vpop.f32.mrb[0].mxu0
        %v7598 = vpop.f32.mrb[0].mxu0
        %v7599 = vpop.f32.mrb[0].mxu0
        %7600 = vdwg.mxu0
        %v7602 = vsel %vm7201, %v7351, 0
        %v7605 = vsel %vm7373, %v7363, 0
        %7607 = vmatprep.subr.bf16.mxu0 0
        %7608 = vmatpush1.bf16.msra.mxu0 %v7605
        %7609 = vmatprep.subr.bf16.mxu0 0
        %7610 = vmatpush1.bf16.msra.mxu0 0
        %7611 = vmatprep.subr.bf16.mxu0 0
        %7612 = vmatpush1.bf16.msra.mxu0 0
        %7613 = vmatprep.subr.bf16.mxu0 0
        %7614 = vmatpush1.bf16.msra.mxu0 0
        %7615 = vmatprep.subr.bf16.mxu0 0
        %7616 = vmatpush1.bf16.msra.mxu0 0
        %7617 = vmatprep.subr.bf16.mxu0 0
        %7618 = vmatpush1.bf16.msra.mxu0 0
        %7619 = vmatprep.subr.bf16.mxu0 0
        %7620 = vmatpush1.bf16.msra.mxu0 0
        %7621 = vmatprep.subr.bf16.mxu0 0
        %7622 = vmatpush1.bf16.msra.mxu0 0
        %7623 = vmatprep.subr.bf16.mxu0 0
        %7624 = vmatpush1.bf16.msra.mxu0 0
        %7625 = vmatprep.subr.bf16.mxu0 0
        %7626 = vmatpush1.bf16.msra.mxu0 0
        %7627 = vmatprep.subr.bf16.mxu0 0
        %7628 = vmatpush1.bf16.msra.mxu0 0
        %7629 = vmatprep.subr.bf16.mxu0 0
        %7630 = vmatpush1.bf16.msra.mxu0 0
        %7631 = vmatprep.subr.bf16.mxu0 0
        %7632 = vmatpush1.bf16.msra.mxu0 0
        %7633 = vmatprep.subr.bf16.mxu0 0
        %7634 = vmatpush1.bf16.msra.mxu0 0
        %7635 = vmatprep.subr.bf16.mxu0 0
        %7636 = vmatpush1.bf16.msra.mxu0 0
        %7637 = vmatprep.subr.bf16.mxu0 0
        %7638 = vmatpush1.bf16.msra.mxu0 0
        %7639 = vmatprep.mubr.bf16.mxu0 0
        %7640 = vmatmul.mubr.bf16.gmra.mrb[0].mxu0 %v7602
        %v7641 = vpop.f32.mrb[0].mxu0
        %v7642 = vadd.f32 0.0, %v7641
        %v7643 = vpop.f32.mrb[0].mxu0
        %v7644 = vpop.f32.mrb[0].mxu0
        %v7645 = vpop.f32.mrb[0].mxu0
        %7646 = vdwg.mxu0
        %v7648 = vsel %vm7201, %v7352, 0
        %v7651 = vsel %vm7373, %v7364, 0
        %7653 = vmatprep.subr.bf16.mxu0 0
        %7654 = vmatpush1.bf16.msra.mxu0 %v7651
        %7655 = vmatprep.subr.bf16.mxu0 0
        %7656 = vmatpush1.bf16.msra.mxu0 0
        %7657 = vmatprep.subr.bf16.mxu0 0
        %7658 = vmatpush1.bf16.msra.mxu0 0
        %7659 = vmatprep.subr.bf16.mxu0 0
        %7660 = vmatpush1.bf16.msra.mxu0 0
        %7661 = vmatprep.subr.bf16.mxu0 0
        %7662 = vmatpush1.bf16.msra.mxu0 0
        %7663 = vmatprep.subr.bf16.mxu0 0
        %7664 = vmatpush1.bf16.msra.mxu0 0
        %7665 = vmatprep.subr.bf16.mxu0 0
        %7666 = vmatpush1.bf16.msra.mxu0 0
        %7667 = vmatprep.subr.bf16.mxu0 0
        %7668 = vmatpush1.bf16.msra.mxu0 0
        %7669 = vmatprep.subr.bf16.mxu0 0
        %7670 = vmatpush1.bf16.msra.mxu0 0
        %7671 = vmatprep.subr.bf16.mxu0 0
        %7672 = vmatpush1.bf16.msra.mxu0 0
        %7673 = vmatprep.subr.bf16.mxu0 0
        %7674 = vmatpush1.bf16.msra.mxu0 0
        %7675 = vmatprep.subr.bf16.mxu0 0
        %7676 = vmatpush1.bf16.msra.mxu0 0
        %7677 = vmatprep.subr.bf16.mxu0 0
        %7678 = vmatpush1.bf16.msra.mxu0 0
        %7679 = vmatprep.subr.bf16.mxu0 0
        %7680 = vmatpush1.bf16.msra.mxu0 0
        %7681 = vmatprep.subr.bf16.mxu0 0
        %7682 = vmatpush1.bf16.msra.mxu0 0
        %7683 = vmatprep.subr.bf16.mxu0 0
        %7684 = vmatpush1.bf16.msra.mxu0 0
        %7685 = vmatprep.mubr.bf16.mxu0 0
        %7686 = vmatmul.mubr.bf16.gmra.mrb[0].mxu0 %v7648
        %v7687 = vpop.f32.mrb[0].mxu0
        %v7688 = vadd.f32 0.0, %v7687
        %v7689 = vpop.f32.mrb[0].mxu0
        %v7690 = vpop.f32.mrb[0].mxu0
        %v7691 = vpop.f32.mrb[0].mxu0
        %7692 = vdwg.mxu0
        %v7694 = vsel %vm7201, %v7353, 0
        %v7697 = vsel %vm7373, %v7365, 0
        %7699 = vmatprep.subr.bf16.mxu0 0
        %7700 = vmatpush1.bf16.msra.mxu0 %v7697
        %7701 = vmatprep.subr.bf16.mxu0 0
        %7702 = vmatpush1.bf16.msra.mxu0 0
        %7703 = vmatprep.subr.bf16.mxu0 0
        %7704 = vmatpush1.bf16.msra.mxu0 0
        %7705 = vmatprep.subr.bf16.mxu0 0
        %7706 = vmatpush1.bf16.msra.mxu0 0
        %7707 = vmatprep.subr.bf16.mxu0 0
        %7708 = vmatpush1.bf16.msra.mxu0 0
        %7709 = vmatprep.subr.bf16.mxu0 0
        %7710 = vmatpush1.bf16.msra.mxu0 0
        %7711 = vmatprep.subr.bf16.mxu0 0
        %7712 = vmatpush1.bf16.msra.mxu0 0
        %7713 = vmatprep.subr.bf16.mxu0 0
        %7714 = vmatpush1.bf16.msra.mxu0 0
        %7715 = vmatprep.subr.bf16.mxu0 0
        %7716 = vmatpush1.bf16.msra.mxu0 0
        %7717 = vmatprep.subr.bf16.mxu0 0
        %7718 = vmatpush1.bf16.msra.mxu0 0
        %7719 = vmatprep.subr.bf16.mxu0 0
        %7720 = vmatpush1.bf16.msra.mxu0 0
        %7721 = vmatprep.subr.bf16.mxu0 0
        %7722 = vmatpush1.bf16.msra.mxu0 0
        %7723 = vmatprep.subr.bf16.mxu0 0
        %7724 = vmatpush1.bf16.msra.mxu0 0
        %7725 = vmatprep.subr.bf16.mxu0 0
        %7726 = vmatpush1.bf16.msra.mxu0 0
        %7727 = vmatprep.subr.bf16.mxu0 0
        %7728 = vmatpush1.bf16.msra.mxu0 0
        %7729 = vmatprep.subr.bf16.mxu0 0
        %7730 = vmatpush1.bf16.msra.mxu0 0
        %7731 = vmatprep.mubr.bf16.mxu0 0
        %7732 = vmatmul.mubr.bf16.gmra.mrb[0].mxu0 %v7694
        %v7733 = vpop.f32.mrb[0].mxu0
        %v7734 = vadd.f32 0.0, %v7733
        %v7735 = vpop.f32.mrb[0].mxu0
        %v7736 = vpop.f32.mrb[0].mxu0
        %v7737 = vpop.f32.mrb[0].mxu0
        %7738 = vdwg.mxu0
        %v7740 = vsel %vm7201, %v7354, 0
        %v7743 = vsel %vm7373, %v7366, 0
        %7745 = vmatprep.subr.bf16.mxu0 0
        %7746 = vmatpush1.bf16.msra.mxu0 %v7743
        %7747 = vmatprep.subr.bf16.mxu0 0
        %7748 = vmatpush1.bf16.msra.mxu0 0
        %7749 = vmatprep.subr.bf16.mxu0 0
        %7750 = vmatpush1.bf16.msra.mxu0 0
        %7751 = vmatprep.subr.bf16.mxu0 0
        %7752 = vmatpush1.bf16.msra.mxu0 0
        %7753 = vmatprep.subr.bf16.mxu0 0
        %7754 = vmatpush1.bf16.msra.mxu0 0
        %7755 = vmatprep.subr.bf16.mxu0 0
        %7756 = vmatpush1.bf16.msra.mxu0 0
        %7757 = vmatprep.subr.bf16.mxu0 0
        %7758 = vmatpush1.bf16.msra.mxu0 0
        %7759 = vmatprep.subr.bf16.mxu0 0
        %7760 = vmatpush1.bf16.msra.mxu0 0
        %7761 = vmatprep.subr.bf16.mxu0 0
        %7762 = vmatpush1.bf16.msra.mxu0 0
        %7763 = vmatprep.subr.bf16.mxu0 0
        %7764 = vmatpush1.bf16.msra.mxu0 0
        %7765 = vmatprep.subr.bf16.mxu0 0
        %7766 = vmatpush1.bf16.msra.mxu0 0
        %7767 = vmatprep.subr.bf16.mxu0 0
        %7768 = vmatpush1.bf16.msra.mxu0 0
        %7769 = vmatprep.subr.bf16.mxu0 0
        %7770 = vmatpush1.bf16.msra.mxu0 0
        %7771 = vmatprep.subr.bf16.mxu0 0
        %7772 = vmatpush1.bf16.msra.mxu0 0
        %7773 = vmatprep.subr.bf16.mxu0 0
        %7774 = vmatpush1.bf16.msra.mxu0 0
        %7775 = vmatprep.subr.bf16.mxu0 0
        %7776 = vmatpush1.bf16.msra.mxu0 0
        %7777 = vmatprep.mubr.bf16.mxu0 0
        %7778 = vmatmul.mubr.bf16.gmra.mrb[0].mxu0 %v7740
        %v7779 = vpop.f32.mrb[0].mxu0
        %v7780 = vadd.f32 0.0, %v7779
        %v7781 = vpop.f32.mrb[0].mxu0
        %v7782 = vpop.f32.mrb[0].mxu0
        %v7783 = vpop.f32.mrb[0].mxu0
        %7784 = vdwg.mxu0
        %v7786 = vsel %vm7201, %v7355, 0
        %v7789 = vsel %vm7373, %v7367, 0
        %7791 = vmatprep.subr.bf16.mxu0 0
        %7792 = vmatpush1.bf16.msra.mxu0 %v7789
        %7793 = vmatprep.subr.bf16.mxu0 0
        %7794 = vmatpush1.bf16.msra.mxu0 0
        %7795 = vmatprep.subr.bf16.mxu0 0
        %7796 = vmatpush1.bf16.msra.mxu0 0
        %7797 = vmatprep.subr.bf16.mxu0 0
        %7798 = vmatpush1.bf16.msra.mxu0 0
        %7799 = vmatprep.subr.bf16.mxu0 0
        %7800 = vmatpush1.bf16.msra.mxu0 0
        %7801 = vmatprep.subr.bf16.mxu0 0
        %7802 = vmatpush1.bf16.msra.mxu0 0
        %7803 = vmatprep.subr.bf16.mxu0 0
        %7804 = vmatpush1.bf16.msra.mxu0 0
        %7805 = vmatprep.subr.bf16.mxu0 0
        %7806 = vmatpush1.bf16.msra.mxu0 0
        %7807 = vmatprep.subr.bf16.mxu0 0
        %7808 = vmatpush1.bf16.msra.mxu0 0
        %7809 = vmatprep.subr.bf16.mxu0 0
        %7810 = vmatpush1.bf16.msra.mxu0 0
        %7811 = vmatprep.subr.bf16.mxu0 0
        %7812 = vmatpush1.bf16.msra.mxu0 0
        %7813 = vmatprep.subr.bf16.mxu0 0
        %7814 = vmatpush1.bf16.msra.mxu0 0
        %7815 = vmatprep.subr.bf16.mxu0 0
        %7816 = vmatpush1.bf16.msra.mxu0 0
        %7817 = vmatprep.subr.bf16.mxu0 0
        %7818 = vmatpush1.bf16.msra.mxu0 0
        %7819 = vmatprep.subr.bf16.mxu0 0
        %7820 = vmatpush1.bf16.msra.mxu0 0
        %7821 = vmatprep.subr.bf16.mxu0 0
        %7822 = vmatpush1.bf16.msra.mxu0 0
        %7823 = vmatprep.mubr.bf16.mxu0 0
        %7824 = vmatmul.mubr.bf16.gmra.mrb[0].mxu0 %v7786
        %v7825 = vpop.f32.mrb[0].mxu0
        %v7826 = vadd.f32 0.0, %v7825
        %v7827 = vpop.f32.mrb[0].mxu0
        %v7828 = vpop.f32.mrb[0].mxu0
        %v7829 = vpop.f32.mrb[0].mxu0
        %7830 = vdwg.mxu0
        %v7832 = vsel %vm7201, %v7356, 0
        %v7835 = vsel %vm7373, %v7368, 0
        %7837 = vmatprep.subr.bf16.mxu0 0
        %7838 = vmatpush1.bf16.msra.mxu0 %v7835
        %7839 = vmatprep.subr.bf16.mxu0 0
        %7840 = vmatpush1.bf16.msra.mxu0 0
        %7841 = vmatprep.subr.bf16.mxu0 0
        %7842 = vmatpush1.bf16.msra.mxu0 0
        %7843 = vmatprep.subr.bf16.mxu0 0
        %7844 = vmatpush1.bf16.msra.mxu0 0
        %7845 = vmatprep.subr.bf16.mxu0 0
        %7846 = vmatpush1.bf16.msra.mxu0 0
        %7847 = vmatprep.subr.bf16.mxu0 0
        %7848 = vmatpush1.bf16.msra.mxu0 0
        %7849 = vmatprep.subr.bf16.mxu0 0
        %7850 = vmatpush1.bf16.msra.mxu0 0
        %7851 = vmatprep.subr.bf16.mxu0 0
        %7852 = vmatpush1.bf16.msra.mxu0 0
        %7853 = vmatprep.subr.bf16.mxu0 0
        %7854 = vmatpush1.bf16.msra.mxu0 0
        %7855 = vmatprep.subr.bf16.mxu0 0
        %7856 = vmatpush1.bf16.msra.mxu0 0
        %7857 = vmatprep.subr.bf16.mxu0 0
        %7858 = vmatpush1.bf16.msra.mxu0 0
        %7859 = vmatprep.subr.bf16.mxu0 0
        %7860 = vmatpush1.bf16.msra.mxu0 0
        %7861 = vmatprep.subr.bf16.mxu0 0
        %7862 = vmatpush1.bf16.msra.mxu0 0
        %7863 = vmatprep.subr.bf16.mxu0 0
        %7864 = vmatpush1.bf16.msra.mxu0 0
        %7865 = vmatprep.subr.bf16.mxu0 0
        %7866 = vmatpush1.bf16.msra.mxu0 0
        %7867 = vmatprep.subr.bf16.mxu0 0
        %7868 = vmatpush1.bf16.msra.mxu0 0
        %7869 = vmatprep.mubr.bf16.mxu0 0
        %7870 = vmatmul.mubr.bf16.gmra.mrb[0].mxu0 %v7832
        %v7871 = vpop.f32.mrb[0].mxu0
        %v7872 = vadd.f32 0.0, %v7871
        %v7873 = vpop.f32.mrb[0].mxu0
        %v7874 = vpop.f32.mrb[0].mxu0
        %v7875 = vpop.f32.mrb[0].mxu0
        %7876 = vdwg.mxu0
        %v7878 = vsel %vm7201, %v7357, 0
        %v7881 = vsel %vm7373, %v7369, 0
        %7883 = vmatprep.subr.bf16.mxu0 0
        %7884 = vmatpush1.bf16.msra.mxu0 %v7881
        %7885 = vmatprep.subr.bf16.mxu0 0
        %7886 = vmatpush1.bf16.msra.mxu0 0
        %7887 = vmatprep.subr.bf16.mxu0 0
        %7888 = vmatpush1.bf16.msra.mxu0 0
        %7889 = vmatprep.subr.bf16.mxu0 0
        %7890 = vmatpush1.bf16.msra.mxu0 0
        %7891 = vmatprep.subr.bf16.mxu0 0
        %7892 = vmatpush1.bf16.msra.mxu0 0
        %7893 = vmatprep.subr.bf16.mxu0 0
        %7894 = vmatpush1.bf16.msra.mxu0 0
        %7895 = vmatprep.subr.bf16.mxu0 0
        %7896 = vmatpush1.bf16.msra.mxu0 0
        %7897 = vmatprep.subr.bf16.mxu0 0
        %7898 = vmatpush1.bf16.msra.mxu0 0
        %7899 = vmatprep.subr.bf16.mxu0 0
        %7900 = vmatpush1.bf16.msra.mxu0 0
        %7901 = vmatprep.subr.bf16.mxu0 0
        %7902 = vmatpush1.bf16.msra.mxu0 0
        %7903 = vmatprep.subr.bf16.mxu0 0
        %7904 = vmatpush1.bf16.msra.mxu0 0
        %7905 = vmatprep.subr.bf16.mxu0 0
        %7906 = vmatpush1.bf16.msra.mxu0 0
        %7907 = vmatprep.subr.bf16.mxu0 0
        %7908 = vmatpush1.bf16.msra.mxu0 0
        %7909 = vmatprep.subr.bf16.mxu0 0
        %7910 = vmatpush1.bf16.msra.mxu0 0
        %7911 = vmatprep.subr.bf16.mxu0 0
        %7912 = vmatpush1.bf16.msra.mxu0 0
        %7913 = vmatprep.subr.bf16.mxu0 0
        %7914 = vmatpush1.bf16.msra.mxu0 0
        %7915 = vmatprep.mubr.bf16.mxu0 0
        %7916 = vmatmul.mubr.bf16.gmra.mrb[0].mxu0 %v7878
        %v7917 = vpop.f32.mrb[0].mxu0
        %v7918 = vadd.f32 0.0, %v7917
        %v7919 = vpop.f32.mrb[0].mxu0
        %v7920 = vpop.f32.mrb[0].mxu0
        %v7921 = vpop.f32.mrb[0].mxu0
        %7922 = vdwg.mxu0
        %v7923 = vcombine.low %v7412, %v7504
        %v7924 = vcombine.high %v7412, %v7504
        %v7926 = vunpack.c.l.s4 1983009808
        %v7927 = vunpack.c.0.s8 %v7926
        %v7928 = vlaneseq
        %v7929 = vshrl.u32 %v7928, 7
        %v7930 = vsub.s32 %v7927, %v7929
        %v7931 = vrot.slane %v7923, %v7930
        %v7933 = vunpack.c.l.s4 1983009808
        %v7934 = vunpack.c.0.s8 %v7933
        %v7935 = vlaneseq
        %v7936 = vshrl.u32 %v7935, 7
        %v7937 = vsub.s32 %v7934, %v7936
        %v7938 = vrot.slane %v7924, %v7937
        %v7939 = vcombine.low %v7458, %v7550
        %v7940 = vcombine.high %v7458, %v7550
        %v7942 = vunpack.c.l.s4 1983009808
        %v7943 = vunpack.c.0.s8 %v7942
        %v7944 = vlaneseq
        %v7945 = vshrl.u32 %v7944, 7
        %v7946 = vsub.s32 %v7943, %v7945
        %v7947 = vrot.slane %v7939, %v7946
        %v7949 = vunpack.c.l.s4 1983009808
        %v7950 = vunpack.c.0.s8 %v7949
        %v7951 = vlaneseq
        %v7952 = vshrl.u32 %v7951, 7
        %v7953 = vsub.s32 %v7950, %v7952
        %v7954 = vrot.slane %v7940, %v7953
        %v7955 = vcombine.low %v7596, %v7688
        %v7956 = vcombine.high %v7596, %v7688
        %v7958 = vunpack.c.l.s4 1983009808
        %v7959 = vunpack.c.0.s8 %v7958
        %v7960 = vlaneseq
        %v7961 = vshrl.u32 %v7960, 7
        %v7962 = vsub.s32 %v7959, %v7961
        %v7963 = vrot.slane %v7955, %v7962
        %v7965 = vunpack.c.l.s4 1983009808
        %v7966 = vunpack.c.0.s8 %v7965
        %v7967 = vlaneseq
        %v7968 = vshrl.u32 %v7967, 7
        %v7969 = vsub.s32 %v7966, %v7968
        %v7970 = vrot.slane %v7956, %v7969
        %v7971 = vcombine.low %v7642, %v7734
        %v7972 = vcombine.high %v7642, %v7734
        %v7974 = vunpack.c.l.s4 1983009808
        %v7975 = vunpack.c.0.s8 %v7974
        %v7976 = vlaneseq
        %v7977 = vshrl.u32 %v7976, 7
        %v7978 = vsub.s32 %v7975, %v7977
        %v7979 = vrot.slane %v7971, %v7978
        %v7981 = vunpack.c.l.s4 1983009808
        %v7982 = vunpack.c.0.s8 %v7981
        %v7983 = vlaneseq
        %v7984 = vshrl.u32 %v7983, 7
        %v7985 = vsub.s32 %v7982, %v7984
        %v7986 = vrot.slane %v7972, %v7985
        %v7987 = vcombine.low %v7931, %v7947
        %v7988 = vcombine.high %v7931, %v7947
        %v7990 = vunpack.c.l.s4 1934713408
        %v7991 = vunpack.c.0.s8 %v7990
        %v7992 = vlaneseq
        %v7993 = vshrl.u32 %v7992, 7
        %v7994 = vsub.s32 %v7991, %v7993
        %v7995 = vrot.slane %v7987, %v7994
        %v7997 = vunpack.c.l.s4 1934713408
        %v7998 = vunpack.c.0.s8 %v7997
        %v7999 = vlaneseq
        %v8000 = vshrl.u32 %v7999, 7
        %v8001 = vsub.s32 %v7998, %v8000
        %v8002 = vrot.slane %v7988, %v8001
        %v8003 = vcombine.low %v7938, %v7954
        %v8004 = vcombine.high %v7938, %v7954
        %v8006 = vunpack.c.l.s4 1934713408
        %v8007 = vunpack.c.0.s8 %v8006
        %v8008 = vlaneseq
        %v8009 = vshrl.u32 %v8008, 7
        %v8010 = vsub.s32 %v8007, %v8009
        %v8011 = vrot.slane %v8003, %v8010
        %v8013 = vunpack.c.l.s4 1934713408
        %v8014 = vunpack.c.0.s8 %v8013
        %v8015 = vlaneseq
        %v8016 = vshrl.u32 %v8015, 7
        %v8017 = vsub.s32 %v8014, %v8016
        %v8018 = vrot.slane %v8004, %v8017
        %v8019 = vcombine.low %v7963, %v7979
        %v8020 = vcombine.high %v7963, %v7979
        %v8022 = vunpack.c.l.s4 1934713408
        %v8023 = vunpack.c.0.s8 %v8022
        %v8024 = vlaneseq
        %v8025 = vshrl.u32 %v8024, 7
        %v8026 = vsub.s32 %v8023, %v8025
        %v8027 = vrot.slane %v8019, %v8026
        %v8029 = vunpack.c.l.s4 1934713408
        %v8030 = vunpack.c.0.s8 %v8029
        %v8031 = vlaneseq
        %v8032 = vshrl.u32 %v8031, 7
        %v8033 = vsub.s32 %v8030, %v8032
        %v8034 = vrot.slane %v8020, %v8033
        %v8035 = vcombine.low %v7970, %v7986
        %v8036 = vcombine.high %v7970, %v7986
        %v8038 = vunpack.c.l.s4 1934713408
        %v8039 = vunpack.c.0.s8 %v8038
        %v8040 = vlaneseq
        %v8041 = vshrl.u32 %v8040, 7
        %v8042 = vsub.s32 %v8039, %v8041
        %v8043 = vrot.slane %v8035, %v8042
        %v8045 = vunpack.c.l.s4 1934713408
        %v8046 = vunpack.c.0.s8 %v8045
        %v8047 = vlaneseq
        %v8048 = vshrl.u32 %v8047, 7
        %v8049 = vsub.s32 %v8046, %v8048
        %v8050 = vrot.slane %v8036, %v8049
        %v8051 = vcombine.low %v7995, %v8027
        %v8052 = vcombine.high %v7995, %v8027
        %v8053 = vcombine.low %v8002, %v8034
        %v8054 = vcombine.high %v8002, %v8034
        %v8055 = vcombine.low %v8011, %v8043
        %v8056 = vcombine.high %v8011, %v8043
        %v8057 = vcombine.low %v8018, %v8050
        %v8058 = vcombine.high %v8018, %v8050
        %v8059 = vcombine.low %v7780, %v7872
        %v8060 = vcombine.high %v7780, %v7872
        %v8062 = vunpack.c.l.s4 1983009808
        %v8063 = vunpack.c.0.s8 %v8062
        %v8064 = vlaneseq
        %v8065 = vshrl.u32 %v8064, 7
        %v8066 = vsub.s32 %v8063, %v8065
        %v8067 = vrot.slane %v8059, %v8066
        %v8069 = vunpack.c.l.s4 1983009808
        %v8070 = vunpack.c.0.s8 %v8069
        %v8071 = vlaneseq
        %v8072 = vshrl.u32 %v8071, 7
        %v8073 = vsub.s32 %v8070, %v8072
        %v8074 = vrot.slane %v8060, %v8073
        %v8075 = vcombine.low %v7826, %v7918
        %v8076 = vcombine.high %v7826, %v7918
        %v8078 = vunpack.c.l.s4 1983009808
        %v8079 = vunpack.c.0.s8 %v8078
        %v8080 = vlaneseq
        %v8081 = vshrl.u32 %v8080, 7
        %v8082 = vsub.s32 %v8079, %v8081
        %v8083 = vrot.slane %v8075, %v8082
        %v8085 = vunpack.c.l.s4 1983009808
        %v8086 = vunpack.c.0.s8 %v8085
        %v8087 = vlaneseq
        %v8088 = vshrl.u32 %v8087, 7
        %v8089 = vsub.s32 %v8086, %v8088
        %v8090 = vrot.slane %v8076, %v8089
        %v8091 = vcombine.low %v8067, %v8083
        %v8092 = vcombine.high %v8067, %v8083
        %v8094 = vunpack.c.l.s4 1934713408
        %v8095 = vunpack.c.0.s8 %v8094
        %v8096 = vlaneseq
        %v8097 = vshrl.u32 %v8096, 7
        %v8098 = vsub.s32 %v8095, %v8097
        %v8099 = vrot.slane %v8091, %v8098
        %v8101 = vunpack.c.l.s4 1934713408
        %v8102 = vunpack.c.0.s8 %v8101
        %v8103 = vlaneseq
        %v8104 = vshrl.u32 %v8103, 7
        %v8105 = vsub.s32 %v8102, %v8104
        %v8106 = vrot.slane %v8092, %v8105
        %v8107 = vcombine.low %v8074, %v8090
        %v8108 = vcombine.high %v8074, %v8090
        %v8110 = vunpack.c.l.s4 1934713408
        %v8111 = vunpack.c.0.s8 %v8110
        %v8112 = vlaneseq
        %v8113 = vshrl.u32 %v8112, 7
        %v8114 = vsub.s32 %v8111, %v8113
        %v8115 = vrot.slane %v8107, %v8114
        %v8117 = vunpack.c.l.s4 1934713408
        %v8118 = vunpack.c.0.s8 %v8117
        %v8119 = vlaneseq
        %v8120 = vshrl.u32 %v8119, 7
        %v8121 = vsub.s32 %v8118, %v8120
        %v8122 = vrot.slane %v8108, %v8121
        %v8123 = vcombine.high %v8099, 0.0
        %v8124 = vcombine.high %v8106, 0.0
        %v8125 = vcombine.high %v8115, 0.0
        %v8126 = vcombine.high %v8122, 0.0
        %v8127 = vcombine.low %v8051, %v8053
        %v8128 = vcombine.high %v8051, %v8053
        %v8130 = vunpack.c.l.s4 1983009808
        %v8131 = vunpack.c.0.s8 %v8130
        %v8132 = vlaneseq
        %v8133 = vshrl.u32 %v8132, 7
        %v8134 = vsub.s32 %v8131, %v8133
        %v8135 = vrot.slane %v8127, %v8134
        %v8137 = vunpack.c.l.s4 1983009808
        %v8138 = vunpack.c.0.s8 %v8137
        %v8139 = vlaneseq
        %v8140 = vshrl.u32 %v8139, 7
        %v8141 = vsub.s32 %v8138, %v8140
        %v8142 = vrot.slane %v8128, %v8141
        %v8143 = vcombine.low %v8052, %v8054
        %v8144 = vcombine.high %v8052, %v8054
        %v8146 = vunpack.c.l.s4 1983009808
        %v8147 = vunpack.c.0.s8 %v8146
        %v8148 = vlaneseq
        %v8149 = vshrl.u32 %v8148, 7
        %v8150 = vsub.s32 %v8147, %v8149
        %v8151 = vrot.slane %v8143, %v8150
        %v8153 = vunpack.c.l.s4 1983009808
        %v8154 = vunpack.c.0.s8 %v8153
        %v8155 = vlaneseq
        %v8156 = vshrl.u32 %v8155, 7
        %v8157 = vsub.s32 %v8154, %v8156
        %v8158 = vrot.slane %v8144, %v8157
        %v8159 = vcombine.low %v8055, %v8057
        %v8160 = vcombine.high %v8055, %v8057
        %v8162 = vunpack.c.l.s4 1983009808
        %v8163 = vunpack.c.0.s8 %v8162
        %v8164 = vlaneseq
        %v8165 = vshrl.u32 %v8164, 7
        %v8166 = vsub.s32 %v8163, %v8165
        %v8167 = vrot.slane %v8159, %v8166
        %v8169 = vunpack.c.l.s4 1983009808
        %v8170 = vunpack.c.0.s8 %v8169
        %v8171 = vlaneseq
        %v8172 = vshrl.u32 %v8171, 7
        %v8173 = vsub.s32 %v8170, %v8172
        %v8174 = vrot.slane %v8160, %v8173
        %v8175 = vcombine.low %v8056, %v8058
        %v8176 = vcombine.high %v8056, %v8058
        %v8178 = vunpack.c.l.s4 1983009808
        %v8179 = vunpack.c.0.s8 %v8178
        %v8180 = vlaneseq
        %v8181 = vshrl.u32 %v8180, 7
        %v8182 = vsub.s32 %v8179, %v8181
        %v8183 = vrot.slane %v8175, %v8182
        %v8185 = vunpack.c.l.s4 1983009808
        %v8186 = vunpack.c.0.s8 %v8185
        %v8187 = vlaneseq
        %v8188 = vshrl.u32 %v8187, 7
        %v8189 = vsub.s32 %v8186, %v8188
        %v8190 = vrot.slane %v8176, %v8189
        %v8191 = vcombine.low %v8135, %v8151
        %v8192 = vcombine.high %v8135, %v8151
        %v8194 = vunpack.c.l.s4 1934713408
        %v8195 = vunpack.c.0.s8 %v8194
        %v8196 = vlaneseq
        %v8197 = vshrl.u32 %v8196, 7
        %v8198 = vsub.s32 %v8195, %v8197
        %v8199 = vrot.slane %v8191, %v8198
        %v8201 = vunpack.c.l.s4 1934713408
        %v8202 = vunpack.c.0.s8 %v8201
        %v8203 = vlaneseq
        %v8204 = vshrl.u32 %v8203, 7
        %v8205 = vsub.s32 %v8202, %v8204
        %v8206 = vrot.slane %v8192, %v8205
        %v8207 = vcombine.low %v8142, %v8158
        %v8208 = vcombine.high %v8142, %v8158
        %v8210 = vunpack.c.l.s4 1934713408
        %v8211 = vunpack.c.0.s8 %v8210
        %v8212 = vlaneseq
        %v8213 = vshrl.u32 %v8212, 7
        %v8214 = vsub.s32 %v8211, %v8213
        %v8215 = vrot.slane %v8207, %v8214
        %v8217 = vunpack.c.l.s4 1934713408
        %v8218 = vunpack.c.0.s8 %v8217
        %v8219 = vlaneseq
        %v8220 = vshrl.u32 %v8219, 7
        %v8221 = vsub.s32 %v8218, %v8220
        %v8222 = vrot.slane %v8208, %v8221
        %v8223 = vcombine.low %v8167, %v8183
        %v8224 = vcombine.high %v8167, %v8183
        %v8226 = vunpack.c.l.s4 1934713408
        %v8227 = vunpack.c.0.s8 %v8226
        %v8228 = vlaneseq
        %v8229 = vshrl.u32 %v8228, 7
        %v8230 = vsub.s32 %v8227, %v8229
        %v8231 = vrot.slane %v8223, %v8230
        %v8233 = vunpack.c.l.s4 1934713408
        %v8234 = vunpack.c.0.s8 %v8233
        %v8235 = vlaneseq
        %v8236 = vshrl.u32 %v8235, 7
        %v8237 = vsub.s32 %v8234, %v8236
        %v8238 = vrot.slane %v8224, %v8237
        %v8239 = vcombine.low %v8174, %v8190
        %v8240 = vcombine.high %v8174, %v8190
        %v8242 = vunpack.c.l.s4 1934713408
        %v8243 = vunpack.c.0.s8 %v8242
        %v8244 = vlaneseq
        %v8245 = vshrl.u32 %v8244, 7
        %v8246 = vsub.s32 %v8243, %v8245
        %v8247 = vrot.slane %v8239, %v8246
        %v8249 = vunpack.c.l.s4 1934713408
        %v8250 = vunpack.c.0.s8 %v8249
        %v8251 = vlaneseq
        %v8252 = vshrl.u32 %v8251, 7
        %v8253 = vsub.s32 %v8250, %v8252
        %v8254 = vrot.slane %v8240, %v8253
        %v8255 = vcombine.low %v8199, %v8231
        %v8256 = vcombine.high %v8199, %v8231
        %v8257 = vcombine.low %v8206, %v8238
        %v8258 = vcombine.high %v8206, %v8238
        %v8259 = vcombine.low %v8215, %v8247
        %v8260 = vcombine.high %v8215, %v8247
        %v8261 = vcombine.low %v8222, %v8254
        %v8262 = vcombine.high %v8222, %v8254
        %v8263 = vcombine.low %v8099, %v8106
        %v8265 = vunpack.c.l.s4 1983009808
        %v8266 = vunpack.c.0.s8 %v8265
        %v8267 = vlaneseq
        %v8268 = vshrl.u32 %v8267, 7
        %v8269 = vsub.s32 %v8266, %v8268
        %v8270 = vrot.slane %v8263, %v8269
        %v8271 = vcombine.low %v8123, %v8124
        %v8273 = vunpack.c.l.s4 1983009808
        %v8274 = vunpack.c.0.s8 %v8273
        %v8275 = vlaneseq
        %v8276 = vshrl.u32 %v8275, 7
        %v8277 = vsub.s32 %v8274, %v8276
        %v8278 = vrot.slane %v8271, %v8277
        %v8279 = vcombine.low %v8115, %v8122
        %v8281 = vunpack.c.l.s4 1983009808
        %v8282 = vunpack.c.0.s8 %v8281
        %v8283 = vlaneseq
        %v8284 = vshrl.u32 %v8283, 7
        %v8285 = vsub.s32 %v8282, %v8284
        %v8286 = vrot.slane %v8279, %v8285
        %v8287 = vcombine.low %v8125, %v8126
        %v8289 = vunpack.c.l.s4 1983009808
        %v8290 = vunpack.c.0.s8 %v8289
        %v8291 = vlaneseq
        %v8292 = vshrl.u32 %v8291, 7
        %v8293 = vsub.s32 %v8290, %v8292
        %v8294 = vrot.slane %v8287, %v8293
        %v8295 = vcombine.low %v8270, %v8278
        %v8296 = vcombine.high %v8270, %v8278
        %v8298 = vunpack.c.l.s4 1934713408
        %v8299 = vunpack.c.0.s8 %v8298
        %v8300 = vlaneseq
        %v8301 = vshrl.u32 %v8300, 7
        %v8302 = vsub.s32 %v8299, %v8301
        %v8303 = vrot.slane %v8295, %v8302
        %v8305 = vunpack.c.l.s4 1934713408
        %v8306 = vunpack.c.0.s8 %v8305
        %v8307 = vlaneseq
        %v8308 = vshrl.u32 %v8307, 7
        %v8309 = vsub.s32 %v8306, %v8308
        %v8310 = vrot.slane %v8296, %v8309
        %v8311 = vcombine.low %v8286, %v8294
        %v8312 = vcombine.high %v8286, %v8294
        %v8314 = vunpack.c.l.s4 1934713408
        %v8315 = vunpack.c.0.s8 %v8314
        %v8316 = vlaneseq
        %v8317 = vshrl.u32 %v8316, 7
        %v8318 = vsub.s32 %v8315, %v8317
        %v8319 = vrot.slane %v8311, %v8318
        %v8321 = vunpack.c.l.s4 1934713408
        %v8322 = vunpack.c.0.s8 %v8321
        %v8323 = vlaneseq
        %v8324 = vshrl.u32 %v8323, 7
        %v8325 = vsub.s32 %v8322, %v8324
        %v8326 = vrot.slane %v8312, %v8325
        %v8327 = vcombine.low %v8303, %v8319
        %v8328 = vcombine.high %v8303, %v8319
        %v8329 = vcombine.low %v8310, %v8326
        %v8330 = vcombine.high %v8310, %v8326
        %8332 = vrot.lane.b32.xlu0 %v8256, 64
        %v8333 = vpop.permute.xlu0 %8332
        %8336 = vrot.lane.b32.xlu0 %v8258, 64
        %v8337 = vpop.permute.xlu0 %8336
        %8340 = vrot.lane.b32.xlu0 %v8260, 64
        %v8341 = vpop.permute.xlu0 %8340
        %8344 = vrot.lane.b32.xlu0 %v8262, 64
        %v8345 = vpop.permute.xlu0 %8344
        %8348 = vrot.lane.b32.xlu0 %v8328, 64
        %v8349 = vpop.permute.xlu0 %8348
        %8352 = vrot.lane.b32.xlu0 %v8330, 64
        %v8353 = vpop.permute.xlu0 %8352
        %v8355 = vsel %vm6648, %v8255, %v8333
        %v8356 = vsel %vm6648, %v8257, %v8337
        %v8357 = vsel %vm6648, %v8259, %v8341
        %v8358 = vsel %vm6648, %v8261, %v8345
        %v8359 = vsel %vm6648, %v8327, %v8349
        %v8360 = vsel %vm6648, %v8329, %v8353
        %v8361 = vpack.c.bf16 %v8355, %v8355
        %v8362 = vpack.c.bf16 %v8356, %v8356
        %v8363 = vpack.c.bf16 %v8357, %v8357
        %v8364 = vpack.c.bf16 %v8358, %v8358
        %v8365 = vpack.c.bf16 %v8359, %v8359
        %v8366 = vpack.c.bf16 %v8360, %v8360
        %v8373 = vunpack.c.l.b16 %v8361
        %v8374 = vunpack.c.l.b16 %v8362
        %v8375 = vunpack.c.l.b16 %v8363
        %v8376 = vunpack.c.l.b16 %v8364
        %v8377 = vunpack.c.l.b16 %v8365
        %v8378 = vunpack.c.l.b16 %v8366
        %v8379 = vpack.c.b16 %v8374, %v8373
        %v8380 = vpack.c.b16 %v8376, %v8375
        %v8381 = vpack.c.b16 %v8378, %v8377
        %8385 = vst [vmem:[%s485] sm:$0xff] %v8379
        %8386 = vst [vmem:[%s485 + $0x8] sm:$0xff] %v8380
        %8387 = vst [vmem:[%s485 + $0x10] sm:$0xff] %v8381
        %s8388 = sand.u32 %s235, 1
        %s8389 = scalar_lea.sflag [#allocation6], %s8388
        %s8390 = sand.u32 %s235, 1
        %s8391 = smul.addr %s8390, 24
        %s8392 = scalar_lea.vmem [#allocation18], %s8391
        %p8393 = scmp.lt.s32.totalorder %s37, 1
        %s8394 = scalar_select %p8393, %s37, 1
        %p8395 = scmp.lt.s32.totalorder %s38, 0
        %s8396 = scalar_select %p8395, %s38, 0
        %s8397 = smul.addr %s8394, 12
        %s8398 = sadd.s32 %s8396, %s8397
        %s8399 = smul.addr %s8398, 8
        %s8400 = scalar_lea.vmem %s9, %s8399
        // Predicated region
        $region89: #{tpu_custom_call.1} parent=51 // pred_check
          %p8401 = pneg %p245
        $region90: #{tpu_custom_call.1} parent=51 // pred_check_branch
          %8403 = sbr.rel (%p8401) target = $region92
        $region91: #{tpu_custom_call.1} parent=51 // pred_region
          %s8405 = ssub.s32 384, 384
          %8406 = vsyncadd %s8389, %s8405
          %s8407 = smul.addr %s38, 6
          %s8408 = smul.addr %s37, 6
          %s8409 = sadd.s32 %s8407, %s8408
          %s8410 = smul.addr %s8409, 64
          %s8411 = scalar_lea.hbm %s8, %s8410
          %s8413 = sshll.u32 %s8392, 4
          %s8414 = int_to_ptr.vmem [resolvable:$true] %s8413
          %8416 = dma.vmem_to_hbm [thread:$0]  %s8414, 384, %s8411, %s8389
        $region92: #{tpu_custom_call.1} parent=51 // pred_fallthru
          _
        // Predicated region
        $region93: #{tpu_custom_call.1} parent=51 // pred_check
          %p8417 = pneg %p273
        $region94: #{tpu_custom_call.1} parent=51 // pred_check_branch
          %8419 = sbr.rel (%p8417) target = $region96
        $region95: #{tpu_custom_call.1} parent=51 // pred_region
          _
        $region96: #{tpu_custom_call.1} parent=51 // pred_fallthru
          _
      $region52: #{tpu_custom_call.1} parent=5 // pred_fallthru
        _
      %p8420 = scmp.le.s32.totalorder 2, %s28
      // Predicated region
      $region97: #{tpu_custom_call.1} parent=5 // pred_check
        %p8421 = pneg %p8420
      $region98: #{tpu_custom_call.1} parent=5 // pred_check_branch
        %8423 = sbr.rel (%p8421) target = $region100
      $region99: #{tpu_custom_call.1} parent=5 // pred_region
        %s8424 = ssub.s32 %s28, 2
        // Predicated region
        $region101: #{tpu_custom_call.1} parent=99 // pred_check
          %p8425 = pneg %p251
        $region102: #{tpu_custom_call.1} parent=99 // pred_check_branch
          %8427 = sbr.rel (%p8425) target = $region104
        $region103: #{tpu_custom_call.1} parent=99 // pred_region
          %s8428 = sand.u32 %s236, 1
          %s8429 = scalar_lea.sflag [#allocation6], %s8428
          %s8430 = sand.u32 %s236, 1
          %s8431 = smul.addr %s8430, 24
          %s8432 = scalar_lea.vmem [#allocation18], %s8431
          %8433 = dma.done %s8429, 384
        $region104: #{tpu_custom_call.1} parent=99 // pred_fallthru
          _
        // Predicated region
        $region105: #{tpu_custom_call.1} parent=99 // pred_check
          %p8434 = pneg %p279
        $region106: #{tpu_custom_call.1} parent=99 // pred_check_branch
          %8436 = sbr.rel (%p8434) target = $region108
        $region107: #{tpu_custom_call.1} parent=99 // pred_region
          %p8437 = scmp.lt.s32.totalorder %s39, 1
          %s8438 = scalar_select %p8437, %s39, 1
          %p8439 = scmp.lt.s32.totalorder %s40, 0
          %s8440 = scalar_select %p8439, %s40, 0
          %s8441 = smul.addr %s8438, 12
          %s8442 = sadd.s32 %s8440, %s8441
          %s8443 = smul.addr %s8442, 8
          %s8444 = scalar_lea.vmem %s9, %s8443
        $region108: #{tpu_custom_call.1} parent=99 // pred_fallthru
          _
      $region100: #{tpu_custom_call.1} parent=5 // pred_fallthru
        _
    $region6: #{tpu_custom_call.1} parent=1 // loop_footer
      %s32 = sadd.s32 1, %s28
    $region7: #{tpu_custom_call.1} parent=1 // loop_footer_branch
      %27 = sbr.rel target = $region3
    $region8: #{tpu_custom_call.1} parent=1 // loop_exit
      _
    %8445 = vsyncpa [#allocation5], 1
    %s8446 = scalar_lea.sflag [#allocation5], 1
    %8447 = vsyncpa %s8446, 1
    %8448 = vsyncpa [#allocation8], 1
    %s8449 = scalar_lea.sflag [#allocation8], 1
    %8450 = vsyncpa %s8449, 1
    %8451 = vsyncpa [#allocation11], 1
    %8452 = vsyncpa [#allocation14], 1
    %8453 = vsyncpa [#allocation17], 1
    %8454 = vsyncpa [#allocation6], 1
    %s8455 = scalar_lea.sflag [#allocation6], 1
    %8456 = vsyncpa %s8455, 1

</llo_original>
